<compile_context>
chip_gen: v7x
topology: tpu7x:2x2x1
jax: 0.10.0
libtpu: 0.0.40
codegen_flags: <defaults>
</compile_context>

<pallas_src>
import jax
import jax.numpy as jnp
from jax.experimental import pallas as pl
from jax.experimental.pallas import tpu as pltpu

INPUT_DIM = 44
HIDDEN_DIM = 256
NUM_LAYERS = 2
OUTPUT_DIM = 30 * 10  # orthotic_height * orthotic_width


def _round_up(n, m):
    return ((n + m - 1) // m) * m


# ----------------------------- Pallas kernel ------------------------------- #

def _fused_lstm_kernel(x_ref, wih0_ref, whh0_ref, b0_ref,
                       wih1_ref, whh1_ref, b1_ref,
                       regw_ref, regb_ref, h0_ref, c0_ref,
                       out_ref, hn_ref, cn_ref,
                       xp0_sc):
    """Fused 2-layer LSTM (wavefront-interleaved) + Linear head, no grid.

    x_ref    : (S*Bp, Dp)   bf16, time-major, batch-padded, feature-padded
    wih*_ref : (K, 4H)      bf16 transposed input weights
    whh*_ref : (H, 4H)      bf16 transposed recurrent weights
    b*_ref   : (1, 4H)      f32  combined bias (b_ih + b_hh)
    regw_ref : (H, Op)      bf16 transposed regressor weight (output padded)
    regb_ref : (1, Op)      f32
    h0/c0    : (L, Bp, H)   f32 initial state
    out_ref  : (Bp, Op)     f32
    hn/cn    : (L, Bp, H)   f32 final state
    xp0_sc   : (S*Bp, 4H)   f32 VMEM scratch, hoisted layer-0 input projection
    """
    SB, _ = x_ref.shape
    H = whh0_ref.shape[0]
    Bp = h0_ref.shape[1]
    S = SB // Bp

    def _sigmoid(x):
        # sigmoid(x) == 0.5*tanh(0.5*x) + 0.5 : 1 EUP push + 2 cheap VPU ops,
        # instead of exp + reciprocal (2 EUP pushes) on the serial chain.
        return 0.5 * jnp.tanh(0.5 * x) + 0.5

    def lstm_cell(xp_t, h, c, whh):
        # xp_t already holds x_t @ W_ih + bias (f32); only h @ W_hh is serial.
        # NOTE: the f32->bf16 cast of h injects bf16 rounding into the state
        # update each step; fine at S=8 within 2e-2 tolerance.
        g = xp_t + jnp.dot(h.astype(whh.dtype), whh,
                           preferred_element_type=jnp.float32)
        i_g = _sigmoid(g[:, 0 * H:1 * H])
        f_g = _sigmoid(g[:, 1 * H:2 * H])
        g_g = jnp.tanh(g[:, 2 * H:3 * H])
        o_g = _sigmoid(g[:, 3 * H:4 * H])
        c_new = f_g * c + i_g * g_g
        h_new = o_g * jnp.tanh(c_new)
        return h_new, c_new

    # ---- layer-0 input projection hoisted over the whole sequence ---------
    xp0_sc[...] = (jnp.dot(x_ref[...], wih0_ref[...],
                           preferred_element_type=jnp.float32)
                   + b0_ref[...])

    whh0 = whh0_ref[...]
    whh1 = whh1_ref[...]
    wih1 = wih1_ref[...]
    b1 = b1_ref[...]

    h0 = h0_ref[0].astype(jnp.float32)
    c0 = c0_ref[0].astype(jnp.float32)
    h1 = h0_ref[1].astype(jnp.float32)
    c1 = c0_ref[1].astype(jnp.float32)

    # ---- wavefront recurrence (fully unrolled, S static) ------------------
    # At unrolled iteration t: layer-1 consumes y0_{t-1} (its input projection
    # and recurrent matmul are independent of layer-0 step t), while layer-0
    # advances to step t.  Exposed dependency chain ~ S+1 steps instead of 2S.
    # TODO(synk): inter-layer dropout (p=0.5) is train-only; identity here.
    y_prev = None
    for t in range(S):
        if t > 0:
            xp1_t = (jnp.dot(y_prev, wih1, preferred_element_type=jnp.float32)
                     + b1)
            h1, c1 = lstm_cell(xp1_t, h1, c1, whh1)
        h0, c0 = lstm_cell(xp0_sc[pl.ds(t * Bp, Bp), :], h0, c0, whh0)
        y_prev = h0.astype(wih1.dtype)
    # Drain: final layer-1 step on y0_{S-1}.
    xp1_t = jnp.dot(y_prev, wih1, preferred_element_type=jnp.float32) + b1
    h1, c1 = lstm_cell(xp1_t, h1, c1, whh1)

    hn_ref[0] = h0.astype(hn_ref.dtype)
    cn_ref[0] = c0.astype(cn_ref.dtype)
    hn_ref[1] = h1.astype(hn_ref.dtype)
    cn_ref[1] = c1.astype(cn_ref.dtype)

    # ---- regressor head on the last timestep of the top layer -------------
    out_ref[...] = (jnp.dot(h1.astype(regw_ref.dtype), regw_ref[...],
                            preferred_element_type=jnp.float32)
                    + regb_ref[...]).astype(out_ref.dtype)


# ------------------------------- wrapper ----------------------------------- #

@jax.jit
def _forward_impl(x, wih0, whh0, b0, wih1, whh1, b1, regw, regb, h0, c0):
    """x: (B, S, D) f32; canonical f32 params; h0/c0: (L, B, H)."""
    B, S, D = x.shape
    H = HIDDEN_DIM
    L = NUM_LAYERS
    G = 4 * H
    Bp = _round_up(B, 8)             # full f32 sublanes
    Dp = _round_up(D, 128)           # lane-dense K for layer-0 projection
    Op = _round_up(OUTPUT_DIM, 128)  # lane-dense regressor output (unmasked vst)

    # sequence-major, batch/feature padded, bf16 activations
    x_sbd = jnp.transpose(x, (1, 0, 2))                                 # (S,B,D)
    x_p = jnp.pad(x_sbd, ((0, 0), (0, Bp - B), (0, Dp - D)))
    x_flat = x_p.reshape(S * Bp, Dp).astype(jnp.bfloat16)               # (S*Bp,Dp)

    wih0_p = jnp.pad(wih0, ((0, Dp - D), (0, 0))).astype(jnp.bfloat16)  # (Dp,4H)
    whh0_b = whh0.astype(jnp.bfloat16)                                  # (H,4H)
    wih1_b = wih1.astype(jnp.bfloat16)                                  # (H,4H)
    whh1_b = whh1.astype(jnp.bfloat16)                                  # (H,4H)
    regw_p = jnp.pad(regw, ((0, 0), (0, Op - OUTPUT_DIM))).astype(jnp.bfloat16)
    regb_p = jnp.pad(regb, ((0, 0), (0, Op - OUTPUT_DIM)))              # f32

    h0_p = jnp.pad(h0.astype(jnp.float32), ((0, 0), (0, Bp - B), (0, 0)))
    c0_p = jnp.pad(c0.astype(jnp.float32), ((0, 0), (0, Bp - B), (0, 0)))

    # No grid -> single invocation; keep every operand single-buffered and
    # fully VMEM-resident (no pipeline double-buffering for a pipeline that
    # never advances).  Total VMEM footprint ~2.3 MiB.
    vmem_spec = pl.BlockSpec(memory_space=pltpu.MemorySpace.VMEM)

    out_p, hn_p, cn_p = pl.pallas_call(
        _fused_lstm_kernel,
        out_shape=(
            jax.ShapeDtypeStruct((Bp, Op), jnp.float32),
            jax.ShapeDtypeStruct((L, Bp, H), jnp.float32),
            jax.ShapeDtypeStruct((L, Bp, H), jnp.float32),
        ),
        in_specs=[vmem_spec] * 11,
        out_specs=(vmem_spec, vmem_spec, vmem_spec),
        scratch_shapes=[
            pltpu.VMEM((S * Bp, G), jnp.float32),   # hoisted layer-0 projection
        ],
    )(x_flat, wih0_p, whh0_b, b0, wih1_b, whh1_b, b1, regw_p, regb_p, h0_p, c0_p)

    out = out_p[:B, :OUTPUT_DIM].astype(x.dtype)
    h_n = hn_p[:, :B].astype(x.dtype)
    c_n = cn_p[:, :B].astype(x.dtype)
    return out, h_n, c_n


def lstm_regressor_forward(x, params, hc=None):
    """Forward pass of LSTMRegressor.

    x      : (B, S, input_dim) float32 (batch_first=True, like PyTorch)
    params : dict of canonical f32 weights
    hc     : optional ((num_layers, B, H), (num_layers, B, H))
    returns: (out (B, output_dim), (h_n, c_n) each (num_layers, B, H))
    """
    B = x.shape[0]
    if hc is None:
        h0 = jnp.zeros((NUM_LAYERS, B, HIDDEN_DIM), jnp.float32)
        c0 = jnp.zeros((NUM_LAYERS, B, HIDDEN_DIM), jnp.float32)
    else:
        h0, c0 = hc
    out, h_n, c_n = _forward_impl(
        x,
        params["wih_t_0"], params["whh_t_0"], params["bias_0"],
        params["wih_t_1"], params["whh_t_1"], params["bias_1"],
        params["reg_w_t"], params["reg_b"], h0, c0)
    return out, (h_n, c_n)


# --------------------------- parameter init -------------------------------- #

def _xavier_uniform(key, shape):
    fan_out, fan_in = shape
    bound = (6.0 / (fan_in + fan_out)) ** 0.5
    return jax.random.uniform(key, shape, jnp.float32, -bound, bound)


def init_params(key):
    params = {}
    keys = jax.random.split(key, 2 * NUM_LAYERS + 2)
    k_idx = 0
    for l in range(NUM_LAYERS):
        in_dim = INPUT_DIM if l == 0 else HIDDEN_DIM
        w_ih = _xavier_uniform(keys[k_idx], (4 * HIDDEN_DIM, in_dim)); k_idx += 1
        w_hh = _xavier_uniform(keys[k_idx], (4 * HIDDEN_DIM, HIDDEN_DIM)); k_idx += 1
        # biases constant 0.0 (init_weights); combine b_ih + b_hh
        params[f"wih_t_{l}"] = w_ih.T                       # (in_dim, 4H)
        params[f"whh_t_{l}"] = w_hh.T                       # (H, 4H)
        params[f"bias_{l}"] = jnp.zeros((1, 4 * HIDDEN_DIM), jnp.float32)
    reg_w = _xavier_uniform(keys[k_idx], (OUTPUT_DIM, HIDDEN_DIM)); k_idx += 1
    bound = 1.0 / (HIDDEN_DIM ** 0.5)  # PyTorch Linear default bias init
    reg_b = jax.random.uniform(keys[k_idx], (1, OUTPUT_DIM), jnp.float32,
                               -bound, bound)
    params["reg_w_t"] = reg_w.T                             # (H, output_dim)
    params["reg_b"] = reg_b
    return params


# ---------------------------- pure-JAX reference ---------------------------- #

def _reference_forward(x, params):
    B, S, D = x.shape
    layer_in = x
    h_list, c_list = [], []
    for l in range(NUM_LAYERS):
        wih_t = params[f"wih_t_{l}"]
        whh_t = params[f"whh_t_{l}"]
        bias = params[f"bias_{l}"][0]
        h = jnp.zeros((B, HIDDEN_DIM), jnp.float32)
        c = jnp.zeros((B, HIDDEN_DIM), jnp.float32)

        def step(carry, x_t):
            h, c = carry
            g = x_t @ wih_t + h @ whh_t + bias
            i = jax.nn.sigmoid(g[:, :HIDDEN_DIM])
            f = jax.nn.sigmoid(g[:, HIDDEN_DIM:2 * HIDDEN_DIM])
            gg = jnp.tanh(g[:, 2 * HIDDEN_DIM:3 * HIDDEN_DIM])
            o = jax.nn.sigmoid(g[:, 3 * HIDDEN_DIM:])
            c_new = f * c + i * gg
            h_new = o * jnp.tanh(c_new)
            return (h_new, c_new), h_new

        (h, c), ys = jax.lax.scan(step, (h, c), jnp.transpose(layer_in, (1, 0, 2)))
        layer_in = jnp.transpose(ys, (1, 0, 2))
        h_list.append(h)
        c_list.append(c)
    out = layer_in[:, -1] @ params["reg_w_t"] + params["reg_b"][0]
    return out, (jnp.stack(h_list), jnp.stack(c_list))


# --------------------------------- main ------------------------------------ #

if __name__ == "__main__":
    key = jax.random.PRNGKey(0)
    k_param, k_x = jax.random.split(key)

    params = init_params(k_param)

    batch, seq = 2, 8
    x = jax.random.normal(k_x, (batch, seq, INPUT_DIM), jnp.float32)

    out, (h_n, c_n) = lstm_regressor_forward(x, params, hc=None)
    out = jax.block_until_ready(out)
    h_n = jax.block_until_ready(h_n)
    c_n = jax.block_until_ready(c_n)

    assert out.shape == (batch, OUTPUT_DIM)
    assert h_n.shape == (NUM_LAYERS, batch, HIDDEN_DIM)
    assert c_n.shape == (NUM_LAYERS, batch, HIDDEN_DIM)

    ref_out, (ref_h, ref_c) = _reference_forward(x, params)
    assert jnp.allclose(out, ref_out, atol=2e-2, rtol=2e-2)
    assert jnp.allclose(h_n, ref_h, atol=2e-2, rtol=2e-2)
    assert jnp.allclose(c_n, ref_c, atol=2e-2, rtol=2e-2)

    print("KERNEL_OK")
</pallas_src>

<mosaic_0001>
module attributes {stable_mosaic.version = 11 : i64} {
  func.func @_fused_lstm_kernel(%arg0: memref<64x128xbf16, #tpu.memory_space<vmem>>, %arg1: memref<128x1024xbf16, #tpu.memory_space<vmem>>, %arg2: memref<256x1024xbf16, #tpu.memory_space<vmem>>, %arg3: memref<1x1024xf32, #tpu.memory_space<vmem>>, %arg4: memref<256x1024xbf16, #tpu.memory_space<vmem>>, %arg5: memref<256x1024xbf16, #tpu.memory_space<vmem>>, %arg6: memref<1x1024xf32, #tpu.memory_space<vmem>>, %arg7: memref<256x384xbf16, #tpu.memory_space<vmem>>, %arg8: memref<1x384xf32, #tpu.memory_space<vmem>>, %arg9: memref<2x8x256xf32, #tpu.memory_space<vmem>>, %arg10: memref<2x8x256xf32, #tpu.memory_space<vmem>>, %arg11: memref<8x384xf32, #tpu.memory_space<vmem>>, %arg12: memref<2x8x256xf32, #tpu.memory_space<vmem>>, %arg13: memref<2x8x256xf32, #tpu.memory_space<vmem>>, %arg14: memref<64x1024xf32, #tpu.memory_space<vmem>>) attributes {dimension_semantics = [], scalar_prefetch = 0 : i64, scratch_operands = 1 : i64, tpu.core_type = #tpu.core_type<tc>} {
    %c0 = arith.constant 0 : index
    %c0_0 = arith.constant 0 : index
    %0 = vector.load %arg0[%c0, %c0_0] : memref<64x128xbf16, #tpu.memory_space<vmem>>, vector<64x128xbf16>
    %c0_1 = arith.constant 0 : index
    %c0_2 = arith.constant 0 : index
    %1 = vector.load %arg1[%c0_1, %c0_2] : memref<128x1024xbf16, #tpu.memory_space<vmem>>, vector<128x1024xbf16>
    %cst = arith.constant dense<0.000000e+00> : vector<64x1024xf32>
    %2 = tpu.matmul %0, %1, %cst {dimension_numbers = #tpu.dot_dimension_numbers<[1], [0], [0], [1], [0, 0, 1, 1], [], []>} : vector<64x128xbf16>, vector<128x1024xbf16>, vector<64x1024xf32> -> vector<64x1024xf32>
    %c0_3 = arith.constant 0 : index
    %c0_4 = arith.constant 0 : index
    %3 = vector.load %arg3[%c0_3, %c0_4] : memref<1x1024xf32, #tpu.memory_space<vmem>>, vector<1x1024xf32>
    %4 = vector.broadcast %3 : vector<1x1024xf32> to vector<64x1024xf32>
    %5 = arith.addf %2, %4 : vector<64x1024xf32>
    %c0_5 = arith.constant 0 : index
    %c0_6 = arith.constant 0 : index
    %6 = vector.load %arg14[%c0_5, %c0_6] : memref<64x1024xf32, #tpu.memory_space<vmem>>, vector<64x1024xf32>
    tpu.vector_store %arg14[%c0_5, %c0_6], %5 {strides = array<i32>} : memref<64x1024xf32, #tpu.memory_space<vmem>>, vector<64x1024xf32>,
    %c0_7 = arith.constant 0 : index
    %c0_8 = arith.constant 0 : index
    %7 = vector.load %arg2[%c0_7, %c0_8] : memref<256x1024xbf16, #tpu.memory_space<vmem>>, vector<256x1024xbf16>
    %c0_9 = arith.constant 0 : index
    %c0_10 = arith.constant 0 : index
    %8 = vector.load %arg5[%c0_9, %c0_10] : memref<256x1024xbf16, #tpu.memory_space<vmem>>, vector<256x1024xbf16>
    %c0_11 = arith.constant 0 : index
    %c0_12 = arith.constant 0 : index
    %9 = vector.load %arg4[%c0_11, %c0_12] : memref<256x1024xbf16, #tpu.memory_space<vmem>>, vector<256x1024xbf16>
    %c0_13 = arith.constant 0 : index
    %c0_14 = arith.constant 0 : index
    %10 = vector.load %arg6[%c0_13, %c0_14] : memref<1x1024xf32, #tpu.memory_space<vmem>>, vector<1x1024xf32>
    %c0_15 = arith.constant 0 : index
    %c0_16 = arith.constant 0 : index
    %c0_17 = arith.constant 0 : index
    %11 = vector.load %arg9[%c0_15, %c0_16, %c0_17] : memref<2x8x256xf32, #tpu.memory_space<vmem>>, vector<1x8x256xf32>
    %12 = vector.shape_cast %11 : vector<1x8x256xf32> to vector<8x256xf32>
    %c0_18 = arith.constant 0 : index
    %c0_19 = arith.constant 0 : index
    %c0_20 = arith.constant 0 : index
    %13 = vector.load %arg10[%c0_18, %c0_19, %c0_20] : memref<2x8x256xf32, #tpu.memory_space<vmem>>, vector<1x8x256xf32>
    %14 = vector.shape_cast %13 : vector<1x8x256xf32> to vector<8x256xf32>
    %c1 = arith.constant 1 : index
    %c0_21 = arith.constant 0 : index
    %c0_22 = arith.constant 0 : index
    %15 = vector.load %arg9[%c1, %c0_21, %c0_22] : memref<2x8x256xf32, #tpu.memory_space<vmem>>, vector<1x8x256xf32>
    %16 = vector.shape_cast %15 : vector<1x8x256xf32> to vector<8x256xf32>
    %c1_23 = arith.constant 1 : index
    %c0_24 = arith.constant 0 : index
    %c0_25 = arith.constant 0 : index
    %17 = vector.load %arg10[%c1_23, %c0_24, %c0_25] : memref<2x8x256xf32, #tpu.memory_space<vmem>>, vector<1x8x256xf32>
    %18 = vector.shape_cast %17 : vector<1x8x256xf32> to vector<8x256xf32>
    %c0_26 = arith.constant 0 : index
    %c0_27 = arith.constant 0 : index
    %19 = vector.load %arg14[%c0_26, %c0_27] : memref<64x1024xf32, #tpu.memory_space<vmem>>, vector<8x1024xf32>
    %20 = arith.truncf %12 : vector<8x256xf32> to vector<8x256xbf16>
    %cst_28 = arith.constant dense<0.000000e+00> : vector<8x1024xf32>
    %21 = tpu.matmul %20, %7, %cst_28 {dimension_numbers = #tpu.dot_dimension_numbers<[1], [0], [0], [1], [0, 0, 1, 1], [], []>} : vector<8x256xbf16>, vector<256x1024xbf16>, vector<8x1024xf32> -> vector<8x1024xf32>
    %22 = arith.addf %19, %21 : vector<8x1024xf32>
    %23 = vector.extract_strided_slice %22 {offsets = [0, 0], sizes = [8, 256], strides = [1, 1]} : vector<8x1024xf32> to vector<8x256xf32>
    %cst_29 = arith.constant 5.000000e-01 : f32
    %24 = vector.broadcast %cst_29 : f32 to vector<8x256xf32>
    %25 = arith.mulf %24, %23 : vector<8x256xf32>
    %26 = math.tanh %25 : vector<8x256xf32>
    %cst_30 = arith.constant 5.000000e-01 : f32
    %27 = vector.broadcast %cst_30 : f32 to vector<8x256xf32>
    %28 = arith.mulf %27, %26 : vector<8x256xf32>
    %cst_31 = arith.constant 5.000000e-01 : f32
    %29 = vector.broadcast %cst_31 : f32 to vector<8x256xf32>
    %30 = arith.addf %28, %29 : vector<8x256xf32>
    %31 = vector.extract_strided_slice %22 {offsets = [0, 256], sizes = [8, 256], strides = [1, 1]} : vector<8x1024xf32> to vector<8x256xf32>
    %cst_32 = arith.constant 5.000000e-01 : f32
    %32 = vector.broadcast %cst_32 : f32 to vector<8x256xf32>
    %33 = arith.mulf %32, %31 : vector<8x256xf32>
    %34 = math.tanh %33 : vector<8x256xf32>
    %cst_33 = arith.constant 5.000000e-01 : f32
    %35 = vector.broadcast %cst_33 : f32 to vector<8x256xf32>
    %36 = arith.mulf %35, %34 : vector<8x256xf32>
    %cst_34 = arith.constant 5.000000e-01 : f32
    %37 = vector.broadcast %cst_34 : f32 to vector<8x256xf32>
    %38 = arith.addf %36, %37 : vector<8x256xf32>
    %39 = vector.extract_strided_slice %22 {offsets = [0, 512], sizes = [8, 256], strides = [1, 1]} : vector<8x1024xf32> to vector<8x256xf32>
    %40 = math.tanh %39 : vector<8x256xf32>
    %41 = vector.extract_strided_slice %22 {offsets = [0, 768], sizes = [8, 256], strides = [1, 1]} : vector<8x1024xf32> to vector<8x256xf32>
    %cst_35 = arith.constant 5.000000e-01 : f32
    %42 = vector.broadcast %cst_35 : f32 to vector<8x256xf32>
    %43 = arith.mulf %42, %41 : vector<8x256xf32>
    %44 = math.tanh %43 : vector<8x256xf32>
    %cst_36 = arith.constant 5.000000e-01 : f32
    %45 = vector.broadcast %cst_36 : f32 to vector<8x256xf32>
    %46 = arith.mulf %45, %44 : vector<8x256xf32>
    %cst_37 = arith.constant 5.000000e-01 : f32
    %47 = vector.broadcast %cst_37 : f32 to vector<8x256xf32>
    %48 = arith.addf %46, %47 : vector<8x256xf32>
    %49 = arith.mulf %38, %14 : vector<8x256xf32>
    %50 = arith.mulf %30, %40 : vector<8x256xf32>
    %51 = arith.addf %49, %50 : vector<8x256xf32>
    %52 = math.tanh %51 : vector<8x256xf32>
    %53 = arith.mulf %48, %52 : vector<8x256xf32>
    %54 = arith.truncf %53 : vector<8x256xf32> to vector<8x256xbf16>
    %cst_38 = arith.constant dense<0.000000e+00> : vector<8x1024xf32>
    %55 = tpu.matmul %54, %9, %cst_38 {dimension_numbers = #tpu.dot_dimension_numbers<[1], [0], [0], [1], [0, 0, 1, 1], [], []>} : vector<8x256xbf16>, vector<256x1024xbf16>, vector<8x1024xf32> -> vector<8x1024xf32>
    %56 = vector.broadcast %10 : vector<1x1024xf32> to vector<8x1024xf32>
    %57 = arith.addf %55, %56 : vector<8x1024xf32>
    %58 = arith.truncf %16 : vector<8x256xf32> to vector<8x256xbf16>
    %cst_39 = arith.constant dense<0.000000e+00> : vector<8x1024xf32>
    %59 = tpu.matmul %58, %8, %cst_39 {dimension_numbers = #tpu.dot_dimension_numbers<[1], [0], [0], [1], [0, 0, 1, 1], [], []>} : vector<8x256xbf16>, vector<256x1024xbf16>, vector<8x1024xf32> -> vector<8x1024xf32>
    %60 = arith.addf %57, %59 : vector<8x1024xf32>
    %61 = vector.extract_strided_slice %60 {offsets = [0, 0], sizes = [8, 256], strides = [1, 1]} : vector<8x1024xf32> to vector<8x256xf32>
    %cst_40 = arith.constant 5.000000e-01 : f32
    %62 = vector.broadcast %cst_40 : f32 to vector<8x256xf32>
    %63 = arith.mulf %62, %61 : vector<8x256xf32>
    %64 = math.tanh %63 : vector<8x256xf32>
    %cst_41 = arith.constant 5.000000e-01 : f32
    %65 = vector.broadcast %cst_41 : f32 to vector<8x256xf32>
    %66 = arith.mulf %65, %64 : vector<8x256xf32>
    %cst_42 = arith.constant 5.000000e-01 : f32
    %67 = vector.broadcast %cst_42 : f32 to vector<8x256xf32>
    %68 = arith.addf %66, %67 : vector<8x256xf32>
    %69 = vector.extract_strided_slice %60 {offsets = [0, 256], sizes = [8, 256], strides = [1, 1]} : vector<8x1024xf32> to vector<8x256xf32>
    %cst_43 = arith.constant 5.000000e-01 : f32
    %70 = vector.broadcast %cst_43 : f32 to vector<8x256xf32>
    %71 = arith.mulf %70, %69 : vector<8x256xf32>
    %72 = math.tanh %71 : vector<8x256xf32>
    %cst_44 = arith.constant 5.000000e-01 : f32
    %73 = vector.broadcast %cst_44 : f32 to vector<8x256xf32>
    %74 = arith.mulf %73, %72 : vector<8x256xf32>
    %cst_45 = arith.constant 5.000000e-01 : f32
    %75 = vector.broadcast %cst_45 : f32 to vector<8x256xf32>
    %76 = arith.addf %74, %75 : vector<8x256xf32>
    %77 = vector.extract_strided_slice %60 {offsets = [0, 512], sizes = [8, 256], strides = [1, 1]} : vector<8x1024xf32> to vector<8x256xf32>
    %78 = math.tanh %77 : vector<8x256xf32>
    %79 = vector.extract_strided_slice %60 {offsets = [0, 768], sizes = [8, 256], strides = [1, 1]} : vector<8x1024xf32> to vector<8x256xf32>
    %cst_46 = arith.constant 5.000000e-01 : f32
    %80 = vector.broadcast %cst_46 : f32 to vector<8x256xf32>
    %81 = arith.mulf %80, %79 : vector<8x256xf32>
    %82 = math.tanh %81 : vector<8x256xf32>
    %cst_47 = arith.constant 5.000000e-01 : f32
    %83 = vector.broadcast %cst_47 : f32 to vector<8x256xf32>
    %84 = arith.mulf %83, %82 : vector<8x256xf32>
    %cst_48 = arith.constant 5.000000e-01 : f32
    %85 = vector.broadcast %cst_48 : f32 to vector<8x256xf32>
    %86 = arith.addf %84, %85 : vector<8x256xf32>
    %87 = arith.mulf %76, %18 : vector<8x256xf32>
    %88 = arith.mulf %68, %78 : vector<8x256xf32>
    %89 = arith.addf %87, %88 : vector<8x256xf32>
    %90 = math.tanh %89 : vector<8x256xf32>
    %91 = arith.mulf %86, %90 : vector<8x256xf32>
    %c8 = arith.constant 8 : index
    %c0_49 = arith.constant 0 : index
    %92 = vector.load %arg14[%c8, %c0_49] : memref<64x1024xf32, #tpu.memory_space<vmem>>, vector<8x1024xf32>
    %93 = arith.truncf %53 : vector<8x256xf32> to vector<8x256xbf16>
    %cst_50 = arith.constant dense<0.000000e+00> : vector<8x1024xf32>
    %94 = tpu.matmul %93, %7, %cst_50 {dimension_numbers = #tpu.dot_dimension_numbers<[1], [0], [0], [1], [0, 0, 1, 1], [], []>} : vector<8x256xbf16>, vector<256x1024xbf16>, vector<8x1024xf32> -> vector<8x1024xf32>
    %95 = arith.addf %92, %94 : vector<8x1024xf32>
    %96 = vector.extract_strided_slice %95 {offsets = [0, 0], sizes = [8, 256], strides = [1, 1]} : vector<8x1024xf32> to vector<8x256xf32>
    %cst_51 = arith.constant 5.000000e-01 : f32
    %97 = vector.broadcast %cst_51 : f32 to vector<8x256xf32>
    %98 = arith.mulf %97, %96 : vector<8x256xf32>
    %99 = math.tanh %98 : vector<8x256xf32>
    %cst_52 = arith.constant 5.000000e-01 : f32
    %100 = vector.broadcast %cst_52 : f32 to vector<8x256xf32>
    %101 = arith.mulf %100, %99 : vector<8x256xf32>
    %cst_53 = arith.constant 5.000000e-01 : f32
    %102 = vector.broadcast %cst_53 : f32 to vector<8x256xf32>
    %103 = arith.addf %101, %102 : vector<8x256xf32>
    %104 = vector.extract_strided_slice %95 {offsets = [0, 256], sizes = [8, 256], strides = [1, 1]} : vector<8x1024xf32> to vector<8x256xf32>
    %cst_54 = arith.constant 5.000000e-01 : f32
    %105 = vector.broadcast %cst_54 : f32 to vector<8x256xf32>
    %106 = arith.mulf %105, %104 : vector<8x256xf32>
    %107 = math.tanh %106 : vector<8x256xf32>
    %cst_55 = arith.constant 5.000000e-01 : f32
    %108 = vector.broadcast %cst_55 : f32 to vector<8x256xf32>
    %109 = arith.mulf %108, %107 : vector<8x256xf32>
    %cst_56 = arith.constant 5.000000e-01 : f32
    %110 = vector.broadcast %cst_56 : f32 to vector<8x256xf32>
    %111 = arith.addf %109, %110 : vector<8x256xf32>
    %112 = vector.extract_strided_slice %95 {offsets = [0, 512], sizes = [8, 256], strides = [1, 1]} : vector<8x1024xf32> to vector<8x256xf32>
    %113 = math.tanh %112 : vector<8x256xf32>
    %114 = vector.extract_strided_slice %95 {offsets = [0, 768], sizes = [8, 256], strides = [1, 1]} : vector<8x1024xf32> to vector<8x256xf32>
    %cst_57 = arith.constant 5.000000e-01 : f32
    %115 = vector.broadcast %cst_57 : f32 to vector<8x256xf32>
    %116 = arith.mulf %115, %114 : vector<8x256xf32>
    %117 = math.tanh %116 : vector<8x256xf32>
    %cst_58 = arith.constant 5.000000e-01 : f32
    %118 = vector.broadcast %cst_58 : f32 to vector<8x256xf32>
    %119 = arith.mulf %118, %117 : vector<8x256xf32>
    %cst_59 = arith.constant 5.000000e-01 : f32
    %120 = vector.broadcast %cst_59 : f32 to vector<8x256xf32>
    %121 = arith.addf %119, %120 : vector<8x256xf32>
    %122 = arith.mulf %111, %51 : vector<8x256xf32>
    %123 = arith.mulf %103, %113 : vector<8x256xf32>
    %124 = arith.addf %122, %123 : vector<8x256xf32>
    %125 = math.tanh %124 : vector<8x256xf32>
    %126 = arith.mulf %121, %125 : vector<8x256xf32>
    %127 = arith.truncf %126 : vector<8x256xf32> to vector<8x256xbf16>
    %cst_60 = arith.constant dense<0.000000e+00> : vector<8x1024xf32>
    %128 = tpu.matmul %127, %9, %cst_60 {dimension_numbers = #tpu.dot_dimension_numbers<[1], [0], [0], [1], [0, 0, 1, 1], [], []>} : vector<8x256xbf16>, vector<256x1024xbf16>, vector<8x1024xf32> -> vector<8x1024xf32>
    %129 = vector.broadcast %10 : vector<1x1024xf32> to vector<8x1024xf32>
    %130 = arith.addf %128, %129 : vector<8x1024xf32>
    %131 = arith.truncf %91 : vector<8x256xf32> to vector<8x256xbf16>
    %cst_61 = arith.constant dense<0.000000e+00> : vector<8x1024xf32>
    %132 = tpu.matmul %131, %8, %cst_61 {dimension_numbers = #tpu.dot_dimension_numbers<[1], [0], [0], [1], [0, 0, 1, 1], [], []>} : vector<8x256xbf16>, vector<256x1024xbf16>, vector<8x1024xf32> -> vector<8x1024xf32>
    %133 = arith.addf %130, %132 : vector<8x1024xf32>
    %134 = vector.extract_strided_slice %133 {offsets = [0, 0], sizes = [8, 256], strides = [1, 1]} : vector<8x1024xf32> to vector<8x256xf32>
    %cst_62 = arith.constant 5.000000e-01 : f32
    %135 = vector.broadcast %cst_62 : f32 to vector<8x256xf32>
    %136 = arith.mulf %135, %134 : vector<8x256xf32>
    %137 = math.tanh %136 : vector<8x256xf32>
    %cst_63 = arith.constant 5.000000e-01 : f32
    %138 = vector.broadcast %cst_63 : f32 to vector<8x256xf32>
    %139 = arith.mulf %138, %137 : vector<8x256xf32>
    %cst_64 = arith.constant 5.000000e-01 : f32
    %140 = vector.broadcast %cst_64 : f32 to vector<8x256xf32>
    %141 = arith.addf %139, %140 : vector<8x256xf32>
    %142 = vector.extract_strided_slice %133 {offsets = [0, 256], sizes = [8, 256], strides = [1, 1]} : vector<8x1024xf32> to vector<8x256xf32>
    %cst_65 = arith.constant 5.000000e-01 : f32
    %143 = vector.broadcast %cst_65 : f32 to vector<8x256xf32>
    %144 = arith.mulf %143, %142 : vector<8x256xf32>
    %145 = math.tanh %144 : vector<8x256xf32>
    %cst_66 = arith.constant 5.000000e-01 : f32
    %146 = vector.broadcast %cst_66 : f32 to vector<8x256xf32>
    %147 = arith.mulf %146, %145 : vector<8x256xf32>
    %cst_67 = arith.constant 5.000000e-01 : f32
    %148 = vector.broadcast %cst_67 : f32 to vector<8x256xf32>
    %149 = arith.addf %147, %148 : vector<8x256xf32>
    %150 = vector.extract_strided_slice %133 {offsets = [0, 512], sizes = [8, 256], strides = [1, 1]} : vector<8x1024xf32> to vector<8x256xf32>
    %151 = math.tanh %150 : vector<8x256xf32>
    %152 = vector.extract_strided_slice %133 {offsets = [0, 768], sizes = [8, 256], strides = [1, 1]} : vector<8x1024xf32> to vector<8x256xf32>
    %cst_68 = arith.constant 5.000000e-01 : f32
    %153 = vector.broadcast %cst_68 : f32 to vector<8x256xf32>
    %154 = arith.mulf %153, %152 : vector<8x256xf32>
    %155 = math.tanh %154 : vector<8x256xf32>
    %cst_69 = arith.constant 5.000000e-01 : f32
    %156 = vector.broadcast %cst_69 : f32 to vector<8x256xf32>
    %157 = arith.mulf %156, %155 : vector<8x256xf32>
    %cst_70 = arith.constant 5.000000e-01 : f32
    %158 = vector.broadcast %cst_70 : f32 to vector<8x256xf32>
    %159 = arith.addf %157, %158 : vector<8x256xf32>
    %160 = arith.mulf %149, %89 : vector<8x256xf32>
    %161 = arith.mulf %141, %151 : vector<8x256xf32>
    %162 = arith.addf %160, %161 : vector<8x256xf32>
    %163 = math.tanh %162 : vector<8x256xf32>
    %164 = arith.mulf %159, %163 : vector<8x256xf32>
    %c16 = arith.constant 16 : index
    %c0_71 = arith.constant 0 : index
    %165 = vector.load %arg14[%c16, %c0_71] : memref<64x1024xf32, #tpu.memory_space<vmem>>, vector<8x1024xf32>
    %166 = arith.truncf %126 : vector<8x256xf32> to vector<8x256xbf16>
    %cst_72 = arith.constant dense<0.000000e+00> : vector<8x1024xf32>
    %167 = tpu.matmul %166, %7, %cst_72 {dimension_numbers = #tpu.dot_dimension_numbers<[1], [0], [0], [1], [0, 0, 1, 1], [], []>} : vector<8x256xbf16>, vector<256x1024xbf16>, vector<8x1024xf32> -> vector<8x1024xf32>
    %168 = arith.addf %165, %167 : vector<8x1024xf32>
    %169 = vector.extract_strided_slice %168 {offsets = [0, 0], sizes = [8, 256], strides = [1, 1]} : vector<8x1024xf32> to vector<8x256xf32>
    %cst_73 = arith.constant 5.000000e-01 : f32
    %170 = vector.broadcast %cst_73 : f32 to vector<8x256xf32>
    %171 = arith.mulf %170, %169 : vector<8x256xf32>
    %172 = math.tanh %171 : vector<8x256xf32>
    %cst_74 = arith.constant 5.000000e-01 : f32
    %173 = vector.broadcast %cst_74 : f32 to vector<8x256xf32>
    %174 = arith.mulf %173, %172 : vector<8x256xf32>
    %cst_75 = arith.constant 5.000000e-01 : f32
    %175 = vector.broadcast %cst_75 : f32 to vector<8x256xf32>
    %176 = arith.addf %174, %175 : vector<8x256xf32>
    %177 = vector.extract_strided_slice %168 {offsets = [0, 256], sizes = [8, 256], strides = [1, 1]} : vector<8x1024xf32> to vector<8x256xf32>
    %cst_76 = arith.constant 5.000000e-01 : f32
    %178 = vector.broadcast %cst_76 : f32 to vector<8x256xf32>
    %179 = arith.mulf %178, %177 : vector<8x256xf32>
    %180 = math.tanh %179 : vector<8x256xf32>
    %cst_77 = arith.constant 5.000000e-01 : f32
    %181 = vector.broadcast %cst_77 : f32 to vector<8x256xf32>
    %182 = arith.mulf %181, %180 : vector<8x256xf32>
    %cst_78 = arith.constant 5.000000e-01 : f32
    %183 = vector.broadcast %cst_78 : f32 to vector<8x256xf32>
    %184 = arith.addf %182, %183 : vector<8x256xf32>
    %185 = vector.extract_strided_slice %168 {offsets = [0, 512], sizes = [8, 256], strides = [1, 1]} : vector<8x1024xf32> to vector<8x256xf32>
    %186 = math.tanh %185 : vector<8x256xf32>
    %187 = vector.extract_strided_slice %168 {offsets = [0, 768], sizes = [8, 256], strides = [1, 1]} : vector<8x1024xf32> to vector<8x256xf32>
    %cst_79 = arith.constant 5.000000e-01 : f32
    %188 = vector.broadcast %cst_79 : f32 to vector<8x256xf32>
    %189 = arith.mulf %188, %187 : vector<8x256xf32>
    %190 = math.tanh %189 : vector<8x256xf32>
    %cst_80 = arith.constant 5.000000e-01 : f32
    %191 = vector.broadcast %cst_80 : f32 to vector<8x256xf32>
    %192 = arith.mulf %191, %190 : vector<8x256xf32>
    %cst_81 = arith.constant 5.000000e-01 : f32
    %193 = vector.broadcast %cst_81 : f32 to vector<8x256xf32>
    %194 = arith.addf %192, %193 : vector<8x256xf32>
    %195 = arith.mulf %184, %124 : vector<8x256xf32>
    %196 = arith.mulf %176, %186 : vector<8x256xf32>
    %197 = arith.addf %195, %196 : vector<8x256xf32>
    %198 = math.tanh %197 : vector<8x256xf32>
    %199 = arith.mulf %194, %198 : vector<8x256xf32>
    %200 = arith.truncf %199 : vector<8x256xf32> to vector<8x256xbf16>
    %cst_82 = arith.constant dense<0.000000e+00> : vector<8x1024xf32>
    %201 = tpu.matmul %200, %9, %cst_82 {dimension_numbers = #tpu.dot_dimension_numbers<[1], [0], [0], [1], [0, 0, 1, 1], [], []>} : vector<8x256xbf16>, vector<256x1024xbf16>, vector<8x1024xf32> -> vector<8x1024xf32>
    %202 = vector.broadcast %10 : vector<1x1024xf32> to vector<8x1024xf32>
    %203 = arith.addf %201, %202 : vector<8x1024xf32>
    %204 = arith.truncf %164 : vector<8x256xf32> to vector<8x256xbf16>
    %cst_83 = arith.constant dense<0.000000e+00> : vector<8x1024xf32>
    %205 = tpu.matmul %204, %8, %cst_83 {dimension_numbers = #tpu.dot_dimension_numbers<[1], [0], [0], [1], [0, 0, 1, 1], [], []>} : vector<8x256xbf16>, vector<256x1024xbf16>, vector<8x1024xf32> -> vector<8x1024xf32>
    %206 = arith.addf %203, %205 : vector<8x1024xf32>
    %207 = vector.extract_strided_slice %206 {offsets = [0, 0], sizes = [8, 256], strides = [1, 1]} : vector<8x1024xf32> to vector<8x256xf32>
    %cst_84 = arith.constant 5.000000e-01 : f32
    %208 = vector.broadcast %cst_84 : f32 to vector<8x256xf32>
    %209 = arith.mulf %208, %207 : vector<8x256xf32>
    %210 = math.tanh %209 : vector<8x256xf32>
    %cst_85 = arith.constant 5.000000e-01 : f32
    %211 = vector.broadcast %cst_85 : f32 to vector<8x256xf32>
    %212 = arith.mulf %211, %210 : vector<8x256xf32>
    %cst_86 = arith.constant 5.000000e-01 : f32
    %213 = vector.broadcast %cst_86 : f32 to vector<8x256xf32>
    %214 = arith.addf %212, %213 : vector<8x256xf32>
    %215 = vector.extract_strided_slice %206 {offsets = [0, 256], sizes = [8, 256], strides = [1, 1]} : vector<8x1024xf32> to vector<8x256xf32>
    %cst_87 = arith.constant 5.000000e-01 : f32
    %216 = vector.broadcast %cst_87 : f32 to vector<8x256xf32>
    %217 = arith.mulf %216, %215 : vector<8x256xf32>
    %218 = math.tanh %217 : vector<8x256xf32>
    %cst_88 = arith.constant 5.000000e-01 : f32
    %219 = vector.broadcast %cst_88 : f32 to vector<8x256xf32>
    %220 = arith.mulf %219, %218 : vector<8x256xf32>
    %cst_89 = arith.constant 5.000000e-01 : f32
    %221 = vector.broadcast %cst_89 : f32 to vector<8x256xf32>
    %222 = arith.addf %220, %221 : vector<8x256xf32>
    %223 = vector.extract_strided_slice %206 {offsets = [0, 512], sizes = [8, 256], strides = [1, 1]} : vector<8x1024xf32> to vector<8x256xf32>
    %224 = math.tanh %223 : vector<8x256xf32>
    %225 = vector.extract_strided_slice %206 {offsets = [0, 768], sizes = [8, 256], strides = [1, 1]} : vector<8x1024xf32> to vector<8x256xf32>
    %cst_90 = arith.constant 5.000000e-01 : f32
    %226 = vector.broadcast %cst_90 : f32 to vector<8x256xf32>
    %227 = arith.mulf %226, %225 : vector<8x256xf32>
    %228 = math.tanh %227 : vector<8x256xf32>
    %cst_91 = arith.constant 5.000000e-01 : f32
    %229 = vector.broadcast %cst_91 : f32 to vector<8x256xf32>
    %230 = arith.mulf %229, %228 : vector<8x256xf32>
    %cst_92 = arith.constant 5.000000e-01 : f32
    %231 = vector.broadcast %cst_92 : f32 to vector<8x256xf32>
    %232 = arith.addf %230, %231 : vector<8x256xf32>
    %233 = arith.mulf %222, %162 : vector<8x256xf32>
    %234 = arith.mulf %214, %224 : vector<8x256xf32>
    %235 = arith.addf %233, %234 : vector<8x256xf32>
    %236 = math.tanh %235 : vector<8x256xf32>
    %237 = arith.mulf %232, %236 : vector<8x256xf32>
    %c24 = arith.constant 24 : index
    %c0_93 = arith.constant 0 : index
    %238 = vector.load %arg14[%c24, %c0_93] : memref<64x1024xf32, #tpu.memory_space<vmem>>, vector<8x1024xf32>
    %239 = arith.truncf %199 : vector<8x256xf32> to vector<8x256xbf16>
    %cst_94 = arith.constant dense<0.000000e+00> : vector<8x1024xf32>
    %240 = tpu.matmul %239, %7, %cst_94 {dimension_numbers = #tpu.dot_dimension_numbers<[1], [0], [0], [1], [0, 0, 1, 1], [], []>} : vector<8x256xbf16>, vector<256x1024xbf16>, vector<8x1024xf32> -> vector<8x1024xf32>
    %241 = arith.addf %238, %240 : vector<8x1024xf32>
    %242 = vector.extract_strided_slice %241 {offsets = [0, 0], sizes = [8, 256], strides = [1, 1]} : vector<8x1024xf32> to vector<8x256xf32>
    %cst_95 = arith.constant 5.000000e-01 : f32
    %243 = vector.broadcast %cst_95 : f32 to vector<8x256xf32>
    %244 = arith.mulf %243, %242 : vector<8x256xf32>
    %245 = math.tanh %244 : vector<8x256xf32>
    %cst_96 = arith.constant 5.000000e-01 : f32
    %246 = vector.broadcast %cst_96 : f32 to vector<8x256xf32>
    %247 = arith.mulf %246, %245 : vector<8x256xf32>
    %cst_97 = arith.constant 5.000000e-01 : f32
    %248 = vector.broadcast %cst_97 : f32 to vector<8x256xf32>
    %249 = arith.addf %247, %248 : vector<8x256xf32>
    %250 = vector.extract_strided_slice %241 {offsets = [0, 256], sizes = [8, 256], strides = [1, 1]} : vector<8x1024xf32> to vector<8x256xf32>
    %cst_98 = arith.constant 5.000000e-01 : f32
    %251 = vector.broadcast %cst_98 : f32 to vector<8x256xf32>
    %252 = arith.mulf %251, %250 : vector<8x256xf32>
    %253 = math.tanh %252 : vector<8x256xf32>
    %cst_99 = arith.constant 5.000000e-01 : f32
    %254 = vector.broadcast %cst_99 : f32 to vector<8x256xf32>
    %255 = arith.mulf %254, %253 : vector<8x256xf32>
    %cst_100 = arith.constant 5.000000e-01 : f32
    %256 = vector.broadcast %cst_100 : f32 to vector<8x256xf32>
    %257 = arith.addf %255, %256 : vector<8x256xf32>
    %258 = vector.extract_strided_slice %241 {offsets = [0, 512], sizes = [8, 256], strides = [1, 1]} : vector<8x1024xf32> to vector<8x256xf32>
    %259 = math.tanh %258 : vector<8x256xf32>
    %260 = vector.extract_strided_slice %241 {offsets = [0, 768], sizes = [8, 256], strides = [1, 1]} : vector<8x1024xf32> to vector<8x256xf32>
    %cst_101 = arith.constant 5.000000e-01 : f32
    %261 = vector.broadcast %cst_101 : f32 to vector<8x256xf32>
    %262 = arith.mulf %261, %260 : vector<8x256xf32>
    %263 = math.tanh %262 : vector<8x256xf32>
    %cst_102 = arith.constant 5.000000e-01 : f32
    %264 = vector.broadcast %cst_102 : f32 to vector<8x256xf32>
    %265 = arith.mulf %264, %263 : vector<8x256xf32>
    %cst_103 = arith.constant 5.000000e-01 : f32
    %266 = vector.broadcast %cst_103 : f32 to vector<8x256xf32>
    %267 = arith.addf %265, %266 : vector<8x256xf32>
    %268 = arith.mulf %257, %197 : vector<8x256xf32>
    %269 = arith.mulf %249, %259 : vector<8x256xf32>
    %270 = arith.addf %268, %269 : vector<8x256xf32>
    %271 = math.tanh %270 : vector<8x256xf32>
    %272 = arith.mulf %267, %271 : vector<8x256xf32>
    %273 = arith.truncf %272 : vector<8x256xf32> to vector<8x256xbf16>
    %cst_104 = arith.constant dense<0.000000e+00> : vector<8x1024xf32>
    %274 = tpu.matmul %273, %9, %cst_104 {dimension_numbers = #tpu.dot_dimension_numbers<[1], [0], [0], [1], [0, 0, 1, 1], [], []>} : vector<8x256xbf16>, vector<256x1024xbf16>, vector<8x1024xf32> -> vector<8x1024xf32>
    %275 = vector.broadcast %10 : vector<1x1024xf32> to vector<8x1024xf32>
    %276 = arith.addf %274, %275 : vector<8x1024xf32>
    %277 = arith.truncf %237 : vector<8x256xf32> to vector<8x256xbf16>
    %cst_105 = arith.constant dense<0.000000e+00> : vector<8x1024xf32>
    %278 = tpu.matmul %277, %8, %cst_105 {dimension_numbers = #tpu.dot_dimension_numbers<[1], [0], [0], [1], [0, 0, 1, 1], [], []>} : vector<8x256xbf16>, vector<256x1024xbf16>, vector<8x1024xf32> -> vector<8x1024xf32>
    %279 = arith.addf %276, %278 : vector<8x1024xf32>
    %280 = vector.extract_strided_slice %279 {offsets = [0, 0], sizes = [8, 256], strides = [1, 1]} : vector<8x1024xf32> to vector<8x256xf32>
    %cst_106 = arith.constant 5.000000e-01 : f32
    %281 = vector.broadcast %cst_106 : f32 to vector<8x256xf32>
    %282 = arith.mulf %281, %280 : vector<8x256xf32>
    %283 = math.tanh %282 : vector<8x256xf32>
    %cst_107 = arith.constant 5.000000e-01 : f32
    %284 = vector.broadcast %cst_107 : f32 to vector<8x256xf32>
    %285 = arith.mulf %284, %283 : vector<8x256xf32>
    %cst_108 = arith.constant 5.000000e-01 : f32
    %286 = vector.broadcast %cst_108 : f32 to vector<8x256xf32>
    %287 = arith.addf %285, %286 : vector<8x256xf32>
    %288 = vector.extract_strided_slice %279 {offsets = [0, 256], sizes = [8, 256], strides = [1, 1]} : vector<8x1024xf32> to vector<8x256xf32>
    %cst_109 = arith.constant 5.000000e-01 : f32
    %289 = vector.broadcast %cst_109 : f32 to vector<8x256xf32>
    %290 = arith.mulf %289, %288 : vector<8x256xf32>
    %291 = math.tanh %290 : vector<8x256xf32>
    %cst_110 = arith.constant 5.000000e-01 : f32
    %292 = vector.broadcast %cst_110 : f32 to vector<8x256xf32>
    %293 = arith.mulf %292, %291 : vector<8x256xf32>
    %cst_111 = arith.constant 5.000000e-01 : f32
    %294 = vector.broadcast %cst_111 : f32 to vector<8x256xf32>
    %295 = arith.addf %293, %294 : vector<8x256xf32>
    %296 = vector.extract_strided_slice %279 {offsets = [0, 512], sizes = [8, 256], strides = [1, 1]} : vector<8x1024xf32> to vector<8x256xf32>
    %297 = math.tanh %296 : vector<8x256xf32>
    %298 = vector.extract_strided_slice %279 {offsets = [0, 768], sizes = [8, 256], strides = [1, 1]} : vector<8x1024xf32> to vector<8x256xf32>
    %cst_112 = arith.constant 5.000000e-01 : f32
    %299 = vector.broadcast %cst_112 : f32 to vector<8x256xf32>
    %300 = arith.mulf %299, %298 : vector<8x256xf32>
    %301 = math.tanh %300 : vector<8x256xf32>
    %cst_113 = arith.constant 5.000000e-01 : f32
    %302 = vector.broadcast %cst_113 : f32 to vector<8x256xf32>
    %303 = arith.mulf %302, %301 : vector<8x256xf32>
    %cst_114 = arith.constant 5.000000e-01 : f32
    %304 = vector.broadcast %cst_114 : f32 to vector<8x256xf32>
    %305 = arith.addf %303, %304 : vector<8x256xf32>
    %306 = arith.mulf %295, %235 : vector<8x256xf32>
    %307 = arith.mulf %287, %297 : vector<8x256xf32>
    %308 = arith.addf %306, %307 : vector<8x256xf32>
    %309 = math.tanh %308 : vector<8x256xf32>
    %310 = arith.mulf %305, %309 : vector<8x256xf32>
    %c32 = arith.constant 32 : index
    %c0_115 = arith.constant 0 : index
    %311 = vector.load %arg14[%c32, %c0_115] : memref<64x1024xf32, #tpu.memory_space<vmem>>, vector<8x1024xf32>
    %312 = arith.truncf %272 : vector<8x256xf32> to vector<8x256xbf16>
    %cst_116 = arith.constant dense<0.000000e+00> : vector<8x1024xf32>
    %313 = tpu.matmul %312, %7, %cst_116 {dimension_numbers = #tpu.dot_dimension_numbers<[1], [0], [0], [1], [0, 0, 1, 1], [], []>} : vector<8x256xbf16>, vector<256x1024xbf16>, vector<8x1024xf32> -> vector<8x1024xf32>
    %314 = arith.addf %311, %313 : vector<8x1024xf32>
    %315 = vector.extract_strided_slice %314 {offsets = [0, 0], sizes = [8, 256], strides = [1, 1]} : vector<8x1024xf32> to vector<8x256xf32>
    %cst_117 = arith.constant 5.000000e-01 : f32
    %316 = vector.broadcast %cst_117 : f32 to vector<8x256xf32>
    %317 = arith.mulf %316, %315 : vector<8x256xf32>
    %318 = math.tanh %317 : vector<8x256xf32>
    %cst_118 = arith.constant 5.000000e-01 : f32
    %319 = vector.broadcast %cst_118 : f32 to vector<8x256xf32>
    %320 = arith.mulf %319, %318 : vector<8x256xf32>
    %cst_119 = arith.constant 5.000000e-01 : f32
    %321 = vector.broadcast %cst_119 : f32 to vector<8x256xf32>
    %322 = arith.addf %320, %321 : vector<8x256xf32>
    %323 = vector.extract_strided_slice %314 {offsets = [0, 256], sizes = [8, 256], strides = [1, 1]} : vector<8x1024xf32> to vector<8x256xf32>
    %cst_120 = arith.constant 5.000000e-01 : f32
    %324 = vector.broadcast %cst_120 : f32 to vector<8x256xf32>
    %325 = arith.mulf %324, %323 : vector<8x256xf32>
    %326 = math.tanh %325 : vector<8x256xf32>
    %cst_121 = arith.constant 5.000000e-01 : f32
    %327 = vector.broadcast %cst_121 : f32 to vector<8x256xf32>
    %328 = arith.mulf %327, %326 : vector<8x256xf32>
    %cst_122 = arith.constant 5.000000e-01 : f32
    %329 = vector.broadcast %cst_122 : f32 to vector<8x256xf32>
    %330 = arith.addf %328, %329 : vector<8x256xf32>
    %331 = vector.extract_strided_slice %314 {offsets = [0, 512], sizes = [8, 256], strides = [1, 1]} : vector<8x1024xf32> to vector<8x256xf32>
    %332 = math.tanh %331 : vector<8x256xf32>
    %333 = vector.extract_strided_slice %314 {offsets = [0, 768], sizes = [8, 256], strides = [1, 1]} : vector<8x1024xf32> to vector<8x256xf32>
    %cst_123 = arith.constant 5.000000e-01 : f32
    %334 = vector.broadcast %cst_123 : f32 to vector<8x256xf32>
    %335 = arith.mulf %334, %333 : vector<8x256xf32>
    %336 = math.tanh %335 : vector<8x256xf32>
    %cst_124 = arith.constant 5.000000e-01 : f32
    %337 = vector.broadcast %cst_124 : f32 to vector<8x256xf32>
    %338 = arith.mulf %337, %336 : vector<8x256xf32>
    %cst_125 = arith.constant 5.000000e-01 : f32
    %339 = vector.broadcast %cst_125 : f32 to vector<8x256xf32>
    %340 = arith.addf %338, %339 : vector<8x256xf32>
    %341 = arith.mulf %330, %270 : vector<8x256xf32>
    %342 = arith.mulf %322, %332 : vector<8x256xf32>
    %343 = arith.addf %341, %342 : vector<8x256xf32>
    %344 = math.tanh %343 : vector<8x256xf32>
    %345 = arith.mulf %340, %344 : vector<8x256xf32>
    %346 = arith.truncf %345 : vector<8x256xf32> to vector<8x256xbf16>
    %cst_126 = arith.constant dense<0.000000e+00> : vector<8x1024xf32>
    %347 = tpu.matmul %346, %9, %cst_126 {dimension_numbers = #tpu.dot_dimension_numbers<[1], [0], [0], [1], [0, 0, 1, 1], [], []>} : vector<8x256xbf16>, vector<256x1024xbf16>, vector<8x1024xf32> -> vector<8x1024xf32>
    %348 = vector.broadcast %10 : vector<1x1024xf32> to vector<8x1024xf32>
    %349 = arith.addf %347, %348 : vector<8x1024xf32>
    %350 = arith.truncf %310 : vector<8x256xf32> to vector<8x256xbf16>
    %cst_127 = arith.constant dense<0.000000e+00> : vector<8x1024xf32>
    %351 = tpu.matmul %350, %8, %cst_127 {dimension_numbers = #tpu.dot_dimension_numbers<[1], [0], [0], [1], [0, 0, 1, 1], [], []>} : vector<8x256xbf16>, vector<256x1024xbf16>, vector<8x1024xf32> -> vector<8x1024xf32>
    %352 = arith.addf %349, %351 : vector<8x1024xf32>
    %353 = vector.extract_strided_slice %352 {offsets = [0, 0], sizes = [8, 256], strides = [1, 1]} : vector<8x1024xf32> to vector<8x256xf32>
    %cst_128 = arith.constant 5.000000e-01 : f32
    %354 = vector.broadcast %cst_128 : f32 to vector<8x256xf32>
    %355 = arith.mulf %354, %353 : vector<8x256xf32>
    %356 = math.tanh %355 : vector<8x256xf32>
    %cst_129 = arith.constant 5.000000e-01 : f32
    %357 = vector.broadcast %cst_129 : f32 to vector<8x256xf32>
    %358 = arith.mulf %357, %356 : vector<8x256xf32>
    %cst_130 = arith.constant 5.000000e-01 : f32
    %359 = vector.broadcast %cst_130 : f32 to vector<8x256xf32>
    %360 = arith.addf %358, %359 : vector<8x256xf32>
    %361 = vector.extract_strided_slice %352 {offsets = [0, 256], sizes = [8, 256], strides = [1, 1]} : vector<8x1024xf32> to vector<8x256xf32>
    %cst_131 = arith.constant 5.000000e-01 : f32
    %362 = vector.broadcast %cst_131 : f32 to vector<8x256xf32>
    %363 = arith.mulf %362, %361 : vector<8x256xf32>
    %364 = math.tanh %363 : vector<8x256xf32>
    %cst_132 = arith.constant 5.000000e-01 : f32
    %365 = vector.broadcast %cst_132 : f32 to vector<8x256xf32>
    %366 = arith.mulf %365, %364 : vector<8x256xf32>
    %cst_133 = arith.constant 5.000000e-01 : f32
    %367 = vector.broadcast %cst_133 : f32 to vector<8x256xf32>
    %368 = arith.addf %366, %367 : vector<8x256xf32>
    %369 = vector.extract_strided_slice %352 {offsets = [0, 512], sizes = [8, 256], strides = [1, 1]} : vector<8x1024xf32> to vector<8x256xf32>
    %370 = math.tanh %369 : vector<8x256xf32>
    %371 = vector.extract_strided_slice %352 {offsets = [0, 768], sizes = [8, 256], strides = [1, 1]} : vector<8x1024xf32> to vector<8x256xf32>
    %cst_134 = arith.constant 5.000000e-01 : f32
    %372 = vector.broadcast %cst_134 : f32 to vector<8x256xf32>
    %373 = arith.mulf %372, %371 : vector<8x256xf32>
    %374 = math.tanh %373 : vector<8x256xf32>
    %cst_135 = arith.constant 5.000000e-01 : f32
    %375 = vector.broadcast %cst_135 : f32 to vector<8x256xf32>
    %376 = arith.mulf %375, %374 : vector<8x256xf32>
    %cst_136 = arith.constant 5.000000e-01 : f32
    %377 = vector.broadcast %cst_136 : f32 to vector<8x256xf32>
    %378 = arith.addf %376, %377 : vector<8x256xf32>
    %379 = arith.mulf %368, %308 : vector<8x256xf32>
    %380 = arith.mulf %360, %370 : vector<8x256xf32>
    %381 = arith.addf %379, %380 : vector<8x256xf32>
    %382 = math.tanh %381 : vector<8x256xf32>
    %383 = arith.mulf %378, %382 : vector<8x256xf32>
    %c40 = arith.constant 40 : index
    %c0_137 = arith.constant 0 : index
    %384 = vector.load %arg14[%c40, %c0_137] : memref<64x1024xf32, #tpu.memory_space<vmem>>, vector<8x1024xf32>
    %385 = arith.truncf %345 : vector<8x256xf32> to vector<8x256xbf16>
    %cst_138 = arith.constant dense<0.000000e+00> : vector<8x1024xf32>
    %386 = tpu.matmul %385, %7, %cst_138 {dimension_numbers = #tpu.dot_dimension_numbers<[1], [0], [0], [1], [0, 0, 1, 1], [], []>} : vector<8x256xbf16>, vector<256x1024xbf16>, vector<8x1024xf32> -> vector<8x1024xf32>
    %387 = arith.addf %384, %386 : vector<8x1024xf32>
    %388 = vector.extract_strided_slice %387 {offsets = [0, 0], sizes = [8, 256], strides = [1, 1]} : vector<8x1024xf32> to vector<8x256xf32>
    %cst_139 = arith.constant 5.000000e-01 : f32
    %389 = vector.broadcast %cst_139 : f32 to vector<8x256xf32>
    %390 = arith.mulf %389, %388 : vector<8x256xf32>
    %391 = math.tanh %390 : vector<8x256xf32>
    %cst_140 = arith.constant 5.000000e-01 : f32
    %392 = vector.broadcast %cst_140 : f32 to vector<8x256xf32>
    %393 = arith.mulf %392, %391 : vector<8x256xf32>
    %cst_141 = arith.constant 5.000000e-01 : f32
    %394 = vector.broadcast %cst_141 : f32 to vector<8x256xf32>
    %395 = arith.addf %393, %394 : vector<8x256xf32>
    %396 = vector.extract_strided_slice %387 {offsets = [0, 256], sizes = [8, 256], strides = [1, 1]} : vector<8x1024xf32> to vector<8x256xf32>
    %cst_142 = arith.constant 5.000000e-01 : f32
    %397 = vector.broadcast %cst_142 : f32 to vector<8x256xf32>
    %398 = arith.mulf %397, %396 : vector<8x256xf32>
    %399 = math.tanh %398 : vector<8x256xf32>
    %cst_143 = arith.constant 5.000000e-01 : f32
    %400 = vector.broadcast %cst_143 : f32 to vector<8x256xf32>
    %401 = arith.mulf %400, %399 : vector<8x256xf32>
    %cst_144 = arith.constant 5.000000e-01 : f32
    %402 = vector.broadcast %cst_144 : f32 to vector<8x256xf32>
    %403 = arith.addf %401, %402 : vector<8x256xf32>
    %404 = vector.extract_strided_slice %387 {offsets = [0, 512], sizes = [8, 256], strides = [1, 1]} : vector<8x1024xf32> to vector<8x256xf32>
    %405 = math.tanh %404 : vector<8x256xf32>
    %406 = vector.extract_strided_slice %387 {offsets = [0, 768], sizes = [8, 256], strides = [1, 1]} : vector<8x1024xf32> to vector<8x256xf32>
    %cst_145 = arith.constant 5.000000e-01 : f32
    %407 = vector.broadcast %cst_145 : f32 to vector<8x256xf32>
    %408 = arith.mulf %407, %406 : vector<8x256xf32>
    %409 = math.tanh %408 : vector<8x256xf32>
    %cst_146 = arith.constant 5.000000e-01 : f32
    %410 = vector.broadcast %cst_146 : f32 to vector<8x256xf32>
    %411 = arith.mulf %410, %409 : vector<8x256xf32>
    %cst_147 = arith.constant 5.000000e-01 : f32
    %412 = vector.broadcast %cst_147 : f32 to vector<8x256xf32>
    %413 = arith.addf %411, %412 : vector<8x256xf32>
    %414 = arith.mulf %403, %343 : vector<8x256xf32>
    %415 = arith.mulf %395, %405 : vector<8x256xf32>
    %416 = arith.addf %414, %415 : vector<8x256xf32>
    %417 = math.tanh %416 : vector<8x256xf32>
    %418 = arith.mulf %413, %417 : vector<8x256xf32>
    %419 = arith.truncf %418 : vector<8x256xf32> to vector<8x256xbf16>
    %cst_148 = arith.constant dense<0.000000e+00> : vector<8x1024xf32>
    %420 = tpu.matmul %419, %9, %cst_148 {dimension_numbers = #tpu.dot_dimension_numbers<[1], [0], [0], [1], [0, 0, 1, 1], [], []>} : vector<8x256xbf16>, vector<256x1024xbf16>, vector<8x1024xf32> -> vector<8x1024xf32>
    %421 = vector.broadcast %10 : vector<1x1024xf32> to vector<8x1024xf32>
    %422 = arith.addf %420, %421 : vector<8x1024xf32>
    %423 = arith.truncf %383 : vector<8x256xf32> to vector<8x256xbf16>
    %cst_149 = arith.constant dense<0.000000e+00> : vector<8x1024xf32>
    %424 = tpu.matmul %423, %8, %cst_149 {dimension_numbers = #tpu.dot_dimension_numbers<[1], [0], [0], [1], [0, 0, 1, 1], [], []>} : vector<8x256xbf16>, vector<256x1024xbf16>, vector<8x1024xf32> -> vector<8x1024xf32>
    %425 = arith.addf %422, %424 : vector<8x1024xf32>
    %426 = vector.extract_strided_slice %425 {offsets = [0, 0], sizes = [8, 256], strides = [1, 1]} : vector<8x1024xf32> to vector<8x256xf32>
    %cst_150 = arith.constant 5.000000e-01 : f32
    %427 = vector.broadcast %cst_150 : f32 to vector<8x256xf32>
    %428 = arith.mulf %427, %426 : vector<8x256xf32>
    %429 = math.tanh %428 : vector<8x256xf32>
    %cst_151 = arith.constant 5.000000e-01 : f32
    %430 = vector.broadcast %cst_151 : f32 to vector<8x256xf32>
    %431 = arith.mulf %430, %429 : vector<8x256xf32>
    %cst_152 = arith.constant 5.000000e-01 : f32
    %432 = vector.broadcast %cst_152 : f32 to vector<8x256xf32>
    %433 = arith.addf %431, %432 : vector<8x256xf32>
    %434 = vector.extract_strided_slice %425 {offsets = [0, 256], sizes = [8, 256], strides = [1, 1]} : vector<8x1024xf32> to vector<8x256xf32>
    %cst_153 = arith.constant 5.000000e-01 : f32
    %435 = vector.broadcast %cst_153 : f32 to vector<8x256xf32>
    %436 = arith.mulf %435, %434 : vector<8x256xf32>
    %437 = math.tanh %436 : vector<8x256xf32>
    %cst_154 = arith.constant 5.000000e-01 : f32
    %438 = vector.broadcast %cst_154 : f32 to vector<8x256xf32>
    %439 = arith.mulf %438, %437 : vector<8x256xf32>
    %cst_155 = arith.constant 5.000000e-01 : f32
    %440 = vector.broadcast %cst_155 : f32 to vector<8x256xf32>
    %441 = arith.addf %439, %440 : vector<8x256xf32>
    %442 = vector.extract_strided_slice %425 {offsets = [0, 512], sizes = [8, 256], strides = [1, 1]} : vector<8x1024xf32> to vector<8x256xf32>
    %443 = math.tanh %442 : vector<8x256xf32>
    %444 = vector.extract_strided_slice %425 {offsets = [0, 768], sizes = [8, 256], strides = [1, 1]} : vector<8x1024xf32> to vector<8x256xf32>
    %cst_156 = arith.constant 5.000000e-01 : f32
    %445 = vector.broadcast %cst_156 : f32 to vector<8x256xf32>
    %446 = arith.mulf %445, %444 : vector<8x256xf32>
    %447 = math.tanh %446 : vector<8x256xf32>
    %cst_157 = arith.constant 5.000000e-01 : f32
    %448 = vector.broadcast %cst_157 : f32 to vector<8x256xf32>
    %449 = arith.mulf %448, %447 : vector<8x256xf32>
    %cst_158 = arith.constant 5.000000e-01 : f32
    %450 = vector.broadcast %cst_158 : f32 to vector<8x256xf32>
    %451 = arith.addf %449, %450 : vector<8x256xf32>
    %452 = arith.mulf %441, %381 : vector<8x256xf32>
    %453 = arith.mulf %433, %443 : vector<8x256xf32>
    %454 = arith.addf %452, %453 : vector<8x256xf32>
    %455 = math.tanh %454 : vector<8x256xf32>
    %456 = arith.mulf %451, %455 : vector<8x256xf32>
    %c48 = arith.constant 48 : index
    %c0_159 = arith.constant 0 : index
    %457 = vector.load %arg14[%c48, %c0_159] : memref<64x1024xf32, #tpu.memory_space<vmem>>, vector<8x1024xf32>
    %458 = arith.truncf %418 : vector<8x256xf32> to vector<8x256xbf16>
    %cst_160 = arith.constant dense<0.000000e+00> : vector<8x1024xf32>
    %459 = tpu.matmul %458, %7, %cst_160 {dimension_numbers = #tpu.dot_dimension_numbers<[1], [0], [0], [1], [0, 0, 1, 1], [], []>} : vector<8x256xbf16>, vector<256x1024xbf16>, vector<8x1024xf32> -> vector<8x1024xf32>
    %460 = arith.addf %457, %459 : vector<8x1024xf32>
    %461 = vector.extract_strided_slice %460 {offsets = [0, 0], sizes = [8, 256], strides = [1, 1]} : vector<8x1024xf32> to vector<8x256xf32>
    %cst_161 = arith.constant 5.000000e-01 : f32
    %462 = vector.broadcast %cst_161 : f32 to vector<8x256xf32>
    %463 = arith.mulf %462, %461 : vector<8x256xf32>
    %464 = math.tanh %463 : vector<8x256xf32>
    %cst_162 = arith.constant 5.000000e-01 : f32
    %465 = vector.broadcast %cst_162 : f32 to vector<8x256xf32>
    %466 = arith.mulf %465, %464 : vector<8x256xf32>
    %cst_163 = arith.constant 5.000000e-01 : f32
    %467 = vector.broadcast %cst_163 : f32 to vector<8x256xf32>
    %468 = arith.addf %466, %467 : vector<8x256xf32>
    %469 = vector.extract_strided_slice %460 {offsets = [0, 256], sizes = [8, 256], strides = [1, 1]} : vector<8x1024xf32> to vector<8x256xf32>
    %cst_164 = arith.constant 5.000000e-01 : f32
    %470 = vector.broadcast %cst_164 : f32 to vector<8x256xf32>
    %471 = arith.mulf %470, %469 : vector<8x256xf32>
    %472 = math.tanh %471 : vector<8x256xf32>
    %cst_165 = arith.constant 5.000000e-01 : f32
    %473 = vector.broadcast %cst_165 : f32 to vector<8x256xf32>
    %474 = arith.mulf %473, %472 : vector<8x256xf32>
    %cst_166 = arith.constant 5.000000e-01 : f32
    %475 = vector.broadcast %cst_166 : f32 to vector<8x256xf32>
    %476 = arith.addf %474, %475 : vector<8x256xf32>
    %477 = vector.extract_strided_slice %460 {offsets = [0, 512], sizes = [8, 256], strides = [1, 1]} : vector<8x1024xf32> to vector<8x256xf32>
    %478 = math.tanh %477 : vector<8x256xf32>
    %479 = vector.extract_strided_slice %460 {offsets = [0, 768], sizes = [8, 256], strides = [1, 1]} : vector<8x1024xf32> to vector<8x256xf32>
    %cst_167 = arith.constant 5.000000e-01 : f32
    %480 = vector.broadcast %cst_167 : f32 to vector<8x256xf32>
    %481 = arith.mulf %480, %479 : vector<8x256xf32>
    %482 = math.tanh %481 : vector<8x256xf32>
    %cst_168 = arith.constant 5.000000e-01 : f32
    %483 = vector.broadcast %cst_168 : f32 to vector<8x256xf32>
    %484 = arith.mulf %483, %482 : vector<8x256xf32>
    %cst_169 = arith.constant 5.000000e-01 : f32
    %485 = vector.broadcast %cst_169 : f32 to vector<8x256xf32>
    %486 = arith.addf %484, %485 : vector<8x256xf32>
    %487 = arith.mulf %476, %416 : vector<8x256xf32>
    %488 = arith.mulf %468, %478 : vector<8x256xf32>
    %489 = arith.addf %487, %488 : vector<8x256xf32>
    %490 = math.tanh %489 : vector<8x256xf32>
    %491 = arith.mulf %486, %490 : vector<8x256xf32>
    %492 = arith.truncf %491 : vector<8x256xf32> to vector<8x256xbf16>
    %cst_170 = arith.constant dense<0.000000e+00> : vector<8x1024xf32>
    %493 = tpu.matmul %492, %9, %cst_170 {dimension_numbers = #tpu.dot_dimension_numbers<[1], [0], [0], [1], [0, 0, 1, 1], [], []>} : vector<8x256xbf16>, vector<256x1024xbf16>, vector<8x1024xf32> -> vector<8x1024xf32>
    %494 = vector.broadcast %10 : vector<1x1024xf32> to vector<8x1024xf32>
    %495 = arith.addf %493, %494 : vector<8x1024xf32>
    %496 = arith.truncf %456 : vector<8x256xf32> to vector<8x256xbf16>
    %cst_171 = arith.constant dense<0.000000e+00> : vector<8x1024xf32>
    %497 = tpu.matmul %496, %8, %cst_171 {dimension_numbers = #tpu.dot_dimension_numbers<[1], [0], [0], [1], [0, 0, 1, 1], [], []>} : vector<8x256xbf16>, vector<256x1024xbf16>, vector<8x1024xf32> -> vector<8x1024xf32>
    %498 = arith.addf %495, %497 : vector<8x1024xf32>
    %499 = vector.extract_strided_slice %498 {offsets = [0, 0], sizes = [8, 256], strides = [1, 1]} : vector<8x1024xf32> to vector<8x256xf32>
    %cst_172 = arith.constant 5.000000e-01 : f32
    %500 = vector.broadcast %cst_172 : f32 to vector<8x256xf32>
    %501 = arith.mulf %500, %499 : vector<8x256xf32>
    %502 = math.tanh %501 : vector<8x256xf32>
    %cst_173 = arith.constant 5.000000e-01 : f32
    %503 = vector.broadcast %cst_173 : f32 to vector<8x256xf32>
    %504 = arith.mulf %503, %502 : vector<8x256xf32>
    %cst_174 = arith.constant 5.000000e-01 : f32
    %505 = vector.broadcast %cst_174 : f32 to vector<8x256xf32>
    %506 = arith.addf %504, %505 : vector<8x256xf32>
    %507 = vector.extract_strided_slice %498 {offsets = [0, 256], sizes = [8, 256], strides = [1, 1]} : vector<8x1024xf32> to vector<8x256xf32>
    %cst_175 = arith.constant 5.000000e-01 : f32
    %508 = vector.broadcast %cst_175 : f32 to vector<8x256xf32>
    %509 = arith.mulf %508, %507 : vector<8x256xf32>
    %510 = math.tanh %509 : vector<8x256xf32>
    %cst_176 = arith.constant 5.000000e-01 : f32
    %511 = vector.broadcast %cst_176 : f32 to vector<8x256xf32>
    %512 = arith.mulf %511, %510 : vector<8x256xf32>
    %cst_177 = arith.constant 5.000000e-01 : f32
    %513 = vector.broadcast %cst_177 : f32 to vector<8x256xf32>
    %514 = arith.addf %512, %513 : vector<8x256xf32>
    %515 = vector.extract_strided_slice %498 {offsets = [0, 512], sizes = [8, 256], strides = [1, 1]} : vector<8x1024xf32> to vector<8x256xf32>
    %516 = math.tanh %515 : vector<8x256xf32>
    %517 = vector.extract_strided_slice %498 {offsets = [0, 768], sizes = [8, 256], strides = [1, 1]} : vector<8x1024xf32> to vector<8x256xf32>
    %cst_178 = arith.constant 5.000000e-01 : f32
    %518 = vector.broadcast %cst_178 : f32 to vector<8x256xf32>
    %519 = arith.mulf %518, %517 : vector<8x256xf32>
    %520 = math.tanh %519 : vector<8x256xf32>
    %cst_179 = arith.constant 5.000000e-01 : f32
    %521 = vector.broadcast %cst_179 : f32 to vector<8x256xf32>
    %522 = arith.mulf %521, %520 : vector<8x256xf32>
    %cst_180 = arith.constant 5.000000e-01 : f32
    %523 = vector.broadcast %cst_180 : f32 to vector<8x256xf32>
    %524 = arith.addf %522, %523 : vector<8x256xf32>
    %525 = arith.mulf %514, %454 : vector<8x256xf32>
    %526 = arith.mulf %506, %516 : vector<8x256xf32>
    %527 = arith.addf %525, %526 : vector<8x256xf32>
    %528 = math.tanh %527 : vector<8x256xf32>
    %529 = arith.mulf %524, %528 : vector<8x256xf32>
    %c56 = arith.constant 56 : index
    %c0_181 = arith.constant 0 : index
    %530 = vector.load %arg14[%c56, %c0_181] : memref<64x1024xf32, #tpu.memory_space<vmem>>, vector<8x1024xf32>
    %531 = arith.truncf %491 : vector<8x256xf32> to vector<8x256xbf16>
    %cst_182 = arith.constant dense<0.000000e+00> : vector<8x1024xf32>
    %532 = tpu.matmul %531, %7, %cst_182 {dimension_numbers = #tpu.dot_dimension_numbers<[1], [0], [0], [1], [0, 0, 1, 1], [], []>} : vector<8x256xbf16>, vector<256x1024xbf16>, vector<8x1024xf32> -> vector<8x1024xf32>
    %533 = arith.addf %530, %532 : vector<8x1024xf32>
    %534 = vector.extract_strided_slice %533 {offsets = [0, 0], sizes = [8, 256], strides = [1, 1]} : vector<8x1024xf32> to vector<8x256xf32>
    %cst_183 = arith.constant 5.000000e-01 : f32
    %535 = vector.broadcast %cst_183 : f32 to vector<8x256xf32>
    %536 = arith.mulf %535, %534 : vector<8x256xf32>
    %537 = math.tanh %536 : vector<8x256xf32>
    %cst_184 = arith.constant 5.000000e-01 : f32
    %538 = vector.broadcast %cst_184 : f32 to vector<8x256xf32>
    %539 = arith.mulf %538, %537 : vector<8x256xf32>
    %cst_185 = arith.constant 5.000000e-01 : f32
    %540 = vector.broadcast %cst_185 : f32 to vector<8x256xf32>
    %541 = arith.addf %539, %540 : vector<8x256xf32>
    %542 = vector.extract_strided_slice %533 {offsets = [0, 256], sizes = [8, 256], strides = [1, 1]} : vector<8x1024xf32> to vector<8x256xf32>
    %cst_186 = arith.constant 5.000000e-01 : f32
    %543 = vector.broadcast %cst_186 : f32 to vector<8x256xf32>
    %544 = arith.mulf %543, %542 : vector<8x256xf32>
    %545 = math.tanh %544 : vector<8x256xf32>
    %cst_187 = arith.constant 5.000000e-01 : f32
    %546 = vector.broadcast %cst_187 : f32 to vector<8x256xf32>
    %547 = arith.mulf %546, %545 : vector<8x256xf32>
    %cst_188 = arith.constant 5.000000e-01 : f32
    %548 = vector.broadcast %cst_188 : f32 to vector<8x256xf32>
    %549 = arith.addf %547, %548 : vector<8x256xf32>
    %550 = vector.extract_strided_slice %533 {offsets = [0, 512], sizes = [8, 256], strides = [1, 1]} : vector<8x1024xf32> to vector<8x256xf32>
    %551 = math.tanh %550 : vector<8x256xf32>
    %552 = vector.extract_strided_slice %533 {offsets = [0, 768], sizes = [8, 256], strides = [1, 1]} : vector<8x1024xf32> to vector<8x256xf32>
    %cst_189 = arith.constant 5.000000e-01 : f32
    %553 = vector.broadcast %cst_189 : f32 to vector<8x256xf32>
    %554 = arith.mulf %553, %552 : vector<8x256xf32>
    %555 = math.tanh %554 : vector<8x256xf32>
    %cst_190 = arith.constant 5.000000e-01 : f32
    %556 = vector.broadcast %cst_190 : f32 to vector<8x256xf32>
    %557 = arith.mulf %556, %555 : vector<8x256xf32>
    %cst_191 = arith.constant 5.000000e-01 : f32
    %558 = vector.broadcast %cst_191 : f32 to vector<8x256xf32>
    %559 = arith.addf %557, %558 : vector<8x256xf32>
    %560 = arith.mulf %549, %489 : vector<8x256xf32>
    %561 = arith.mulf %541, %551 : vector<8x256xf32>
    %562 = arith.addf %560, %561 : vector<8x256xf32>
    %563 = math.tanh %562 : vector<8x256xf32>
    %564 = arith.mulf %559, %563 : vector<8x256xf32>
    %565 = arith.truncf %564 : vector<8x256xf32> to vector<8x256xbf16>
    %cst_192 = arith.constant dense<0.000000e+00> : vector<8x1024xf32>
    %566 = tpu.matmul %565, %9, %cst_192 {dimension_numbers = #tpu.dot_dimension_numbers<[1], [0], [0], [1], [0, 0, 1, 1], [], []>} : vector<8x256xbf16>, vector<256x1024xbf16>, vector<8x1024xf32> -> vector<8x1024xf32>
    %567 = vector.broadcast %10 : vector<1x1024xf32> to vector<8x1024xf32>
    %568 = arith.addf %566, %567 : vector<8x1024xf32>
    %569 = arith.truncf %529 : vector<8x256xf32> to vector<8x256xbf16>
    %cst_193 = arith.constant dense<0.000000e+00> : vector<8x1024xf32>
    %570 = tpu.matmul %569, %8, %cst_193 {dimension_numbers = #tpu.dot_dimension_numbers<[1], [0], [0], [1], [0, 0, 1, 1], [], []>} : vector<8x256xbf16>, vector<256x1024xbf16>, vector<8x1024xf32> -> vector<8x1024xf32>
    %571 = arith.addf %568, %570 : vector<8x1024xf32>
    %572 = vector.extract_strided_slice %571 {offsets = [0, 0], sizes = [8, 256], strides = [1, 1]} : vector<8x1024xf32> to vector<8x256xf32>
    %cst_194 = arith.constant 5.000000e-01 : f32
    %573 = vector.broadcast %cst_194 : f32 to vector<8x256xf32>
    %574 = arith.mulf %573, %572 : vector<8x256xf32>
    %575 = math.tanh %574 : vector<8x256xf32>
    %cst_195 = arith.constant 5.000000e-01 : f32
    %576 = vector.broadcast %cst_195 : f32 to vector<8x256xf32>
    %577 = arith.mulf %576, %575 : vector<8x256xf32>
    %cst_196 = arith.constant 5.000000e-01 : f32
    %578 = vector.broadcast %cst_196 : f32 to vector<8x256xf32>
    %579 = arith.addf %577, %578 : vector<8x256xf32>
    %580 = vector.extract_strided_slice %571 {offsets = [0, 256], sizes = [8, 256], strides = [1, 1]} : vector<8x1024xf32> to vector<8x256xf32>
    %cst_197 = arith.constant 5.000000e-01 : f32
    %581 = vector.broadcast %cst_197 : f32 to vector<8x256xf32>
    %582 = arith.mulf %581, %580 : vector<8x256xf32>
    %583 = math.tanh %582 : vector<8x256xf32>
    %cst_198 = arith.constant 5.000000e-01 : f32
    %584 = vector.broadcast %cst_198 : f32 to vector<8x256xf32>
    %585 = arith.mulf %584, %583 : vector<8x256xf32>
    %cst_199 = arith.constant 5.000000e-01 : f32
    %586 = vector.broadcast %cst_199 : f32 to vector<8x256xf32>
    %587 = arith.addf %585, %586 : vector<8x256xf32>
    %588 = vector.extract_strided_slice %571 {offsets = [0, 512], sizes = [8, 256], strides = [1, 1]} : vector<8x1024xf32> to vector<8x256xf32>
    %589 = math.tanh %588 : vector<8x256xf32>
    %590 = vector.extract_strided_slice %571 {offsets = [0, 768], sizes = [8, 256], strides = [1, 1]} : vector<8x1024xf32> to vector<8x256xf32>
    %cst_200 = arith.constant 5.000000e-01 : f32
    %591 = vector.broadcast %cst_200 : f32 to vector<8x256xf32>
    %592 = arith.mulf %591, %590 : vector<8x256xf32>
    %593 = math.tanh %592 : vector<8x256xf32>
    %cst_201 = arith.constant 5.000000e-01 : f32
    %594 = vector.broadcast %cst_201 : f32 to vector<8x256xf32>
    %595 = arith.mulf %594, %593 : vector<8x256xf32>
    %cst_202 = arith.constant 5.000000e-01 : f32
    %596 = vector.broadcast %cst_202 : f32 to vector<8x256xf32>
    %597 = arith.addf %595, %596 : vector<8x256xf32>
    %598 = arith.mulf %587, %527 : vector<8x256xf32>
    %599 = arith.mulf %579, %589 : vector<8x256xf32>
    %600 = arith.addf %598, %599 : vector<8x256xf32>
    %601 = math.tanh %600 : vector<8x256xf32>
    %602 = arith.mulf %597, %601 : vector<8x256xf32>
    %c0_203 = arith.constant 0 : index
    %c0_204 = arith.constant 0 : index
    %c0_205 = arith.constant 0 : index
    %603 = vector.load %arg12[%c0_203, %c0_204, %c0_205] : memref<2x8x256xf32, #tpu.memory_space<vmem>>, vector<1x8x256xf32>
    %604 = vector.shape_cast %603 : vector<1x8x256xf32> to vector<8x256xf32>
    %605 = vector.shape_cast %564 : vector<8x256xf32> to vector<1x8x256xf32>
    tpu.vector_store %arg12[%c0_203, %c0_204, %c0_205], %605 {strides = array<i32>} : memref<2x8x256xf32, #tpu.memory_space<vmem>>, vector<1x8x256xf32>,
    %c0_206 = arith.constant 0 : index
    %c0_207 = arith.constant 0 : index
    %c0_208 = arith.constant 0 : index
    %606 = vector.load %arg13[%c0_206, %c0_207, %c0_208] : memref<2x8x256xf32, #tpu.memory_space<vmem>>, vector<1x8x256xf32>
    %607 = vector.shape_cast %606 : vector<1x8x256xf32> to vector<8x256xf32>
    %608 = vector.shape_cast %562 : vector<8x256xf32> to vector<1x8x256xf32>
    tpu.vector_store %arg13[%c0_206, %c0_207, %c0_208], %608 {strides = array<i32>} : memref<2x8x256xf32, #tpu.memory_space<vmem>>, vector<1x8x256xf32>,
    %c1_209 = arith.constant 1 : index
    %c0_210 = arith.constant 0 : index
    %c0_211 = arith.constant 0 : index
    %609 = vector.load %arg12[%c1_209, %c0_210, %c0_211] : memref<2x8x256xf32, #tpu.memory_space<vmem>>, vector<1x8x256xf32>
    %610 = vector.shape_cast %609 : vector<1x8x256xf32> to vector<8x256xf32>
    %611 = vector.shape_cast %602 : vector<8x256xf32> to vector<1x8x256xf32>
    tpu.vector_store %arg12[%c1_209, %c0_210, %c0_211], %611 {strides = array<i32>} : memref<2x8x256xf32, #tpu.memory_space<vmem>>, vector<1x8x256xf32>,
    %c1_212 = arith.constant 1 : index
    %c0_213 = arith.constant 0 : index
    %c0_214 = arith.constant 0 : index
    %612 = vector.load %arg13[%c1_212, %c0_213, %c0_214] : memref<2x8x256xf32, #tpu.memory_space<vmem>>, vector<1x8x256xf32>
    %613 = vector.shape_cast %612 : vector<1x8x256xf32> to vector<8x256xf32>
    %614 = vector.shape_cast %600 : vector<8x256xf32> to vector<1x8x256xf32>
    tpu.vector_store %arg13[%c1_212, %c0_213, %c0_214], %614 {strides = array<i32>} : memref<2x8x256xf32, #tpu.memory_space<vmem>>, vector<1x8x256xf32>,
    %615 = arith.truncf %602 : vector<8x256xf32> to vector<8x256xbf16>
    %c0_215 = arith.constant 0 : index
    %c0_216 = arith.constant 0 : index
    %616 = vector.load %arg7[%c0_215, %c0_216] : memref<256x384xbf16, #tpu.memory_space<vmem>>, vector<256x384xbf16>
    %cst_217 = arith.constant dense<0.000000e+00> : vector<8x384xf32>
    %617 = tpu.matmul %615, %616, %cst_217 {dimension_numbers = #tpu.dot_dimension_numbers<[1], [0], [0], [1], [0, 0, 1, 1], [], []>} : vector<8x256xbf16>, vector<256x384xbf16>, vector<8x384xf32> -> vector<8x384xf32>
    %c0_218 = arith.constant 0 : index
    %c0_219 = arith.constant 0 : index
    %618 = vector.load %arg8[%c0_218, %c0_219] : memref<1x384xf32, #tpu.memory_space<vmem>>, vector<1x384xf32>
    %619 = vector.broadcast %618 : vector<1x384xf32> to vector<8x384xf32>
    %620 = arith.addf %617, %619 : vector<8x384xf32>
    %c0_220 = arith.constant 0 : index
    %c0_221 = arith.constant 0 : index
    %621 = vector.load %arg11[%c0_220, %c0_221] : memref<8x384xf32, #tpu.memory_space<vmem>>, vector<8x384xf32>
    tpu.vector_store %arg11[%c0_220, %c0_221], %620 {strides = array<i32>} : memref<8x384xf32, #tpu.memory_space<vmem>>, vector<8x384xf32>,
    return
  }
}

</mosaic_0001>

<llo_original>
// kernel: _forward_impl.1
$region0: #{_forward_impl.1}
  #allocation0 [shape = 'u32[]', space=smem, size = 0x4, offset = 0x4, fixed_abs, tag = 'smem constant byte address 0x4 - core index']
  #allocation1 [shape = 'u32[144,128]{1,0:T(1,128)}', space=vmem, size = 0x12000, scoped, tag = 'internal scratch']
  #allocation2 [shape = 'f32[64,1024]{1,0:T(8,128)}', space=vmem, size = 0x40000, scoped, tag = 'scratch operand']
  %s0 = inlined_call_operand.vmem [shape: bf16[64,128], index: 0, kind: input, shape index: {}]
  %s1 = inlined_call_operand.vmem [shape: bf16[128,1024], index: 1, kind: input, shape index: {}]
  %s2 = inlined_call_operand.vmem [shape: bf16[256,1024], index: 2, kind: input, shape index: {}]
  %s3 = inlined_call_operand.vmem [shape: f32[1,1024], index: 3, kind: input, shape index: {}]
  %s4 = inlined_call_operand.vmem [shape: bf16[256,1024], index: 4, kind: input, shape index: {}]
  %s5 = inlined_call_operand.vmem [shape: bf16[256,1024], index: 5, kind: input, shape index: {}]
  %s6 = inlined_call_operand.vmem [shape: f32[1,1024], index: 6, kind: input, shape index: {}]
  %s7 = inlined_call_operand.vmem [shape: bf16[256,384], index: 7, kind: input, shape index: {}]
  %s8 = inlined_call_operand.vmem [shape: f32[1,384], index: 8, kind: input, shape index: {}]
  %s9 = inlined_call_operand.vmem [shape: f32[2,8,256], index: 9, kind: input, shape index: {}]
  %s10 = inlined_call_operand.vmem [shape: f32[2,8,256], index: 10, kind: input, shape index: {}]
  %s11 = inlined_call_operand.vmem [shape: f32[8,384], index: 11, kind: output, shape index: {0}]
  %s12 = inlined_call_operand.vmem [shape: f32[2,8,256], index: 12, kind: output, shape index: {1}]
  %s13 = inlined_call_operand.vmem [shape: f32[2,8,256], index: 13, kind: output, shape index: {2}]
  %14 = xla_tuple %s11, %s12, %s13
  %s15 = sld [smem:[#allocation0]]
  $region70: #{_forward_impl.1} parent=0
    _
  %s17 = ssub.s32 1, %s15
  %s18 = scalar_select 0, %s17, %s15
  // Predicated region
  $region2: #{_forward_impl.1} parent=0 // pred_check
    _
  $region3: #{_forward_impl.1} parent=0 // pred_check_branch
    %20 = sbr.rel (0) target = $region5
  $region4: #{_forward_impl.1} parent=0 // pred_region
    _
  $region5: #{_forward_impl.1} parent=0 // pred_fallthru
    _
  // Predicated region
  $region6: #{_forward_impl.1} parent=0 // pred_check
    _
  $region7: #{_forward_impl.1} parent=0 // pred_check_branch
    %22 = sbr.rel (0) target = $region9
  $region8: #{_forward_impl.1} parent=0 // pred_region
    _
  $region9: #{_forward_impl.1} parent=0 // pred_fallthru
    _
  // Predicated region
  $region10: #{_forward_impl.1} parent=0 // pred_check
    _
  $region11: #{_forward_impl.1} parent=0 // pred_check_branch
    %24 = sbr.rel (0) target = $region13
  $region12: #{_forward_impl.1} parent=0 // pred_region
    _
  $region13: #{_forward_impl.1} parent=0 // pred_fallthru
    _
  // Predicated region
  $region14: #{_forward_impl.1} parent=0 // pred_check
    _
  $region15: #{_forward_impl.1} parent=0 // pred_check_branch
    %26 = sbr.rel (0) target = $region17
  $region16: #{_forward_impl.1} parent=0 // pred_region
    _
  $region17: #{_forward_impl.1} parent=0 // pred_fallthru
    _
  // Predicated region
  $region18: #{_forward_impl.1} parent=0 // pred_check
    _
  $region19: #{_forward_impl.1} parent=0 // pred_check_branch
    %28 = sbr.rel (0) target = $region21
  $region20: #{_forward_impl.1} parent=0 // pred_region
    _
  $region21: #{_forward_impl.1} parent=0 // pred_fallthru
    _
  // Predicated region
  $region22: #{_forward_impl.1} parent=0 // pred_check
    _
  $region23: #{_forward_impl.1} parent=0 // pred_check_branch
    %30 = sbr.rel (0) target = $region25
  $region24: #{_forward_impl.1} parent=0 // pred_region
    _
  $region25: #{_forward_impl.1} parent=0 // pred_fallthru
    _
  // Predicated region
  $region26: #{_forward_impl.1} parent=0 // pred_check
    _
  $region27: #{_forward_impl.1} parent=0 // pred_check_branch
    %32 = sbr.rel (0) target = $region29
  $region28: #{_forward_impl.1} parent=0 // pred_region
    _
  $region29: #{_forward_impl.1} parent=0 // pred_fallthru
    _
  // Predicated region
  $region30: #{_forward_impl.1} parent=0 // pred_check
    _
  $region31: #{_forward_impl.1} parent=0 // pred_check_branch
    %34 = sbr.rel (0) target = $region33
  $region32: #{_forward_impl.1} parent=0 // pred_region
    _
  $region33: #{_forward_impl.1} parent=0 // pred_fallthru
    _
  // Predicated region
  $region34: #{_forward_impl.1} parent=0 // pred_check
    _
  $region35: #{_forward_impl.1} parent=0 // pred_check_branch
    %36 = sbr.rel (0) target = $region37
  $region36: #{_forward_impl.1} parent=0 // pred_region
    _
  $region37: #{_forward_impl.1} parent=0 // pred_fallthru
    _
  // Predicated region
  $region38: #{_forward_impl.1} parent=0 // pred_check
    _
  $region39: #{_forward_impl.1} parent=0 // pred_check_branch
    %38 = sbr.rel (0) target = $region41
  $region40: #{_forward_impl.1} parent=0 // pred_region
    _
  $region41: #{_forward_impl.1} parent=0 // pred_fallthru
    _
  // Predicated region
  $region42: #{_forward_impl.1} parent=0 // pred_check
    _
  $region43: #{_forward_impl.1} parent=0 // pred_check_branch
    %40 = sbr.rel (0) target = $region45
  $region44: #{_forward_impl.1} parent=0 // pred_region
    _
  $region45: #{_forward_impl.1} parent=0 // pred_fallthru
    _
  %v42 = vld [vmem:[%s0] sm:$0xf]
  %v43 = vld [vmem:[%s0 + $0x4] sm:$0xf]
  %v44 = vld [vmem:[%s0 + $0x8] sm:$0xf]
  %v45 = vld [vmem:[%s0 + $0xc] sm:$0xf]
  %v46 = vld [vmem:[%s0 + $0x10] sm:$0xf]
  %v47 = vld [vmem:[%s0 + $0x14] sm:$0xf]
  %v48 = vld [vmem:[%s0 + $0x18] sm:$0xf]
  %v49 = vld [vmem:[%s0 + $0x1c] sm:$0xf]
  %v50 = vld [vmem:[%s1] sm:$0xff]
  %v51 = vld [vmem:[%s1 + $0x8] sm:$0xff]
  %v52 = vld [vmem:[%s1 + $0x10] sm:$0xff]
  %v53 = vld [vmem:[%s1 + $0x18] sm:$0xff]
  %v54 = vld [vmem:[%s1 + $0x20] sm:$0xff]
  %v55 = vld [vmem:[%s1 + $0x28] sm:$0xff]
  %v56 = vld [vmem:[%s1 + $0x30] sm:$0xff]
  %v57 = vld [vmem:[%s1 + $0x38] sm:$0xff]
  %v58 = vld [vmem:[%s1 + $0x40] sm:$0xff]
  %v59 = vld [vmem:[%s1 + $0x48] sm:$0xff]
  %v60 = vld [vmem:[%s1 + $0x50] sm:$0xff]
  %v61 = vld [vmem:[%s1 + $0x58] sm:$0xff]
  %v62 = vld [vmem:[%s1 + $0x60] sm:$0xff]
  %v63 = vld [vmem:[%s1 + $0x68] sm:$0xff]
  %v64 = vld [vmem:[%s1 + $0x70] sm:$0xff]
  %v65 = vld [vmem:[%s1 + $0x78] sm:$0xff]
  %v66 = vld [vmem:[%s1 + $0x80] sm:$0xff]
  %v67 = vld [vmem:[%s1 + $0x88] sm:$0xff]
  %v68 = vld [vmem:[%s1 + $0x90] sm:$0xff]
  %v69 = vld [vmem:[%s1 + $0x98] sm:$0xff]
  %v70 = vld [vmem:[%s1 + $0xa0] sm:$0xff]
  %v71 = vld [vmem:[%s1 + $0xa8] sm:$0xff]
  %v72 = vld [vmem:[%s1 + $0xb0] sm:$0xff]
  %v73 = vld [vmem:[%s1 + $0xb8] sm:$0xff]
  %v74 = vld [vmem:[%s1 + $0xc0] sm:$0xff]
  %v75 = vld [vmem:[%s1 + $0xc8] sm:$0xff]
  %v76 = vld [vmem:[%s1 + $0xd0] sm:$0xff]
  %v77 = vld [vmem:[%s1 + $0xd8] sm:$0xff]
  %v78 = vld [vmem:[%s1 + $0xe0] sm:$0xff]
  %v79 = vld [vmem:[%s1 + $0xe8] sm:$0xff]
  %v80 = vld [vmem:[%s1 + $0xf0] sm:$0xff]
  %v81 = vld [vmem:[%s1 + $0xf8] sm:$0xff]
  %v82 = vld [vmem:[%s1 + $0x100] sm:$0xff]
  %v83 = vld [vmem:[%s1 + $0x108] sm:$0xff]
  %v84 = vld [vmem:[%s1 + $0x110] sm:$0xff]
  %v85 = vld [vmem:[%s1 + $0x118] sm:$0xff]
  %v86 = vld [vmem:[%s1 + $0x120] sm:$0xff]
  %v87 = vld [vmem:[%s1 + $0x128] sm:$0xff]
  %v88 = vld [vmem:[%s1 + $0x130] sm:$0xff]
  %v89 = vld [vmem:[%s1 + $0x138] sm:$0xff]
  %v90 = vld [vmem:[%s1 + $0x140] sm:$0xff]
  %v91 = vld [vmem:[%s1 + $0x148] sm:$0xff]
  %v92 = vld [vmem:[%s1 + $0x150] sm:$0xff]
  %v93 = vld [vmem:[%s1 + $0x158] sm:$0xff]
  %v94 = vld [vmem:[%s1 + $0x160] sm:$0xff]
  %v95 = vld [vmem:[%s1 + $0x168] sm:$0xff]
  %v96 = vld [vmem:[%s1 + $0x170] sm:$0xff]
  %v97 = vld [vmem:[%s1 + $0x178] sm:$0xff]
  %v98 = vld [vmem:[%s1 + $0x180] sm:$0xff]
  %v99 = vld [vmem:[%s1 + $0x188] sm:$0xff]
  %v100 = vld [vmem:[%s1 + $0x190] sm:$0xff]
  %v101 = vld [vmem:[%s1 + $0x198] sm:$0xff]
  %v102 = vld [vmem:[%s1 + $0x1a0] sm:$0xff]
  %v103 = vld [vmem:[%s1 + $0x1a8] sm:$0xff]
  %v104 = vld [vmem:[%s1 + $0x1b0] sm:$0xff]
  %v105 = vld [vmem:[%s1 + $0x1b8] sm:$0xff]
  %v106 = vld [vmem:[%s1 + $0x1c0] sm:$0xff]
  %v107 = vld [vmem:[%s1 + $0x1c8] sm:$0xff]
  %v108 = vld [vmem:[%s1 + $0x1d0] sm:$0xff]
  %v109 = vld [vmem:[%s1 + $0x1d8] sm:$0xff]
  %v110 = vld [vmem:[%s1 + $0x1e0] sm:$0xff]
  %v111 = vld [vmem:[%s1 + $0x1e8] sm:$0xff]
  %v112 = vld [vmem:[%s1 + $0x1f0] sm:$0xff]
  %v113 = vld [vmem:[%s1 + $0x1f8] sm:$0xff]
  %v114 = vld [vmem:[%s3] sm:$0xff]
  %v116 = vlaneseq
  %v117 = vshrl.u32 %v116, 7
  %v118 = vsub.s32 0, %v117
  %v119 = vrot.slane %v114, %v118
  %v120 = vlaneseq
  %v121 = vshrl.u32 %v120, 7
  %v122 = vsub.s32 1, %v121
  %v123 = vrot.slane %v114, %v122
  %v124 = vlaneseq
  %v125 = vshrl.u32 %v124, 7
  %v126 = vsub.s32 2, %v125
  %v127 = vrot.slane %v114, %v126
  %v128 = vlaneseq
  %v129 = vshrl.u32 %v128, 7
  %v130 = vsub.s32 3, %v129
  %v131 = vrot.slane %v114, %v130
  %v132 = vlaneseq
  %v133 = vshrl.u32 %v132, 7
  %v134 = vsub.s32 4, %v133
  %v135 = vrot.slane %v114, %v134
  %v136 = vlaneseq
  %v137 = vshrl.u32 %v136, 7
  %v138 = vsub.s32 5, %v137
  %v139 = vrot.slane %v114, %v138
  %v140 = vlaneseq
  %v141 = vshrl.u32 %v140, 7
  %v142 = vsub.s32 6, %v141
  %v143 = vrot.slane %v114, %v142
  %v144 = vlaneseq
  %v145 = vshrl.u32 %v144, 7
  %v146 = vsub.s32 7, %v145
  %v147 = vrot.slane %v114, %v146
  %v164 = vunpack.c.l.b16 %v42
  %v165 = vunpack.c.l.b16 %v43
  %v166 = vunpack.c.l.b16 %v44
  %v167 = vunpack.c.l.b16 %v45
  %v168 = vunpack.c.l.b16 %v46
  %v169 = vunpack.c.l.b16 %v47
  %v170 = vunpack.c.l.b16 %v48
  %v171 = vunpack.c.l.b16 %v49
  %v172 = vpack.c.b16 %v165, %v164
  %v173 = vpack.c.b16 %v167, %v166
  %v174 = vpack.c.b16 %v169, %v168
  %v175 = vpack.c.b16 %v171, %v170
  %v244 = vunpack.c.l.b16 %v50
  %v245 = vunpack.c.h.b16 %v50
  %v246 = vunpack.c.l.b16 %v51
  %v247 = vunpack.c.h.b16 %v51
  %v248 = vunpack.c.l.b16 %v52
  %v249 = vunpack.c.h.b16 %v52
  %v250 = vunpack.c.l.b16 %v53
  %v251 = vunpack.c.h.b16 %v53
  %v252 = vunpack.c.l.b16 %v54
  %v253 = vunpack.c.h.b16 %v54
  %v254 = vunpack.c.l.b16 %v55
  %v255 = vunpack.c.h.b16 %v55
  %v256 = vunpack.c.l.b16 %v56
  %v257 = vunpack.c.h.b16 %v56
  %v258 = vunpack.c.l.b16 %v57
  %v259 = vunpack.c.h.b16 %v57
  %v260 = vunpack.c.l.b16 %v58
  %v261 = vunpack.c.h.b16 %v58
  %v262 = vunpack.c.l.b16 %v59
  %v263 = vunpack.c.h.b16 %v59
  %v264 = vunpack.c.l.b16 %v60
  %v265 = vunpack.c.h.b16 %v60
  %v266 = vunpack.c.l.b16 %v61
  %v267 = vunpack.c.h.b16 %v61
  %v268 = vunpack.c.l.b16 %v62
  %v269 = vunpack.c.h.b16 %v62
  %v270 = vunpack.c.l.b16 %v63
  %v271 = vunpack.c.h.b16 %v63
  %v272 = vunpack.c.l.b16 %v64
  %v273 = vunpack.c.h.b16 %v64
  %v274 = vunpack.c.l.b16 %v65
  %v275 = vunpack.c.h.b16 %v65
  %v276 = vunpack.c.l.b16 %v66
  %v277 = vunpack.c.h.b16 %v66
  %v278 = vunpack.c.l.b16 %v67
  %v279 = vunpack.c.h.b16 %v67
  %v280 = vunpack.c.l.b16 %v68
  %v281 = vunpack.c.h.b16 %v68
  %v282 = vunpack.c.l.b16 %v69
  %v283 = vunpack.c.h.b16 %v69
  %v284 = vunpack.c.l.b16 %v70
  %v285 = vunpack.c.h.b16 %v70
  %v286 = vunpack.c.l.b16 %v71
  %v287 = vunpack.c.h.b16 %v71
  %v288 = vunpack.c.l.b16 %v72
  %v289 = vunpack.c.h.b16 %v72
  %v290 = vunpack.c.l.b16 %v73
  %v291 = vunpack.c.h.b16 %v73
  %v292 = vunpack.c.l.b16 %v74
  %v293 = vunpack.c.h.b16 %v74
  %v294 = vunpack.c.l.b16 %v75
  %v295 = vunpack.c.h.b16 %v75
  %v296 = vunpack.c.l.b16 %v76
  %v297 = vunpack.c.h.b16 %v76
  %v298 = vunpack.c.l.b16 %v77
  %v299 = vunpack.c.h.b16 %v77
  %v300 = vunpack.c.l.b16 %v78
  %v301 = vunpack.c.h.b16 %v78
  %v302 = vunpack.c.l.b16 %v79
  %v303 = vunpack.c.h.b16 %v79
  %v304 = vunpack.c.l.b16 %v80
  %v305 = vunpack.c.h.b16 %v80
  %v306 = vunpack.c.l.b16 %v81
  %v307 = vunpack.c.h.b16 %v81
  %v308 = vunpack.c.l.b16 %v82
  %v309 = vunpack.c.h.b16 %v82
  %v310 = vunpack.c.l.b16 %v83
  %v311 = vunpack.c.h.b16 %v83
  %v312 = vunpack.c.l.b16 %v84
  %v313 = vunpack.c.h.b16 %v84
  %v314 = vunpack.c.l.b16 %v85
  %v315 = vunpack.c.h.b16 %v85
  %v316 = vunpack.c.l.b16 %v86
  %v317 = vunpack.c.h.b16 %v86
  %v318 = vunpack.c.l.b16 %v87
  %v319 = vunpack.c.h.b16 %v87
  %v320 = vunpack.c.l.b16 %v88
  %v321 = vunpack.c.h.b16 %v88
  %v322 = vunpack.c.l.b16 %v89
  %v323 = vunpack.c.h.b16 %v89
  %v324 = vunpack.c.l.b16 %v90
  %v325 = vunpack.c.h.b16 %v90
  %v326 = vunpack.c.l.b16 %v91
  %v327 = vunpack.c.h.b16 %v91
  %v328 = vunpack.c.l.b16 %v92
  %v329 = vunpack.c.h.b16 %v92
  %v330 = vunpack.c.l.b16 %v93
  %v331 = vunpack.c.h.b16 %v93
  %v332 = vunpack.c.l.b16 %v94
  %v333 = vunpack.c.h.b16 %v94
  %v334 = vunpack.c.l.b16 %v95
  %v335 = vunpack.c.h.b16 %v95
  %v336 = vunpack.c.l.b16 %v96
  %v337 = vunpack.c.h.b16 %v96
  %v338 = vunpack.c.l.b16 %v97
  %v339 = vunpack.c.h.b16 %v97
  %v340 = vunpack.c.l.b16 %v98
  %v341 = vunpack.c.h.b16 %v98
  %v342 = vunpack.c.l.b16 %v99
  %v343 = vunpack.c.h.b16 %v99
  %v344 = vunpack.c.l.b16 %v100
  %v345 = vunpack.c.h.b16 %v100
  %v346 = vunpack.c.l.b16 %v101
  %v347 = vunpack.c.h.b16 %v101
  %v348 = vunpack.c.l.b16 %v102
  %v349 = vunpack.c.h.b16 %v102
  %v350 = vunpack.c.l.b16 %v103
  %v351 = vunpack.c.h.b16 %v103
  %v352 = vunpack.c.l.b16 %v104
  %v353 = vunpack.c.h.b16 %v104
  %v354 = vunpack.c.l.b16 %v105
  %v355 = vunpack.c.h.b16 %v105
  %v356 = vunpack.c.l.b16 %v106
  %v357 = vunpack.c.h.b16 %v106
  %v358 = vunpack.c.l.b16 %v107
  %v359 = vunpack.c.h.b16 %v107
  %v360 = vunpack.c.l.b16 %v108
  %v361 = vunpack.c.h.b16 %v108
  %v362 = vunpack.c.l.b16 %v109
  %v363 = vunpack.c.h.b16 %v109
  %v364 = vunpack.c.l.b16 %v110
  %v365 = vunpack.c.h.b16 %v110
  %v366 = vunpack.c.l.b16 %v111
  %v367 = vunpack.c.h.b16 %v111
  %v368 = vunpack.c.l.b16 %v112
  %v369 = vunpack.c.h.b16 %v112
  %v370 = vunpack.c.l.b16 %v113
  %v371 = vunpack.c.h.b16 %v113
  %v372 = vpack.c.b16 %v252, %v244
  %v373 = vpack.c.b16 %v253, %v245
  %v374 = vpack.c.b16 %v254, %v246
  %v375 = vpack.c.b16 %v255, %v247
  %v376 = vpack.c.b16 %v256, %v248
  %v377 = vpack.c.b16 %v257, %v249
  %v378 = vpack.c.b16 %v258, %v250
  %v379 = vpack.c.b16 %v259, %v251
  %v380 = vpack.c.b16 %v268, %v260
  %v381 = vpack.c.b16 %v269, %v261
  %v382 = vpack.c.b16 %v270, %v262
  %v383 = vpack.c.b16 %v271, %v263
  %v384 = vpack.c.b16 %v272, %v264
  %v385 = vpack.c.b16 %v273, %v265
  %v386 = vpack.c.b16 %v274, %v266
  %v387 = vpack.c.b16 %v275, %v267
  %v388 = vpack.c.b16 %v284, %v276
  %v389 = vpack.c.b16 %v285, %v277
  %v390 = vpack.c.b16 %v286, %v278
  %v391 = vpack.c.b16 %v287, %v279
  %v392 = vpack.c.b16 %v288, %v280
  %v393 = vpack.c.b16 %v289, %v281
  %v394 = vpack.c.b16 %v290, %v282
  %v395 = vpack.c.b16 %v291, %v283
  %v396 = vpack.c.b16 %v300, %v292
  %v397 = vpack.c.b16 %v301, %v293
  %v398 = vpack.c.b16 %v302, %v294
  %v399 = vpack.c.b16 %v303, %v295
  %v400 = vpack.c.b16 %v304, %v296
  %v401 = vpack.c.b16 %v305, %v297
  %v402 = vpack.c.b16 %v306, %v298
  %v403 = vpack.c.b16 %v307, %v299
  %v404 = vpack.c.b16 %v316, %v308
  %v405 = vpack.c.b16 %v317, %v309
  %v406 = vpack.c.b16 %v318, %v310
  %v407 = vpack.c.b16 %v319, %v311
  %v408 = vpack.c.b16 %v320, %v312
  %v409 = vpack.c.b16 %v321, %v313
  %v410 = vpack.c.b16 %v322, %v314
  %v411 = vpack.c.b16 %v323, %v315
  %v412 = vpack.c.b16 %v332, %v324
  %v413 = vpack.c.b16 %v333, %v325
  %v414 = vpack.c.b16 %v334, %v326
  %v415 = vpack.c.b16 %v335, %v327
  %v416 = vpack.c.b16 %v336, %v328
  %v417 = vpack.c.b16 %v337, %v329
  %v418 = vpack.c.b16 %v338, %v330
  %v419 = vpack.c.b16 %v339, %v331
  %v420 = vpack.c.b16 %v348, %v340
  %v421 = vpack.c.b16 %v349, %v341
  %v422 = vpack.c.b16 %v350, %v342
  %v423 = vpack.c.b16 %v351, %v343
  %v424 = vpack.c.b16 %v352, %v344
  %v425 = vpack.c.b16 %v353, %v345
  %v426 = vpack.c.b16 %v354, %v346
  %v427 = vpack.c.b16 %v355, %v347
  %v428 = vpack.c.b16 %v364, %v356
  %v429 = vpack.c.b16 %v365, %v357
  %v430 = vpack.c.b16 %v366, %v358
  %v431 = vpack.c.b16 %v367, %v359
  %v432 = vpack.c.b16 %v368, %v360
  %v433 = vpack.c.b16 %v369, %v361
  %v434 = vpack.c.b16 %v370, %v362
  %v435 = vpack.c.b16 %v371, %v363
  %500 = vmatprep.subr.bf16.mxu0 %v373
  %501 = vmatpush1.bf16.msra.mxu0 %v372
  %502 = vmatprep.subr.bf16.mxu0 %v381
  %503 = vmatpush1.bf16.msra.mxu0 %v380
  %504 = vmatprep.subr.bf16.mxu0 %v389
  %505 = vmatpush1.bf16.msra.mxu0 %v388
  %506 = vmatprep.subr.bf16.mxu0 %v397
  %507 = vmatpush1.bf16.msra.mxu0 %v396
  %508 = vmatprep.subr.bf16.mxu0 %v405
  %509 = vmatpush1.bf16.msra.mxu0 %v404
  %510 = vmatprep.subr.bf16.mxu0 %v413
  %511 = vmatpush1.bf16.msra.mxu0 %v412
  %512 = vmatprep.subr.bf16.mxu0 %v421
  %513 = vmatpush1.bf16.msra.mxu0 %v420
  %514 = vmatprep.subr.bf16.mxu0 %v429
  %515 = vmatpush1.bf16.msra.mxu0 %v428
  %516 = vmatprep.subr.bf16.mxu0 0
  %517 = vmatpush1.bf16.msra.mxu0 0
  %518 = vmatprep.subr.bf16.mxu0 0
  %519 = vmatpush1.bf16.msra.mxu0 0
  %520 = vmatprep.subr.bf16.mxu0 0
  %521 = vmatpush1.bf16.msra.mxu0 0
  %522 = vmatprep.subr.bf16.mxu0 0
  %523 = vmatpush1.bf16.msra.mxu0 0
  %524 = vmatprep.subr.bf16.mxu0 0
  %525 = vmatpush1.bf16.msra.mxu0 0
  %526 = vmatprep.subr.bf16.mxu0 0
  %527 = vmatpush1.bf16.msra.mxu0 0
  %528 = vmatprep.subr.bf16.mxu0 0
  %529 = vmatpush1.bf16.msra.mxu0 0
  %530 = vmatprep.subr.bf16.mxu0 0
  %531 = vmatpush1.bf16.msra.mxu0 0
  %532 = vmatprep.mubr.bf16.mxu0 0
  %533 = vmatmul.mubr.bf16.gmra.mrb[0].mxu0 %v172
  %v534 = vpop.f32.mrb[0].mxu0
  %v535 = vadd.f32 %v119, %v534
  %v536 = vpop.f32.mrb[0].mxu0
  %v537 = vadd.f32 %v123, %v536
  %v538 = vpop.f32.mrb[0].mxu0
  %v539 = vadd.f32 %v119, %v538
  %v540 = vpop.f32.mrb[0].mxu0
  %v541 = vadd.f32 %v123, %v540
  %542 = vmatprep.mubr.bf16.mxu0 0
  %543 = vmatmul.mubr.bf16.gmra.mrb[0].mxu0 %v173
  %v544 = vpop.f32.mrb[0].mxu0
  %v545 = vadd.f32 %v119, %v544
  %v546 = vpop.f32.mrb[0].mxu0
  %v547 = vadd.f32 %v123, %v546
  %v548 = vpop.f32.mrb[0].mxu0
  %v549 = vadd.f32 %v119, %v548
  %v550 = vpop.f32.mrb[0].mxu0
  %v551 = vadd.f32 %v123, %v550
  %552 = vmatprep.mubr.bf16.mxu0 0
  %553 = vmatmul.mubr.bf16.gmra.mrb[0].mxu0 %v174
  %v554 = vpop.f32.mrb[0].mxu0
  %v555 = vadd.f32 %v119, %v554
  %v556 = vpop.f32.mrb[0].mxu0
  %v557 = vadd.f32 %v123, %v556
  %v558 = vpop.f32.mrb[0].mxu0
  %v559 = vadd.f32 %v119, %v558
  %v560 = vpop.f32.mrb[0].mxu0
  %v561 = vadd.f32 %v123, %v560
  %562 = vmatprep.mubr.bf16.mxu0 0
  %563 = vmatmul.mubr.bf16.gmra.mrb[0].mxu0 %v175
  %v564 = vpop.f32.mrb[0].mxu0
  %v565 = vadd.f32 %v119, %v564
  %v566 = vpop.f32.mrb[0].mxu0
  %v567 = vadd.f32 %v123, %v566
  %v568 = vpop.f32.mrb[0].mxu0
  %v569 = vadd.f32 %v119, %v568
  %v570 = vpop.f32.mrb[0].mxu0
  %v571 = vadd.f32 %v123, %v570
  %572 = vdwg.mxu0
  %573 = vmatprep.subr.bf16.mxu0 %v375
  %574 = vmatpush1.bf16.msra.mxu0 %v374
  %575 = vmatprep.subr.bf16.mxu0 %v383
  %576 = vmatpush1.bf16.msra.mxu0 %v382
  %577 = vmatprep.subr.bf16.mxu0 %v391
  %578 = vmatpush1.bf16.msra.mxu0 %v390
  %579 = vmatprep.subr.bf16.mxu0 %v399
  %580 = vmatpush1.bf16.msra.mxu0 %v398
  %581 = vmatprep.subr.bf16.mxu0 %v407
  %582 = vmatpush1.bf16.msra.mxu0 %v406
  %583 = vmatprep.subr.bf16.mxu0 %v415
  %584 = vmatpush1.bf16.msra.mxu0 %v414
  %585 = vmatprep.subr.bf16.mxu0 %v423
  %586 = vmatpush1.bf16.msra.mxu0 %v422
  %587 = vmatprep.subr.bf16.mxu0 %v431
  %588 = vmatpush1.bf16.msra.mxu0 %v430
  %589 = vmatprep.subr.bf16.mxu0 0
  %590 = vmatpush1.bf16.msra.mxu0 0
  %591 = vmatprep.subr.bf16.mxu0 0
  %592 = vmatpush1.bf16.msra.mxu0 0
  %593 = vmatprep.subr.bf16.mxu0 0
  %594 = vmatpush1.bf16.msra.mxu0 0
  %595 = vmatprep.subr.bf16.mxu0 0
  %596 = vmatpush1.bf16.msra.mxu0 0
  %597 = vmatprep.subr.bf16.mxu0 0
  %598 = vmatpush1.bf16.msra.mxu0 0
  %599 = vmatprep.subr.bf16.mxu0 0
  %600 = vmatpush1.bf16.msra.mxu0 0
  %601 = vmatprep.subr.bf16.mxu0 0
  %602 = vmatpush1.bf16.msra.mxu0 0
  %603 = vmatprep.subr.bf16.mxu0 0
  %604 = vmatpush1.bf16.msra.mxu0 0
  %605 = vmatprep.mubr.bf16.mxu0 0
  %606 = vmatmul.mubr.bf16.gmra.mrb[0].mxu0 %v172
  %v607 = vpop.f32.mrb[0].mxu0
  %v608 = vadd.f32 %v127, %v607
  %v609 = vpop.f32.mrb[0].mxu0
  %v610 = vadd.f32 %v131, %v609
  %v611 = vpop.f32.mrb[0].mxu0
  %v612 = vadd.f32 %v127, %v611
  %v613 = vpop.f32.mrb[0].mxu0
  %v614 = vadd.f32 %v131, %v613
  %615 = vmatprep.mubr.bf16.mxu0 0
  %616 = vmatmul.mubr.bf16.gmra.mrb[0].mxu0 %v173
  %v617 = vpop.f32.mrb[0].mxu0
  %v618 = vadd.f32 %v127, %v617
  %v619 = vpop.f32.mrb[0].mxu0
  %v620 = vadd.f32 %v131, %v619
  %v621 = vpop.f32.mrb[0].mxu0
  %v622 = vadd.f32 %v127, %v621
  %v623 = vpop.f32.mrb[0].mxu0
  %v624 = vadd.f32 %v131, %v623
  %625 = vmatprep.mubr.bf16.mxu0 0
  %626 = vmatmul.mubr.bf16.gmra.mrb[0].mxu0 %v174
  %v627 = vpop.f32.mrb[0].mxu0
  %v628 = vadd.f32 %v127, %v627
  %v629 = vpop.f32.mrb[0].mxu0
  %v630 = vadd.f32 %v131, %v629
  %v631 = vpop.f32.mrb[0].mxu0
  %v632 = vadd.f32 %v127, %v631
  %v633 = vpop.f32.mrb[0].mxu0
  %v634 = vadd.f32 %v131, %v633
  %635 = vmatprep.mubr.bf16.mxu0 0
  %636 = vmatmul.mubr.bf16.gmra.mrb[0].mxu0 %v175
  %v637 = vpop.f32.mrb[0].mxu0
  %v638 = vadd.f32 %v127, %v637
  %v639 = vpop.f32.mrb[0].mxu0
  %v640 = vadd.f32 %v131, %v639
  %v641 = vpop.f32.mrb[0].mxu0
  %v642 = vadd.f32 %v127, %v641
  %v643 = vpop.f32.mrb[0].mxu0
  %v644 = vadd.f32 %v131, %v643
  %645 = vdwg.mxu0
  %646 = vmatprep.subr.bf16.mxu0 %v377
  %647 = vmatpush1.bf16.msra.mxu0 %v376
  %648 = vmatprep.subr.bf16.mxu0 %v385
  %649 = vmatpush1.bf16.msra.mxu0 %v384
  %650 = vmatprep.subr.bf16.mxu0 %v393
  %651 = vmatpush1.bf16.msra.mxu0 %v392
  %652 = vmatprep.subr.bf16.mxu0 %v401
  %653 = vmatpush1.bf16.msra.mxu0 %v400
  %654 = vmatprep.subr.bf16.mxu0 %v409
  %655 = vmatpush1.bf16.msra.mxu0 %v408
  %656 = vmatprep.subr.bf16.mxu0 %v417
  %657 = vmatpush1.bf16.msra.mxu0 %v416
  %658 = vmatprep.subr.bf16.mxu0 %v425
  %659 = vmatpush1.bf16.msra.mxu0 %v424
  %660 = vmatprep.subr.bf16.mxu0 %v433
  %661 = vmatpush1.bf16.msra.mxu0 %v432
  %662 = vmatprep.subr.bf16.mxu0 0
  %663 = vmatpush1.bf16.msra.mxu0 0
  %664 = vmatprep.subr.bf16.mxu0 0
  %665 = vmatpush1.bf16.msra.mxu0 0
  %666 = vmatprep.subr.bf16.mxu0 0
  %667 = vmatpush1.bf16.msra.mxu0 0
  %668 = vmatprep.subr.bf16.mxu0 0
  %669 = vmatpush1.bf16.msra.mxu0 0
  %670 = vmatprep.subr.bf16.mxu0 0
  %671 = vmatpush1.bf16.msra.mxu0 0
  %672 = vmatprep.subr.bf16.mxu0 0
  %673 = vmatpush1.bf16.msra.mxu0 0
  %674 = vmatprep.subr.bf16.mxu0 0
  %675 = vmatpush1.bf16.msra.mxu0 0
  %676 = vmatprep.subr.bf16.mxu0 0
  %677 = vmatpush1.bf16.msra.mxu0 0
  %678 = vmatprep.mubr.bf16.mxu0 0
  %679 = vmatmul.mubr.bf16.gmra.mrb[0].mxu0 %v172
  %v680 = vpop.f32.mrb[0].mxu0
  %v681 = vadd.f32 %v135, %v680
  %v682 = vpop.f32.mrb[0].mxu0
  %v683 = vadd.f32 %v139, %v682
  %v684 = vpop.f32.mrb[0].mxu0
  %v685 = vadd.f32 %v135, %v684
  %v686 = vpop.f32.mrb[0].mxu0
  %v687 = vadd.f32 %v139, %v686
  %688 = vmatprep.mubr.bf16.mxu0 0
  %689 = vmatmul.mubr.bf16.gmra.mrb[0].mxu0 %v173
  %v690 = vpop.f32.mrb[0].mxu0
  %v691 = vadd.f32 %v135, %v690
  %v692 = vpop.f32.mrb[0].mxu0
  %v693 = vadd.f32 %v139, %v692
  %v694 = vpop.f32.mrb[0].mxu0
  %v695 = vadd.f32 %v135, %v694
  %v696 = vpop.f32.mrb[0].mxu0
  %v697 = vadd.f32 %v139, %v696
  %698 = vmatprep.mubr.bf16.mxu0 0
  %699 = vmatmul.mubr.bf16.gmra.mrb[0].mxu0 %v174
  %v700 = vpop.f32.mrb[0].mxu0
  %v701 = vadd.f32 %v135, %v700
  %v702 = vpop.f32.mrb[0].mxu0
  %v703 = vadd.f32 %v139, %v702
  %v704 = vpop.f32.mrb[0].mxu0
  %v705 = vadd.f32 %v135, %v704
  %v706 = vpop.f32.mrb[0].mxu0
  %v707 = vadd.f32 %v139, %v706
  %708 = vmatprep.mubr.bf16.mxu0 0
  %709 = vmatmul.mubr.bf16.gmra.mrb[0].mxu0 %v175
  %v710 = vpop.f32.mrb[0].mxu0
  %v711 = vadd.f32 %v135, %v710
  %v712 = vpop.f32.mrb[0].mxu0
  %v713 = vadd.f32 %v139, %v712
  %v714 = vpop.f32.mrb[0].mxu0
  %v715 = vadd.f32 %v135, %v714
  %v716 = vpop.f32.mrb[0].mxu0
  %v717 = vadd.f32 %v139, %v716
  %718 = vdwg.mxu0
  %719 = vmatprep.subr.bf16.mxu0 %v379
  %720 = vmatpush1.bf16.msra.mxu0 %v378
  %721 = vmatprep.subr.bf16.mxu0 %v387
  %722 = vmatpush1.bf16.msra.mxu0 %v386
  %723 = vmatprep.subr.bf16.mxu0 %v395
  %724 = vmatpush1.bf16.msra.mxu0 %v394
  %725 = vmatprep.subr.bf16.mxu0 %v403
  %726 = vmatpush1.bf16.msra.mxu0 %v402
  %727 = vmatprep.subr.bf16.mxu0 %v411
  %728 = vmatpush1.bf16.msra.mxu0 %v410
  %729 = vmatprep.subr.bf16.mxu0 %v419
  %730 = vmatpush1.bf16.msra.mxu0 %v418
  %731 = vmatprep.subr.bf16.mxu0 %v427
  %732 = vmatpush1.bf16.msra.mxu0 %v426
  %733 = vmatprep.subr.bf16.mxu0 %v435
  %734 = vmatpush1.bf16.msra.mxu0 %v434
  %735 = vmatprep.subr.bf16.mxu0 0
  %736 = vmatpush1.bf16.msra.mxu0 0
  %737 = vmatprep.subr.bf16.mxu0 0
  %738 = vmatpush1.bf16.msra.mxu0 0
  %739 = vmatprep.subr.bf16.mxu0 0
  %740 = vmatpush1.bf16.msra.mxu0 0
  %741 = vmatprep.subr.bf16.mxu0 0
  %742 = vmatpush1.bf16.msra.mxu0 0
  %743 = vmatprep.subr.bf16.mxu0 0
  %744 = vmatpush1.bf16.msra.mxu0 0
  %745 = vmatprep.subr.bf16.mxu0 0
  %746 = vmatpush1.bf16.msra.mxu0 0
  %747 = vmatprep.subr.bf16.mxu0 0
  %748 = vmatpush1.bf16.msra.mxu0 0
  %749 = vmatprep.subr.bf16.mxu0 0
  %750 = vmatpush1.bf16.msra.mxu0 0
  %751 = vmatprep.mubr.bf16.mxu0 0
  %752 = vmatmul.mubr.bf16.gmra.mrb[0].mxu0 %v172
  %v753 = vpop.f32.mrb[0].mxu0
  %v754 = vadd.f32 %v143, %v753
  %v755 = vpop.f32.mrb[0].mxu0
  %v756 = vadd.f32 %v147, %v755
  %v757 = vpop.f32.mrb[0].mxu0
  %v758 = vadd.f32 %v143, %v757
  %v759 = vpop.f32.mrb[0].mxu0
  %v760 = vadd.f32 %v147, %v759
  %761 = vmatprep.mubr.bf16.mxu0 0
  %762 = vmatmul.mubr.bf16.gmra.mrb[0].mxu0 %v173
  %v763 = vpop.f32.mrb[0].mxu0
  %v764 = vadd.f32 %v143, %v763
  %v765 = vpop.f32.mrb[0].mxu0
  %v766 = vadd.f32 %v147, %v765
  %v767 = vpop.f32.mrb[0].mxu0
  %v768 = vadd.f32 %v143, %v767
  %v769 = vpop.f32.mrb[0].mxu0
  %v770 = vadd.f32 %v147, %v769
  %771 = vmatprep.mubr.bf16.mxu0 0
  %772 = vmatmul.mubr.bf16.gmra.mrb[0].mxu0 %v174
  %v773 = vpop.f32.mrb[0].mxu0
  %v774 = vadd.f32 %v143, %v773
  %v775 = vpop.f32.mrb[0].mxu0
  %v776 = vadd.f32 %v147, %v775
  %v777 = vpop.f32.mrb[0].mxu0
  %v778 = vadd.f32 %v143, %v777
  %v779 = vpop.f32.mrb[0].mxu0
  %v780 = vadd.f32 %v147, %v779
  %781 = vmatprep.mubr.bf16.mxu0 0
  %782 = vmatmul.mubr.bf16.gmra.mrb[0].mxu0 %v175
  %v783 = vpop.f32.mrb[0].mxu0
  %v784 = vadd.f32 %v143, %v783
  %v785 = vpop.f32.mrb[0].mxu0
  %v786 = vadd.f32 %v147, %v785
  %v787 = vpop.f32.mrb[0].mxu0
  %v788 = vadd.f32 %v143, %v787
  %v789 = vpop.f32.mrb[0].mxu0
  %v790 = vadd.f32 %v147, %v789
  %791 = vdwg.mxu0
  %792 = vst [vmem:[#allocation2] sm:$0xff] %v535
  %793 = vst [vmem:[#allocation2 + $0x8] sm:$0xff] %v537
  %794 = vst [vmem:[#allocation2 + $0x10] sm:$0xff] %v608
  %795 = vst [vmem:[#allocation2 + $0x18] sm:$0xff] %v610
  %796 = vst [vmem:[#allocation2 + $0x20] sm:$0xff] %v681
  %797 = vst [vmem:[#allocation2 + $0x28] sm:$0xff] %v683
  %798 = vst [vmem:[#allocation2 + $0x30] sm:$0xff] %v754
  %799 = vst [vmem:[#allocation2 + $0x38] sm:$0xff] %v756
  %800 = vst [vmem:[#allocation2 + $0x40] sm:$0xff] %v539
  %801 = vst [vmem:[#allocation2 + $0x48] sm:$0xff] %v541
  %802 = vst [vmem:[#allocation2 + $0x50] sm:$0xff] %v612
  %803 = vst [vmem:[#allocation2 + $0x58] sm:$0xff] %v614
  %804 = vst [vmem:[#allocation2 + $0x60] sm:$0xff] %v685
  %805 = vst [vmem:[#allocation2 + $0x68] sm:$0xff] %v687
  %806 = vst [vmem:[#allocation2 + $0x70] sm:$0xff] %v758
  %807 = vst [vmem:[#allocation2 + $0x78] sm:$0xff] %v760
  %808 = vst [vmem:[#allocation2 + $0x80] sm:$0xff] %v545
  %809 = vst [vmem:[#allocation2 + $0x88] sm:$0xff] %v547
  %810 = vst [vmem:[#allocation2 + $0x90] sm:$0xff] %v618
  %811 = vst [vmem:[#allocation2 + $0x98] sm:$0xff] %v620
  %812 = vst [vmem:[#allocation2 + $0xa0] sm:$0xff] %v691
  %813 = vst [vmem:[#allocation2 + $0xa8] sm:$0xff] %v693
  %814 = vst [vmem:[#allocation2 + $0xb0] sm:$0xff] %v764
  %815 = vst [vmem:[#allocation2 + $0xb8] sm:$0xff] %v766
  %816 = vst [vmem:[#allocation2 + $0xc0] sm:$0xff] %v549
  %817 = vst [vmem:[#allocation2 + $0xc8] sm:$0xff] %v551
  %818 = vst [vmem:[#allocation2 + $0xd0] sm:$0xff] %v622
  %819 = vst [vmem:[#allocation2 + $0xd8] sm:$0xff] %v624
  %820 = vst [vmem:[#allocation2 + $0xe0] sm:$0xff] %v695
  %821 = vst [vmem:[#allocation2 + $0xe8] sm:$0xff] %v697
  %822 = vst [vmem:[#allocation2 + $0xf0] sm:$0xff] %v768
  %823 = vst [vmem:[#allocation2 + $0xf8] sm:$0xff] %v770
  %824 = vst [vmem:[#allocation2 + $0x100] sm:$0xff] %v555
  %825 = vst [vmem:[#allocation2 + $0x108] sm:$0xff] %v557
  %826 = vst [vmem:[#allocation2 + $0x110] sm:$0xff] %v628
  %827 = vst [vmem:[#allocation2 + $0x118] sm:$0xff] %v630
  %828 = vst [vmem:[#allocation2 + $0x120] sm:$0xff] %v701
  %829 = vst [vmem:[#allocation2 + $0x128] sm:$0xff] %v703
  %830 = vst [vmem:[#allocation2 + $0x130] sm:$0xff] %v774
  %831 = vst [vmem:[#allocation2 + $0x138] sm:$0xff] %v776
  %832 = vst [vmem:[#allocation2 + $0x140] sm:$0xff] %v559
  %833 = vst [vmem:[#allocation2 + $0x148] sm:$0xff] %v561
  %834 = vst [vmem:[#allocation2 + $0x150] sm:$0xff] %v632
  %835 = vst [vmem:[#allocation2 + $0x158] sm:$0xff] %v634
  %836 = vst [vmem:[#allocation2 + $0x160] sm:$0xff] %v705
  %837 = vst [vmem:[#allocation2 + $0x168] sm:$0xff] %v707
  %838 = vst [vmem:[#allocation2 + $0x170] sm:$0xff] %v778
  %839 = vst [vmem:[#allocation2 + $0x178] sm:$0xff] %v780
  %840 = vst [vmem:[#allocation2 + $0x180] sm:$0xff] %v565
  %841 = vst [vmem:[#allocation2 + $0x188] sm:$0xff] %v567
  %842 = vst [vmem:[#allocation2 + $0x190] sm:$0xff] %v638
  %843 = vst [vmem:[#allocation2 + $0x198] sm:$0xff] %v640
  %844 = vst [vmem:[#allocation2 + $0x1a0] sm:$0xff] %v711
  %845 = vst [vmem:[#allocation2 + $0x1a8] sm:$0xff] %v713
  %846 = vst [vmem:[#allocation2 + $0x1b0] sm:$0xff] %v784
  %847 = vst [vmem:[#allocation2 + $0x1b8] sm:$0xff] %v786
  %848 = vst [vmem:[#allocation2 + $0x1c0] sm:$0xff] %v569
  %849 = vst [vmem:[#allocation2 + $0x1c8] sm:$0xff] %v571
  %850 = vst [vmem:[#allocation2 + $0x1d0] sm:$0xff] %v642
  %851 = vst [vmem:[#allocation2 + $0x1d8] sm:$0xff] %v644
  %852 = vst [vmem:[#allocation2 + $0x1e0] sm:$0xff] %v715
  %853 = vst [vmem:[#allocation2 + $0x1e8] sm:$0xff] %v717
  %854 = vst [vmem:[#allocation2 + $0x1f0] sm:$0xff] %v788
  %855 = vst [vmem:[#allocation2 + $0x1f8] sm:$0xff] %v790
  %v856 = vld [vmem:[%s2] sm:$0xff]
  %v857 = vld [vmem:[%s2 + $0x8] sm:$0xff]
  %v858 = vld [vmem:[%s2 + $0x10] sm:$0xff]
  %v859 = vld [vmem:[%s2 + $0x18] sm:$0xff]
  %v860 = vld [vmem:[%s2 + $0x20] sm:$0xff]
  %v861 = vld [vmem:[%s2 + $0x28] sm:$0xff]
  %v862 = vld [vmem:[%s2 + $0x30] sm:$0xff]
  %v863 = vld [vmem:[%s2 + $0x38] sm:$0xff]
  %v864 = vld [vmem:[%s2 + $0x40] sm:$0xff]
  %v865 = vld [vmem:[%s2 + $0x48] sm:$0xff]
  %v866 = vld [vmem:[%s2 + $0x50] sm:$0xff]
  %v867 = vld [vmem:[%s2 + $0x58] sm:$0xff]
  %v868 = vld [vmem:[%s2 + $0x60] sm:$0xff]
  %v869 = vld [vmem:[%s2 + $0x68] sm:$0xff]
  %v870 = vld [vmem:[%s2 + $0x70] sm:$0xff]
  %v871 = vld [vmem:[%s2 + $0x78] sm:$0xff]
  %v872 = vld [vmem:[%s2 + $0x80] sm:$0xff]
  %v873 = vld [vmem:[%s2 + $0x88] sm:$0xff]
  %v874 = vld [vmem:[%s2 + $0x90] sm:$0xff]
  %v875 = vld [vmem:[%s2 + $0x98] sm:$0xff]
  %v876 = vld [vmem:[%s2 + $0xa0] sm:$0xff]
  %v877 = vld [vmem:[%s2 + $0xa8] sm:$0xff]
  %v878 = vld [vmem:[%s2 + $0xb0] sm:$0xff]
  %v879 = vld [vmem:[%s2 + $0xb8] sm:$0xff]
  %v880 = vld [vmem:[%s2 + $0xc0] sm:$0xff]
  %v881 = vld [vmem:[%s2 + $0xc8] sm:$0xff]
  %v882 = vld [vmem:[%s2 + $0xd0] sm:$0xff]
  %v883 = vld [vmem:[%s2 + $0xd8] sm:$0xff]
  %v884 = vld [vmem:[%s2 + $0xe0] sm:$0xff]
  %v885 = vld [vmem:[%s2 + $0xe8] sm:$0xff]
  %v886 = vld [vmem:[%s2 + $0xf0] sm:$0xff]
  %v887 = vld [vmem:[%s2 + $0xf8] sm:$0xff]
  %v888 = vld [vmem:[%s2 + $0x100] sm:$0xff]
  %v889 = vld [vmem:[%s2 + $0x108] sm:$0xff]
  %v890 = vld [vmem:[%s2 + $0x110] sm:$0xff]
  %v891 = vld [vmem:[%s2 + $0x118] sm:$0xff]
  %v892 = vld [vmem:[%s2 + $0x120] sm:$0xff]
  %v893 = vld [vmem:[%s2 + $0x128] sm:$0xff]
  %v894 = vld [vmem:[%s2 + $0x130] sm:$0xff]
  %v895 = vld [vmem:[%s2 + $0x138] sm:$0xff]
  %v896 = vld [vmem:[%s2 + $0x140] sm:$0xff]
  %v897 = vld [vmem:[%s2 + $0x148] sm:$0xff]
  %v898 = vld [vmem:[%s2 + $0x150] sm:$0xff]
  %v899 = vld [vmem:[%s2 + $0x158] sm:$0xff]
  %v900 = vld [vmem:[%s2 + $0x160] sm:$0xff]
  %v901 = vld [vmem:[%s2 + $0x168] sm:$0xff]
  %v902 = vld [vmem:[%s2 + $0x170] sm:$0xff]
  %v903 = vld [vmem:[%s2 + $0x178] sm:$0xff]
  %v904 = vld [vmem:[%s2 + $0x180] sm:$0xff]
  %v905 = vld [vmem:[%s2 + $0x188] sm:$0xff]
  %v906 = vld [vmem:[%s2 + $0x190] sm:$0xff]
  %v907 = vld [vmem:[%s2 + $0x198] sm:$0xff]
  %v908 = vld [vmem:[%s2 + $0x1a0] sm:$0xff]
  %v909 = vld [vmem:[%s2 + $0x1a8] sm:$0xff]
  %v910 = vld [vmem:[%s2 + $0x1b0] sm:$0xff]
  %v911 = vld [vmem:[%s2 + $0x1b8] sm:$0xff]
  %v912 = vld [vmem:[%s2 + $0x1c0] sm:$0xff]
  %v913 = vld [vmem:[%s2 + $0x1c8] sm:$0xff]
  %v914 = vld [vmem:[%s2 + $0x1d0] sm:$0xff]
  %v915 = vld [vmem:[%s2 + $0x1d8] sm:$0xff]
  %v916 = vld [vmem:[%s2 + $0x1e0] sm:$0xff]
  %v917 = vld [vmem:[%s2 + $0x1e8] sm:$0xff]
  %v918 = vld [vmem:[%s2 + $0x1f0] sm:$0xff]
  %v919 = vld [vmem:[%s2 + $0x1f8] sm:$0xff]
  %v920 = vld [vmem:[%s2 + $0x200] sm:$0xff]
  %v921 = vld [vmem:[%s2 + $0x208] sm:$0xff]
  %v922 = vld [vmem:[%s2 + $0x210] sm:$0xff]
  %v923 = vld [vmem:[%s2 + $0x218] sm:$0xff]
  %v924 = vld [vmem:[%s2 + $0x220] sm:$0xff]
  %v925 = vld [vmem:[%s2 + $0x228] sm:$0xff]
  %v926 = vld [vmem:[%s2 + $0x230] sm:$0xff]
  %v927 = vld [vmem:[%s2 + $0x238] sm:$0xff]
  %v928 = vld [vmem:[%s2 + $0x240] sm:$0xff]
  %v929 = vld [vmem:[%s2 + $0x248] sm:$0xff]
  %v930 = vld [vmem:[%s2 + $0x250] sm:$0xff]
  %v931 = vld [vmem:[%s2 + $0x258] sm:$0xff]
  %v932 = vld [vmem:[%s2 + $0x260] sm:$0xff]
  %v933 = vld [vmem:[%s2 + $0x268] sm:$0xff]
  %v934 = vld [vmem:[%s2 + $0x270] sm:$0xff]
  %v935 = vld [vmem:[%s2 + $0x278] sm:$0xff]
  %v936 = vld [vmem:[%s2 + $0x280] sm:$0xff]
  %v937 = vld [vmem:[%s2 + $0x288] sm:$0xff]
  %v938 = vld [vmem:[%s2 + $0x290] sm:$0xff]
  %v939 = vld [vmem:[%s2 + $0x298] sm:$0xff]
  %v940 = vld [vmem:[%s2 + $0x2a0] sm:$0xff]
  %v941 = vld [vmem:[%s2 + $0x2a8] sm:$0xff]
  %v942 = vld [vmem:[%s2 + $0x2b0] sm:$0xff]
  %v943 = vld [vmem:[%s2 + $0x2b8] sm:$0xff]
  %v944 = vld [vmem:[%s2 + $0x2c0] sm:$0xff]
  %v945 = vld [vmem:[%s2 + $0x2c8] sm:$0xff]
  %v946 = vld [vmem:[%s2 + $0x2d0] sm:$0xff]
  %v947 = vld [vmem:[%s2 + $0x2d8] sm:$0xff]
  %v948 = vld [vmem:[%s2 + $0x2e0] sm:$0xff]
  %v949 = vld [vmem:[%s2 + $0x2e8] sm:$0xff]
  %v950 = vld [vmem:[%s2 + $0x2f0] sm:$0xff]
  %v951 = vld [vmem:[%s2 + $0x2f8] sm:$0xff]
  %v952 = vld [vmem:[%s2 + $0x300] sm:$0xff]
  %v953 = vld [vmem:[%s2 + $0x308] sm:$0xff]
  %v954 = vld [vmem:[%s2 + $0x310] sm:$0xff]
  %v955 = vld [vmem:[%s2 + $0x318] sm:$0xff]
  %v956 = vld [vmem:[%s2 + $0x320] sm:$0xff]
  %v957 = vld [vmem:[%s2 + $0x328] sm:$0xff]
  %v958 = vld [vmem:[%s2 + $0x330] sm:$0xff]
  %v959 = vld [vmem:[%s2 + $0x338] sm:$0xff]
  %v960 = vld [vmem:[%s2 + $0x340] sm:$0xff]
  %v961 = vld [vmem:[%s2 + $0x348] sm:$0xff]
  %v962 = vld [vmem:[%s2 + $0x350] sm:$0xff]
  %v963 = vld [vmem:[%s2 + $0x358] sm:$0xff]
  %v964 = vld [vmem:[%s2 + $0x360] sm:$0xff]
  %v965 = vld [vmem:[%s2 + $0x368] sm:$0xff]
  %v966 = vld [vmem:[%s2 + $0x370] sm:$0xff]
  %v967 = vld [vmem:[%s2 + $0x378] sm:$0xff]
  %v968 = vld [vmem:[%s2 + $0x380] sm:$0xff]
  %v969 = vld [vmem:[%s2 + $0x388] sm:$0xff]
  %v970 = vld [vmem:[%s2 + $0x390] sm:$0xff]
  %v971 = vld [vmem:[%s2 + $0x398] sm:$0xff]
  %v972 = vld [vmem:[%s2 + $0x3a0] sm:$0xff]
  %v973 = vld [vmem:[%s2 + $0x3a8] sm:$0xff]
  %v974 = vld [vmem:[%s2 + $0x3b0] sm:$0xff]
  %v975 = vld [vmem:[%s2 + $0x3b8] sm:$0xff]
  %v976 = vld [vmem:[%s2 + $0x3c0] sm:$0xff]
  %v977 = vld [vmem:[%s2 + $0x3c8] sm:$0xff]
  %v978 = vld [vmem:[%s2 + $0x3d0] sm:$0xff]
  %v979 = vld [vmem:[%s2 + $0x3d8] sm:$0xff]
  %v980 = vld [vmem:[%s2 + $0x3e0] sm:$0xff]
  %v981 = vld [vmem:[%s2 + $0x3e8] sm:$0xff]
  %v982 = vld [vmem:[%s2 + $0x3f0] sm:$0xff]
  %v983 = vld [vmem:[%s2 + $0x3f8] sm:$0xff]
  %v984 = vld [vmem:[%s5] sm:$0xff]
  %v985 = vld [vmem:[%s5 + $0x8] sm:$0xff]
  %v986 = vld [vmem:[%s5 + $0x10] sm:$0xff]
  %v987 = vld [vmem:[%s5 + $0x18] sm:$0xff]
  %v988 = vld [vmem:[%s5 + $0x20] sm:$0xff]
  %v989 = vld [vmem:[%s5 + $0x28] sm:$0xff]
  %v990 = vld [vmem:[%s5 + $0x30] sm:$0xff]
  %v991 = vld [vmem:[%s5 + $0x38] sm:$0xff]
  %v992 = vld [vmem:[%s5 + $0x40] sm:$0xff]
  %v993 = vld [vmem:[%s5 + $0x48] sm:$0xff]
  %v994 = vld [vmem:[%s5 + $0x50] sm:$0xff]
  %v995 = vld [vmem:[%s5 + $0x58] sm:$0xff]
  %v996 = vld [vmem:[%s5 + $0x60] sm:$0xff]
  %v997 = vld [vmem:[%s5 + $0x68] sm:$0xff]
  %v998 = vld [vmem:[%s5 + $0x70] sm:$0xff]
  %v999 = vld [vmem:[%s5 + $0x78] sm:$0xff]
  %v1000 = vld [vmem:[%s5 + $0x80] sm:$0xff]
  %v1001 = vld [vmem:[%s5 + $0x88] sm:$0xff]
  %v1002 = vld [vmem:[%s5 + $0x90] sm:$0xff]
  %v1003 = vld [vmem:[%s5 + $0x98] sm:$0xff]
  %v1004 = vld [vmem:[%s5 + $0xa0] sm:$0xff]
  %v1005 = vld [vmem:[%s5 + $0xa8] sm:$0xff]
  %v1006 = vld [vmem:[%s5 + $0xb0] sm:$0xff]
  %v1007 = vld [vmem:[%s5 + $0xb8] sm:$0xff]
  %v1008 = vld [vmem:[%s5 + $0xc0] sm:$0xff]
  %v1009 = vld [vmem:[%s5 + $0xc8] sm:$0xff]
  %v1010 = vld [vmem:[%s5 + $0xd0] sm:$0xff]
  %v1011 = vld [vmem:[%s5 + $0xd8] sm:$0xff]
  %v1012 = vld [vmem:[%s5 + $0xe0] sm:$0xff]
  %v1013 = vld [vmem:[%s5 + $0xe8] sm:$0xff]
  %v1014 = vld [vmem:[%s5 + $0xf0] sm:$0xff]
  %v1015 = vld [vmem:[%s5 + $0xf8] sm:$0xff]
  %v1016 = vld [vmem:[%s5 + $0x100] sm:$0xff]
  %v1017 = vld [vmem:[%s5 + $0x108] sm:$0xff]
  %v1018 = vld [vmem:[%s5 + $0x110] sm:$0xff]
  %v1019 = vld [vmem:[%s5 + $0x118] sm:$0xff]
  %v1020 = vld [vmem:[%s5 + $0x120] sm:$0xff]
  %v1021 = vld [vmem:[%s5 + $0x128] sm:$0xff]
  %v1022 = vld [vmem:[%s5 + $0x130] sm:$0xff]
  %v1023 = vld [vmem:[%s5 + $0x138] sm:$0xff]
  %v1024 = vld [vmem:[%s5 + $0x140] sm:$0xff]
  %v1025 = vld [vmem:[%s5 + $0x148] sm:$0xff]
  %v1026 = vld [vmem:[%s5 + $0x150] sm:$0xff]
  %v1027 = vld [vmem:[%s5 + $0x158] sm:$0xff]
  %v1028 = vld [vmem:[%s5 + $0x160] sm:$0xff]
  %v1029 = vld [vmem:[%s5 + $0x168] sm:$0xff]
  %v1030 = vld [vmem:[%s5 + $0x170] sm:$0xff]
  %v1031 = vld [vmem:[%s5 + $0x178] sm:$0xff]
  %v1032 = vld [vmem:[%s5 + $0x180] sm:$0xff]
  %v1033 = vld [vmem:[%s5 + $0x188] sm:$0xff]
  %v1034 = vld [vmem:[%s5 + $0x190] sm:$0xff]
  %v1035 = vld [vmem:[%s5 + $0x198] sm:$0xff]
  %v1036 = vld [vmem:[%s5 + $0x1a0] sm:$0xff]
  %v1037 = vld [vmem:[%s5 + $0x1a8] sm:$0xff]
  %v1038 = vld [vmem:[%s5 + $0x1b0] sm:$0xff]
  %v1039 = vld [vmem:[%s5 + $0x1b8] sm:$0xff]
  %v1040 = vld [vmem:[%s5 + $0x1c0] sm:$0xff]
  %v1041 = vld [vmem:[%s5 + $0x1c8] sm:$0xff]
  %v1042 = vld [vmem:[%s5 + $0x1d0] sm:$0xff]
  %v1043 = vld [vmem:[%s5 + $0x1d8] sm:$0xff]
  %v1044 = vld [vmem:[%s5 + $0x1e0] sm:$0xff]
  %v1045 = vld [vmem:[%s5 + $0x1e8] sm:$0xff]
  %v1046 = vld [vmem:[%s5 + $0x1f0] sm:$0xff]
  %v1047 = vld [vmem:[%s5 + $0x1f8] sm:$0xff]
  %v1048 = vld [vmem:[%s5 + $0x200] sm:$0xff]
  %v1049 = vld [vmem:[%s5 + $0x208] sm:$0xff]
  %v1050 = vld [vmem:[%s5 + $0x210] sm:$0xff]
  %v1051 = vld [vmem:[%s5 + $0x218] sm:$0xff]
  %v1052 = vld [vmem:[%s5 + $0x220] sm:$0xff]
  %v1053 = vld [vmem:[%s5 + $0x228] sm:$0xff]
  %v1054 = vld [vmem:[%s5 + $0x230] sm:$0xff]
  %v1055 = vld [vmem:[%s5 + $0x238] sm:$0xff]
  %v1056 = vld [vmem:[%s5 + $0x240] sm:$0xff]
  %v1057 = vld [vmem:[%s5 + $0x248] sm:$0xff]
  %v1058 = vld [vmem:[%s5 + $0x250] sm:$0xff]
  %v1059 = vld [vmem:[%s5 + $0x258] sm:$0xff]
  %v1060 = vld [vmem:[%s5 + $0x260] sm:$0xff]
  %v1061 = vld [vmem:[%s5 + $0x268] sm:$0xff]
  %v1062 = vld [vmem:[%s5 + $0x270] sm:$0xff]
  %v1063 = vld [vmem:[%s5 + $0x278] sm:$0xff]
  %v1064 = vld [vmem:[%s5 + $0x280] sm:$0xff]
  %v1065 = vld [vmem:[%s5 + $0x288] sm:$0xff]
  %v1066 = vld [vmem:[%s5 + $0x290] sm:$0xff]
  %v1067 = vld [vmem:[%s5 + $0x298] sm:$0xff]
  %v1068 = vld [vmem:[%s5 + $0x2a0] sm:$0xff]
  %v1069 = vld [vmem:[%s5 + $0x2a8] sm:$0xff]
  %v1070 = vld [vmem:[%s5 + $0x2b0] sm:$0xff]
  %v1071 = vld [vmem:[%s5 + $0x2b8] sm:$0xff]
  %v1072 = vld [vmem:[%s5 + $0x2c0] sm:$0xff]
  %v1073 = vld [vmem:[%s5 + $0x2c8] sm:$0xff]
  %v1074 = vld [vmem:[%s5 + $0x2d0] sm:$0xff]
  %v1075 = vld [vmem:[%s5 + $0x2d8] sm:$0xff]
  %v1076 = vld [vmem:[%s5 + $0x2e0] sm:$0xff]
  %v1077 = vld [vmem:[%s5 + $0x2e8] sm:$0xff]
  %v1078 = vld [vmem:[%s5 + $0x2f0] sm:$0xff]
  %v1079 = vld [vmem:[%s5 + $0x2f8] sm:$0xff]
  %v1080 = vld [vmem:[%s5 + $0x300] sm:$0xff]
  %v1081 = vld [vmem:[%s5 + $0x308] sm:$0xff]
  %v1082 = vld [vmem:[%s5 + $0x310] sm:$0xff]
  %v1083 = vld [vmem:[%s5 + $0x318] sm:$0xff]
  %v1084 = vld [vmem:[%s5 + $0x320] sm:$0xff]
  %v1085 = vld [vmem:[%s5 + $0x328] sm:$0xff]
  %v1086 = vld [vmem:[%s5 + $0x330] sm:$0xff]
  %v1087 = vld [vmem:[%s5 + $0x338] sm:$0xff]
  %v1088 = vld [vmem:[%s5 + $0x340] sm:$0xff]
  %v1089 = vld [vmem:[%s5 + $0x348] sm:$0xff]
  %v1090 = vld [vmem:[%s5 + $0x350] sm:$0xff]
  %v1091 = vld [vmem:[%s5 + $0x358] sm:$0xff]
  %v1092 = vld [vmem:[%s5 + $0x360] sm:$0xff]
  %v1093 = vld [vmem:[%s5 + $0x368] sm:$0xff]
  %v1094 = vld [vmem:[%s5 + $0x370] sm:$0xff]
  %v1095 = vld [vmem:[%s5 + $0x378] sm:$0xff]
  %v1096 = vld [vmem:[%s5 + $0x380] sm:$0xff]
  %v1097 = vld [vmem:[%s5 + $0x388] sm:$0xff]
  %v1098 = vld [vmem:[%s5 + $0x390] sm:$0xff]
  %v1099 = vld [vmem:[%s5 + $0x398] sm:$0xff]
  %v1100 = vld [vmem:[%s5 + $0x3a0] sm:$0xff]
  %v1101 = vld [vmem:[%s5 + $0x3a8] sm:$0xff]
  %v1102 = vld [vmem:[%s5 + $0x3b0] sm:$0xff]
  %v1103 = vld [vmem:[%s5 + $0x3b8] sm:$0xff]
  %v1104 = vld [vmem:[%s5 + $0x3c0] sm:$0xff]
  %v1105 = vld [vmem:[%s5 + $0x3c8] sm:$0xff]
  %v1106 = vld [vmem:[%s5 + $0x3d0] sm:$0xff]
  %v1107 = vld [vmem:[%s5 + $0x3d8] sm:$0xff]
  %v1108 = vld [vmem:[%s5 + $0x3e0] sm:$0xff]
  %v1109 = vld [vmem:[%s5 + $0x3e8] sm:$0xff]
  %v1110 = vld [vmem:[%s5 + $0x3f0] sm:$0xff]
  %v1111 = vld [vmem:[%s5 + $0x3f8] sm:$0xff]
  %v1112 = vld [vmem:[%s4] sm:$0xff]
  %v1113 = vld [vmem:[%s4 + $0x8] sm:$0xff]
  %v1114 = vld [vmem:[%s4 + $0x10] sm:$0xff]
  %v1115 = vld [vmem:[%s4 + $0x18] sm:$0xff]
  %v1116 = vld [vmem:[%s4 + $0x20] sm:$0xff]
  %v1117 = vld [vmem:[%s4 + $0x28] sm:$0xff]
  %v1118 = vld [vmem:[%s4 + $0x30] sm:$0xff]
  %v1119 = vld [vmem:[%s4 + $0x38] sm:$0xff]
  %v1120 = vld [vmem:[%s4 + $0x40] sm:$0xff]
  %v1121 = vld [vmem:[%s4 + $0x48] sm:$0xff]
  %v1122 = vld [vmem:[%s4 + $0x50] sm:$0xff]
  %v1123 = vld [vmem:[%s4 + $0x58] sm:$0xff]
  %v1124 = vld [vmem:[%s4 + $0x60] sm:$0xff]
  %v1125 = vld [vmem:[%s4 + $0x68] sm:$0xff]
  %v1126 = vld [vmem:[%s4 + $0x70] sm:$0xff]
  %v1127 = vld [vmem:[%s4 + $0x78] sm:$0xff]
  %v1128 = vld [vmem:[%s4 + $0x80] sm:$0xff]
  %v1129 = vld [vmem:[%s4 + $0x88] sm:$0xff]
  %v1130 = vld [vmem:[%s4 + $0x90] sm:$0xff]
  %v1131 = vld [vmem:[%s4 + $0x98] sm:$0xff]
  %v1132 = vld [vmem:[%s4 + $0xa0] sm:$0xff]
  %v1133 = vld [vmem:[%s4 + $0xa8] sm:$0xff]
  %v1134 = vld [vmem:[%s4 + $0xb0] sm:$0xff]
  %v1135 = vld [vmem:[%s4 + $0xb8] sm:$0xff]
  %v1136 = vld [vmem:[%s4 + $0xc0] sm:$0xff]
  %v1137 = vld [vmem:[%s4 + $0xc8] sm:$0xff]
  %v1138 = vld [vmem:[%s4 + $0xd0] sm:$0xff]
  %v1139 = vld [vmem:[%s4 + $0xd8] sm:$0xff]
  %v1140 = vld [vmem:[%s4 + $0xe0] sm:$0xff]
  %v1141 = vld [vmem:[%s4 + $0xe8] sm:$0xff]
  %v1142 = vld [vmem:[%s4 + $0xf0] sm:$0xff]
  %v1143 = vld [vmem:[%s4 + $0xf8] sm:$0xff]
  %v1144 = vld [vmem:[%s4 + $0x100] sm:$0xff]
  %v1145 = vld [vmem:[%s4 + $0x108] sm:$0xff]
  %v1146 = vld [vmem:[%s4 + $0x110] sm:$0xff]
  %v1147 = vld [vmem:[%s4 + $0x118] sm:$0xff]
  %v1148 = vld [vmem:[%s4 + $0x120] sm:$0xff]
  %v1149 = vld [vmem:[%s4 + $0x128] sm:$0xff]
  %v1150 = vld [vmem:[%s4 + $0x130] sm:$0xff]
  %v1151 = vld [vmem:[%s4 + $0x138] sm:$0xff]
  %v1152 = vld [vmem:[%s4 + $0x140] sm:$0xff]
  %v1153 = vld [vmem:[%s4 + $0x148] sm:$0xff]
  %v1154 = vld [vmem:[%s4 + $0x150] sm:$0xff]
  %v1155 = vld [vmem:[%s4 + $0x158] sm:$0xff]
  %v1156 = vld [vmem:[%s4 + $0x160] sm:$0xff]
  %v1157 = vld [vmem:[%s4 + $0x168] sm:$0xff]
  %v1158 = vld [vmem:[%s4 + $0x170] sm:$0xff]
  %v1159 = vld [vmem:[%s4 + $0x178] sm:$0xff]
  %v1160 = vld [vmem:[%s4 + $0x180] sm:$0xff]
  %v1161 = vld [vmem:[%s4 + $0x188] sm:$0xff]
  %v1162 = vld [vmem:[%s4 + $0x190] sm:$0xff]
  %v1163 = vld [vmem:[%s4 + $0x198] sm:$0xff]
  %v1164 = vld [vmem:[%s4 + $0x1a0] sm:$0xff]
  %v1165 = vld [vmem:[%s4 + $0x1a8] sm:$0xff]
  %v1166 = vld [vmem:[%s4 + $0x1b0] sm:$0xff]
  %v1167 = vld [vmem:[%s4 + $0x1b8] sm:$0xff]
  %v1168 = vld [vmem:[%s4 + $0x1c0] sm:$0xff]
  %v1169 = vld [vmem:[%s4 + $0x1c8] sm:$0xff]
  %v1170 = vld [vmem:[%s4 + $0x1d0] sm:$0xff]
  %v1171 = vld [vmem:[%s4 + $0x1d8] sm:$0xff]
  %v1172 = vld [vmem:[%s4 + $0x1e0] sm:$0xff]
  %v1173 = vld [vmem:[%s4 + $0x1e8] sm:$0xff]
  %v1174 = vld [vmem:[%s4 + $0x1f0] sm:$0xff]
  %v1175 = vld [vmem:[%s4 + $0x1f8] sm:$0xff]
  %v1176 = vld [vmem:[%s4 + $0x200] sm:$0xff]
  %v1177 = vld [vmem:[%s4 + $0x208] sm:$0xff]
  %v1178 = vld [vmem:[%s4 + $0x210] sm:$0xff]
  %v1179 = vld [vmem:[%s4 + $0x218] sm:$0xff]
  %v1180 = vld [vmem:[%s4 + $0x220] sm:$0xff]
  %v1181 = vld [vmem:[%s4 + $0x228] sm:$0xff]
  %v1182 = vld [vmem:[%s4 + $0x230] sm:$0xff]
  %v1183 = vld [vmem:[%s4 + $0x238] sm:$0xff]
  %v1184 = vld [vmem:[%s4 + $0x240] sm:$0xff]
  %v1185 = vld [vmem:[%s4 + $0x248] sm:$0xff]
  %v1186 = vld [vmem:[%s4 + $0x250] sm:$0xff]
  %v1187 = vld [vmem:[%s4 + $0x258] sm:$0xff]
  %v1188 = vld [vmem:[%s4 + $0x260] sm:$0xff]
  %v1189 = vld [vmem:[%s4 + $0x268] sm:$0xff]
  %v1190 = vld [vmem:[%s4 + $0x270] sm:$0xff]
  %v1191 = vld [vmem:[%s4 + $0x278] sm:$0xff]
  %v1192 = vld [vmem:[%s4 + $0x280] sm:$0xff]
  %v1193 = vld [vmem:[%s4 + $0x288] sm:$0xff]
  %v1194 = vld [vmem:[%s4 + $0x290] sm:$0xff]
  %v1195 = vld [vmem:[%s4 + $0x298] sm:$0xff]
  %v1196 = vld [vmem:[%s4 + $0x2a0] sm:$0xff]
  %v1197 = vld [vmem:[%s4 + $0x2a8] sm:$0xff]
  %v1198 = vld [vmem:[%s4 + $0x2b0] sm:$0xff]
  %v1199 = vld [vmem:[%s4 + $0x2b8] sm:$0xff]
  %v1200 = vld [vmem:[%s4 + $0x2c0] sm:$0xff]
  %v1201 = vld [vmem:[%s4 + $0x2c8] sm:$0xff]
  %v1202 = vld [vmem:[%s4 + $0x2d0] sm:$0xff]
  %v1203 = vld [vmem:[%s4 + $0x2d8] sm:$0xff]
  %v1204 = vld [vmem:[%s4 + $0x2e0] sm:$0xff]
  %v1205 = vld [vmem:[%s4 + $0x2e8] sm:$0xff]
  %v1206 = vld [vmem:[%s4 + $0x2f0] sm:$0xff]
  %v1207 = vld [vmem:[%s4 + $0x2f8] sm:$0xff]
  %v1208 = vld [vmem:[%s4 + $0x300] sm:$0xff]
  %v1209 = vld [vmem:[%s4 + $0x308] sm:$0xff]
  %v1210 = vld [vmem:[%s4 + $0x310] sm:$0xff]
  %v1211 = vld [vmem:[%s4 + $0x318] sm:$0xff]
  %v1212 = vld [vmem:[%s4 + $0x320] sm:$0xff]
  %v1213 = vld [vmem:[%s4 + $0x328] sm:$0xff]
  %v1214 = vld [vmem:[%s4 + $0x330] sm:$0xff]
  %v1215 = vld [vmem:[%s4 + $0x338] sm:$0xff]
  %v1216 = vld [vmem:[%s4 + $0x340] sm:$0xff]
  %v1217 = vld [vmem:[%s4 + $0x348] sm:$0xff]
  %v1218 = vld [vmem:[%s4 + $0x350] sm:$0xff]
  %v1219 = vld [vmem:[%s4 + $0x358] sm:$0xff]
  %v1220 = vld [vmem:[%s4 + $0x360] sm:$0xff]
  %v1221 = vld [vmem:[%s4 + $0x368] sm:$0xff]
  %v1222 = vld [vmem:[%s4 + $0x370] sm:$0xff]
  %v1223 = vld [vmem:[%s4 + $0x378] sm:$0xff]
  %v1224 = vld [vmem:[%s4 + $0x380] sm:$0xff]
  %v1225 = vld [vmem:[%s4 + $0x388] sm:$0xff]
  %v1226 = vld [vmem:[%s4 + $0x390] sm:$0xff]
  %v1227 = vld [vmem:[%s4 + $0x398] sm:$0xff]
  %v1228 = vld [vmem:[%s4 + $0x3a0] sm:$0xff]
  %v1229 = vld [vmem:[%s4 + $0x3a8] sm:$0xff]
  %v1230 = vld [vmem:[%s4 + $0x3b0] sm:$0xff]
  %v1231 = vld [vmem:[%s4 + $0x3b8] sm:$0xff]
  %v1232 = vld [vmem:[%s4 + $0x3c0] sm:$0xff]
  %v1233 = vld [vmem:[%s4 + $0x3c8] sm:$0xff]
  %v1234 = vld [vmem:[%s4 + $0x3d0] sm:$0xff]
  %v1235 = vld [vmem:[%s4 + $0x3d8] sm:$0xff]
  %v1236 = vld [vmem:[%s4 + $0x3e0] sm:$0xff]
  %v1237 = vld [vmem:[%s4 + $0x3e8] sm:$0xff]
  %v1238 = vld [vmem:[%s4 + $0x3f0] sm:$0xff]
  %v1239 = vld [vmem:[%s4 + $0x3f8] sm:$0xff]
  %v1240 = vld [vmem:[%s6] sm:$0xff]
  %v1241 = vld [vmem:[%s9] sm:$0xff]
  %v1242 = vld [vmem:[%s9 + $0x8] sm:$0xff]
  %v1243 = vld [vmem:[%s10] sm:$0xff]
  %v1244 = vld [vmem:[%s10 + $0x8] sm:$0xff]
  %s1245 = scalar_lea.vmem %s9, 16
  %v1246 = vld [vmem:[%s1245] sm:$0xff]
  %v1247 = vld [vmem:[%s1245 + $0x8] sm:$0xff]
  %s1248 = scalar_lea.vmem %s10, 16
  %v1249 = vld [vmem:[%s1248] sm:$0xff]
  %v1250 = vld [vmem:[%s1248 + $0x8] sm:$0xff]
  %v1251 = vld [vmem:[#allocation2] sm:$0xff]
  %v1252 = vld [vmem:[#allocation2 + $0x8] sm:$0xff]
  %v1253 = vld [vmem:[#allocation2 + $0x10] sm:$0xff]
  %v1254 = vld [vmem:[#allocation2 + $0x18] sm:$0xff]
  %v1255 = vld [vmem:[#allocation2 + $0x20] sm:$0xff]
  %v1256 = vld [vmem:[#allocation2 + $0x28] sm:$0xff]
  %v1257 = vld [vmem:[#allocation2 + $0x30] sm:$0xff]
  %v1258 = vld [vmem:[#allocation2 + $0x38] sm:$0xff]
  %v1259 = vpack.c.bf16 %v1241, %v1241
  %v1260 = vpack.c.bf16 %v1242, %v1242
  %v1389 = vunpack.c.l.b16 %v856
  %v1390 = vunpack.c.h.b16 %v856
  %v1391 = vunpack.c.l.b16 %v857
  %v1392 = vunpack.c.h.b16 %v857
  %v1393 = vunpack.c.l.b16 %v858
  %v1394 = vunpack.c.h.b16 %v858
  %v1395 = vunpack.c.l.b16 %v859
  %v1396 = vunpack.c.h.b16 %v859
  %v1397 = vunpack.c.l.b16 %v860
  %v1398 = vunpack.c.h.b16 %v860
  %v1399 = vunpack.c.l.b16 %v861
  %v1400 = vunpack.c.h.b16 %v861
  %v1401 = vunpack.c.l.b16 %v862
  %v1402 = vunpack.c.h.b16 %v862
  %v1403 = vunpack.c.l.b16 %v863
  %v1404 = vunpack.c.h.b16 %v863
  %v1405 = vunpack.c.l.b16 %v864
  %v1406 = vunpack.c.h.b16 %v864
  %v1407 = vunpack.c.l.b16 %v865
  %v1408 = vunpack.c.h.b16 %v865
  %v1409 = vunpack.c.l.b16 %v866
  %v1410 = vunpack.c.h.b16 %v866
  %v1411 = vunpack.c.l.b16 %v867
  %v1412 = vunpack.c.h.b16 %v867
  %v1413 = vunpack.c.l.b16 %v868
  %v1414 = vunpack.c.h.b16 %v868
  %v1415 = vunpack.c.l.b16 %v869
  %v1416 = vunpack.c.h.b16 %v869
  %v1417 = vunpack.c.l.b16 %v870
  %v1418 = vunpack.c.h.b16 %v870
  %v1419 = vunpack.c.l.b16 %v871
  %v1420 = vunpack.c.h.b16 %v871
  %v1421 = vunpack.c.l.b16 %v872
  %v1422 = vunpack.c.h.b16 %v872
  %v1423 = vunpack.c.l.b16 %v873
  %v1424 = vunpack.c.h.b16 %v873
  %v1425 = vunpack.c.l.b16 %v874
  %v1426 = vunpack.c.h.b16 %v874
  %v1427 = vunpack.c.l.b16 %v875
  %v1428 = vunpack.c.h.b16 %v875
  %v1429 = vunpack.c.l.b16 %v876
  %v1430 = vunpack.c.h.b16 %v876
  %v1431 = vunpack.c.l.b16 %v877
  %v1432 = vunpack.c.h.b16 %v877
  %v1433 = vunpack.c.l.b16 %v878
  %v1434 = vunpack.c.h.b16 %v878
  %v1435 = vunpack.c.l.b16 %v879
  %v1436 = vunpack.c.h.b16 %v879
  %v1437 = vunpack.c.l.b16 %v880
  %v1438 = vunpack.c.h.b16 %v880
  %v1439 = vunpack.c.l.b16 %v881
  %v1440 = vunpack.c.h.b16 %v881
  %v1441 = vunpack.c.l.b16 %v882
  %v1442 = vunpack.c.h.b16 %v882
  %v1443 = vunpack.c.l.b16 %v883
  %v1444 = vunpack.c.h.b16 %v883
  %v1445 = vunpack.c.l.b16 %v884
  %v1446 = vunpack.c.h.b16 %v884
  %v1447 = vunpack.c.l.b16 %v885
  %v1448 = vunpack.c.h.b16 %v885
  %v1449 = vunpack.c.l.b16 %v886
  %v1450 = vunpack.c.h.b16 %v886
  %v1451 = vunpack.c.l.b16 %v887
  %v1452 = vunpack.c.h.b16 %v887
  %v1453 = vunpack.c.l.b16 %v888
  %v1454 = vunpack.c.h.b16 %v888
  %v1455 = vunpack.c.l.b16 %v889
  %v1456 = vunpack.c.h.b16 %v889
  %v1457 = vunpack.c.l.b16 %v890
  %v1458 = vunpack.c.h.b16 %v890
  %v1459 = vunpack.c.l.b16 %v891
  %v1460 = vunpack.c.h.b16 %v891
  %v1461 = vunpack.c.l.b16 %v892
  %v1462 = vunpack.c.h.b16 %v892
  %v1463 = vunpack.c.l.b16 %v893
  %v1464 = vunpack.c.h.b16 %v893
  %v1465 = vunpack.c.l.b16 %v894
  %v1466 = vunpack.c.h.b16 %v894
  %v1467 = vunpack.c.l.b16 %v895
  %v1468 = vunpack.c.h.b16 %v895
  %v1469 = vunpack.c.l.b16 %v896
  %v1470 = vunpack.c.h.b16 %v896
  %v1471 = vunpack.c.l.b16 %v897
  %v1472 = vunpack.c.h.b16 %v897
  %v1473 = vunpack.c.l.b16 %v898
  %v1474 = vunpack.c.h.b16 %v898
  %v1475 = vunpack.c.l.b16 %v899
  %v1476 = vunpack.c.h.b16 %v899
  %v1477 = vunpack.c.l.b16 %v900
  %v1478 = vunpack.c.h.b16 %v900
  %v1479 = vunpack.c.l.b16 %v901
  %v1480 = vunpack.c.h.b16 %v901
  %v1481 = vunpack.c.l.b16 %v902
  %v1482 = vunpack.c.h.b16 %v902
  %v1483 = vunpack.c.l.b16 %v903
  %v1484 = vunpack.c.h.b16 %v903
  %v1485 = vunpack.c.l.b16 %v904
  %v1486 = vunpack.c.h.b16 %v904
  %v1487 = vunpack.c.l.b16 %v905
  %v1488 = vunpack.c.h.b16 %v905
  %v1489 = vunpack.c.l.b16 %v906
  %v1490 = vunpack.c.h.b16 %v906
  %v1491 = vunpack.c.l.b16 %v907
  %v1492 = vunpack.c.h.b16 %v907
  %v1493 = vunpack.c.l.b16 %v908
  %v1494 = vunpack.c.h.b16 %v908
  %v1495 = vunpack.c.l.b16 %v909
  %v1496 = vunpack.c.h.b16 %v909
  %v1497 = vunpack.c.l.b16 %v910
  %v1498 = vunpack.c.h.b16 %v910
  %v1499 = vunpack.c.l.b16 %v911
  %v1500 = vunpack.c.h.b16 %v911
  %v1501 = vunpack.c.l.b16 %v912
  %v1502 = vunpack.c.h.b16 %v912
  %v1503 = vunpack.c.l.b16 %v913
  %v1504 = vunpack.c.h.b16 %v913
  %v1505 = vunpack.c.l.b16 %v914
  %v1506 = vunpack.c.h.b16 %v914
  %v1507 = vunpack.c.l.b16 %v915
  %v1508 = vunpack.c.h.b16 %v915
  %v1509 = vunpack.c.l.b16 %v916
  %v1510 = vunpack.c.h.b16 %v916
  %v1511 = vunpack.c.l.b16 %v917
  %v1512 = vunpack.c.h.b16 %v917
  %v1513 = vunpack.c.l.b16 %v918
  %v1514 = vunpack.c.h.b16 %v918
  %v1515 = vunpack.c.l.b16 %v919
  %v1516 = vunpack.c.h.b16 %v919
  %v1517 = vunpack.c.l.b16 %v920
  %v1518 = vunpack.c.h.b16 %v920
  %v1519 = vunpack.c.l.b16 %v921
  %v1520 = vunpack.c.h.b16 %v921
  %v1521 = vunpack.c.l.b16 %v922
  %v1522 = vunpack.c.h.b16 %v922
  %v1523 = vunpack.c.l.b16 %v923
  %v1524 = vunpack.c.h.b16 %v923
  %v1525 = vunpack.c.l.b16 %v924
  %v1526 = vunpack.c.h.b16 %v924
  %v1527 = vunpack.c.l.b16 %v925
  %v1528 = vunpack.c.h.b16 %v925
  %v1529 = vunpack.c.l.b16 %v926
  %v1530 = vunpack.c.h.b16 %v926
  %v1531 = vunpack.c.l.b16 %v927
  %v1532 = vunpack.c.h.b16 %v927
  %v1533 = vunpack.c.l.b16 %v928
  %v1534 = vunpack.c.h.b16 %v928
  %v1535 = vunpack.c.l.b16 %v929
  %v1536 = vunpack.c.h.b16 %v929
  %v1537 = vunpack.c.l.b16 %v930
  %v1538 = vunpack.c.h.b16 %v930
  %v1539 = vunpack.c.l.b16 %v931
  %v1540 = vunpack.c.h.b16 %v931
  %v1541 = vunpack.c.l.b16 %v932
  %v1542 = vunpack.c.h.b16 %v932
  %v1543 = vunpack.c.l.b16 %v933
  %v1544 = vunpack.c.h.b16 %v933
  %v1545 = vunpack.c.l.b16 %v934
  %v1546 = vunpack.c.h.b16 %v934
  %v1547 = vunpack.c.l.b16 %v935
  %v1548 = vunpack.c.h.b16 %v935
  %v1549 = vunpack.c.l.b16 %v936
  %v1550 = vunpack.c.h.b16 %v936
  %v1551 = vunpack.c.l.b16 %v937
  %v1552 = vunpack.c.h.b16 %v937
  %v1553 = vunpack.c.l.b16 %v938
  %v1554 = vunpack.c.h.b16 %v938
  %v1555 = vunpack.c.l.b16 %v939
  %v1556 = vunpack.c.h.b16 %v939
  %v1557 = vunpack.c.l.b16 %v940
  %v1558 = vunpack.c.h.b16 %v940
  %v1559 = vunpack.c.l.b16 %v941
  %v1560 = vunpack.c.h.b16 %v941
  %v1561 = vunpack.c.l.b16 %v942
  %v1562 = vunpack.c.h.b16 %v942
  %v1563 = vunpack.c.l.b16 %v943
  %v1564 = vunpack.c.h.b16 %v943
  %v1565 = vunpack.c.l.b16 %v944
  %v1566 = vunpack.c.h.b16 %v944
  %v1567 = vunpack.c.l.b16 %v945
  %v1568 = vunpack.c.h.b16 %v945
  %v1569 = vunpack.c.l.b16 %v946
  %v1570 = vunpack.c.h.b16 %v946
  %v1571 = vunpack.c.l.b16 %v947
  %v1572 = vunpack.c.h.b16 %v947
  %v1573 = vunpack.c.l.b16 %v948
  %v1574 = vunpack.c.h.b16 %v948
  %v1575 = vunpack.c.l.b16 %v949
  %v1576 = vunpack.c.h.b16 %v949
  %v1577 = vunpack.c.l.b16 %v950
  %v1578 = vunpack.c.h.b16 %v950
  %v1579 = vunpack.c.l.b16 %v951
  %v1580 = vunpack.c.h.b16 %v951
  %v1581 = vunpack.c.l.b16 %v952
  %v1582 = vunpack.c.h.b16 %v952
  %v1583 = vunpack.c.l.b16 %v953
  %v1584 = vunpack.c.h.b16 %v953
  %v1585 = vunpack.c.l.b16 %v954
  %v1586 = vunpack.c.h.b16 %v954
  %v1587 = vunpack.c.l.b16 %v955
  %v1588 = vunpack.c.h.b16 %v955
  %v1589 = vunpack.c.l.b16 %v956
  %v1590 = vunpack.c.h.b16 %v956
  %v1591 = vunpack.c.l.b16 %v957
  %v1592 = vunpack.c.h.b16 %v957
  %v1593 = vunpack.c.l.b16 %v958
  %v1594 = vunpack.c.h.b16 %v958
  %v1595 = vunpack.c.l.b16 %v959
  %v1596 = vunpack.c.h.b16 %v959
  %v1597 = vunpack.c.l.b16 %v960
  %v1598 = vunpack.c.h.b16 %v960
  %v1599 = vunpack.c.l.b16 %v961
  %v1600 = vunpack.c.h.b16 %v961
  %v1601 = vunpack.c.l.b16 %v962
  %v1602 = vunpack.c.h.b16 %v962
  %v1603 = vunpack.c.l.b16 %v963
  %v1604 = vunpack.c.h.b16 %v963
  %v1605 = vunpack.c.l.b16 %v964
  %v1606 = vunpack.c.h.b16 %v964
  %v1607 = vunpack.c.l.b16 %v965
  %v1608 = vunpack.c.h.b16 %v965
  %v1609 = vunpack.c.l.b16 %v966
  %v1610 = vunpack.c.h.b16 %v966
  %v1611 = vunpack.c.l.b16 %v967
  %v1612 = vunpack.c.h.b16 %v967
  %v1613 = vunpack.c.l.b16 %v968
  %v1614 = vunpack.c.h.b16 %v968
  %v1615 = vunpack.c.l.b16 %v969
  %v1616 = vunpack.c.h.b16 %v969
  %v1617 = vunpack.c.l.b16 %v970
  %v1618 = vunpack.c.h.b16 %v970
  %v1619 = vunpack.c.l.b16 %v971
  %v1620 = vunpack.c.h.b16 %v971
  %v1621 = vunpack.c.l.b16 %v972
  %v1622 = vunpack.c.h.b16 %v972
  %v1623 = vunpack.c.l.b16 %v973
  %v1624 = vunpack.c.h.b16 %v973
  %v1625 = vunpack.c.l.b16 %v974
  %v1626 = vunpack.c.h.b16 %v974
  %v1627 = vunpack.c.l.b16 %v975
  %v1628 = vunpack.c.h.b16 %v975
  %v1629 = vunpack.c.l.b16 %v976
  %v1630 = vunpack.c.h.b16 %v976
  %v1631 = vunpack.c.l.b16 %v977
  %v1632 = vunpack.c.h.b16 %v977
  %v1633 = vunpack.c.l.b16 %v978
  %v1634 = vunpack.c.h.b16 %v978
  %v1635 = vunpack.c.l.b16 %v979
  %v1636 = vunpack.c.h.b16 %v979
  %v1637 = vunpack.c.l.b16 %v980
  %v1638 = vunpack.c.h.b16 %v980
  %v1639 = vunpack.c.l.b16 %v981
  %v1640 = vunpack.c.h.b16 %v981
  %v1641 = vunpack.c.l.b16 %v982
  %v1642 = vunpack.c.h.b16 %v982
  %v1643 = vunpack.c.l.b16 %v983
  %v1644 = vunpack.c.h.b16 %v983
  %v1645 = vpack.c.b16 %v1397, %v1389
  %v1646 = vpack.c.b16 %v1398, %v1390
  %v1647 = vpack.c.b16 %v1399, %v1391
  %v1648 = vpack.c.b16 %v1400, %v1392
  %v1649 = vpack.c.b16 %v1401, %v1393
  %v1650 = vpack.c.b16 %v1402, %v1394
  %v1651 = vpack.c.b16 %v1403, %v1395
  %v1652 = vpack.c.b16 %v1404, %v1396
  %v1653 = vpack.c.b16 %v1413, %v1405
  %v1654 = vpack.c.b16 %v1414, %v1406
  %v1655 = vpack.c.b16 %v1415, %v1407
  %v1656 = vpack.c.b16 %v1416, %v1408
  %v1657 = vpack.c.b16 %v1417, %v1409
  %v1658 = vpack.c.b16 %v1418, %v1410
  %v1659 = vpack.c.b16 %v1419, %v1411
  %v1660 = vpack.c.b16 %v1420, %v1412
  %v1661 = vpack.c.b16 %v1429, %v1421
  %v1662 = vpack.c.b16 %v1430, %v1422
  %v1663 = vpack.c.b16 %v1431, %v1423
  %v1664 = vpack.c.b16 %v1432, %v1424
  %v1665 = vpack.c.b16 %v1433, %v1425
  %v1666 = vpack.c.b16 %v1434, %v1426
  %v1667 = vpack.c.b16 %v1435, %v1427
  %v1668 = vpack.c.b16 %v1436, %v1428
  %v1669 = vpack.c.b16 %v1445, %v1437
  %v1670 = vpack.c.b16 %v1446, %v1438
  %v1671 = vpack.c.b16 %v1447, %v1439
  %v1672 = vpack.c.b16 %v1448, %v1440
  %v1673 = vpack.c.b16 %v1449, %v1441
  %v1674 = vpack.c.b16 %v1450, %v1442
  %v1675 = vpack.c.b16 %v1451, %v1443
  %v1676 = vpack.c.b16 %v1452, %v1444
  %v1677 = vpack.c.b16 %v1461, %v1453
  %v1678 = vpack.c.b16 %v1462, %v1454
  %v1679 = vpack.c.b16 %v1463, %v1455
  %v1680 = vpack.c.b16 %v1464, %v1456
  %v1681 = vpack.c.b16 %v1465, %v1457
  %v1682 = vpack.c.b16 %v1466, %v1458
  %v1683 = vpack.c.b16 %v1467, %v1459
  %v1684 = vpack.c.b16 %v1468, %v1460
  %v1685 = vpack.c.b16 %v1477, %v1469
  %v1686 = vpack.c.b16 %v1478, %v1470
  %v1687 = vpack.c.b16 %v1479, %v1471
  %v1688 = vpack.c.b16 %v1480, %v1472
  %v1689 = vpack.c.b16 %v1481, %v1473
  %v1690 = vpack.c.b16 %v1482, %v1474
  %v1691 = vpack.c.b16 %v1483, %v1475
  %v1692 = vpack.c.b16 %v1484, %v1476
  %v1693 = vpack.c.b16 %v1493, %v1485
  %v1694 = vpack.c.b16 %v1494, %v1486
  %v1695 = vpack.c.b16 %v1495, %v1487
  %v1696 = vpack.c.b16 %v1496, %v1488
  %v1697 = vpack.c.b16 %v1497, %v1489
  %v1698 = vpack.c.b16 %v1498, %v1490
  %v1699 = vpack.c.b16 %v1499, %v1491
  %v1700 = vpack.c.b16 %v1500, %v1492
  %v1701 = vpack.c.b16 %v1509, %v1501
  %v1702 = vpack.c.b16 %v1510, %v1502
  %v1703 = vpack.c.b16 %v1511, %v1503
  %v1704 = vpack.c.b16 %v1512, %v1504
  %v1705 = vpack.c.b16 %v1513, %v1505
  %v1706 = vpack.c.b16 %v1514, %v1506
  %v1707 = vpack.c.b16 %v1515, %v1507
  %v1708 = vpack.c.b16 %v1516, %v1508
  %v1709 = vpack.c.b16 %v1525, %v1517
  %v1710 = vpack.c.b16 %v1526, %v1518
  %v1711 = vpack.c.b16 %v1527, %v1519
  %v1712 = vpack.c.b16 %v1528, %v1520
  %v1713 = vpack.c.b16 %v1529, %v1521
  %v1714 = vpack.c.b16 %v1530, %v1522
  %v1715 = vpack.c.b16 %v1531, %v1523
  %v1716 = vpack.c.b16 %v1532, %v1524
  %v1717 = vpack.c.b16 %v1541, %v1533
  %v1718 = vpack.c.b16 %v1542, %v1534
  %v1719 = vpack.c.b16 %v1543, %v1535
  %v1720 = vpack.c.b16 %v1544, %v1536
  %v1721 = vpack.c.b16 %v1545, %v1537
  %v1722 = vpack.c.b16 %v1546, %v1538
  %v1723 = vpack.c.b16 %v1547, %v1539
  %v1724 = vpack.c.b16 %v1548, %v1540
  %v1725 = vpack.c.b16 %v1557, %v1549
  %v1726 = vpack.c.b16 %v1558, %v1550
  %v1727 = vpack.c.b16 %v1559, %v1551
  %v1728 = vpack.c.b16 %v1560, %v1552
  %v1729 = vpack.c.b16 %v1561, %v1553
  %v1730 = vpack.c.b16 %v1562, %v1554
  %v1731 = vpack.c.b16 %v1563, %v1555
  %v1732 = vpack.c.b16 %v1564, %v1556
  %v1733 = vpack.c.b16 %v1573, %v1565
  %v1734 = vpack.c.b16 %v1574, %v1566
  %v1735 = vpack.c.b16 %v1575, %v1567
  %v1736 = vpack.c.b16 %v1576, %v1568
  %v1737 = vpack.c.b16 %v1577, %v1569
  %v1738 = vpack.c.b16 %v1578, %v1570
  %v1739 = vpack.c.b16 %v1579, %v1571
  %v1740 = vpack.c.b16 %v1580, %v1572
  %v1741 = vpack.c.b16 %v1589, %v1581
  %v1742 = vpack.c.b16 %v1590, %v1582
  %v1743 = vpack.c.b16 %v1591, %v1583
  %v1744 = vpack.c.b16 %v1592, %v1584
  %v1745 = vpack.c.b16 %v1593, %v1585
  %v1746 = vpack.c.b16 %v1594, %v1586
  %v1747 = vpack.c.b16 %v1595, %v1587
  %v1748 = vpack.c.b16 %v1596, %v1588
  %v1749 = vpack.c.b16 %v1605, %v1597
  %v1750 = vpack.c.b16 %v1606, %v1598
  %v1751 = vpack.c.b16 %v1607, %v1599
  %v1752 = vpack.c.b16 %v1608, %v1600
  %v1753 = vpack.c.b16 %v1609, %v1601
  %v1754 = vpack.c.b16 %v1610, %v1602
  %v1755 = vpack.c.b16 %v1611, %v1603
  %v1756 = vpack.c.b16 %v1612, %v1604
  %v1757 = vpack.c.b16 %v1621, %v1613
  %v1758 = vpack.c.b16 %v1622, %v1614
  %v1759 = vpack.c.b16 %v1623, %v1615
  %v1760 = vpack.c.b16 %v1624, %v1616
  %v1761 = vpack.c.b16 %v1625, %v1617
  %v1762 = vpack.c.b16 %v1626, %v1618
  %v1763 = vpack.c.b16 %v1627, %v1619
  %v1764 = vpack.c.b16 %v1628, %v1620
  %v1765 = vpack.c.b16 %v1637, %v1629
  %v1766 = vpack.c.b16 %v1638, %v1630
  %v1767 = vpack.c.b16 %v1639, %v1631
  %v1768 = vpack.c.b16 %v1640, %v1632
  %v1769 = vpack.c.b16 %v1641, %v1633
  %v1770 = vpack.c.b16 %v1642, %v1634
  %v1771 = vpack.c.b16 %v1643, %v1635
  %v1772 = vpack.c.b16 %v1644, %v1636
  %1901 = vmatprep.subr.bf16.mxu0 %v1646
  %1902 = vmatpush1.bf16.msra.mxu0 %v1645
  %1903 = vmatprep.subr.bf16.mxu0 %v1654
  %1904 = vmatpush1.bf16.msra.mxu0 %v1653
  %1905 = vmatprep.subr.bf16.mxu0 %v1662
  %1906 = vmatpush1.bf16.msra.mxu0 %v1661
  %1907 = vmatprep.subr.bf16.mxu0 %v1670
  %1908 = vmatpush1.bf16.msra.mxu0 %v1669
  %1909 = vmatprep.subr.bf16.mxu0 %v1678
  %1910 = vmatpush1.bf16.msra.mxu0 %v1677
  %1911 = vmatprep.subr.bf16.mxu0 %v1686
  %1912 = vmatpush1.bf16.msra.mxu0 %v1685
  %1913 = vmatprep.subr.bf16.mxu0 %v1694
  %1914 = vmatpush1.bf16.msra.mxu0 %v1693
  %1915 = vmatprep.subr.bf16.mxu0 %v1702
  %1916 = vmatpush1.bf16.msra.mxu0 %v1701
  %1917 = vmatprep.subr.bf16.mxu0 %v1710
  %1918 = vmatpush1.bf16.msra.mxu0 %v1709
  %1919 = vmatprep.subr.bf16.mxu0 %v1718
  %1920 = vmatpush1.bf16.msra.mxu0 %v1717
  %1921 = vmatprep.subr.bf16.mxu0 %v1726
  %1922 = vmatpush1.bf16.msra.mxu0 %v1725
  %1923 = vmatprep.subr.bf16.mxu0 %v1734
  %1924 = vmatpush1.bf16.msra.mxu0 %v1733
  %1925 = vmatprep.subr.bf16.mxu0 %v1742
  %1926 = vmatpush1.bf16.msra.mxu0 %v1741
  %1927 = vmatprep.subr.bf16.mxu0 %v1750
  %1928 = vmatpush1.bf16.msra.mxu0 %v1749
  %1929 = vmatprep.subr.bf16.mxu0 %v1758
  %1930 = vmatpush1.bf16.msra.mxu0 %v1757
  %1931 = vmatprep.subr.bf16.mxu0 %v1766
  %1932 = vmatpush1.bf16.msra.mxu0 %v1765
  %1933 = vmatprep.mubr.bf16.mxu0 %v1260
  %1934 = vmatmul.mubr.bf16.gmra.mrb[0].mxu0 %v1259
  %v1935 = vpop.f32.mrb[0].mxu0
  %v1936 = vadd.f32 0.0, %v1935
  %v1937 = vpop.f32.mrb[0].mxu0
  %v1938 = vadd.f32 0.0, %v1937
  %v1939 = vpop.f32.mrb[0].mxu0
  %v1940 = vpop.f32.mrb[0].mxu0
  %1941 = vdwg.mxu0
  %1942 = vmatprep.subr.bf16.mxu0 %v1648
  %1943 = vmatpush1.bf16.msra.mxu0 %v1647
  %1944 = vmatprep.subr.bf16.mxu0 %v1656
  %1945 = vmatpush1.bf16.msra.mxu0 %v1655
  %1946 = vmatprep.subr.bf16.mxu0 %v1664
  %1947 = vmatpush1.bf16.msra.mxu0 %v1663
  %1948 = vmatprep.subr.bf16.mxu0 %v1672
  %1949 = vmatpush1.bf16.msra.mxu0 %v1671
  %1950 = vmatprep.subr.bf16.mxu0 %v1680
  %1951 = vmatpush1.bf16.msra.mxu0 %v1679
  %1952 = vmatprep.subr.bf16.mxu0 %v1688
  %1953 = vmatpush1.bf16.msra.mxu0 %v1687
  %1954 = vmatprep.subr.bf16.mxu0 %v1696
  %1955 = vmatpush1.bf16.msra.mxu0 %v1695
  %1956 = vmatprep.subr.bf16.mxu0 %v1704
  %1957 = vmatpush1.bf16.msra.mxu0 %v1703
  %1958 = vmatprep.subr.bf16.mxu0 %v1712
  %1959 = vmatpush1.bf16.msra.mxu0 %v1711
  %1960 = vmatprep.subr.bf16.mxu0 %v1720
  %1961 = vmatpush1.bf16.msra.mxu0 %v1719
  %1962 = vmatprep.subr.bf16.mxu0 %v1728
  %1963 = vmatpush1.bf16.msra.mxu0 %v1727
  %1964 = vmatprep.subr.bf16.mxu0 %v1736
  %1965 = vmatpush1.bf16.msra.mxu0 %v1735
  %1966 = vmatprep.subr.bf16.mxu0 %v1744
  %1967 = vmatpush1.bf16.msra.mxu0 %v1743
  %1968 = vmatprep.subr.bf16.mxu0 %v1752
  %1969 = vmatpush1.bf16.msra.mxu0 %v1751
  %1970 = vmatprep.subr.bf16.mxu0 %v1760
  %1971 = vmatpush1.bf16.msra.mxu0 %v1759
  %1972 = vmatprep.subr.bf16.mxu0 %v1768
  %1973 = vmatpush1.bf16.msra.mxu0 %v1767
  %1974 = vmatprep.mubr.bf16.mxu0 %v1260
  %1975 = vmatmul.mubr.bf16.gmra.mrb[0].mxu0 %v1259
  %v1976 = vpop.f32.mrb[0].mxu0
  %v1977 = vadd.f32 0.0, %v1976
  %v1978 = vpop.f32.mrb[0].mxu0
  %v1979 = vadd.f32 0.0, %v1978
  %v1980 = vpop.f32.mrb[0].mxu0
  %v1981 = vpop.f32.mrb[0].mxu0
  %1982 = vdwg.mxu0
  %1983 = vmatprep.subr.bf16.mxu0 %v1650
  %1984 = vmatpush1.bf16.msra.mxu0 %v1649
  %1985 = vmatprep.subr.bf16.mxu0 %v1658
  %1986 = vmatpush1.bf16.msra.mxu0 %v1657
  %1987 = vmatprep.subr.bf16.mxu0 %v1666
  %1988 = vmatpush1.bf16.msra.mxu0 %v1665
  %1989 = vmatprep.subr.bf16.mxu0 %v1674
  %1990 = vmatpush1.bf16.msra.mxu0 %v1673
  %1991 = vmatprep.subr.bf16.mxu0 %v1682
  %1992 = vmatpush1.bf16.msra.mxu0 %v1681
  %1993 = vmatprep.subr.bf16.mxu0 %v1690
  %1994 = vmatpush1.bf16.msra.mxu0 %v1689
  %1995 = vmatprep.subr.bf16.mxu0 %v1698
  %1996 = vmatpush1.bf16.msra.mxu0 %v1697
  %1997 = vmatprep.subr.bf16.mxu0 %v1706
  %1998 = vmatpush1.bf16.msra.mxu0 %v1705
  %1999 = vmatprep.subr.bf16.mxu0 %v1714
  %2000 = vmatpush1.bf16.msra.mxu0 %v1713
  %2001 = vmatprep.subr.bf16.mxu0 %v1722
  %2002 = vmatpush1.bf16.msra.mxu0 %v1721
  %2003 = vmatprep.subr.bf16.mxu0 %v1730
  %2004 = vmatpush1.bf16.msra.mxu0 %v1729
  %2005 = vmatprep.subr.bf16.mxu0 %v1738
  %2006 = vmatpush1.bf16.msra.mxu0 %v1737
  %2007 = vmatprep.subr.bf16.mxu0 %v1746
  %2008 = vmatpush1.bf16.msra.mxu0 %v1745
  %2009 = vmatprep.subr.bf16.mxu0 %v1754
  %2010 = vmatpush1.bf16.msra.mxu0 %v1753
  %2011 = vmatprep.subr.bf16.mxu0 %v1762
  %2012 = vmatpush1.bf16.msra.mxu0 %v1761
  %2013 = vmatprep.subr.bf16.mxu0 %v1770
  %2014 = vmatpush1.bf16.msra.mxu0 %v1769
  %2015 = vmatprep.mubr.bf16.mxu0 %v1260
  %2016 = vmatmul.mubr.bf16.gmra.mrb[0].mxu0 %v1259
  %v2017 = vpop.f32.mrb[0].mxu0
  %v2018 = vadd.f32 0.0, %v2017
  %v2019 = vpop.f32.mrb[0].mxu0
  %v2020 = vadd.f32 0.0, %v2019
  %v2021 = vpop.f32.mrb[0].mxu0
  %v2022 = vpop.f32.mrb[0].mxu0
  %2023 = vdwg.mxu0
  %2024 = vmatprep.subr.bf16.mxu0 %v1652
  %2025 = vmatpush1.bf16.msra.mxu0 %v1651
  %2026 = vmatprep.subr.bf16.mxu0 %v1660
  %2027 = vmatpush1.bf16.msra.mxu0 %v1659
  %2028 = vmatprep.subr.bf16.mxu0 %v1668
  %2029 = vmatpush1.bf16.msra.mxu0 %v1667
  %2030 = vmatprep.subr.bf16.mxu0 %v1676
  %2031 = vmatpush1.bf16.msra.mxu0 %v1675
  %2032 = vmatprep.subr.bf16.mxu0 %v1684
  %2033 = vmatpush1.bf16.msra.mxu0 %v1683
  %2034 = vmatprep.subr.bf16.mxu0 %v1692
  %2035 = vmatpush1.bf16.msra.mxu0 %v1691
  %2036 = vmatprep.subr.bf16.mxu0 %v1700
  %2037 = vmatpush1.bf16.msra.mxu0 %v1699
  %2038 = vmatprep.subr.bf16.mxu0 %v1708
  %2039 = vmatpush1.bf16.msra.mxu0 %v1707
  %2040 = vmatprep.subr.bf16.mxu0 %v1716
  %2041 = vmatpush1.bf16.msra.mxu0 %v1715
  %2042 = vmatprep.subr.bf16.mxu0 %v1724
  %2043 = vmatpush1.bf16.msra.mxu0 %v1723
  %2044 = vmatprep.subr.bf16.mxu0 %v1732
  %2045 = vmatpush1.bf16.msra.mxu0 %v1731
  %2046 = vmatprep.subr.bf16.mxu0 %v1740
  %2047 = vmatpush1.bf16.msra.mxu0 %v1739
  %2048 = vmatprep.subr.bf16.mxu0 %v1748
  %2049 = vmatpush1.bf16.msra.mxu0 %v1747
  %2050 = vmatprep.subr.bf16.mxu0 %v1756
  %2051 = vmatpush1.bf16.msra.mxu0 %v1755
  %2052 = vmatprep.subr.bf16.mxu0 %v1764
  %2053 = vmatpush1.bf16.msra.mxu0 %v1763
  %2054 = vmatprep.subr.bf16.mxu0 %v1772
  %2055 = vmatpush1.bf16.msra.mxu0 %v1771
  %2056 = vmatprep.mubr.bf16.mxu0 %v1260
  %2057 = vmatmul.mubr.bf16.gmra.mrb[0].mxu0 %v1259
  %v2058 = vpop.f32.mrb[0].mxu0
  %v2059 = vadd.f32 0.0, %v2058
  %v2060 = vpop.f32.mrb[0].mxu0
  %v2061 = vadd.f32 0.0, %v2060
  %v2062 = vpop.f32.mrb[0].mxu0
  %v2063 = vpop.f32.mrb[0].mxu0
  %2064 = vdwg.mxu0
  %v2065 = vadd.f32 %v1251, %v1936
  %v2066 = vadd.f32 %v1252, %v1938
  %v2067 = vadd.f32 %v1253, %v1977
  %v2068 = vadd.f32 %v1254, %v1979
  %v2069 = vadd.f32 %v1255, %v2018
  %v2070 = vadd.f32 %v1256, %v2020
  %v2071 = vadd.f32 %v1257, %v2059
  %v2072 = vadd.f32 %v1258, %v2061
  %v2073 = vmul.f32 %v2065, 0.5
  %v2074 = vmul.f32 %v2066, 0.5
  %v2075 = vtanh.pop %v2073
  %v2076 = vtanh.pop %v2074
  %v2077 = vmul.f32 %v2075, 0.5
  %v2078 = vmul.f32 %v2076, 0.5
  %v2079 = vadd.f32 %v2077, 0.5
  %v2080 = vadd.f32 %v2078, 0.5
  %v2081 = vmul.f32 %v2067, 0.5
  %v2082 = vmul.f32 %v2068, 0.5
  %v2083 = vtanh.pop %v2081
  %v2084 = vtanh.pop %v2082
  %v2085 = vmul.f32 %v2083, 0.5
  %v2086 = vmul.f32 %v2084, 0.5
  %v2087 = vadd.f32 %v2085, 0.5
  %v2088 = vadd.f32 %v2086, 0.5
  %v2089 = vtanh.pop %v2069
  %v2090 = vtanh.pop %v2070
  %v2091 = vmul.f32 %v2071, 0.5
  %v2092 = vmul.f32 %v2072, 0.5
  %v2093 = vtanh.pop %v2091
  %v2094 = vtanh.pop %v2092
  %v2095 = vmul.f32 %v2093, 0.5
  %v2096 = vmul.f32 %v2094, 0.5
  %v2097 = vadd.f32 %v2095, 0.5
  %v2098 = vadd.f32 %v2096, 0.5
  %v2099 = vmul.f32 %v2087, %v1243
  %v2100 = vmul.f32 %v2088, %v1244
  %v2101 = vmul.f32 %v2079, %v2089
  %v2102 = vmul.f32 %v2080, %v2090
  %v2103 = vadd.f32 %v2099, %v2101
  %v2104 = vadd.f32 %v2100, %v2102
  %v2105 = vtanh.pop %v2103
  %v2106 = vtanh.pop %v2104
  %v2107 = vmul.f32 %v2097, %v2105
  %v2108 = vmul.f32 %v2098, %v2106
  %v2109 = vpack.c.bf16 %v2107, %v2107
  %v2110 = vpack.c.bf16 %v2108, %v2108
  %v2112 = vlaneseq
  %v2113 = vshrl.u32 %v2112, 7
  %v2114 = vsub.s32 0, %v2113
  %v2115 = vrot.slane %v1240, %v2114
  %v2116 = vlaneseq
  %v2117 = vshrl.u32 %v2116, 7
  %v2118 = vsub.s32 1, %v2117
  %v2119 = vrot.slane %v1240, %v2118
  %v2120 = vlaneseq
  %v2121 = vshrl.u32 %v2120, 7
  %v2122 = vsub.s32 2, %v2121
  %v2123 = vrot.slane %v1240, %v2122
  %v2124 = vlaneseq
  %v2125 = vshrl.u32 %v2124, 7
  %v2126 = vsub.s32 3, %v2125
  %v2127 = vrot.slane %v1240, %v2126
  %v2128 = vlaneseq
  %v2129 = vshrl.u32 %v2128, 7
  %v2130 = vsub.s32 4, %v2129
  %v2131 = vrot.slane %v1240, %v2130
  %v2132 = vlaneseq
  %v2133 = vshrl.u32 %v2132, 7
  %v2134 = vsub.s32 5, %v2133
  %v2135 = vrot.slane %v1240, %v2134
  %v2136 = vlaneseq
  %v2137 = vshrl.u32 %v2136, 7
  %v2138 = vsub.s32 6, %v2137
  %v2139 = vrot.slane %v1240, %v2138
  %v2140 = vlaneseq
  %v2141 = vshrl.u32 %v2140, 7
  %v2142 = vsub.s32 7, %v2141
  %v2143 = vrot.slane %v1240, %v2142
  %v2280 = vunpack.c.l.b16 %v1112
  %v2281 = vunpack.c.h.b16 %v1112
  %v2282 = vunpack.c.l.b16 %v1113
  %v2283 = vunpack.c.h.b16 %v1113
  %v2284 = vunpack.c.l.b16 %v1114
  %v2285 = vunpack.c.h.b16 %v1114
  %v2286 = vunpack.c.l.b16 %v1115
  %v2287 = vunpack.c.h.b16 %v1115
  %v2288 = vunpack.c.l.b16 %v1116
  %v2289 = vunpack.c.h.b16 %v1116
  %v2290 = vunpack.c.l.b16 %v1117
  %v2291 = vunpack.c.h.b16 %v1117
  %v2292 = vunpack.c.l.b16 %v1118
  %v2293 = vunpack.c.h.b16 %v1118
  %v2294 = vunpack.c.l.b16 %v1119
  %v2295 = vunpack.c.h.b16 %v1119
  %v2296 = vunpack.c.l.b16 %v1120
  %v2297 = vunpack.c.h.b16 %v1120
  %v2298 = vunpack.c.l.b16 %v1121
  %v2299 = vunpack.c.h.b16 %v1121
  %v2300 = vunpack.c.l.b16 %v1122
  %v2301 = vunpack.c.h.b16 %v1122
  %v2302 = vunpack.c.l.b16 %v1123
  %v2303 = vunpack.c.h.b16 %v1123
  %v2304 = vunpack.c.l.b16 %v1124
  %v2305 = vunpack.c.h.b16 %v1124
  %v2306 = vunpack.c.l.b16 %v1125
  %v2307 = vunpack.c.h.b16 %v1125
  %v2308 = vunpack.c.l.b16 %v1126
  %v2309 = vunpack.c.h.b16 %v1126
  %v2310 = vunpack.c.l.b16 %v1127
  %v2311 = vunpack.c.h.b16 %v1127
  %v2312 = vunpack.c.l.b16 %v1128
  %v2313 = vunpack.c.h.b16 %v1128
  %v2314 = vunpack.c.l.b16 %v1129
  %v2315 = vunpack.c.h.b16 %v1129
  %v2316 = vunpack.c.l.b16 %v1130
  %v2317 = vunpack.c.h.b16 %v1130
  %v2318 = vunpack.c.l.b16 %v1131
  %v2319 = vunpack.c.h.b16 %v1131
  %v2320 = vunpack.c.l.b16 %v1132
  %v2321 = vunpack.c.h.b16 %v1132
  %v2322 = vunpack.c.l.b16 %v1133
  %v2323 = vunpack.c.h.b16 %v1133
  %v2324 = vunpack.c.l.b16 %v1134
  %v2325 = vunpack.c.h.b16 %v1134
  %v2326 = vunpack.c.l.b16 %v1135
  %v2327 = vunpack.c.h.b16 %v1135
  %v2328 = vunpack.c.l.b16 %v1136
  %v2329 = vunpack.c.h.b16 %v1136
  %v2330 = vunpack.c.l.b16 %v1137
  %v2331 = vunpack.c.h.b16 %v1137
  %v2332 = vunpack.c.l.b16 %v1138
  %v2333 = vunpack.c.h.b16 %v1138
  %v2334 = vunpack.c.l.b16 %v1139
  %v2335 = vunpack.c.h.b16 %v1139
  %v2336 = vunpack.c.l.b16 %v1140
  %v2337 = vunpack.c.h.b16 %v1140
  %v2338 = vunpack.c.l.b16 %v1141
  %v2339 = vunpack.c.h.b16 %v1141
  %v2340 = vunpack.c.l.b16 %v1142
  %v2341 = vunpack.c.h.b16 %v1142
  %v2342 = vunpack.c.l.b16 %v1143
  %v2343 = vunpack.c.h.b16 %v1143
  %v2344 = vunpack.c.l.b16 %v1144
  %v2345 = vunpack.c.h.b16 %v1144
  %v2346 = vunpack.c.l.b16 %v1145
  %v2347 = vunpack.c.h.b16 %v1145
  %v2348 = vunpack.c.l.b16 %v1146
  %v2349 = vunpack.c.h.b16 %v1146
  %v2350 = vunpack.c.l.b16 %v1147
  %v2351 = vunpack.c.h.b16 %v1147
  %v2352 = vunpack.c.l.b16 %v1148
  %v2353 = vunpack.c.h.b16 %v1148
  %v2354 = vunpack.c.l.b16 %v1149
  %v2355 = vunpack.c.h.b16 %v1149
  %v2356 = vunpack.c.l.b16 %v1150
  %v2357 = vunpack.c.h.b16 %v1150
  %v2358 = vunpack.c.l.b16 %v1151
  %v2359 = vunpack.c.h.b16 %v1151
  %v2360 = vunpack.c.l.b16 %v1152
  %v2361 = vunpack.c.h.b16 %v1152
  %v2362 = vunpack.c.l.b16 %v1153
  %v2363 = vunpack.c.h.b16 %v1153
  %v2364 = vunpack.c.l.b16 %v1154
  %v2365 = vunpack.c.h.b16 %v1154
  %v2366 = vunpack.c.l.b16 %v1155
  %v2367 = vunpack.c.h.b16 %v1155
  %v2368 = vunpack.c.l.b16 %v1156
  %v2369 = vunpack.c.h.b16 %v1156
  %v2370 = vunpack.c.l.b16 %v1157
  %v2371 = vunpack.c.h.b16 %v1157
  %v2372 = vunpack.c.l.b16 %v1158
  %v2373 = vunpack.c.h.b16 %v1158
  %v2374 = vunpack.c.l.b16 %v1159
  %v2375 = vunpack.c.h.b16 %v1159
  %v2376 = vunpack.c.l.b16 %v1160
  %v2377 = vunpack.c.h.b16 %v1160
  %v2378 = vunpack.c.l.b16 %v1161
  %v2379 = vunpack.c.h.b16 %v1161
  %v2380 = vunpack.c.l.b16 %v1162
  %v2381 = vunpack.c.h.b16 %v1162
  %v2382 = vunpack.c.l.b16 %v1163
  %v2383 = vunpack.c.h.b16 %v1163
  %v2384 = vunpack.c.l.b16 %v1164
  %v2385 = vunpack.c.h.b16 %v1164
  %v2386 = vunpack.c.l.b16 %v1165
  %v2387 = vunpack.c.h.b16 %v1165
  %v2388 = vunpack.c.l.b16 %v1166
  %v2389 = vunpack.c.h.b16 %v1166
  %v2390 = vunpack.c.l.b16 %v1167
  %v2391 = vunpack.c.h.b16 %v1167
  %v2392 = vunpack.c.l.b16 %v1168
  %v2393 = vunpack.c.h.b16 %v1168
  %v2394 = vunpack.c.l.b16 %v1169
  %v2395 = vunpack.c.h.b16 %v1169
  %v2396 = vunpack.c.l.b16 %v1170
  %v2397 = vunpack.c.h.b16 %v1170
  %v2398 = vunpack.c.l.b16 %v1171
  %v2399 = vunpack.c.h.b16 %v1171
  %v2400 = vunpack.c.l.b16 %v1172
  %v2401 = vunpack.c.h.b16 %v1172
  %v2402 = vunpack.c.l.b16 %v1173
  %v2403 = vunpack.c.h.b16 %v1173
  %v2404 = vunpack.c.l.b16 %v1174
  %v2405 = vunpack.c.h.b16 %v1174
  %v2406 = vunpack.c.l.b16 %v1175
  %v2407 = vunpack.c.h.b16 %v1175
  %v2408 = vunpack.c.l.b16 %v1176
  %v2409 = vunpack.c.h.b16 %v1176
  %v2410 = vunpack.c.l.b16 %v1177
  %v2411 = vunpack.c.h.b16 %v1177
  %v2412 = vunpack.c.l.b16 %v1178
  %v2413 = vunpack.c.h.b16 %v1178
  %v2414 = vunpack.c.l.b16 %v1179
  %v2415 = vunpack.c.h.b16 %v1179
  %v2416 = vunpack.c.l.b16 %v1180
  %v2417 = vunpack.c.h.b16 %v1180
  %v2418 = vunpack.c.l.b16 %v1181
  %v2419 = vunpack.c.h.b16 %v1181
  %v2420 = vunpack.c.l.b16 %v1182
  %v2421 = vunpack.c.h.b16 %v1182
  %v2422 = vunpack.c.l.b16 %v1183
  %v2423 = vunpack.c.h.b16 %v1183
  %v2424 = vunpack.c.l.b16 %v1184
  %v2425 = vunpack.c.h.b16 %v1184
  %v2426 = vunpack.c.l.b16 %v1185
  %v2427 = vunpack.c.h.b16 %v1185
  %v2428 = vunpack.c.l.b16 %v1186
  %v2429 = vunpack.c.h.b16 %v1186
  %v2430 = vunpack.c.l.b16 %v1187
  %v2431 = vunpack.c.h.b16 %v1187
  %v2432 = vunpack.c.l.b16 %v1188
  %v2433 = vunpack.c.h.b16 %v1188
  %v2434 = vunpack.c.l.b16 %v1189
  %v2435 = vunpack.c.h.b16 %v1189
  %v2436 = vunpack.c.l.b16 %v1190
  %v2437 = vunpack.c.h.b16 %v1190
  %v2438 = vunpack.c.l.b16 %v1191
  %v2439 = vunpack.c.h.b16 %v1191
  %v2440 = vunpack.c.l.b16 %v1192
  %v2441 = vunpack.c.h.b16 %v1192
  %v2442 = vunpack.c.l.b16 %v1193
  %v2443 = vunpack.c.h.b16 %v1193
  %v2444 = vunpack.c.l.b16 %v1194
  %v2445 = vunpack.c.h.b16 %v1194
  %v2446 = vunpack.c.l.b16 %v1195
  %v2447 = vunpack.c.h.b16 %v1195
  %v2448 = vunpack.c.l.b16 %v1196
  %v2449 = vunpack.c.h.b16 %v1196
  %v2450 = vunpack.c.l.b16 %v1197
  %v2451 = vunpack.c.h.b16 %v1197
  %v2452 = vunpack.c.l.b16 %v1198
  %v2453 = vunpack.c.h.b16 %v1198
  %v2454 = vunpack.c.l.b16 %v1199
  %v2455 = vunpack.c.h.b16 %v1199
  %v2456 = vunpack.c.l.b16 %v1200
  %v2457 = vunpack.c.h.b16 %v1200
  %v2458 = vunpack.c.l.b16 %v1201
  %v2459 = vunpack.c.h.b16 %v1201
  %v2460 = vunpack.c.l.b16 %v1202
  %v2461 = vunpack.c.h.b16 %v1202
  %v2462 = vunpack.c.l.b16 %v1203
  %v2463 = vunpack.c.h.b16 %v1203
  %v2464 = vunpack.c.l.b16 %v1204
  %v2465 = vunpack.c.h.b16 %v1204
  %v2466 = vunpack.c.l.b16 %v1205
  %v2467 = vunpack.c.h.b16 %v1205
  %v2468 = vunpack.c.l.b16 %v1206
  %v2469 = vunpack.c.h.b16 %v1206
  %v2470 = vunpack.c.l.b16 %v1207
  %v2471 = vunpack.c.h.b16 %v1207
  %v2472 = vunpack.c.l.b16 %v1208
  %v2473 = vunpack.c.h.b16 %v1208
  %v2474 = vunpack.c.l.b16 %v1209
  %v2475 = vunpack.c.h.b16 %v1209
  %v2476 = vunpack.c.l.b16 %v1210
  %v2477 = vunpack.c.h.b16 %v1210
  %v2478 = vunpack.c.l.b16 %v1211
  %v2479 = vunpack.c.h.b16 %v1211
  %v2480 = vunpack.c.l.b16 %v1212
  %v2481 = vunpack.c.h.b16 %v1212
  %v2482 = vunpack.c.l.b16 %v1213
  %v2483 = vunpack.c.h.b16 %v1213
  %v2484 = vunpack.c.l.b16 %v1214
  %v2485 = vunpack.c.h.b16 %v1214
  %v2486 = vunpack.c.l.b16 %v1215
  %v2487 = vunpack.c.h.b16 %v1215
  %v2488 = vunpack.c.l.b16 %v1216
  %v2489 = vunpack.c.h.b16 %v1216
  %v2490 = vunpack.c.l.b16 %v1217
  %v2491 = vunpack.c.h.b16 %v1217
  %v2492 = vunpack.c.l.b16 %v1218
  %v2493 = vunpack.c.h.b16 %v1218
  %v2494 = vunpack.c.l.b16 %v1219
  %v2495 = vunpack.c.h.b16 %v1219
  %v2496 = vunpack.c.l.b16 %v1220
  %v2497 = vunpack.c.h.b16 %v1220
  %v2498 = vunpack.c.l.b16 %v1221
  %v2499 = vunpack.c.h.b16 %v1221
  %v2500 = vunpack.c.l.b16 %v1222
  %v2501 = vunpack.c.h.b16 %v1222
  %v2502 = vunpack.c.l.b16 %v1223
  %v2503 = vunpack.c.h.b16 %v1223
  %v2504 = vunpack.c.l.b16 %v1224
  %v2505 = vunpack.c.h.b16 %v1224
  %v2506 = vunpack.c.l.b16 %v1225
  %v2507 = vunpack.c.h.b16 %v1225
  %v2508 = vunpack.c.l.b16 %v1226
  %v2509 = vunpack.c.h.b16 %v1226
  %v2510 = vunpack.c.l.b16 %v1227
  %v2511 = vunpack.c.h.b16 %v1227
  %v2512 = vunpack.c.l.b16 %v1228
  %v2513 = vunpack.c.h.b16 %v1228
  %v2514 = vunpack.c.l.b16 %v1229
  %v2515 = vunpack.c.h.b16 %v1229
  %v2516 = vunpack.c.l.b16 %v1230
  %v2517 = vunpack.c.h.b16 %v1230
  %v2518 = vunpack.c.l.b16 %v1231
  %v2519 = vunpack.c.h.b16 %v1231
  %v2520 = vunpack.c.l.b16 %v1232
  %v2521 = vunpack.c.h.b16 %v1232
  %v2522 = vunpack.c.l.b16 %v1233
  %v2523 = vunpack.c.h.b16 %v1233
  %v2524 = vunpack.c.l.b16 %v1234
  %v2525 = vunpack.c.h.b16 %v1234
  %v2526 = vunpack.c.l.b16 %v1235
  %v2527 = vunpack.c.h.b16 %v1235
  %v2528 = vunpack.c.l.b16 %v1236
  %v2529 = vunpack.c.h.b16 %v1236
  %v2530 = vunpack.c.l.b16 %v1237
  %v2531 = vunpack.c.h.b16 %v1237
  %v2532 = vunpack.c.l.b16 %v1238
  %v2533 = vunpack.c.h.b16 %v1238
  %v2534 = vunpack.c.l.b16 %v1239
  %v2535 = vunpack.c.h.b16 %v1239
  %v2536 = vpack.c.b16 %v2288, %v2280
  %v2537 = vpack.c.b16 %v2289, %v2281
  %v2538 = vpack.c.b16 %v2290, %v2282
  %v2539 = vpack.c.b16 %v2291, %v2283
  %v2540 = vpack.c.b16 %v2292, %v2284
  %v2541 = vpack.c.b16 %v2293, %v2285
  %v2542 = vpack.c.b16 %v2294, %v2286
  %v2543 = vpack.c.b16 %v2295, %v2287
  %v2544 = vpack.c.b16 %v2304, %v2296
  %v2545 = vpack.c.b16 %v2305, %v2297
  %v2546 = vpack.c.b16 %v2306, %v2298
  %v2547 = vpack.c.b16 %v2307, %v2299
  %v2548 = vpack.c.b16 %v2308, %v2300
  %v2549 = vpack.c.b16 %v2309, %v2301
  %v2550 = vpack.c.b16 %v2310, %v2302
  %v2551 = vpack.c.b16 %v2311, %v2303
  %v2552 = vpack.c.b16 %v2320, %v2312
  %v2553 = vpack.c.b16 %v2321, %v2313
  %v2554 = vpack.c.b16 %v2322, %v2314
  %v2555 = vpack.c.b16 %v2323, %v2315
  %v2556 = vpack.c.b16 %v2324, %v2316
  %v2557 = vpack.c.b16 %v2325, %v2317
  %v2558 = vpack.c.b16 %v2326, %v2318
  %v2559 = vpack.c.b16 %v2327, %v2319
  %v2560 = vpack.c.b16 %v2336, %v2328
  %v2561 = vpack.c.b16 %v2337, %v2329
  %v2562 = vpack.c.b16 %v2338, %v2330
  %v2563 = vpack.c.b16 %v2339, %v2331
  %v2564 = vpack.c.b16 %v2340, %v2332
  %v2565 = vpack.c.b16 %v2341, %v2333
  %v2566 = vpack.c.b16 %v2342, %v2334
  %v2567 = vpack.c.b16 %v2343, %v2335
  %v2568 = vpack.c.b16 %v2352, %v2344
  %v2569 = vpack.c.b16 %v2353, %v2345
  %v2570 = vpack.c.b16 %v2354, %v2346
  %v2571 = vpack.c.b16 %v2355, %v2347
  %v2572 = vpack.c.b16 %v2356, %v2348
  %v2573 = vpack.c.b16 %v2357, %v2349
  %v2574 = vpack.c.b16 %v2358, %v2350
  %v2575 = vpack.c.b16 %v2359, %v2351
  %v2576 = vpack.c.b16 %v2368, %v2360
  %v2577 = vpack.c.b16 %v2369, %v2361
  %v2578 = vpack.c.b16 %v2370, %v2362
  %v2579 = vpack.c.b16 %v2371, %v2363
  %v2580 = vpack.c.b16 %v2372, %v2364
  %v2581 = vpack.c.b16 %v2373, %v2365
  %v2582 = vpack.c.b16 %v2374, %v2366
  %v2583 = vpack.c.b16 %v2375, %v2367
  %v2584 = vpack.c.b16 %v2384, %v2376
  %v2585 = vpack.c.b16 %v2385, %v2377
  %v2586 = vpack.c.b16 %v2386, %v2378
  %v2587 = vpack.c.b16 %v2387, %v2379
  %v2588 = vpack.c.b16 %v2388, %v2380
  %v2589 = vpack.c.b16 %v2389, %v2381
  %v2590 = vpack.c.b16 %v2390, %v2382
  %v2591 = vpack.c.b16 %v2391, %v2383
  %v2592 = vpack.c.b16 %v2400, %v2392
  %v2593 = vpack.c.b16 %v2401, %v2393
  %v2594 = vpack.c.b16 %v2402, %v2394
  %v2595 = vpack.c.b16 %v2403, %v2395
  %v2596 = vpack.c.b16 %v2404, %v2396
  %v2597 = vpack.c.b16 %v2405, %v2397
  %v2598 = vpack.c.b16 %v2406, %v2398
  %v2599 = vpack.c.b16 %v2407, %v2399
  %v2600 = vpack.c.b16 %v2416, %v2408
  %v2601 = vpack.c.b16 %v2417, %v2409
  %v2602 = vpack.c.b16 %v2418, %v2410
  %v2603 = vpack.c.b16 %v2419, %v2411
  %v2604 = vpack.c.b16 %v2420, %v2412
  %v2605 = vpack.c.b16 %v2421, %v2413
  %v2606 = vpack.c.b16 %v2422, %v2414
  %v2607 = vpack.c.b16 %v2423, %v2415
  %v2608 = vpack.c.b16 %v2432, %v2424
  %v2609 = vpack.c.b16 %v2433, %v2425
  %v2610 = vpack.c.b16 %v2434, %v2426
  %v2611 = vpack.c.b16 %v2435, %v2427
  %v2612 = vpack.c.b16 %v2436, %v2428
  %v2613 = vpack.c.b16 %v2437, %v2429
  %v2614 = vpack.c.b16 %v2438, %v2430
  %v2615 = vpack.c.b16 %v2439, %v2431
  %v2616 = vpack.c.b16 %v2448, %v2440
  %v2617 = vpack.c.b16 %v2449, %v2441
  %v2618 = vpack.c.b16 %v2450, %v2442
  %v2619 = vpack.c.b16 %v2451, %v2443
  %v2620 = vpack.c.b16 %v2452, %v2444
  %v2621 = vpack.c.b16 %v2453, %v2445
  %v2622 = vpack.c.b16 %v2454, %v2446
  %v2623 = vpack.c.b16 %v2455, %v2447
  %v2624 = vpack.c.b16 %v2464, %v2456
  %v2625 = vpack.c.b16 %v2465, %v2457
  %v2626 = vpack.c.b16 %v2466, %v2458
  %v2627 = vpack.c.b16 %v2467, %v2459
  %v2628 = vpack.c.b16 %v2468, %v2460
  %v2629 = vpack.c.b16 %v2469, %v2461
  %v2630 = vpack.c.b16 %v2470, %v2462
  %v2631 = vpack.c.b16 %v2471, %v2463
  %v2632 = vpack.c.b16 %v2480, %v2472
  %v2633 = vpack.c.b16 %v2481, %v2473
  %v2634 = vpack.c.b16 %v2482, %v2474
  %v2635 = vpack.c.b16 %v2483, %v2475
  %v2636 = vpack.c.b16 %v2484, %v2476
  %v2637 = vpack.c.b16 %v2485, %v2477
  %v2638 = vpack.c.b16 %v2486, %v2478
  %v2639 = vpack.c.b16 %v2487, %v2479
  %v2640 = vpack.c.b16 %v2496, %v2488
  %v2641 = vpack.c.b16 %v2497, %v2489
  %v2642 = vpack.c.b16 %v2498, %v2490
  %v2643 = vpack.c.b16 %v2499, %v2491
  %v2644 = vpack.c.b16 %v2500, %v2492
  %v2645 = vpack.c.b16 %v2501, %v2493
  %v2646 = vpack.c.b16 %v2502, %v2494
  %v2647 = vpack.c.b16 %v2503, %v2495
  %v2648 = vpack.c.b16 %v2512, %v2504
  %v2649 = vpack.c.b16 %v2513, %v2505
  %v2650 = vpack.c.b16 %v2514, %v2506
  %v2651 = vpack.c.b16 %v2515, %v2507
  %v2652 = vpack.c.b16 %v2516, %v2508
  %v2653 = vpack.c.b16 %v2517, %v2509
  %v2654 = vpack.c.b16 %v2518, %v2510
  %v2655 = vpack.c.b16 %v2519, %v2511
  %v2656 = vpack.c.b16 %v2528, %v2520
  %v2657 = vpack.c.b16 %v2529, %v2521
  %v2658 = vpack.c.b16 %v2530, %v2522
  %v2659 = vpack.c.b16 %v2531, %v2523
  %v2660 = vpack.c.b16 %v2532, %v2524
  %v2661 = vpack.c.b16 %v2533, %v2525
  %v2662 = vpack.c.b16 %v2534, %v2526
  %v2663 = vpack.c.b16 %v2535, %v2527
  %2792 = vmatprep.subr.bf16.mxu0 %v2537
  %2793 = vmatpush1.bf16.msra.mxu0 %v2536
  %2794 = vmatprep.subr.bf16.mxu0 %v2545
  %2795 = vmatpush1.bf16.msra.mxu0 %v2544
  %2796 = vmatprep.subr.bf16.mxu0 %v2553
  %2797 = vmatpush1.bf16.msra.mxu0 %v2552
  %2798 = vmatprep.subr.bf16.mxu0 %v2561
  %2799 = vmatpush1.bf16.msra.mxu0 %v2560
  %2800 = vmatprep.subr.bf16.mxu0 %v2569
  %2801 = vmatpush1.bf16.msra.mxu0 %v2568
  %2802 = vmatprep.subr.bf16.mxu0 %v2577
  %2803 = vmatpush1.bf16.msra.mxu0 %v2576
  %2804 = vmatprep.subr.bf16.mxu0 %v2585
  %2805 = vmatpush1.bf16.msra.mxu0 %v2584
  %2806 = vmatprep.subr.bf16.mxu0 %v2593
  %2807 = vmatpush1.bf16.msra.mxu0 %v2592
  %2808 = vmatprep.subr.bf16.mxu0 %v2601
  %2809 = vmatpush1.bf16.msra.mxu0 %v2600
  %2810 = vmatprep.subr.bf16.mxu0 %v2609
  %2811 = vmatpush1.bf16.msra.mxu0 %v2608
  %2812 = vmatprep.subr.bf16.mxu0 %v2617
  %2813 = vmatpush1.bf16.msra.mxu0 %v2616
  %2814 = vmatprep.subr.bf16.mxu0 %v2625
  %2815 = vmatpush1.bf16.msra.mxu0 %v2624
  %2816 = vmatprep.subr.bf16.mxu0 %v2633
  %2817 = vmatpush1.bf16.msra.mxu0 %v2632
  %2818 = vmatprep.subr.bf16.mxu0 %v2641
  %2819 = vmatpush1.bf16.msra.mxu0 %v2640
  %2820 = vmatprep.subr.bf16.mxu0 %v2649
  %2821 = vmatpush1.bf16.msra.mxu0 %v2648
  %2822 = vmatprep.subr.bf16.mxu0 %v2657
  %2823 = vmatpush1.bf16.msra.mxu0 %v2656
  %2824 = vmatprep.mubr.bf16.mxu0 %v2110
  %2825 = vmatmul.mubr.bf16.gmra.mrb[0].mxu0 %v2109
  %v2826 = vpop.f32.mrb[0].mxu0
  %v2827 = vadd.f32 %v2115, %v2826
  %v2828 = vpop.f32.mrb[0].mxu0
  %v2829 = vadd.f32 %v2119, %v2828
  %v2830 = vpop.f32.mrb[0].mxu0
  %v2831 = vpop.f32.mrb[0].mxu0
  %2832 = vdwg.mxu0
  %2833 = vmatprep.subr.bf16.mxu0 %v2539
  %2834 = vmatpush1.bf16.msra.mxu0 %v2538
  %2835 = vmatprep.subr.bf16.mxu0 %v2547
  %2836 = vmatpush1.bf16.msra.mxu0 %v2546
  %2837 = vmatprep.subr.bf16.mxu0 %v2555
  %2838 = vmatpush1.bf16.msra.mxu0 %v2554
  %2839 = vmatprep.subr.bf16.mxu0 %v2563
  %2840 = vmatpush1.bf16.msra.mxu0 %v2562
  %2841 = vmatprep.subr.bf16.mxu0 %v2571
  %2842 = vmatpush1.bf16.msra.mxu0 %v2570
  %2843 = vmatprep.subr.bf16.mxu0 %v2579
  %2844 = vmatpush1.bf16.msra.mxu0 %v2578
  %2845 = vmatprep.subr.bf16.mxu0 %v2587
  %2846 = vmatpush1.bf16.msra.mxu0 %v2586
  %2847 = vmatprep.subr.bf16.mxu0 %v2595
  %2848 = vmatpush1.bf16.msra.mxu0 %v2594
  %2849 = vmatprep.subr.bf16.mxu0 %v2603
  %2850 = vmatpush1.bf16.msra.mxu0 %v2602
  %2851 = vmatprep.subr.bf16.mxu0 %v2611
  %2852 = vmatpush1.bf16.msra.mxu0 %v2610
  %2853 = vmatprep.subr.bf16.mxu0 %v2619
  %2854 = vmatpush1.bf16.msra.mxu0 %v2618
  %2855 = vmatprep.subr.bf16.mxu0 %v2627
  %2856 = vmatpush1.bf16.msra.mxu0 %v2626
  %2857 = vmatprep.subr.bf16.mxu0 %v2635
  %2858 = vmatpush1.bf16.msra.mxu0 %v2634
  %2859 = vmatprep.subr.bf16.mxu0 %v2643
  %2860 = vmatpush1.bf16.msra.mxu0 %v2642
  %2861 = vmatprep.subr.bf16.mxu0 %v2651
  %2862 = vmatpush1.bf16.msra.mxu0 %v2650
  %2863 = vmatprep.subr.bf16.mxu0 %v2659
  %2864 = vmatpush1.bf16.msra.mxu0 %v2658
  %2865 = vmatprep.mubr.bf16.mxu0 %v2110
  %2866 = vmatmul.mubr.bf16.gmra.mrb[0].mxu0 %v2109
  %v2867 = vpop.f32.mrb[0].mxu0
  %v2868 = vadd.f32 %v2123, %v2867
  %v2869 = vpop.f32.mrb[0].mxu0
  %v2870 = vadd.f32 %v2127, %v2869
  %v2871 = vpop.f32.mrb[0].mxu0
  %v2872 = vpop.f32.mrb[0].mxu0
  %2873 = vdwg.mxu0
  %2874 = vmatprep.subr.bf16.mxu0 %v2541
  %2875 = vmatpush1.bf16.msra.mxu0 %v2540
  %2876 = vmatprep.subr.bf16.mxu0 %v2549
  %2877 = vmatpush1.bf16.msra.mxu0 %v2548
  %2878 = vmatprep.subr.bf16.mxu0 %v2557
  %2879 = vmatpush1.bf16.msra.mxu0 %v2556
  %2880 = vmatprep.subr.bf16.mxu0 %v2565
  %2881 = vmatpush1.bf16.msra.mxu0 %v2564
  %2882 = vmatprep.subr.bf16.mxu0 %v2573
  %2883 = vmatpush1.bf16.msra.mxu0 %v2572
  %2884 = vmatprep.subr.bf16.mxu0 %v2581
  %2885 = vmatpush1.bf16.msra.mxu0 %v2580
  %2886 = vmatprep.subr.bf16.mxu0 %v2589
  %2887 = vmatpush1.bf16.msra.mxu0 %v2588
  %2888 = vmatprep.subr.bf16.mxu0 %v2597
  %2889 = vmatpush1.bf16.msra.mxu0 %v2596
  %2890 = vmatprep.subr.bf16.mxu0 %v2605
  %2891 = vmatpush1.bf16.msra.mxu0 %v2604
  %2892 = vmatprep.subr.bf16.mxu0 %v2613
  %2893 = vmatpush1.bf16.msra.mxu0 %v2612
  %2894 = vmatprep.subr.bf16.mxu0 %v2621
  %2895 = vmatpush1.bf16.msra.mxu0 %v2620
  %2896 = vmatprep.subr.bf16.mxu0 %v2629
  %2897 = vmatpush1.bf16.msra.mxu0 %v2628
  %2898 = vmatprep.subr.bf16.mxu0 %v2637
  %2899 = vmatpush1.bf16.msra.mxu0 %v2636
  %2900 = vmatprep.subr.bf16.mxu0 %v2645
  %2901 = vmatpush1.bf16.msra.mxu0 %v2644
  %2902 = vmatprep.subr.bf16.mxu0 %v2653
  %2903 = vmatpush1.bf16.msra.mxu0 %v2652
  %2904 = vmatprep.subr.bf16.mxu0 %v2661
  %2905 = vmatpush1.bf16.msra.mxu0 %v2660
  %2906 = vmatprep.mubr.bf16.mxu0 %v2110
  %2907 = vmatmul.mubr.bf16.gmra.mrb[0].mxu0 %v2109
  %v2908 = vpop.f32.mrb[0].mxu0
  %v2909 = vadd.f32 %v2131, %v2908
  %v2910 = vpop.f32.mrb[0].mxu0
  %v2911 = vadd.f32 %v2135, %v2910
  %v2912 = vpop.f32.mrb[0].mxu0
  %v2913 = vpop.f32.mrb[0].mxu0
  %2914 = vdwg.mxu0
  %2915 = vmatprep.subr.bf16.mxu0 %v2543
  %2916 = vmatpush1.bf16.msra.mxu0 %v2542
  %2917 = vmatprep.subr.bf16.mxu0 %v2551
  %2918 = vmatpush1.bf16.msra.mxu0 %v2550
  %2919 = vmatprep.subr.bf16.mxu0 %v2559
  %2920 = vmatpush1.bf16.msra.mxu0 %v2558
  %2921 = vmatprep.subr.bf16.mxu0 %v2567
  %2922 = vmatpush1.bf16.msra.mxu0 %v2566
  %2923 = vmatprep.subr.bf16.mxu0 %v2575
  %2924 = vmatpush1.bf16.msra.mxu0 %v2574
  %2925 = vmatprep.subr.bf16.mxu0 %v2583
  %2926 = vmatpush1.bf16.msra.mxu0 %v2582
  %2927 = vmatprep.subr.bf16.mxu0 %v2591
  %2928 = vmatpush1.bf16.msra.mxu0 %v2590
  %2929 = vmatprep.subr.bf16.mxu0 %v2599
  %2930 = vmatpush1.bf16.msra.mxu0 %v2598
  %2931 = vmatprep.subr.bf16.mxu0 %v2607
  %2932 = vmatpush1.bf16.msra.mxu0 %v2606
  %2933 = vmatprep.subr.bf16.mxu0 %v2615
  %2934 = vmatpush1.bf16.msra.mxu0 %v2614
  %2935 = vmatprep.subr.bf16.mxu0 %v2623
  %2936 = vmatpush1.bf16.msra.mxu0 %v2622
  %2937 = vmatprep.subr.bf16.mxu0 %v2631
  %2938 = vmatpush1.bf16.msra.mxu0 %v2630
  %2939 = vmatprep.subr.bf16.mxu0 %v2639
  %2940 = vmatpush1.bf16.msra.mxu0 %v2638
  %2941 = vmatprep.subr.bf16.mxu0 %v2647
  %2942 = vmatpush1.bf16.msra.mxu0 %v2646
  %2943 = vmatprep.subr.bf16.mxu0 %v2655
  %2944 = vmatpush1.bf16.msra.mxu0 %v2654
  %2945 = vmatprep.subr.bf16.mxu0 %v2663
  %2946 = vmatpush1.bf16.msra.mxu0 %v2662
  %2947 = vmatprep.mubr.bf16.mxu0 %v2110
  %2948 = vmatmul.mubr.bf16.gmra.mrb[0].mxu0 %v2109
  %v2949 = vpop.f32.mrb[0].mxu0
  %v2950 = vadd.f32 %v2139, %v2949
  %v2951 = vpop.f32.mrb[0].mxu0
  %v2952 = vadd.f32 %v2143, %v2951
  %v2953 = vpop.f32.mrb[0].mxu0
  %v2954 = vpop.f32.mrb[0].mxu0
  %2955 = vdwg.mxu0
  %v2956 = vpack.c.bf16 %v1246, %v1246
  %v2957 = vpack.c.bf16 %v1247, %v1247
  %v3086 = vunpack.c.l.b16 %v984
  %v3087 = vunpack.c.h.b16 %v984
  %v3088 = vunpack.c.l.b16 %v985
  %v3089 = vunpack.c.h.b16 %v985
  %v3090 = vunpack.c.l.b16 %v986
  %v3091 = vunpack.c.h.b16 %v986
  %v3092 = vunpack.c.l.b16 %v987
  %v3093 = vunpack.c.h.b16 %v987
  %v3094 = vunpack.c.l.b16 %v988
  %v3095 = vunpack.c.h.b16 %v988
  %v3096 = vunpack.c.l.b16 %v989
  %v3097 = vunpack.c.h.b16 %v989
  %v3098 = vunpack.c.l.b16 %v990
  %v3099 = vunpack.c.h.b16 %v990
  %v3100 = vunpack.c.l.b16 %v991
  %v3101 = vunpack.c.h.b16 %v991
  %v3102 = vunpack.c.l.b16 %v992
  %v3103 = vunpack.c.h.b16 %v992
  %v3104 = vunpack.c.l.b16 %v993
  %v3105 = vunpack.c.h.b16 %v993
  %v3106 = vunpack.c.l.b16 %v994
  %v3107 = vunpack.c.h.b16 %v994
  %v3108 = vunpack.c.l.b16 %v995
  %v3109 = vunpack.c.h.b16 %v995
  %v3110 = vunpack.c.l.b16 %v996
  %v3111 = vunpack.c.h.b16 %v996
  %v3112 = vunpack.c.l.b16 %v997
  %v3113 = vunpack.c.h.b16 %v997
  %v3114 = vunpack.c.l.b16 %v998
  %v3115 = vunpack.c.h.b16 %v998
  %v3116 = vunpack.c.l.b16 %v999
  %v3117 = vunpack.c.h.b16 %v999
  %v3118 = vunpack.c.l.b16 %v1000
  %v3119 = vunpack.c.h.b16 %v1000
  %v3120 = vunpack.c.l.b16 %v1001
  %v3121 = vunpack.c.h.b16 %v1001
  %v3122 = vunpack.c.l.b16 %v1002
  %v3123 = vunpack.c.h.b16 %v1002
  %v3124 = vunpack.c.l.b16 %v1003
  %v3125 = vunpack.c.h.b16 %v1003
  %v3126 = vunpack.c.l.b16 %v1004
  %v3127 = vunpack.c.h.b16 %v1004
  %v3128 = vunpack.c.l.b16 %v1005
  %v3129 = vunpack.c.h.b16 %v1005
  %v3130 = vunpack.c.l.b16 %v1006
  %v3131 = vunpack.c.h.b16 %v1006
  %v3132 = vunpack.c.l.b16 %v1007
  %v3133 = vunpack.c.h.b16 %v1007
  %v3134 = vunpack.c.l.b16 %v1008
  %v3135 = vunpack.c.h.b16 %v1008
  %v3136 = vunpack.c.l.b16 %v1009
  %v3137 = vunpack.c.h.b16 %v1009
  %v3138 = vunpack.c.l.b16 %v1010
  %v3139 = vunpack.c.h.b16 %v1010
  %v3140 = vunpack.c.l.b16 %v1011
  %v3141 = vunpack.c.h.b16 %v1011
  %v3142 = vunpack.c.l.b16 %v1012
  %v3143 = vunpack.c.h.b16 %v1012
  %v3144 = vunpack.c.l.b16 %v1013
  %v3145 = vunpack.c.h.b16 %v1013
  %v3146 = vunpack.c.l.b16 %v1014
  %v3147 = vunpack.c.h.b16 %v1014
  %v3148 = vunpack.c.l.b16 %v1015
  %v3149 = vunpack.c.h.b16 %v1015
  %v3150 = vunpack.c.l.b16 %v1016
  %v3151 = vunpack.c.h.b16 %v1016
  %v3152 = vunpack.c.l.b16 %v1017
  %v3153 = vunpack.c.h.b16 %v1017
  %v3154 = vunpack.c.l.b16 %v1018
  %v3155 = vunpack.c.h.b16 %v1018
  %v3156 = vunpack.c.l.b16 %v1019
  %v3157 = vunpack.c.h.b16 %v1019
  %v3158 = vunpack.c.l.b16 %v1020
  %v3159 = vunpack.c.h.b16 %v1020
  %v3160 = vunpack.c.l.b16 %v1021
  %v3161 = vunpack.c.h.b16 %v1021
  %v3162 = vunpack.c.l.b16 %v1022
  %v3163 = vunpack.c.h.b16 %v1022
  %v3164 = vunpack.c.l.b16 %v1023
  %v3165 = vunpack.c.h.b16 %v1023
  %v3166 = vunpack.c.l.b16 %v1024
  %v3167 = vunpack.c.h.b16 %v1024
  %v3168 = vunpack.c.l.b16 %v1025
  %v3169 = vunpack.c.h.b16 %v1025
  %v3170 = vunpack.c.l.b16 %v1026
  %v3171 = vunpack.c.h.b16 %v1026
  %v3172 = vunpack.c.l.b16 %v1027
  %v3173 = vunpack.c.h.b16 %v1027
  %v3174 = vunpack.c.l.b16 %v1028
  %v3175 = vunpack.c.h.b16 %v1028
  %v3176 = vunpack.c.l.b16 %v1029
  %v3177 = vunpack.c.h.b16 %v1029
  %v3178 = vunpack.c.l.b16 %v1030
  %v3179 = vunpack.c.h.b16 %v1030
  %v3180 = vunpack.c.l.b16 %v1031
  %v3181 = vunpack.c.h.b16 %v1031
  %v3182 = vunpack.c.l.b16 %v1032
  %v3183 = vunpack.c.h.b16 %v1032
  %v3184 = vunpack.c.l.b16 %v1033
  %v3185 = vunpack.c.h.b16 %v1033
  %v3186 = vunpack.c.l.b16 %v1034
  %v3187 = vunpack.c.h.b16 %v1034
  %v3188 = vunpack.c.l.b16 %v1035
  %v3189 = vunpack.c.h.b16 %v1035
  %v3190 = vunpack.c.l.b16 %v1036
  %v3191 = vunpack.c.h.b16 %v1036
  %v3192 = vunpack.c.l.b16 %v1037
  %v3193 = vunpack.c.h.b16 %v1037
  %v3194 = vunpack.c.l.b16 %v1038
  %v3195 = vunpack.c.h.b16 %v1038
  %v3196 = vunpack.c.l.b16 %v1039
  %v3197 = vunpack.c.h.b16 %v1039
  %v3198 = vunpack.c.l.b16 %v1040
  %v3199 = vunpack.c.h.b16 %v1040
  %v3200 = vunpack.c.l.b16 %v1041
  %v3201 = vunpack.c.h.b16 %v1041
  %v3202 = vunpack.c.l.b16 %v1042
  %v3203 = vunpack.c.h.b16 %v1042
  %v3204 = vunpack.c.l.b16 %v1043
  %v3205 = vunpack.c.h.b16 %v1043
  %v3206 = vunpack.c.l.b16 %v1044
  %v3207 = vunpack.c.h.b16 %v1044
  %v3208 = vunpack.c.l.b16 %v1045
  %v3209 = vunpack.c.h.b16 %v1045
  %v3210 = vunpack.c.l.b16 %v1046
  %v3211 = vunpack.c.h.b16 %v1046
  %v3212 = vunpack.c.l.b16 %v1047
  %v3213 = vunpack.c.h.b16 %v1047
  %v3214 = vunpack.c.l.b16 %v1048
  %v3215 = vunpack.c.h.b16 %v1048
  %v3216 = vunpack.c.l.b16 %v1049
  %v3217 = vunpack.c.h.b16 %v1049
  %v3218 = vunpack.c.l.b16 %v1050
  %v3219 = vunpack.c.h.b16 %v1050
  %v3220 = vunpack.c.l.b16 %v1051
  %v3221 = vunpack.c.h.b16 %v1051
  %v3222 = vunpack.c.l.b16 %v1052
  %v3223 = vunpack.c.h.b16 %v1052
  %v3224 = vunpack.c.l.b16 %v1053
  %v3225 = vunpack.c.h.b16 %v1053
  %v3226 = vunpack.c.l.b16 %v1054
  %v3227 = vunpack.c.h.b16 %v1054
  %v3228 = vunpack.c.l.b16 %v1055
  %v3229 = vunpack.c.h.b16 %v1055
  %v3230 = vunpack.c.l.b16 %v1056
  %v3231 = vunpack.c.h.b16 %v1056
  %v3232 = vunpack.c.l.b16 %v1057
  %v3233 = vunpack.c.h.b16 %v1057
  %v3234 = vunpack.c.l.b16 %v1058
  %v3235 = vunpack.c.h.b16 %v1058
  %v3236 = vunpack.c.l.b16 %v1059
  %v3237 = vunpack.c.h.b16 %v1059
  %v3238 = vunpack.c.l.b16 %v1060
  %v3239 = vunpack.c.h.b16 %v1060
  %v3240 = vunpack.c.l.b16 %v1061
  %v3241 = vunpack.c.h.b16 %v1061
  %v3242 = vunpack.c.l.b16 %v1062
  %v3243 = vunpack.c.h.b16 %v1062
  %v3244 = vunpack.c.l.b16 %v1063
  %v3245 = vunpack.c.h.b16 %v1063
  %v3246 = vunpack.c.l.b16 %v1064
  %v3247 = vunpack.c.h.b16 %v1064
  %v3248 = vunpack.c.l.b16 %v1065
  %v3249 = vunpack.c.h.b16 %v1065
  %v3250 = vunpack.c.l.b16 %v1066
  %v3251 = vunpack.c.h.b16 %v1066
  %v3252 = vunpack.c.l.b16 %v1067
  %v3253 = vunpack.c.h.b16 %v1067
  %v3254 = vunpack.c.l.b16 %v1068
  %v3255 = vunpack.c.h.b16 %v1068
  %v3256 = vunpack.c.l.b16 %v1069
  %v3257 = vunpack.c.h.b16 %v1069
  %v3258 = vunpack.c.l.b16 %v1070
  %v3259 = vunpack.c.h.b16 %v1070
  %v3260 = vunpack.c.l.b16 %v1071
  %v3261 = vunpack.c.h.b16 %v1071
  %v3262 = vunpack.c.l.b16 %v1072
  %v3263 = vunpack.c.h.b16 %v1072
  %v3264 = vunpack.c.l.b16 %v1073
  %v3265 = vunpack.c.h.b16 %v1073
  %v3266 = vunpack.c.l.b16 %v1074
  %v3267 = vunpack.c.h.b16 %v1074
  %v3268 = vunpack.c.l.b16 %v1075
  %v3269 = vunpack.c.h.b16 %v1075
  %v3270 = vunpack.c.l.b16 %v1076
  %v3271 = vunpack.c.h.b16 %v1076
  %v3272 = vunpack.c.l.b16 %v1077
  %v3273 = vunpack.c.h.b16 %v1077
  %v3274 = vunpack.c.l.b16 %v1078
  %v3275 = vunpack.c.h.b16 %v1078
  %v3276 = vunpack.c.l.b16 %v1079
  %v3277 = vunpack.c.h.b16 %v1079
  %v3278 = vunpack.c.l.b16 %v1080
  %v3279 = vunpack.c.h.b16 %v1080
  %v3280 = vunpack.c.l.b16 %v1081
  %v3281 = vunpack.c.h.b16 %v1081
  %v3282 = vunpack.c.l.b16 %v1082
  %v3283 = vunpack.c.h.b16 %v1082
  %v3284 = vunpack.c.l.b16 %v1083
  %v3285 = vunpack.c.h.b16 %v1083
  %v3286 = vunpack.c.l.b16 %v1084
  %v3287 = vunpack.c.h.b16 %v1084
  %v3288 = vunpack.c.l.b16 %v1085
  %v3289 = vunpack.c.h.b16 %v1085
  %v3290 = vunpack.c.l.b16 %v1086
  %v3291 = vunpack.c.h.b16 %v1086
  %v3292 = vunpack.c.l.b16 %v1087
  %v3293 = vunpack.c.h.b16 %v1087
  %v3294 = vunpack.c.l.b16 %v1088
  %v3295 = vunpack.c.h.b16 %v1088
  %v3296 = vunpack.c.l.b16 %v1089
  %v3297 = vunpack.c.h.b16 %v1089
  %v3298 = vunpack.c.l.b16 %v1090
  %v3299 = vunpack.c.h.b16 %v1090
  %v3300 = vunpack.c.l.b16 %v1091
  %v3301 = vunpack.c.h.b16 %v1091
  %v3302 = vunpack.c.l.b16 %v1092
  %v3303 = vunpack.c.h.b16 %v1092
  %v3304 = vunpack.c.l.b16 %v1093
  %v3305 = vunpack.c.h.b16 %v1093
  %v3306 = vunpack.c.l.b16 %v1094
  %v3307 = vunpack.c.h.b16 %v1094
  %v3308 = vunpack.c.l.b16 %v1095
  %v3309 = vunpack.c.h.b16 %v1095
  %v3310 = vunpack.c.l.b16 %v1096
  %v3311 = vunpack.c.h.b16 %v1096
  %v3312 = vunpack.c.l.b16 %v1097
  %v3313 = vunpack.c.h.b16 %v1097
  %v3314 = vunpack.c.l.b16 %v1098
  %v3315 = vunpack.c.h.b16 %v1098
  %v3316 = vunpack.c.l.b16 %v1099
  %v3317 = vunpack.c.h.b16 %v1099
  %v3318 = vunpack.c.l.b16 %v1100
  %v3319 = vunpack.c.h.b16 %v1100
  %v3320 = vunpack.c.l.b16 %v1101
  %v3321 = vunpack.c.h.b16 %v1101
  %v3322 = vunpack.c.l.b16 %v1102
  %v3323 = vunpack.c.h.b16 %v1102
  %v3324 = vunpack.c.l.b16 %v1103
  %v3325 = vunpack.c.h.b16 %v1103
  %v3326 = vunpack.c.l.b16 %v1104
  %v3327 = vunpack.c.h.b16 %v1104
  %v3328 = vunpack.c.l.b16 %v1105
  %v3329 = vunpack.c.h.b16 %v1105
  %v3330 = vunpack.c.l.b16 %v1106
  %v3331 = vunpack.c.h.b16 %v1106
  %v3332 = vunpack.c.l.b16 %v1107
  %v3333 = vunpack.c.h.b16 %v1107
  %v3334 = vunpack.c.l.b16 %v1108
  %v3335 = vunpack.c.h.b16 %v1108
  %v3336 = vunpack.c.l.b16 %v1109
  %v3337 = vunpack.c.h.b16 %v1109
  %v3338 = vunpack.c.l.b16 %v1110
  %v3339 = vunpack.c.h.b16 %v1110
  %v3340 = vunpack.c.l.b16 %v1111
  %v3341 = vunpack.c.h.b16 %v1111
  %v3342 = vpack.c.b16 %v3094, %v3086
  %v3343 = vpack.c.b16 %v3095, %v3087
  %v3344 = vpack.c.b16 %v3096, %v3088
  %v3345 = vpack.c.b16 %v3097, %v3089
  %v3346 = vpack.c.b16 %v3098, %v3090
  %v3347 = vpack.c.b16 %v3099, %v3091
  %v3348 = vpack.c.b16 %v3100, %v3092
  %v3349 = vpack.c.b16 %v3101, %v3093
  %v3350 = vpack.c.b16 %v3110, %v3102
  %v3351 = vpack.c.b16 %v3111, %v3103
  %v3352 = vpack.c.b16 %v3112, %v3104
  %v3353 = vpack.c.b16 %v3113, %v3105
  %v3354 = vpack.c.b16 %v3114, %v3106
  %v3355 = vpack.c.b16 %v3115, %v3107
  %v3356 = vpack.c.b16 %v3116, %v3108
  %v3357 = vpack.c.b16 %v3117, %v3109
  %v3358 = vpack.c.b16 %v3126, %v3118
  %v3359 = vpack.c.b16 %v3127, %v3119
  %v3360 = vpack.c.b16 %v3128, %v3120
  %v3361 = vpack.c.b16 %v3129, %v3121
  %v3362 = vpack.c.b16 %v3130, %v3122
  %v3363 = vpack.c.b16 %v3131, %v3123
  %v3364 = vpack.c.b16 %v3132, %v3124
  %v3365 = vpack.c.b16 %v3133, %v3125
  %v3366 = vpack.c.b16 %v3142, %v3134
  %v3367 = vpack.c.b16 %v3143, %v3135
  %v3368 = vpack.c.b16 %v3144, %v3136
  %v3369 = vpack.c.b16 %v3145, %v3137
  %v3370 = vpack.c.b16 %v3146, %v3138
  %v3371 = vpack.c.b16 %v3147, %v3139
  %v3372 = vpack.c.b16 %v3148, %v3140
  %v3373 = vpack.c.b16 %v3149, %v3141
  %v3374 = vpack.c.b16 %v3158, %v3150
  %v3375 = vpack.c.b16 %v3159, %v3151
  %v3376 = vpack.c.b16 %v3160, %v3152
  %v3377 = vpack.c.b16 %v3161, %v3153
  %v3378 = vpack.c.b16 %v3162, %v3154
  %v3379 = vpack.c.b16 %v3163, %v3155
  %v3380 = vpack.c.b16 %v3164, %v3156
  %v3381 = vpack.c.b16 %v3165, %v3157
  %v3382 = vpack.c.b16 %v3174, %v3166
  %v3383 = vpack.c.b16 %v3175, %v3167
  %v3384 = vpack.c.b16 %v3176, %v3168
  %v3385 = vpack.c.b16 %v3177, %v3169
  %v3386 = vpack.c.b16 %v3178, %v3170
  %v3387 = vpack.c.b16 %v3179, %v3171
  %v3388 = vpack.c.b16 %v3180, %v3172
  %v3389 = vpack.c.b16 %v3181, %v3173
  %v3390 = vpack.c.b16 %v3190, %v3182
  %v3391 = vpack.c.b16 %v3191, %v3183
  %v3392 = vpack.c.b16 %v3192, %v3184
  %v3393 = vpack.c.b16 %v3193, %v3185
  %v3394 = vpack.c.b16 %v3194, %v3186
  %v3395 = vpack.c.b16 %v3195, %v3187
  %v3396 = vpack.c.b16 %v3196, %v3188
  %v3397 = vpack.c.b16 %v3197, %v3189
  %v3398 = vpack.c.b16 %v3206, %v3198
  %v3399 = vpack.c.b16 %v3207, %v3199
  %v3400 = vpack.c.b16 %v3208, %v3200
  %v3401 = vpack.c.b16 %v3209, %v3201
  %v3402 = vpack.c.b16 %v3210, %v3202
  %v3403 = vpack.c.b16 %v3211, %v3203
  %v3404 = vpack.c.b16 %v3212, %v3204
  %v3405 = vpack.c.b16 %v3213, %v3205
  %v3406 = vpack.c.b16 %v3222, %v3214
  %v3407 = vpack.c.b16 %v3223, %v3215
  %v3408 = vpack.c.b16 %v3224, %v3216
  %v3409 = vpack.c.b16 %v3225, %v3217
  %v3410 = vpack.c.b16 %v3226, %v3218
  %v3411 = vpack.c.b16 %v3227, %v3219
  %v3412 = vpack.c.b16 %v3228, %v3220
  %v3413 = vpack.c.b16 %v3229, %v3221
  %v3414 = vpack.c.b16 %v3238, %v3230
  %v3415 = vpack.c.b16 %v3239, %v3231
  %v3416 = vpack.c.b16 %v3240, %v3232
  %v3417 = vpack.c.b16 %v3241, %v3233
  %v3418 = vpack.c.b16 %v3242, %v3234
  %v3419 = vpack.c.b16 %v3243, %v3235
  %v3420 = vpack.c.b16 %v3244, %v3236
  %v3421 = vpack.c.b16 %v3245, %v3237
  %v3422 = vpack.c.b16 %v3254, %v3246
  %v3423 = vpack.c.b16 %v3255, %v3247
  %v3424 = vpack.c.b16 %v3256, %v3248
  %v3425 = vpack.c.b16 %v3257, %v3249
  %v3426 = vpack.c.b16 %v3258, %v3250
  %v3427 = vpack.c.b16 %v3259, %v3251
  %v3428 = vpack.c.b16 %v3260, %v3252
  %v3429 = vpack.c.b16 %v3261, %v3253
  %v3430 = vpack.c.b16 %v3270, %v3262
  %v3431 = vpack.c.b16 %v3271, %v3263
  %v3432 = vpack.c.b16 %v3272, %v3264
  %v3433 = vpack.c.b16 %v3273, %v3265
  %v3434 = vpack.c.b16 %v3274, %v3266
  %v3435 = vpack.c.b16 %v3275, %v3267
  %v3436 = vpack.c.b16 %v3276, %v3268
  %v3437 = vpack.c.b16 %v3277, %v3269
  %v3438 = vpack.c.b16 %v3286, %v3278
  %v3439 = vpack.c.b16 %v3287, %v3279
  %v3440 = vpack.c.b16 %v3288, %v3280
  %v3441 = vpack.c.b16 %v3289, %v3281
  %v3442 = vpack.c.b16 %v3290, %v3282
  %v3443 = vpack.c.b16 %v3291, %v3283
  %v3444 = vpack.c.b16 %v3292, %v3284
  %v3445 = vpack.c.b16 %v3293, %v3285
  %v3446 = vpack.c.b16 %v3302, %v3294
  %v3447 = vpack.c.b16 %v3303, %v3295
  %v3448 = vpack.c.b16 %v3304, %v3296
  %v3449 = vpack.c.b16 %v3305, %v3297
  %v3450 = vpack.c.b16 %v3306, %v3298
  %v3451 = vpack.c.b16 %v3307, %v3299
  %v3452 = vpack.c.b16 %v3308, %v3300
  %v3453 = vpack.c.b16 %v3309, %v3301
  %v3454 = vpack.c.b16 %v3318, %v3310
  %v3455 = vpack.c.b16 %v3319, %v3311
  %v3456 = vpack.c.b16 %v3320, %v3312
  %v3457 = vpack.c.b16 %v3321, %v3313
  %v3458 = vpack.c.b16 %v3322, %v3314
  %v3459 = vpack.c.b16 %v3323, %v3315
  %v3460 = vpack.c.b16 %v3324, %v3316
  %v3461 = vpack.c.b16 %v3325, %v3317
  %v3462 = vpack.c.b16 %v3334, %v3326
  %v3463 = vpack.c.b16 %v3335, %v3327
  %v3464 = vpack.c.b16 %v3336, %v3328
  %v3465 = vpack.c.b16 %v3337, %v3329
  %v3466 = vpack.c.b16 %v3338, %v3330
  %v3467 = vpack.c.b16 %v3339, %v3331
  %v3468 = vpack.c.b16 %v3340, %v3332
  %v3469 = vpack.c.b16 %v3341, %v3333
  %3598 = vmatprep.subr.bf16.mxu0 %v3343
  %3599 = vmatpush1.bf16.msra.mxu0 %v3342
  %3600 = vmatprep.subr.bf16.mxu0 %v3351
  %3601 = vmatpush1.bf16.msra.mxu0 %v3350
  %3602 = vmatprep.subr.bf16.mxu0 %v3359
  %3603 = vmatpush1.bf16.msra.mxu0 %v3358
  %3604 = vmatprep.subr.bf16.mxu0 %v3367
  %3605 = vmatpush1.bf16.msra.mxu0 %v3366
  %3606 = vmatprep.subr.bf16.mxu0 %v3375
  %3607 = vmatpush1.bf16.msra.mxu0 %v3374
  %3608 = vmatprep.subr.bf16.mxu0 %v3383
  %3609 = vmatpush1.bf16.msra.mxu0 %v3382
  %3610 = vmatprep.subr.bf16.mxu0 %v3391
  %3611 = vmatpush1.bf16.msra.mxu0 %v3390
  %3612 = vmatprep.subr.bf16.mxu0 %v3399
  %3613 = vmatpush1.bf16.msra.mxu0 %v3398
  %3614 = vmatprep.subr.bf16.mxu0 %v3407
  %3615 = vmatpush1.bf16.msra.mxu0 %v3406
  %3616 = vmatprep.subr.bf16.mxu0 %v3415
  %3617 = vmatpush1.bf16.msra.mxu0 %v3414
  %3618 = vmatprep.subr.bf16.mxu0 %v3423
  %3619 = vmatpush1.bf16.msra.mxu0 %v3422
  %3620 = vmatprep.subr.bf16.mxu0 %v3431
  %3621 = vmatpush1.bf16.msra.mxu0 %v3430
  %3622 = vmatprep.subr.bf16.mxu0 %v3439
  %3623 = vmatpush1.bf16.msra.mxu0 %v3438
  %3624 = vmatprep.subr.bf16.mxu0 %v3447
  %3625 = vmatpush1.bf16.msra.mxu0 %v3446
  %3626 = vmatprep.subr.bf16.mxu0 %v3455
  %3627 = vmatpush1.bf16.msra.mxu0 %v3454
  %3628 = vmatprep.subr.bf16.mxu0 %v3463
  %3629 = vmatpush1.bf16.msra.mxu0 %v3462
  %3630 = vmatprep.mubr.bf16.mxu0 %v2957
  %3631 = vmatmul.mubr.bf16.gmra.mrb[0].mxu0 %v2956
  %v3632 = vpop.f32.mrb[0].mxu0
  %v3633 = vadd.f32 0.0, %v3632
  %v3634 = vpop.f32.mrb[0].mxu0
  %v3635 = vadd.f32 0.0, %v3634
  %v3636 = vpop.f32.mrb[0].mxu0
  %v3637 = vpop.f32.mrb[0].mxu0
  %3638 = vdwg.mxu0
  %3639 = vmatprep.subr.bf16.mxu0 %v3345
  %3640 = vmatpush1.bf16.msra.mxu0 %v3344
  %3641 = vmatprep.subr.bf16.mxu0 %v3353
  %3642 = vmatpush1.bf16.msra.mxu0 %v3352
  %3643 = vmatprep.subr.bf16.mxu0 %v3361
  %3644 = vmatpush1.bf16.msra.mxu0 %v3360
  %3645 = vmatprep.subr.bf16.mxu0 %v3369
  %3646 = vmatpush1.bf16.msra.mxu0 %v3368
  %3647 = vmatprep.subr.bf16.mxu0 %v3377
  %3648 = vmatpush1.bf16.msra.mxu0 %v3376
  %3649 = vmatprep.subr.bf16.mxu0 %v3385
  %3650 = vmatpush1.bf16.msra.mxu0 %v3384
  %3651 = vmatprep.subr.bf16.mxu0 %v3393
  %3652 = vmatpush1.bf16.msra.mxu0 %v3392
  %3653 = vmatprep.subr.bf16.mxu0 %v3401
  %3654 = vmatpush1.bf16.msra.mxu0 %v3400
  %3655 = vmatprep.subr.bf16.mxu0 %v3409
  %3656 = vmatpush1.bf16.msra.mxu0 %v3408
  %3657 = vmatprep.subr.bf16.mxu0 %v3417
  %3658 = vmatpush1.bf16.msra.mxu0 %v3416
  %3659 = vmatprep.subr.bf16.mxu0 %v3425
  %3660 = vmatpush1.bf16.msra.mxu0 %v3424
  %3661 = vmatprep.subr.bf16.mxu0 %v3433
  %3662 = vmatpush1.bf16.msra.mxu0 %v3432
  %3663 = vmatprep.subr.bf16.mxu0 %v3441
  %3664 = vmatpush1.bf16.msra.mxu0 %v3440
  %3665 = vmatprep.subr.bf16.mxu0 %v3449
  %3666 = vmatpush1.bf16.msra.mxu0 %v3448
  %3667 = vmatprep.subr.bf16.mxu0 %v3457
  %3668 = vmatpush1.bf16.msra.mxu0 %v3456
  %3669 = vmatprep.subr.bf16.mxu0 %v3465
  %3670 = vmatpush1.bf16.msra.mxu0 %v3464
  %3671 = vmatprep.mubr.bf16.mxu0 %v2957
  %3672 = vmatmul.mubr.bf16.gmra.mrb[0].mxu0 %v2956
  %v3673 = vpop.f32.mrb[0].mxu0
  %v3674 = vadd.f32 0.0, %v3673
  %v3675 = vpop.f32.mrb[0].mxu0
  %v3676 = vadd.f32 0.0, %v3675
  %v3677 = vpop.f32.mrb[0].mxu0
  %v3678 = vpop.f32.mrb[0].mxu0
  %3679 = vdwg.mxu0
  %3680 = vmatprep.subr.bf16.mxu0 %v3347
  %3681 = vmatpush1.bf16.msra.mxu0 %v3346
  %3682 = vmatprep.subr.bf16.mxu0 %v3355
  %3683 = vmatpush1.bf16.msra.mxu0 %v3354
  %3684 = vmatprep.subr.bf16.mxu0 %v3363
  %3685 = vmatpush1.bf16.msra.mxu0 %v3362
  %3686 = vmatprep.subr.bf16.mxu0 %v3371
  %3687 = vmatpush1.bf16.msra.mxu0 %v3370
  %3688 = vmatprep.subr.bf16.mxu0 %v3379
  %3689 = vmatpush1.bf16.msra.mxu0 %v3378
  %3690 = vmatprep.subr.bf16.mxu0 %v3387
  %3691 = vmatpush1.bf16.msra.mxu0 %v3386
  %3692 = vmatprep.subr.bf16.mxu0 %v3395
  %3693 = vmatpush1.bf16.msra.mxu0 %v3394
  %3694 = vmatprep.subr.bf16.mxu0 %v3403
  %3695 = vmatpush1.bf16.msra.mxu0 %v3402
  %3696 = vmatprep.subr.bf16.mxu0 %v3411
  %3697 = vmatpush1.bf16.msra.mxu0 %v3410
  %3698 = vmatprep.subr.bf16.mxu0 %v3419
  %3699 = vmatpush1.bf16.msra.mxu0 %v3418
  %3700 = vmatprep.subr.bf16.mxu0 %v3427
  %3701 = vmatpush1.bf16.msra.mxu0 %v3426
  %3702 = vmatprep.subr.bf16.mxu0 %v3435
  %3703 = vmatpush1.bf16.msra.mxu0 %v3434
  %3704 = vmatprep.subr.bf16.mxu0 %v3443
  %3705 = vmatpush1.bf16.msra.mxu0 %v3442
  %3706 = vmatprep.subr.bf16.mxu0 %v3451
  %3707 = vmatpush1.bf16.msra.mxu0 %v3450
  %3708 = vmatprep.subr.bf16.mxu0 %v3459
  %3709 = vmatpush1.bf16.msra.mxu0 %v3458
  %3710 = vmatprep.subr.bf16.mxu0 %v3467
  %3711 = vmatpush1.bf16.msra.mxu0 %v3466
  %3712 = vmatprep.mubr.bf16.mxu0 %v2957
  %3713 = vmatmul.mubr.bf16.gmra.mrb[0].mxu0 %v2956
  %v3714 = vpop.f32.mrb[0].mxu0
  %v3715 = vadd.f32 0.0, %v3714
  %v3716 = vpop.f32.mrb[0].mxu0
  %v3717 = vadd.f32 0.0, %v3716
  %v3718 = vpop.f32.mrb[0].mxu0
  %v3719 = vpop.f32.mrb[0].mxu0
  %3720 = vdwg.mxu0
  %3721 = vmatprep.subr.bf16.mxu0 %v3349
  %3722 = vmatpush1.bf16.msra.mxu0 %v3348
  %3723 = vmatprep.subr.bf16.mxu0 %v3357
  %3724 = vmatpush1.bf16.msra.mxu0 %v3356
  %3725 = vmatprep.subr.bf16.mxu0 %v3365
  %3726 = vmatpush1.bf16.msra.mxu0 %v3364
  %3727 = vmatprep.subr.bf16.mxu0 %v3373
  %3728 = vmatpush1.bf16.msra.mxu0 %v3372
  %3729 = vmatprep.subr.bf16.mxu0 %v3381
  %3730 = vmatpush1.bf16.msra.mxu0 %v3380
  %3731 = vmatprep.subr.bf16.mxu0 %v3389
  %3732 = vmatpush1.bf16.msra.mxu0 %v3388
  %3733 = vmatprep.subr.bf16.mxu0 %v3397
  %3734 = vmatpush1.bf16.msra.mxu0 %v3396
  %3735 = vmatprep.subr.bf16.mxu0 %v3405
  %3736 = vmatpush1.bf16.msra.mxu0 %v3404
  %3737 = vmatprep.subr.bf16.mxu0 %v3413
  %3738 = vmatpush1.bf16.msra.mxu0 %v3412
  %3739 = vmatprep.subr.bf16.mxu0 %v3421
  %3740 = vmatpush1.bf16.msra.mxu0 %v3420
  %3741 = vmatprep.subr.bf16.mxu0 %v3429
  %3742 = vmatpush1.bf16.msra.mxu0 %v3428
  %3743 = vmatprep.subr.bf16.mxu0 %v3437
  %3744 = vmatpush1.bf16.msra.mxu0 %v3436
  %3745 = vmatprep.subr.bf16.mxu0 %v3445
  %3746 = vmatpush1.bf16.msra.mxu0 %v3444
  %3747 = vmatprep.subr.bf16.mxu0 %v3453
  %3748 = vmatpush1.bf16.msra.mxu0 %v3452
  %3749 = vmatprep.subr.bf16.mxu0 %v3461
  %3750 = vmatpush1.bf16.msra.mxu0 %v3460
  %3751 = vmatprep.subr.bf16.mxu0 %v3469
  %3752 = vmatpush1.bf16.msra.mxu0 %v3468
  %3753 = vmatprep.mubr.bf16.mxu0 %v2957
  %3754 = vmatmul.mubr.bf16.gmra.mrb[0].mxu0 %v2956
  %v3755 = vpop.f32.mrb[0].mxu0
  %v3756 = vadd.f32 0.0, %v3755
  %v3757 = vpop.f32.mrb[0].mxu0
  %v3758 = vadd.f32 0.0, %v3757
  %v3759 = vpop.f32.mrb[0].mxu0
  %v3760 = vpop.f32.mrb[0].mxu0
  %3761 = vdwg.mxu0
  %v3762 = vadd.f32 %v2827, %v3633
  %v3763 = vadd.f32 %v2829, %v3635
  %v3764 = vadd.f32 %v2868, %v3674
  %v3765 = vadd.f32 %v2870, %v3676
  %v3766 = vadd.f32 %v2909, %v3715
  %v3767 = vadd.f32 %v2911, %v3717
  %v3768 = vadd.f32 %v2950, %v3756
  %v3769 = vadd.f32 %v2952, %v3758
  %v3770 = vmul.f32 %v3762, 0.5
  %v3771 = vmul.f32 %v3763, 0.5
  %v3772 = vtanh.pop %v3770
  %v3773 = vtanh.pop %v3771
  %v3774 = vmul.f32 %v3772, 0.5
  %v3775 = vmul.f32 %v3773, 0.5
  %v3776 = vadd.f32 %v3774, 0.5
  %v3777 = vadd.f32 %v3775, 0.5
  %v3778 = vmul.f32 %v3764, 0.5
  %v3779 = vmul.f32 %v3765, 0.5
  %v3780 = vtanh.pop %v3778
  %v3781 = vtanh.pop %v3779
  %v3782 = vmul.f32 %v3780, 0.5
  %v3783 = vmul.f32 %v3781, 0.5
  %v3784 = vadd.f32 %v3782, 0.5
  %v3785 = vadd.f32 %v3783, 0.5
  %v3786 = vtanh.pop %v3766
  %v3787 = vtanh.pop %v3767
  %v3788 = vmul.f32 %v3768, 0.5
  %v3789 = vmul.f32 %v3769, 0.5
  %v3790 = vtanh.pop %v3788
  %v3791 = vtanh.pop %v3789
  %v3792 = vmul.f32 %v3790, 0.5
  %v3793 = vmul.f32 %v3791, 0.5
  %v3794 = vadd.f32 %v3792, 0.5
  %v3795 = vadd.f32 %v3793, 0.5
  %v3796 = vmul.f32 %v3784, %v1249
  %v3797 = vmul.f32 %v3785, %v1250
  %v3798 = vmul.f32 %v3776, %v3786
  %v3799 = vmul.f32 %v3777, %v3787
  %v3800 = vadd.f32 %v3796, %v3798
  %v3801 = vadd.f32 %v3797, %v3799
  %v3802 = vtanh.pop %v3800
  %v3803 = vtanh.pop %v3801
  %v3804 = vmul.f32 %v3794, %v3802
  %v3805 = vmul.f32 %v3795, %v3803
  %v3806 = vld [vmem:[#allocation2 + $0x40] sm:$0xff]
  %v3807 = vld [vmem:[#allocation2 + $0x48] sm:$0xff]
  %v3808 = vld [vmem:[#allocation2 + $0x50] sm:$0xff]
  %v3809 = vld [vmem:[#allocation2 + $0x58] sm:$0xff]
  %v3810 = vld [vmem:[#allocation2 + $0x60] sm:$0xff]
  %v3811 = vld [vmem:[#allocation2 + $0x68] sm:$0xff]
  %v3812 = vld [vmem:[#allocation2 + $0x70] sm:$0xff]
  %v3813 = vld [vmem:[#allocation2 + $0x78] sm:$0xff]
  %3814 = vmatprep.subr.bf16.mxu0 %v1646
  %3815 = vmatpush1.bf16.msra.mxu0 %v1645
  %3816 = vmatprep.subr.bf16.mxu0 %v1654
  %3817 = vmatpush1.bf16.msra.mxu0 %v1653
  %3818 = vmatprep.subr.bf16.mxu0 %v1662
  %3819 = vmatpush1.bf16.msra.mxu0 %v1661
  %3820 = vmatprep.subr.bf16.mxu0 %v1670
  %3821 = vmatpush1.bf16.msra.mxu0 %v1669
  %3822 = vmatprep.subr.bf16.mxu0 %v1678
  %3823 = vmatpush1.bf16.msra.mxu0 %v1677
  %3824 = vmatprep.subr.bf16.mxu0 %v1686
  %3825 = vmatpush1.bf16.msra.mxu0 %v1685
  %3826 = vmatprep.subr.bf16.mxu0 %v1694
  %3827 = vmatpush1.bf16.msra.mxu0 %v1693
  %3828 = vmatprep.subr.bf16.mxu0 %v1702
  %3829 = vmatpush1.bf16.msra.mxu0 %v1701
  %3830 = vmatprep.subr.bf16.mxu0 %v1710
  %3831 = vmatpush1.bf16.msra.mxu0 %v1709
  %3832 = vmatprep.subr.bf16.mxu0 %v1718
  %3833 = vmatpush1.bf16.msra.mxu0 %v1717
  %3834 = vmatprep.subr.bf16.mxu0 %v1726
  %3835 = vmatpush1.bf16.msra.mxu0 %v1725
  %3836 = vmatprep.subr.bf16.mxu0 %v1734
  %3837 = vmatpush1.bf16.msra.mxu0 %v1733
  %3838 = vmatprep.subr.bf16.mxu0 %v1742
  %3839 = vmatpush1.bf16.msra.mxu0 %v1741
  %3840 = vmatprep.subr.bf16.mxu0 %v1750
  %3841 = vmatpush1.bf16.msra.mxu0 %v1749
  %3842 = vmatprep.subr.bf16.mxu0 %v1758
  %3843 = vmatpush1.bf16.msra.mxu0 %v1757
  %3844 = vmatprep.subr.bf16.mxu0 %v1766
  %3845 = vmatpush1.bf16.msra.mxu0 %v1765
  %3846 = vmatprep.mubr.bf16.mxu0 %v2110
  %3847 = vmatmul.mubr.bf16.gmra.mrb[0].mxu0 %v2109
  %v3848 = vpop.f32.mrb[0].mxu0
  %v3849 = vadd.f32 0.0, %v3848
  %v3850 = vpop.f32.mrb[0].mxu0
  %v3851 = vadd.f32 0.0, %v3850
  %v3852 = vpop.f32.mrb[0].mxu0
  %v3853 = vpop.f32.mrb[0].mxu0
  %3854 = vdwg.mxu0
  %3855 = vmatprep.subr.bf16.mxu0 %v1648
  %3856 = vmatpush1.bf16.msra.mxu0 %v1647
  %3857 = vmatprep.subr.bf16.mxu0 %v1656
  %3858 = vmatpush1.bf16.msra.mxu0 %v1655
  %3859 = vmatprep.subr.bf16.mxu0 %v1664
  %3860 = vmatpush1.bf16.msra.mxu0 %v1663
  %3861 = vmatprep.subr.bf16.mxu0 %v1672
  %3862 = vmatpush1.bf16.msra.mxu0 %v1671
  %3863 = vmatprep.subr.bf16.mxu0 %v1680
  %3864 = vmatpush1.bf16.msra.mxu0 %v1679
  %3865 = vmatprep.subr.bf16.mxu0 %v1688
  %3866 = vmatpush1.bf16.msra.mxu0 %v1687
  %3867 = vmatprep.subr.bf16.mxu0 %v1696
  %3868 = vmatpush1.bf16.msra.mxu0 %v1695
  %3869 = vmatprep.subr.bf16.mxu0 %v1704
  %3870 = vmatpush1.bf16.msra.mxu0 %v1703
  %3871 = vmatprep.subr.bf16.mxu0 %v1712
  %3872 = vmatpush1.bf16.msra.mxu0 %v1711
  %3873 = vmatprep.subr.bf16.mxu0 %v1720
  %3874 = vmatpush1.bf16.msra.mxu0 %v1719
  %3875 = vmatprep.subr.bf16.mxu0 %v1728
  %3876 = vmatpush1.bf16.msra.mxu0 %v1727
  %3877 = vmatprep.subr.bf16.mxu0 %v1736
  %3878 = vmatpush1.bf16.msra.mxu0 %v1735
  %3879 = vmatprep.subr.bf16.mxu0 %v1744
  %3880 = vmatpush1.bf16.msra.mxu0 %v1743
  %3881 = vmatprep.subr.bf16.mxu0 %v1752
  %3882 = vmatpush1.bf16.msra.mxu0 %v1751
  %3883 = vmatprep.subr.bf16.mxu0 %v1760
  %3884 = vmatpush1.bf16.msra.mxu0 %v1759
  %3885 = vmatprep.subr.bf16.mxu0 %v1768
  %3886 = vmatpush1.bf16.msra.mxu0 %v1767
  %3887 = vmatprep.mubr.bf16.mxu0 %v2110
  %3888 = vmatmul.mubr.bf16.gmra.mrb[0].mxu0 %v2109
  %v3889 = vpop.f32.mrb[0].mxu0
  %v3890 = vadd.f32 0.0, %v3889
  %v3891 = vpop.f32.mrb[0].mxu0
  %v3892 = vadd.f32 0.0, %v3891
  %v3893 = vpop.f32.mrb[0].mxu0
  %v3894 = vpop.f32.mrb[0].mxu0
  %3895 = vdwg.mxu0
  %3896 = vmatprep.subr.bf16.mxu0 %v1650
  %3897 = vmatpush1.bf16.msra.mxu0 %v1649
  %3898 = vmatprep.subr.bf16.mxu0 %v1658
  %3899 = vmatpush1.bf16.msra.mxu0 %v1657
  %3900 = vmatprep.subr.bf16.mxu0 %v1666
  %3901 = vmatpush1.bf16.msra.mxu0 %v1665
  %3902 = vmatprep.subr.bf16.mxu0 %v1674
  %3903 = vmatpush1.bf16.msra.mxu0 %v1673
  %3904 = vmatprep.subr.bf16.mxu0 %v1682
  %3905 = vmatpush1.bf16.msra.mxu0 %v1681
  %3906 = vmatprep.subr.bf16.mxu0 %v1690
  %3907 = vmatpush1.bf16.msra.mxu0 %v1689
  %3908 = vmatprep.subr.bf16.mxu0 %v1698
  %3909 = vmatpush1.bf16.msra.mxu0 %v1697
  %3910 = vmatprep.subr.bf16.mxu0 %v1706
  %3911 = vmatpush1.bf16.msra.mxu0 %v1705
  %3912 = vmatprep.subr.bf16.mxu0 %v1714
  %3913 = vmatpush1.bf16.msra.mxu0 %v1713
  %3914 = vmatprep.subr.bf16.mxu0 %v1722
  %3915 = vmatpush1.bf16.msra.mxu0 %v1721
  %3916 = vmatprep.subr.bf16.mxu0 %v1730
  %3917 = vmatpush1.bf16.msra.mxu0 %v1729
  %3918 = vmatprep.subr.bf16.mxu0 %v1738
  %3919 = vmatpush1.bf16.msra.mxu0 %v1737
  %3920 = vmatprep.subr.bf16.mxu0 %v1746
  %3921 = vmatpush1.bf16.msra.mxu0 %v1745
  %3922 = vmatprep.subr.bf16.mxu0 %v1754
  %3923 = vmatpush1.bf16.msra.mxu0 %v1753
  %3924 = vmatprep.subr.bf16.mxu0 %v1762
  %3925 = vmatpush1.bf16.msra.mxu0 %v1761
  %3926 = vmatprep.subr.bf16.mxu0 %v1770
  %3927 = vmatpush1.bf16.msra.mxu0 %v1769
  %3928 = vmatprep.mubr.bf16.mxu0 %v2110
  %3929 = vmatmul.mubr.bf16.gmra.mrb[0].mxu0 %v2109
  %v3930 = vpop.f32.mrb[0].mxu0
  %v3931 = vadd.f32 0.0, %v3930
  %v3932 = vpop.f32.mrb[0].mxu0
  %v3933 = vadd.f32 0.0, %v3932
  %v3934 = vpop.f32.mrb[0].mxu0
  %v3935 = vpop.f32.mrb[0].mxu0
  %3936 = vdwg.mxu0
  %3937 = vmatprep.subr.bf16.mxu0 %v1652
  %3938 = vmatpush1.bf16.msra.mxu0 %v1651
  %3939 = vmatprep.subr.bf16.mxu0 %v1660
  %3940 = vmatpush1.bf16.msra.mxu0 %v1659
  %3941 = vmatprep.subr.bf16.mxu0 %v1668
  %3942 = vmatpush1.bf16.msra.mxu0 %v1667
  %3943 = vmatprep.subr.bf16.mxu0 %v1676
  %3944 = vmatpush1.bf16.msra.mxu0 %v1675
  %3945 = vmatprep.subr.bf16.mxu0 %v1684
  %3946 = vmatpush1.bf16.msra.mxu0 %v1683
  %3947 = vmatprep.subr.bf16.mxu0 %v1692
  %3948 = vmatpush1.bf16.msra.mxu0 %v1691
  %3949 = vmatprep.subr.bf16.mxu0 %v1700
  %3950 = vmatpush1.bf16.msra.mxu0 %v1699
  %3951 = vmatprep.subr.bf16.mxu0 %v1708
  %3952 = vmatpush1.bf16.msra.mxu0 %v1707
  %3953 = vmatprep.subr.bf16.mxu0 %v1716
  %3954 = vmatpush1.bf16.msra.mxu0 %v1715
  %3955 = vmatprep.subr.bf16.mxu0 %v1724
  %3956 = vmatpush1.bf16.msra.mxu0 %v1723
  %3957 = vmatprep.subr.bf16.mxu0 %v1732
  %3958 = vmatpush1.bf16.msra.mxu0 %v1731
  %3959 = vmatprep.subr.bf16.mxu0 %v1740
  %3960 = vmatpush1.bf16.msra.mxu0 %v1739
  %3961 = vmatprep.subr.bf16.mxu0 %v1748
  %3962 = vmatpush1.bf16.msra.mxu0 %v1747
  %3963 = vmatprep.subr.bf16.mxu0 %v1756
  %3964 = vmatpush1.bf16.msra.mxu0 %v1755
  %3965 = vmatprep.subr.bf16.mxu0 %v1764
  %3966 = vmatpush1.bf16.msra.mxu0 %v1763
  %3967 = vmatprep.subr.bf16.mxu0 %v1772
  %3968 = vmatpush1.bf16.msra.mxu0 %v1771
  %3969 = vmatprep.mubr.bf16.mxu0 %v2110
  %3970 = vmatmul.mubr.bf16.gmra.mrb[0].mxu0 %v2109
  %v3971 = vpop.f32.mrb[0].mxu0
  %v3972 = vadd.f32 0.0, %v3971
  %v3973 = vpop.f32.mrb[0].mxu0
  %v3974 = vadd.f32 0.0, %v3973
  %v3975 = vpop.f32.mrb[0].mxu0
  %v3976 = vpop.f32.mrb[0].mxu0
  %3977 = vdwg.mxu0
  %v3978 = vadd.f32 %v3806, %v3849
  %v3979 = vadd.f32 %v3807, %v3851
  %v3980 = vadd.f32 %v3808, %v3890
  %v3981 = vadd.f32 %v3809, %v3892
  %v3982 = vadd.f32 %v3810, %v3931
  %v3983 = vadd.f32 %v3811, %v3933
  %v3984 = vadd.f32 %v3812, %v3972
  %v3985 = vadd.f32 %v3813, %v3974
  %v3986 = vmul.f32 %v3978, 0.5
  %v3987 = vmul.f32 %v3979, 0.5
  %v3988 = vtanh.pop %v3986
  %v3989 = vtanh.pop %v3987
  %v3990 = vmul.f32 %v3988, 0.5
  %v3991 = vmul.f32 %v3989, 0.5
  %v3992 = vadd.f32 %v3990, 0.5
  %v3993 = vadd.f32 %v3991, 0.5
  %v3994 = vmul.f32 %v3980, 0.5
  %v3995 = vmul.f32 %v3981, 0.5
  %v3996 = vtanh.pop %v3994
  %v3997 = vtanh.pop %v3995
  %v3998 = vmul.f32 %v3996, 0.5
  %v3999 = vmul.f32 %v3997, 0.5
  %v4000 = vadd.f32 %v3998, 0.5
  %v4001 = vadd.f32 %v3999, 0.5
  %v4002 = vtanh.pop %v3982
  %v4003 = vtanh.pop %v3983
  %v4004 = vmul.f32 %v3984, 0.5
  %v4005 = vmul.f32 %v3985, 0.5
  %v4006 = vtanh.pop %v4004
  %v4007 = vtanh.pop %v4005
  %v4008 = vmul.f32 %v4006, 0.5
  %v4009 = vmul.f32 %v4007, 0.5
  %v4010 = vadd.f32 %v4008, 0.5
  %v4011 = vadd.f32 %v4009, 0.5
  %v4012 = vmul.f32 %v4000, %v2103
  %v4013 = vmul.f32 %v4001, %v2104
  %v4014 = vmul.f32 %v3992, %v4002
  %v4015 = vmul.f32 %v3993, %v4003
  %v4016 = vadd.f32 %v4012, %v4014
  %v4017 = vadd.f32 %v4013, %v4015
  %v4018 = vtanh.pop %v4016
  %v4019 = vtanh.pop %v4017
  %v4020 = vmul.f32 %v4010, %v4018
  %v4021 = vmul.f32 %v4011, %v4019
  %v4022 = vpack.c.bf16 %v4020, %v4020
  %v4023 = vpack.c.bf16 %v4021, %v4021
  %4024 = vmatprep.subr.bf16.mxu0 %v2537
  %4025 = vmatpush1.bf16.msra.mxu0 %v2536
  %4026 = vmatprep.subr.bf16.mxu0 %v2545
  %4027 = vmatpush1.bf16.msra.mxu0 %v2544
  %4028 = vmatprep.subr.bf16.mxu0 %v2553
  %4029 = vmatpush1.bf16.msra.mxu0 %v2552
  %4030 = vmatprep.subr.bf16.mxu0 %v2561
  %4031 = vmatpush1.bf16.msra.mxu0 %v2560
  %4032 = vmatprep.subr.bf16.mxu0 %v2569
  %4033 = vmatpush1.bf16.msra.mxu0 %v2568
  %4034 = vmatprep.subr.bf16.mxu0 %v2577
  %4035 = vmatpush1.bf16.msra.mxu0 %v2576
  %4036 = vmatprep.subr.bf16.mxu0 %v2585
  %4037 = vmatpush1.bf16.msra.mxu0 %v2584
  %4038 = vmatprep.subr.bf16.mxu0 %v2593
  %4039 = vmatpush1.bf16.msra.mxu0 %v2592
  %4040 = vmatprep.subr.bf16.mxu0 %v2601
  %4041 = vmatpush1.bf16.msra.mxu0 %v2600
  %4042 = vmatprep.subr.bf16.mxu0 %v2609
  %4043 = vmatpush1.bf16.msra.mxu0 %v2608
  %4044 = vmatprep.subr.bf16.mxu0 %v2617
  %4045 = vmatpush1.bf16.msra.mxu0 %v2616
  %4046 = vmatprep.subr.bf16.mxu0 %v2625
  %4047 = vmatpush1.bf16.msra.mxu0 %v2624
  %4048 = vmatprep.subr.bf16.mxu0 %v2633
  %4049 = vmatpush1.bf16.msra.mxu0 %v2632
  %4050 = vmatprep.subr.bf16.mxu0 %v2641
  %4051 = vmatpush1.bf16.msra.mxu0 %v2640
  %4052 = vmatprep.subr.bf16.mxu0 %v2649
  %4053 = vmatpush1.bf16.msra.mxu0 %v2648
  %4054 = vmatprep.subr.bf16.mxu0 %v2657
  %4055 = vmatpush1.bf16.msra.mxu0 %v2656
  %4056 = vmatprep.mubr.bf16.mxu0 %v4023
  %4057 = vmatmul.mubr.bf16.gmra.mrb[0].mxu0 %v4022
  %v4058 = vpop.f32.mrb[0].mxu0
  %v4059 = vadd.f32 %v2115, %v4058
  %v4060 = vpop.f32.mrb[0].mxu0
  %v4061 = vadd.f32 %v2119, %v4060
  %v4062 = vpop.f32.mrb[0].mxu0
  %v4063 = vpop.f32.mrb[0].mxu0
  %4064 = vdwg.mxu0
  %4065 = vmatprep.subr.bf16.mxu0 %v2539
  %4066 = vmatpush1.bf16.msra.mxu0 %v2538
  %4067 = vmatprep.subr.bf16.mxu0 %v2547
  %4068 = vmatpush1.bf16.msra.mxu0 %v2546
  %4069 = vmatprep.subr.bf16.mxu0 %v2555
  %4070 = vmatpush1.bf16.msra.mxu0 %v2554
  %4071 = vmatprep.subr.bf16.mxu0 %v2563
  %4072 = vmatpush1.bf16.msra.mxu0 %v2562
  %4073 = vmatprep.subr.bf16.mxu0 %v2571
  %4074 = vmatpush1.bf16.msra.mxu0 %v2570
  %4075 = vmatprep.subr.bf16.mxu0 %v2579
  %4076 = vmatpush1.bf16.msra.mxu0 %v2578
  %4077 = vmatprep.subr.bf16.mxu0 %v2587
  %4078 = vmatpush1.bf16.msra.mxu0 %v2586
  %4079 = vmatprep.subr.bf16.mxu0 %v2595
  %4080 = vmatpush1.bf16.msra.mxu0 %v2594
  %4081 = vmatprep.subr.bf16.mxu0 %v2603
  %4082 = vmatpush1.bf16.msra.mxu0 %v2602
  %4083 = vmatprep.subr.bf16.mxu0 %v2611
  %4084 = vmatpush1.bf16.msra.mxu0 %v2610
  %4085 = vmatprep.subr.bf16.mxu0 %v2619
  %4086 = vmatpush1.bf16.msra.mxu0 %v2618
  %4087 = vmatprep.subr.bf16.mxu0 %v2627
  %4088 = vmatpush1.bf16.msra.mxu0 %v2626
  %4089 = vmatprep.subr.bf16.mxu0 %v2635
  %4090 = vmatpush1.bf16.msra.mxu0 %v2634
  %4091 = vmatprep.subr.bf16.mxu0 %v2643
  %4092 = vmatpush1.bf16.msra.mxu0 %v2642
  %4093 = vmatprep.subr.bf16.mxu0 %v2651
  %4094 = vmatpush1.bf16.msra.mxu0 %v2650
  %4095 = vmatprep.subr.bf16.mxu0 %v2659
  %4096 = vmatpush1.bf16.msra.mxu0 %v2658
  %4097 = vmatprep.mubr.bf16.mxu0 %v4023
  %4098 = vmatmul.mubr.bf16.gmra.mrb[0].mxu0 %v4022
  %v4099 = vpop.f32.mrb[0].mxu0
  %v4100 = vadd.f32 %v2123, %v4099
  %v4101 = vpop.f32.mrb[0].mxu0
  %v4102 = vadd.f32 %v2127, %v4101
  %v4103 = vpop.f32.mrb[0].mxu0
  %v4104 = vpop.f32.mrb[0].mxu0
  %4105 = vdwg.mxu0
  %4106 = vmatprep.subr.bf16.mxu0 %v2541
  %4107 = vmatpush1.bf16.msra.mxu0 %v2540
  %4108 = vmatprep.subr.bf16.mxu0 %v2549
  %4109 = vmatpush1.bf16.msra.mxu0 %v2548
  %4110 = vmatprep.subr.bf16.mxu0 %v2557
  %4111 = vmatpush1.bf16.msra.mxu0 %v2556
  %4112 = vmatprep.subr.bf16.mxu0 %v2565
  %4113 = vmatpush1.bf16.msra.mxu0 %v2564
  %4114 = vmatprep.subr.bf16.mxu0 %v2573
  %4115 = vmatpush1.bf16.msra.mxu0 %v2572
  %4116 = vmatprep.subr.bf16.mxu0 %v2581
  %4117 = vmatpush1.bf16.msra.mxu0 %v2580
  %4118 = vmatprep.subr.bf16.mxu0 %v2589
  %4119 = vmatpush1.bf16.msra.mxu0 %v2588
  %4120 = vmatprep.subr.bf16.mxu0 %v2597
  %4121 = vmatpush1.bf16.msra.mxu0 %v2596
  %4122 = vmatprep.subr.bf16.mxu0 %v2605
  %4123 = vmatpush1.bf16.msra.mxu0 %v2604
  %4124 = vmatprep.subr.bf16.mxu0 %v2613
  %4125 = vmatpush1.bf16.msra.mxu0 %v2612
  %4126 = vmatprep.subr.bf16.mxu0 %v2621
  %4127 = vmatpush1.bf16.msra.mxu0 %v2620
  %4128 = vmatprep.subr.bf16.mxu0 %v2629
  %4129 = vmatpush1.bf16.msra.mxu0 %v2628
  %4130 = vmatprep.subr.bf16.mxu0 %v2637
  %4131 = vmatpush1.bf16.msra.mxu0 %v2636
  %4132 = vmatprep.subr.bf16.mxu0 %v2645
  %4133 = vmatpush1.bf16.msra.mxu0 %v2644
  %4134 = vmatprep.subr.bf16.mxu0 %v2653
  %4135 = vmatpush1.bf16.msra.mxu0 %v2652
  %4136 = vmatprep.subr.bf16.mxu0 %v2661
  %4137 = vmatpush1.bf16.msra.mxu0 %v2660
  %4138 = vmatprep.mubr.bf16.mxu0 %v4023
  %4139 = vmatmul.mubr.bf16.gmra.mrb[0].mxu0 %v4022
  %v4140 = vpop.f32.mrb[0].mxu0
  %v4141 = vadd.f32 %v2131, %v4140
  %v4142 = vpop.f32.mrb[0].mxu0
  %v4143 = vadd.f32 %v2135, %v4142
  %v4144 = vpop.f32.mrb[0].mxu0
  %v4145 = vpop.f32.mrb[0].mxu0
  %4146 = vdwg.mxu0
  %4147 = vmatprep.subr.bf16.mxu0 %v2543
  %4148 = vmatpush1.bf16.msra.mxu0 %v2542
  %4149 = vmatprep.subr.bf16.mxu0 %v2551
  %4150 = vmatpush1.bf16.msra.mxu0 %v2550
  %4151 = vmatprep.subr.bf16.mxu0 %v2559
  %4152 = vmatpush1.bf16.msra.mxu0 %v2558
  %4153 = vmatprep.subr.bf16.mxu0 %v2567
  %4154 = vmatpush1.bf16.msra.mxu0 %v2566
  %4155 = vmatprep.subr.bf16.mxu0 %v2575
  %4156 = vmatpush1.bf16.msra.mxu0 %v2574
  %4157 = vmatprep.subr.bf16.mxu0 %v2583
  %4158 = vmatpush1.bf16.msra.mxu0 %v2582
  %4159 = vmatprep.subr.bf16.mxu0 %v2591
  %4160 = vmatpush1.bf16.msra.mxu0 %v2590
  %4161 = vmatprep.subr.bf16.mxu0 %v2599
  %4162 = vmatpush1.bf16.msra.mxu0 %v2598
  %4163 = vmatprep.subr.bf16.mxu0 %v2607
  %4164 = vmatpush1.bf16.msra.mxu0 %v2606
  %4165 = vmatprep.subr.bf16.mxu0 %v2615
  %4166 = vmatpush1.bf16.msra.mxu0 %v2614
  %4167 = vmatprep.subr.bf16.mxu0 %v2623
  %4168 = vmatpush1.bf16.msra.mxu0 %v2622
  %4169 = vmatprep.subr.bf16.mxu0 %v2631
  %4170 = vmatpush1.bf16.msra.mxu0 %v2630
  %4171 = vmatprep.subr.bf16.mxu0 %v2639
  %4172 = vmatpush1.bf16.msra.mxu0 %v2638
  %4173 = vmatprep.subr.bf16.mxu0 %v2647
  %4174 = vmatpush1.bf16.msra.mxu0 %v2646
  %4175 = vmatprep.subr.bf16.mxu0 %v2655
  %4176 = vmatpush1.bf16.msra.mxu0 %v2654
  %4177 = vmatprep.subr.bf16.mxu0 %v2663
  %4178 = vmatpush1.bf16.msra.mxu0 %v2662
  %4179 = vmatprep.mubr.bf16.mxu0 %v4023
  %4180 = vmatmul.mubr.bf16.gmra.mrb[0].mxu0 %v4022
  %v4181 = vpop.f32.mrb[0].mxu0
  %v4182 = vadd.f32 %v2139, %v4181
  %v4183 = vpop.f32.mrb[0].mxu0
  %v4184 = vadd.f32 %v2143, %v4183
  %v4185 = vpop.f32.mrb[0].mxu0
  %v4186 = vpop.f32.mrb[0].mxu0
  %4187 = vdwg.mxu0
  %v4188 = vpack.c.bf16 %v3804, %v3804
  %v4189 = vpack.c.bf16 %v3805, %v3805
  %4190 = vmatprep.subr.bf16.mxu0 %v3343
  %4191 = vmatpush1.bf16.msra.mxu0 %v3342
  %4192 = vmatprep.subr.bf16.mxu0 %v3351
  %4193 = vmatpush1.bf16.msra.mxu0 %v3350
  %4194 = vmatprep.subr.bf16.mxu0 %v3359
  %4195 = vmatpush1.bf16.msra.mxu0 %v3358
  %4196 = vmatprep.subr.bf16.mxu0 %v3367
  %4197 = vmatpush1.bf16.msra.mxu0 %v3366
  %4198 = vmatprep.subr.bf16.mxu0 %v3375
  %4199 = vmatpush1.bf16.msra.mxu0 %v3374
  %4200 = vmatprep.subr.bf16.mxu0 %v3383
  %4201 = vmatpush1.bf16.msra.mxu0 %v3382
  %4202 = vmatprep.subr.bf16.mxu0 %v3391
  %4203 = vmatpush1.bf16.msra.mxu0 %v3390
  %4204 = vmatprep.subr.bf16.mxu0 %v3399
  %4205 = vmatpush1.bf16.msra.mxu0 %v3398
  %4206 = vmatprep.subr.bf16.mxu0 %v3407
  %4207 = vmatpush1.bf16.msra.mxu0 %v3406
  %4208 = vmatprep.subr.bf16.mxu0 %v3415
  %4209 = vmatpush1.bf16.msra.mxu0 %v3414
  %4210 = vmatprep.subr.bf16.mxu0 %v3423
  %4211 = vmatpush1.bf16.msra.mxu0 %v3422
  %4212 = vmatprep.subr.bf16.mxu0 %v3431
  %4213 = vmatpush1.bf16.msra.mxu0 %v3430
  %4214 = vmatprep.subr.bf16.mxu0 %v3439
  %4215 = vmatpush1.bf16.msra.mxu0 %v3438
  %4216 = vmatprep.subr.bf16.mxu0 %v3447
  %4217 = vmatpush1.bf16.msra.mxu0 %v3446
  %4218 = vmatprep.subr.bf16.mxu0 %v3455
  %4219 = vmatpush1.bf16.msra.mxu0 %v3454
  %4220 = vmatprep.subr.bf16.mxu0 %v3463
  %4221 = vmatpush1.bf16.msra.mxu0 %v3462
  %4222 = vmatprep.mubr.bf16.mxu0 %v4189
  %4223 = vmatmul.mubr.bf16.gmra.mrb[0].mxu0 %v4188
  %v4224 = vpop.f32.mrb[0].mxu0
  %v4225 = vadd.f32 0.0, %v4224
  %v4226 = vpop.f32.mrb[0].mxu0
  %v4227 = vadd.f32 0.0, %v4226
  %v4228 = vpop.f32.mrb[0].mxu0
  %v4229 = vpop.f32.mrb[0].mxu0
  %4230 = vdwg.mxu0
  %4231 = vmatprep.subr.bf16.mxu0 %v3345
  %4232 = vmatpush1.bf16.msra.mxu0 %v3344
  %4233 = vmatprep.subr.bf16.mxu0 %v3353
  %4234 = vmatpush1.bf16.msra.mxu0 %v3352
  %4235 = vmatprep.subr.bf16.mxu0 %v3361
  %4236 = vmatpush1.bf16.msra.mxu0 %v3360
  %4237 = vmatprep.subr.bf16.mxu0 %v3369
  %4238 = vmatpush1.bf16.msra.mxu0 %v3368
  %4239 = vmatprep.subr.bf16.mxu0 %v3377
  %4240 = vmatpush1.bf16.msra.mxu0 %v3376
  %4241 = vmatprep.subr.bf16.mxu0 %v3385
  %4242 = vmatpush1.bf16.msra.mxu0 %v3384
  %4243 = vmatprep.subr.bf16.mxu0 %v3393
  %4244 = vmatpush1.bf16.msra.mxu0 %v3392
  %4245 = vmatprep.subr.bf16.mxu0 %v3401
  %4246 = vmatpush1.bf16.msra.mxu0 %v3400
  %4247 = vmatprep.subr.bf16.mxu0 %v3409
  %4248 = vmatpush1.bf16.msra.mxu0 %v3408
  %4249 = vmatprep.subr.bf16.mxu0 %v3417
  %4250 = vmatpush1.bf16.msra.mxu0 %v3416
  %4251 = vmatprep.subr.bf16.mxu0 %v3425
  %4252 = vmatpush1.bf16.msra.mxu0 %v3424
  %4253 = vmatprep.subr.bf16.mxu0 %v3433
  %4254 = vmatpush1.bf16.msra.mxu0 %v3432
  %4255 = vmatprep.subr.bf16.mxu0 %v3441
  %4256 = vmatpush1.bf16.msra.mxu0 %v3440
  %4257 = vmatprep.subr.bf16.mxu0 %v3449
  %4258 = vmatpush1.bf16.msra.mxu0 %v3448
  %4259 = vmatprep.subr.bf16.mxu0 %v3457
  %4260 = vmatpush1.bf16.msra.mxu0 %v3456
  %4261 = vmatprep.subr.bf16.mxu0 %v3465
  %4262 = vmatpush1.bf16.msra.mxu0 %v3464
  %4263 = vmatprep.mubr.bf16.mxu0 %v4189
  %4264 = vmatmul.mubr.bf16.gmra.mrb[0].mxu0 %v4188
  %v4265 = vpop.f32.mrb[0].mxu0
  %v4266 = vadd.f32 0.0, %v4265
  %v4267 = vpop.f32.mrb[0].mxu0
  %v4268 = vadd.f32 0.0, %v4267
  %v4269 = vpop.f32.mrb[0].mxu0
  %v4270 = vpop.f32.mrb[0].mxu0
  %4271 = vdwg.mxu0
  %4272 = vmatprep.subr.bf16.mxu0 %v3347
  %4273 = vmatpush1.bf16.msra.mxu0 %v3346
  %4274 = vmatprep.subr.bf16.mxu0 %v3355
  %4275 = vmatpush1.bf16.msra.mxu0 %v3354
  %4276 = vmatprep.subr.bf16.mxu0 %v3363
  %4277 = vmatpush1.bf16.msra.mxu0 %v3362
  %4278 = vmatprep.subr.bf16.mxu0 %v3371
  %4279 = vmatpush1.bf16.msra.mxu0 %v3370
  %4280 = vmatprep.subr.bf16.mxu0 %v3379
  %4281 = vmatpush1.bf16.msra.mxu0 %v3378
  %4282 = vmatprep.subr.bf16.mxu0 %v3387
  %4283 = vmatpush1.bf16.msra.mxu0 %v3386
  %4284 = vmatprep.subr.bf16.mxu0 %v3395
  %4285 = vmatpush1.bf16.msra.mxu0 %v3394
  %4286 = vmatprep.subr.bf16.mxu0 %v3403
  %4287 = vmatpush1.bf16.msra.mxu0 %v3402
  %4288 = vmatprep.subr.bf16.mxu0 %v3411
  %4289 = vmatpush1.bf16.msra.mxu0 %v3410
  %4290 = vmatprep.subr.bf16.mxu0 %v3419
  %4291 = vmatpush1.bf16.msra.mxu0 %v3418
  %4292 = vmatprep.subr.bf16.mxu0 %v3427
  %4293 = vmatpush1.bf16.msra.mxu0 %v3426
  %4294 = vmatprep.subr.bf16.mxu0 %v3435
  %4295 = vmatpush1.bf16.msra.mxu0 %v3434
  %4296 = vmatprep.subr.bf16.mxu0 %v3443
  %4297 = vmatpush1.bf16.msra.mxu0 %v3442
  %4298 = vmatprep.subr.bf16.mxu0 %v3451
  %4299 = vmatpush1.bf16.msra.mxu0 %v3450
  %4300 = vmatprep.subr.bf16.mxu0 %v3459
  %4301 = vmatpush1.bf16.msra.mxu0 %v3458
  %4302 = vmatprep.subr.bf16.mxu0 %v3467
  %4303 = vmatpush1.bf16.msra.mxu0 %v3466
  %4304 = vmatprep.mubr.bf16.mxu0 %v4189
  %4305 = vmatmul.mubr.bf16.gmra.mrb[0].mxu0 %v4188
  %v4306 = vpop.f32.mrb[0].mxu0
  %v4307 = vadd.f32 0.0, %v4306
  %v4308 = vpop.f32.mrb[0].mxu0
  %v4309 = vadd.f32 0.0, %v4308
  %v4310 = vpop.f32.mrb[0].mxu0
  %v4311 = vpop.f32.mrb[0].mxu0
  %4312 = vdwg.mxu0
  %4313 = vmatprep.subr.bf16.mxu0 %v3349
  %4314 = vmatpush1.bf16.msra.mxu0 %v3348
  %4315 = vmatprep.subr.bf16.mxu0 %v3357
  %4316 = vmatpush1.bf16.msra.mxu0 %v3356
  %4317 = vmatprep.subr.bf16.mxu0 %v3365
  %4318 = vmatpush1.bf16.msra.mxu0 %v3364
  %4319 = vmatprep.subr.bf16.mxu0 %v3373
  %4320 = vmatpush1.bf16.msra.mxu0 %v3372
  %4321 = vmatprep.subr.bf16.mxu0 %v3381
  %4322 = vmatpush1.bf16.msra.mxu0 %v3380
  %4323 = vmatprep.subr.bf16.mxu0 %v3389
  %4324 = vmatpush1.bf16.msra.mxu0 %v3388
  %4325 = vmatprep.subr.bf16.mxu0 %v3397
  %4326 = vmatpush1.bf16.msra.mxu0 %v3396
  %4327 = vmatprep.subr.bf16.mxu0 %v3405
  %4328 = vmatpush1.bf16.msra.mxu0 %v3404
  %4329 = vmatprep.subr.bf16.mxu0 %v3413
  %4330 = vmatpush1.bf16.msra.mxu0 %v3412
  %4331 = vmatprep.subr.bf16.mxu0 %v3421
  %4332 = vmatpush1.bf16.msra.mxu0 %v3420
  %4333 = vmatprep.subr.bf16.mxu0 %v3429
  %4334 = vmatpush1.bf16.msra.mxu0 %v3428
  %4335 = vmatprep.subr.bf16.mxu0 %v3437
  %4336 = vmatpush1.bf16.msra.mxu0 %v3436
  %4337 = vmatprep.subr.bf16.mxu0 %v3445
  %4338 = vmatpush1.bf16.msra.mxu0 %v3444
  %4339 = vmatprep.subr.bf16.mxu0 %v3453
  %4340 = vmatpush1.bf16.msra.mxu0 %v3452
  %4341 = vmatprep.subr.bf16.mxu0 %v3461
  %4342 = vmatpush1.bf16.msra.mxu0 %v3460
  %4343 = vmatprep.subr.bf16.mxu0 %v3469
  %4344 = vmatpush1.bf16.msra.mxu0 %v3468
  %4345 = vmatprep.mubr.bf16.mxu0 %v4189
  %4346 = vmatmul.mubr.bf16.gmra.mrb[0].mxu0 %v4188
  %v4347 = vpop.f32.mrb[0].mxu0
  %v4348 = vadd.f32 0.0, %v4347
  %v4349 = vpop.f32.mrb[0].mxu0
  %v4350 = vadd.f32 0.0, %v4349
  %v4351 = vpop.f32.mrb[0].mxu0
  %v4352 = vpop.f32.mrb[0].mxu0
  %4353 = vdwg.mxu0
  %v4354 = vadd.f32 %v4059, %v4225
  %v4355 = vadd.f32 %v4061, %v4227
  %v4356 = vadd.f32 %v4100, %v4266
  %v4357 = vadd.f32 %v4102, %v4268
  %v4358 = vadd.f32 %v4141, %v4307
  %v4359 = vadd.f32 %v4143, %v4309
  %v4360 = vadd.f32 %v4182, %v4348
  %v4361 = vadd.f32 %v4184, %v4350
  %v4362 = vmul.f32 %v4354, 0.5
  %v4363 = vmul.f32 %v4355, 0.5
  %v4364 = vtanh.pop %v4362
  %v4365 = vtanh.pop %v4363
  %v4366 = vmul.f32 %v4364, 0.5
  %v4367 = vmul.f32 %v4365, 0.5
  %v4368 = vadd.f32 %v4366, 0.5
  %v4369 = vadd.f32 %v4367, 0.5
  %v4370 = vmul.f32 %v4356, 0.5
  %v4371 = vmul.f32 %v4357, 0.5
  %v4372 = vtanh.pop %v4370
  %v4373 = vtanh.pop %v4371
  %v4374 = vmul.f32 %v4372, 0.5
  %v4375 = vmul.f32 %v4373, 0.5
  %v4376 = vadd.f32 %v4374, 0.5
  %v4377 = vadd.f32 %v4375, 0.5
  %v4378 = vtanh.pop %v4358
  %v4379 = vtanh.pop %v4359
  %v4380 = vmul.f32 %v4360, 0.5
  %v4381 = vmul.f32 %v4361, 0.5
  %v4382 = vtanh.pop %v4380
  %v4383 = vtanh.pop %v4381
  %v4384 = vmul.f32 %v4382, 0.5
  %v4385 = vmul.f32 %v4383, 0.5
  %v4386 = vadd.f32 %v4384, 0.5
  %v4387 = vadd.f32 %v4385, 0.5
  %v4388 = vmul.f32 %v4376, %v3800
  %v4389 = vmul.f32 %v4377, %v3801
  %v4390 = vmul.f32 %v4368, %v4378
  %v4391 = vmul.f32 %v4369, %v4379
  %v4392 = vadd.f32 %v4388, %v4390
  %v4393 = vadd.f32 %v4389, %v4391
  %v4394 = vtanh.pop %v4392
  %v4395 = vtanh.pop %v4393
  %v4396 = vmul.f32 %v4386, %v4394
  %v4397 = vmul.f32 %v4387, %v4395
  %v4398 = vld [vmem:[#allocation2 + $0x80] sm:$0xff]
  %v4399 = vld [vmem:[#allocation2 + $0x88] sm:$0xff]
  %v4400 = vld [vmem:[#allocation2 + $0x90] sm:$0xff]
  %v4401 = vld [vmem:[#allocation2 + $0x98] sm:$0xff]
  %v4402 = vld [vmem:[#allocation2 + $0xa0] sm:$0xff]
  %v4403 = vld [vmem:[#allocation2 + $0xa8] sm:$0xff]
  %v4404 = vld [vmem:[#allocation2 + $0xb0] sm:$0xff]
  %v4405 = vld [vmem:[#allocation2 + $0xb8] sm:$0xff]
  %4406 = vmatprep.subr.bf16.mxu0 %v1646
  %4407 = vmatpush1.bf16.msra.mxu0 %v1645
  %4408 = vmatprep.subr.bf16.mxu0 %v1654
  %4409 = vmatpush1.bf16.msra.mxu0 %v1653
  %4410 = vmatprep.subr.bf16.mxu0 %v1662
  %4411 = vmatpush1.bf16.msra.mxu0 %v1661
  %4412 = vmatprep.subr.bf16.mxu0 %v1670
  %4413 = vmatpush1.bf16.msra.mxu0 %v1669
  %4414 = vmatprep.subr.bf16.mxu0 %v1678
  %4415 = vmatpush1.bf16.msra.mxu0 %v1677
  %4416 = vmatprep.subr.bf16.mxu0 %v1686
  %4417 = vmatpush1.bf16.msra.mxu0 %v1685
  %4418 = vmatprep.subr.bf16.mxu0 %v1694
  %4419 = vmatpush1.bf16.msra.mxu0 %v1693
  %4420 = vmatprep.subr.bf16.mxu0 %v1702
  %4421 = vmatpush1.bf16.msra.mxu0 %v1701
  %4422 = vmatprep.subr.bf16.mxu0 %v1710
  %4423 = vmatpush1.bf16.msra.mxu0 %v1709
  %4424 = vmatprep.subr.bf16.mxu0 %v1718
  %4425 = vmatpush1.bf16.msra.mxu0 %v1717
  %4426 = vmatprep.subr.bf16.mxu0 %v1726
  %4427 = vmatpush1.bf16.msra.mxu0 %v1725
  %4428 = vmatprep.subr.bf16.mxu0 %v1734
  %4429 = vmatpush1.bf16.msra.mxu0 %v1733
  %4430 = vmatprep.subr.bf16.mxu0 %v1742
  %4431 = vmatpush1.bf16.msra.mxu0 %v1741
  %4432 = vmatprep.subr.bf16.mxu0 %v1750
  %4433 = vmatpush1.bf16.msra.mxu0 %v1749
  %4434 = vmatprep.subr.bf16.mxu0 %v1758
  %4435 = vmatpush1.bf16.msra.mxu0 %v1757
  %4436 = vmatprep.subr.bf16.mxu0 %v1766
  %4437 = vmatpush1.bf16.msra.mxu0 %v1765
  %4438 = vmatprep.mubr.bf16.mxu0 %v4023
  %4439 = vmatmul.mubr.bf16.gmra.mrb[0].mxu0 %v4022
  %v4440 = vpop.f32.mrb[0].mxu0
  %v4441 = vadd.f32 0.0, %v4440
  %v4442 = vpop.f32.mrb[0].mxu0
  %v4443 = vadd.f32 0.0, %v4442
  %v4444 = vpop.f32.mrb[0].mxu0
  %v4445 = vpop.f32.mrb[0].mxu0
  %4446 = vdwg.mxu0
  %4447 = vmatprep.subr.bf16.mxu0 %v1648
  %4448 = vmatpush1.bf16.msra.mxu0 %v1647
  %4449 = vmatprep.subr.bf16.mxu0 %v1656
  %4450 = vmatpush1.bf16.msra.mxu0 %v1655
  %4451 = vmatprep.subr.bf16.mxu0 %v1664
  %4452 = vmatpush1.bf16.msra.mxu0 %v1663
  %4453 = vmatprep.subr.bf16.mxu0 %v1672
  %4454 = vmatpush1.bf16.msra.mxu0 %v1671
  %4455 = vmatprep.subr.bf16.mxu0 %v1680
  %4456 = vmatpush1.bf16.msra.mxu0 %v1679
  %4457 = vmatprep.subr.bf16.mxu0 %v1688
  %4458 = vmatpush1.bf16.msra.mxu0 %v1687
  %4459 = vmatprep.subr.bf16.mxu0 %v1696
  %4460 = vmatpush1.bf16.msra.mxu0 %v1695
  %4461 = vmatprep.subr.bf16.mxu0 %v1704
  %4462 = vmatpush1.bf16.msra.mxu0 %v1703
  %4463 = vmatprep.subr.bf16.mxu0 %v1712
  %4464 = vmatpush1.bf16.msra.mxu0 %v1711
  %4465 = vmatprep.subr.bf16.mxu0 %v1720
  %4466 = vmatpush1.bf16.msra.mxu0 %v1719
  %4467 = vmatprep.subr.bf16.mxu0 %v1728
  %4468 = vmatpush1.bf16.msra.mxu0 %v1727
  %4469 = vmatprep.subr.bf16.mxu0 %v1736
  %4470 = vmatpush1.bf16.msra.mxu0 %v1735
  %4471 = vmatprep.subr.bf16.mxu0 %v1744
  %4472 = vmatpush1.bf16.msra.mxu0 %v1743
  %4473 = vmatprep.subr.bf16.mxu0 %v1752
  %4474 = vmatpush1.bf16.msra.mxu0 %v1751
  %4475 = vmatprep.subr.bf16.mxu0 %v1760
  %4476 = vmatpush1.bf16.msra.mxu0 %v1759
  %4477 = vmatprep.subr.bf16.mxu0 %v1768
  %4478 = vmatpush1.bf16.msra.mxu0 %v1767
  %4479 = vmatprep.mubr.bf16.mxu0 %v4023
  %4480 = vmatmul.mubr.bf16.gmra.mrb[0].mxu0 %v4022
  %v4481 = vpop.f32.mrb[0].mxu0
  %v4482 = vadd.f32 0.0, %v4481
  %v4483 = vpop.f32.mrb[0].mxu0
  %v4484 = vadd.f32 0.0, %v4483
  %v4485 = vpop.f32.mrb[0].mxu0
  %v4486 = vpop.f32.mrb[0].mxu0
  %4487 = vdwg.mxu0
  %4488 = vmatprep.subr.bf16.mxu0 %v1650
  %4489 = vmatpush1.bf16.msra.mxu0 %v1649
  %4490 = vmatprep.subr.bf16.mxu0 %v1658
  %4491 = vmatpush1.bf16.msra.mxu0 %v1657
  %4492 = vmatprep.subr.bf16.mxu0 %v1666
  %4493 = vmatpush1.bf16.msra.mxu0 %v1665
  %4494 = vmatprep.subr.bf16.mxu0 %v1674
  %4495 = vmatpush1.bf16.msra.mxu0 %v1673
  %4496 = vmatprep.subr.bf16.mxu0 %v1682
  %4497 = vmatpush1.bf16.msra.mxu0 %v1681
  %4498 = vmatprep.subr.bf16.mxu0 %v1690
  %4499 = vmatpush1.bf16.msra.mxu0 %v1689
  %4500 = vmatprep.subr.bf16.mxu0 %v1698
  %4501 = vmatpush1.bf16.msra.mxu0 %v1697
  %4502 = vmatprep.subr.bf16.mxu0 %v1706
  %4503 = vmatpush1.bf16.msra.mxu0 %v1705
  %4504 = vmatprep.subr.bf16.mxu0 %v1714
  %4505 = vmatpush1.bf16.msra.mxu0 %v1713
  %4506 = vmatprep.subr.bf16.mxu0 %v1722
  %4507 = vmatpush1.bf16.msra.mxu0 %v1721
  %4508 = vmatprep.subr.bf16.mxu0 %v1730
  %4509 = vmatpush1.bf16.msra.mxu0 %v1729
  %4510 = vmatprep.subr.bf16.mxu0 %v1738
  %4511 = vmatpush1.bf16.msra.mxu0 %v1737
  %4512 = vmatprep.subr.bf16.mxu0 %v1746
  %4513 = vmatpush1.bf16.msra.mxu0 %v1745
  %4514 = vmatprep.subr.bf16.mxu0 %v1754
  %4515 = vmatpush1.bf16.msra.mxu0 %v1753
  %4516 = vmatprep.subr.bf16.mxu0 %v1762
  %4517 = vmatpush1.bf16.msra.mxu0 %v1761
  %4518 = vmatprep.subr.bf16.mxu0 %v1770
  %4519 = vmatpush1.bf16.msra.mxu0 %v1769
  %4520 = vmatprep.mubr.bf16.mxu0 %v4023
  %4521 = vmatmul.mubr.bf16.gmra.mrb[0].mxu0 %v4022
  %v4522 = vpop.f32.mrb[0].mxu0
  %v4523 = vadd.f32 0.0, %v4522
  %v4524 = vpop.f32.mrb[0].mxu0
  %v4525 = vadd.f32 0.0, %v4524
  %v4526 = vpop.f32.mrb[0].mxu0
  %v4527 = vpop.f32.mrb[0].mxu0
  %4528 = vdwg.mxu0
  %4529 = vmatprep.subr.bf16.mxu0 %v1652
  %4530 = vmatpush1.bf16.msra.mxu0 %v1651
  %4531 = vmatprep.subr.bf16.mxu0 %v1660
  %4532 = vmatpush1.bf16.msra.mxu0 %v1659
  %4533 = vmatprep.subr.bf16.mxu0 %v1668
  %4534 = vmatpush1.bf16.msra.mxu0 %v1667
  %4535 = vmatprep.subr.bf16.mxu0 %v1676
  %4536 = vmatpush1.bf16.msra.mxu0 %v1675
  %4537 = vmatprep.subr.bf16.mxu0 %v1684
  %4538 = vmatpush1.bf16.msra.mxu0 %v1683
  %4539 = vmatprep.subr.bf16.mxu0 %v1692
  %4540 = vmatpush1.bf16.msra.mxu0 %v1691
  %4541 = vmatprep.subr.bf16.mxu0 %v1700
  %4542 = vmatpush1.bf16.msra.mxu0 %v1699
  %4543 = vmatprep.subr.bf16.mxu0 %v1708
  %4544 = vmatpush1.bf16.msra.mxu0 %v1707
  %4545 = vmatprep.subr.bf16.mxu0 %v1716
  %4546 = vmatpush1.bf16.msra.mxu0 %v1715
  %4547 = vmatprep.subr.bf16.mxu0 %v1724
  %4548 = vmatpush1.bf16.msra.mxu0 %v1723
  %4549 = vmatprep.subr.bf16.mxu0 %v1732
  %4550 = vmatpush1.bf16.msra.mxu0 %v1731
  %4551 = vmatprep.subr.bf16.mxu0 %v1740
  %4552 = vmatpush1.bf16.msra.mxu0 %v1739
  %4553 = vmatprep.subr.bf16.mxu0 %v1748
  %4554 = vmatpush1.bf16.msra.mxu0 %v1747
  %4555 = vmatprep.subr.bf16.mxu0 %v1756
  %4556 = vmatpush1.bf16.msra.mxu0 %v1755
  %4557 = vmatprep.subr.bf16.mxu0 %v1764
  %4558 = vmatpush1.bf16.msra.mxu0 %v1763
  %4559 = vmatprep.subr.bf16.mxu0 %v1772
  %4560 = vmatpush1.bf16.msra.mxu0 %v1771
  %4561 = vmatprep.mubr.bf16.mxu0 %v4023
  %4562 = vmatmul.mubr.bf16.gmra.mrb[0].mxu0 %v4022
  %v4563 = vpop.f32.mrb[0].mxu0
  %v4564 = vadd.f32 0.0, %v4563
  %v4565 = vpop.f32.mrb[0].mxu0
  %v4566 = vadd.f32 0.0, %v4565
  %v4567 = vpop.f32.mrb[0].mxu0
  %v4568 = vpop.f32.mrb[0].mxu0
  %4569 = vdwg.mxu0
  %v4570 = vadd.f32 %v4398, %v4441
  %v4571 = vadd.f32 %v4399, %v4443
  %v4572 = vadd.f32 %v4400, %v4482
  %v4573 = vadd.f32 %v4401, %v4484
  %v4574 = vadd.f32 %v4402, %v4523
  %v4575 = vadd.f32 %v4403, %v4525
  %v4576 = vadd.f32 %v4404, %v4564
  %v4577 = vadd.f32 %v4405, %v4566
  %v4578 = vmul.f32 %v4570, 0.5
  %v4579 = vmul.f32 %v4571, 0.5
  %v4580 = vtanh.pop %v4578
  %v4581 = vtanh.pop %v4579
  %v4582 = vmul.f32 %v4580, 0.5
  %v4583 = vmul.f32 %v4581, 0.5
  %v4584 = vadd.f32 %v4582, 0.5
  %v4585 = vadd.f32 %v4583, 0.5
  %v4586 = vmul.f32 %v4572, 0.5
  %v4587 = vmul.f32 %v4573, 0.5
  %v4588 = vtanh.pop %v4586
  %v4589 = vtanh.pop %v4587
  %v4590 = vmul.f32 %v4588, 0.5
  %v4591 = vmul.f32 %v4589, 0.5
  %v4592 = vadd.f32 %v4590, 0.5
  %v4593 = vadd.f32 %v4591, 0.5
  %v4594 = vtanh.pop %v4574
  %v4595 = vtanh.pop %v4575
  %v4596 = vmul.f32 %v4576, 0.5
  %v4597 = vmul.f32 %v4577, 0.5
  %v4598 = vtanh.pop %v4596
  %v4599 = vtanh.pop %v4597
  %v4600 = vmul.f32 %v4598, 0.5
  %v4601 = vmul.f32 %v4599, 0.5
  %v4602 = vadd.f32 %v4600, 0.5
  %v4603 = vadd.f32 %v4601, 0.5
  %v4604 = vmul.f32 %v4592, %v4016
  %v4605 = vmul.f32 %v4593, %v4017
  %v4606 = vmul.f32 %v4584, %v4594
  %v4607 = vmul.f32 %v4585, %v4595
  %v4608 = vadd.f32 %v4604, %v4606
  %v4609 = vadd.f32 %v4605, %v4607
  %v4610 = vtanh.pop %v4608
  %v4611 = vtanh.pop %v4609
  %v4612 = vmul.f32 %v4602, %v4610
  %v4613 = vmul.f32 %v4603, %v4611
  %v4614 = vpack.c.bf16 %v4612, %v4612
  %v4615 = vpack.c.bf16 %v4613, %v4613
  %4616 = vmatprep.subr.bf16.mxu0 %v2537
  %4617 = vmatpush1.bf16.msra.mxu0 %v2536
  %4618 = vmatprep.subr.bf16.mxu0 %v2545
  %4619 = vmatpush1.bf16.msra.mxu0 %v2544
  %4620 = vmatprep.subr.bf16.mxu0 %v2553
  %4621 = vmatpush1.bf16.msra.mxu0 %v2552
  %4622 = vmatprep.subr.bf16.mxu0 %v2561
  %4623 = vmatpush1.bf16.msra.mxu0 %v2560
  %4624 = vmatprep.subr.bf16.mxu0 %v2569
  %4625 = vmatpush1.bf16.msra.mxu0 %v2568
  %4626 = vmatprep.subr.bf16.mxu0 %v2577
  %4627 = vmatpush1.bf16.msra.mxu0 %v2576
  %4628 = vmatprep.subr.bf16.mxu0 %v2585
  %4629 = vmatpush1.bf16.msra.mxu0 %v2584
  %4630 = vmatprep.subr.bf16.mxu0 %v2593
  %4631 = vmatpush1.bf16.msra.mxu0 %v2592
  %4632 = vmatprep.subr.bf16.mxu0 %v2601
  %4633 = vmatpush1.bf16.msra.mxu0 %v2600
  %4634 = vmatprep.subr.bf16.mxu0 %v2609
  %4635 = vmatpush1.bf16.msra.mxu0 %v2608
  %4636 = vmatprep.subr.bf16.mxu0 %v2617
  %4637 = vmatpush1.bf16.msra.mxu0 %v2616
  %4638 = vmatprep.subr.bf16.mxu0 %v2625
  %4639 = vmatpush1.bf16.msra.mxu0 %v2624
  %4640 = vmatprep.subr.bf16.mxu0 %v2633
  %4641 = vmatpush1.bf16.msra.mxu0 %v2632
  %4642 = vmatprep.subr.bf16.mxu0 %v2641
  %4643 = vmatpush1.bf16.msra.mxu0 %v2640
  %4644 = vmatprep.subr.bf16.mxu0 %v2649
  %4645 = vmatpush1.bf16.msra.mxu0 %v2648
  %4646 = vmatprep.subr.bf16.mxu0 %v2657
  %4647 = vmatpush1.bf16.msra.mxu0 %v2656
  %4648 = vmatprep.mubr.bf16.mxu0 %v4615
  %4649 = vmatmul.mubr.bf16.gmra.mrb[0].mxu0 %v4614
  %v4650 = vpop.f32.mrb[0].mxu0
  %v4651 = vadd.f32 %v2115, %v4650
  %v4652 = vpop.f32.mrb[0].mxu0
  %v4653 = vadd.f32 %v2119, %v4652
  %v4654 = vpop.f32.mrb[0].mxu0
  %v4655 = vpop.f32.mrb[0].mxu0
  %4656 = vdwg.mxu0
  %4657 = vmatprep.subr.bf16.mxu0 %v2539
  %4658 = vmatpush1.bf16.msra.mxu0 %v2538
  %4659 = vmatprep.subr.bf16.mxu0 %v2547
  %4660 = vmatpush1.bf16.msra.mxu0 %v2546
  %4661 = vmatprep.subr.bf16.mxu0 %v2555
  %4662 = vmatpush1.bf16.msra.mxu0 %v2554
  %4663 = vmatprep.subr.bf16.mxu0 %v2563
  %4664 = vmatpush1.bf16.msra.mxu0 %v2562
  %4665 = vmatprep.subr.bf16.mxu0 %v2571
  %4666 = vmatpush1.bf16.msra.mxu0 %v2570
  %4667 = vmatprep.subr.bf16.mxu0 %v2579
  %4668 = vmatpush1.bf16.msra.mxu0 %v2578
  %4669 = vmatprep.subr.bf16.mxu0 %v2587
  %4670 = vmatpush1.bf16.msra.mxu0 %v2586
  %4671 = vmatprep.subr.bf16.mxu0 %v2595
  %4672 = vmatpush1.bf16.msra.mxu0 %v2594
  %4673 = vmatprep.subr.bf16.mxu0 %v2603
  %4674 = vmatpush1.bf16.msra.mxu0 %v2602
  %4675 = vmatprep.subr.bf16.mxu0 %v2611
  %4676 = vmatpush1.bf16.msra.mxu0 %v2610
  %4677 = vmatprep.subr.bf16.mxu0 %v2619
  %4678 = vmatpush1.bf16.msra.mxu0 %v2618
  %4679 = vmatprep.subr.bf16.mxu0 %v2627
  %4680 = vmatpush1.bf16.msra.mxu0 %v2626
  %4681 = vmatprep.subr.bf16.mxu0 %v2635
  %4682 = vmatpush1.bf16.msra.mxu0 %v2634
  %4683 = vmatprep.subr.bf16.mxu0 %v2643
  %4684 = vmatpush1.bf16.msra.mxu0 %v2642
  %4685 = vmatprep.subr.bf16.mxu0 %v2651
  %4686 = vmatpush1.bf16.msra.mxu0 %v2650
  %4687 = vmatprep.subr.bf16.mxu0 %v2659
  %4688 = vmatpush1.bf16.msra.mxu0 %v2658
  %4689 = vmatprep.mubr.bf16.mxu0 %v4615
  %4690 = vmatmul.mubr.bf16.gmra.mrb[0].mxu0 %v4614
  %v4691 = vpop.f32.mrb[0].mxu0
  %v4692 = vadd.f32 %v2123, %v4691
  %v4693 = vpop.f32.mrb[0].mxu0
  %v4694 = vadd.f32 %v2127, %v4693
  %v4695 = vpop.f32.mrb[0].mxu0
  %v4696 = vpop.f32.mrb[0].mxu0
  %4697 = vdwg.mxu0
  %4698 = vmatprep.subr.bf16.mxu0 %v2541
  %4699 = vmatpush1.bf16.msra.mxu0 %v2540
  %4700 = vmatprep.subr.bf16.mxu0 %v2549
  %4701 = vmatpush1.bf16.msra.mxu0 %v2548
  %4702 = vmatprep.subr.bf16.mxu0 %v2557
  %4703 = vmatpush1.bf16.msra.mxu0 %v2556
  %4704 = vmatprep.subr.bf16.mxu0 %v2565
  %4705 = vmatpush1.bf16.msra.mxu0 %v2564
  %4706 = vmatprep.subr.bf16.mxu0 %v2573
  %4707 = vmatpush1.bf16.msra.mxu0 %v2572
  %4708 = vmatprep.subr.bf16.mxu0 %v2581
  %4709 = vmatpush1.bf16.msra.mxu0 %v2580
  %4710 = vmatprep.subr.bf16.mxu0 %v2589
  %4711 = vmatpush1.bf16.msra.mxu0 %v2588
  %4712 = vmatprep.subr.bf16.mxu0 %v2597
  %4713 = vmatpush1.bf16.msra.mxu0 %v2596
  %4714 = vmatprep.subr.bf16.mxu0 %v2605
  %4715 = vmatpush1.bf16.msra.mxu0 %v2604
  %4716 = vmatprep.subr.bf16.mxu0 %v2613
  %4717 = vmatpush1.bf16.msra.mxu0 %v2612
  %4718 = vmatprep.subr.bf16.mxu0 %v2621
  %4719 = vmatpush1.bf16.msra.mxu0 %v2620
  %4720 = vmatprep.subr.bf16.mxu0 %v2629
  %4721 = vmatpush1.bf16.msra.mxu0 %v2628
  %4722 = vmatprep.subr.bf16.mxu0 %v2637
  %4723 = vmatpush1.bf16.msra.mxu0 %v2636
  %4724 = vmatprep.subr.bf16.mxu0 %v2645
  %4725 = vmatpush1.bf16.msra.mxu0 %v2644
  %4726 = vmatprep.subr.bf16.mxu0 %v2653
  %4727 = vmatpush1.bf16.msra.mxu0 %v2652
  %4728 = vmatprep.subr.bf16.mxu0 %v2661
  %4729 = vmatpush1.bf16.msra.mxu0 %v2660
  %4730 = vmatprep.mubr.bf16.mxu0 %v4615
  %4731 = vmatmul.mubr.bf16.gmra.mrb[0].mxu0 %v4614
  %v4732 = vpop.f32.mrb[0].mxu0
  %v4733 = vadd.f32 %v2131, %v4732
  %v4734 = vpop.f32.mrb[0].mxu0
  %v4735 = vadd.f32 %v2135, %v4734
  %v4736 = vpop.f32.mrb[0].mxu0
  %v4737 = vpop.f32.mrb[0].mxu0
  %4738 = vdwg.mxu0
  %4739 = vmatprep.subr.bf16.mxu0 %v2543
  %4740 = vmatpush1.bf16.msra.mxu0 %v2542
  %4741 = vmatprep.subr.bf16.mxu0 %v2551
  %4742 = vmatpush1.bf16.msra.mxu0 %v2550
  %4743 = vmatprep.subr.bf16.mxu0 %v2559
  %4744 = vmatpush1.bf16.msra.mxu0 %v2558
  %4745 = vmatprep.subr.bf16.mxu0 %v2567
  %4746 = vmatpush1.bf16.msra.mxu0 %v2566
  %4747 = vmatprep.subr.bf16.mxu0 %v2575
  %4748 = vmatpush1.bf16.msra.mxu0 %v2574
  %4749 = vmatprep.subr.bf16.mxu0 %v2583
  %4750 = vmatpush1.bf16.msra.mxu0 %v2582
  %4751 = vmatprep.subr.bf16.mxu0 %v2591
  %4752 = vmatpush1.bf16.msra.mxu0 %v2590
  %4753 = vmatprep.subr.bf16.mxu0 %v2599
  %4754 = vmatpush1.bf16.msra.mxu0 %v2598
  %4755 = vmatprep.subr.bf16.mxu0 %v2607
  %4756 = vmatpush1.bf16.msra.mxu0 %v2606
  %4757 = vmatprep.subr.bf16.mxu0 %v2615
  %4758 = vmatpush1.bf16.msra.mxu0 %v2614
  %4759 = vmatprep.subr.bf16.mxu0 %v2623
  %4760 = vmatpush1.bf16.msra.mxu0 %v2622
  %4761 = vmatprep.subr.bf16.mxu0 %v2631
  %4762 = vmatpush1.bf16.msra.mxu0 %v2630
  %4763 = vmatprep.subr.bf16.mxu0 %v2639
  %4764 = vmatpush1.bf16.msra.mxu0 %v2638
  %4765 = vmatprep.subr.bf16.mxu0 %v2647
  %4766 = vmatpush1.bf16.msra.mxu0 %v2646
  %4767 = vmatprep.subr.bf16.mxu0 %v2655
  %4768 = vmatpush1.bf16.msra.mxu0 %v2654
  %4769 = vmatprep.subr.bf16.mxu0 %v2663
  %4770 = vmatpush1.bf16.msra.mxu0 %v2662
  %4771 = vmatprep.mubr.bf16.mxu0 %v4615
  %4772 = vmatmul.mubr.bf16.gmra.mrb[0].mxu0 %v4614
  %v4773 = vpop.f32.mrb[0].mxu0
  %v4774 = vadd.f32 %v2139, %v4773
  %v4775 = vpop.f32.mrb[0].mxu0
  %v4776 = vadd.f32 %v2143, %v4775
  %v4777 = vpop.f32.mrb[0].mxu0
  %v4778 = vpop.f32.mrb[0].mxu0
  %4779 = vdwg.mxu0
  %v4780 = vpack.c.bf16 %v4396, %v4396
  %v4781 = vpack.c.bf16 %v4397, %v4397
  %4782 = vmatprep.subr.bf16.mxu0 %v3343
  %4783 = vmatpush1.bf16.msra.mxu0 %v3342
  %4784 = vmatprep.subr.bf16.mxu0 %v3351
  %4785 = vmatpush1.bf16.msra.mxu0 %v3350
  %4786 = vmatprep.subr.bf16.mxu0 %v3359
  %4787 = vmatpush1.bf16.msra.mxu0 %v3358
  %4788 = vmatprep.subr.bf16.mxu0 %v3367
  %4789 = vmatpush1.bf16.msra.mxu0 %v3366
  %4790 = vmatprep.subr.bf16.mxu0 %v3375
  %4791 = vmatpush1.bf16.msra.mxu0 %v3374
  %4792 = vmatprep.subr.bf16.mxu0 %v3383
  %4793 = vmatpush1.bf16.msra.mxu0 %v3382
  %4794 = vmatprep.subr.bf16.mxu0 %v3391
  %4795 = vmatpush1.bf16.msra.mxu0 %v3390
  %4796 = vmatprep.subr.bf16.mxu0 %v3399
  %4797 = vmatpush1.bf16.msra.mxu0 %v3398
  %4798 = vmatprep.subr.bf16.mxu0 %v3407
  %4799 = vmatpush1.bf16.msra.mxu0 %v3406
  %4800 = vmatprep.subr.bf16.mxu0 %v3415
  %4801 = vmatpush1.bf16.msra.mxu0 %v3414
  %4802 = vmatprep.subr.bf16.mxu0 %v3423
  %4803 = vmatpush1.bf16.msra.mxu0 %v3422
  %4804 = vmatprep.subr.bf16.mxu0 %v3431
  %4805 = vmatpush1.bf16.msra.mxu0 %v3430
  %4806 = vmatprep.subr.bf16.mxu0 %v3439
  %4807 = vmatpush1.bf16.msra.mxu0 %v3438
  %4808 = vmatprep.subr.bf16.mxu0 %v3447
  %4809 = vmatpush1.bf16.msra.mxu0 %v3446
  %4810 = vmatprep.subr.bf16.mxu0 %v3455
  %4811 = vmatpush1.bf16.msra.mxu0 %v3454
  %4812 = vmatprep.subr.bf16.mxu0 %v3463
  %4813 = vmatpush1.bf16.msra.mxu0 %v3462
  %4814 = vmatprep.mubr.bf16.mxu0 %v4781
  %4815 = vmatmul.mubr.bf16.gmra.mrb[0].mxu0 %v4780
  %v4816 = vpop.f32.mrb[0].mxu0
  %v4817 = vadd.f32 0.0, %v4816
  %v4818 = vpop.f32.mrb[0].mxu0
  %v4819 = vadd.f32 0.0, %v4818
  %v4820 = vpop.f32.mrb[0].mxu0
  %v4821 = vpop.f32.mrb[0].mxu0
  %4822 = vdwg.mxu0
  %4823 = vmatprep.subr.bf16.mxu0 %v3345
  %4824 = vmatpush1.bf16.msra.mxu0 %v3344
  %4825 = vmatprep.subr.bf16.mxu0 %v3353
  %4826 = vmatpush1.bf16.msra.mxu0 %v3352
  %4827 = vmatprep.subr.bf16.mxu0 %v3361
  %4828 = vmatpush1.bf16.msra.mxu0 %v3360
  %4829 = vmatprep.subr.bf16.mxu0 %v3369
  %4830 = vmatpush1.bf16.msra.mxu0 %v3368
  %4831 = vmatprep.subr.bf16.mxu0 %v3377
  %4832 = vmatpush1.bf16.msra.mxu0 %v3376
  %4833 = vmatprep.subr.bf16.mxu0 %v3385
  %4834 = vmatpush1.bf16.msra.mxu0 %v3384
  %4835 = vmatprep.subr.bf16.mxu0 %v3393
  %4836 = vmatpush1.bf16.msra.mxu0 %v3392
  %4837 = vmatprep.subr.bf16.mxu0 %v3401
  %4838 = vmatpush1.bf16.msra.mxu0 %v3400
  %4839 = vmatprep.subr.bf16.mxu0 %v3409
  %4840 = vmatpush1.bf16.msra.mxu0 %v3408
  %4841 = vmatprep.subr.bf16.mxu0 %v3417
  %4842 = vmatpush1.bf16.msra.mxu0 %v3416
  %4843 = vmatprep.subr.bf16.mxu0 %v3425
  %4844 = vmatpush1.bf16.msra.mxu0 %v3424
  %4845 = vmatprep.subr.bf16.mxu0 %v3433
  %4846 = vmatpush1.bf16.msra.mxu0 %v3432
  %4847 = vmatprep.subr.bf16.mxu0 %v3441
  %4848 = vmatpush1.bf16.msra.mxu0 %v3440
  %4849 = vmatprep.subr.bf16.mxu0 %v3449
  %4850 = vmatpush1.bf16.msra.mxu0 %v3448
  %4851 = vmatprep.subr.bf16.mxu0 %v3457
  %4852 = vmatpush1.bf16.msra.mxu0 %v3456
  %4853 = vmatprep.subr.bf16.mxu0 %v3465
  %4854 = vmatpush1.bf16.msra.mxu0 %v3464
  %4855 = vmatprep.mubr.bf16.mxu0 %v4781
  %4856 = vmatmul.mubr.bf16.gmra.mrb[0].mxu0 %v4780
  %v4857 = vpop.f32.mrb[0].mxu0
  %v4858 = vadd.f32 0.0, %v4857
  %v4859 = vpop.f32.mrb[0].mxu0
  %v4860 = vadd.f32 0.0, %v4859
  %v4861 = vpop.f32.mrb[0].mxu0
  %v4862 = vpop.f32.mrb[0].mxu0
  %4863 = vdwg.mxu0
  %4864 = vmatprep.subr.bf16.mxu0 %v3347
  %4865 = vmatpush1.bf16.msra.mxu0 %v3346
  %4866 = vmatprep.subr.bf16.mxu0 %v3355
  %4867 = vmatpush1.bf16.msra.mxu0 %v3354
  %4868 = vmatprep.subr.bf16.mxu0 %v3363
  %4869 = vmatpush1.bf16.msra.mxu0 %v3362
  %4870 = vmatprep.subr.bf16.mxu0 %v3371
  %4871 = vmatpush1.bf16.msra.mxu0 %v3370
  %4872 = vmatprep.subr.bf16.mxu0 %v3379
  %4873 = vmatpush1.bf16.msra.mxu0 %v3378
  %4874 = vmatprep.subr.bf16.mxu0 %v3387
  %4875 = vmatpush1.bf16.msra.mxu0 %v3386
  %4876 = vmatprep.subr.bf16.mxu0 %v3395
  %4877 = vmatpush1.bf16.msra.mxu0 %v3394
  %4878 = vmatprep.subr.bf16.mxu0 %v3403
  %4879 = vmatpush1.bf16.msra.mxu0 %v3402
  %4880 = vmatprep.subr.bf16.mxu0 %v3411
  %4881 = vmatpush1.bf16.msra.mxu0 %v3410
  %4882 = vmatprep.subr.bf16.mxu0 %v3419
  %4883 = vmatpush1.bf16.msra.mxu0 %v3418
  %4884 = vmatprep.subr.bf16.mxu0 %v3427
  %4885 = vmatpush1.bf16.msra.mxu0 %v3426
  %4886 = vmatprep.subr.bf16.mxu0 %v3435
  %4887 = vmatpush1.bf16.msra.mxu0 %v3434
  %4888 = vmatprep.subr.bf16.mxu0 %v3443
  %4889 = vmatpush1.bf16.msra.mxu0 %v3442
  %4890 = vmatprep.subr.bf16.mxu0 %v3451
  %4891 = vmatpush1.bf16.msra.mxu0 %v3450
  %4892 = vmatprep.subr.bf16.mxu0 %v3459
  %4893 = vmatpush1.bf16.msra.mxu0 %v3458
  %4894 = vmatprep.subr.bf16.mxu0 %v3467
  %4895 = vmatpush1.bf16.msra.mxu0 %v3466
  %4896 = vmatprep.mubr.bf16.mxu0 %v4781
  %4897 = vmatmul.mubr.bf16.gmra.mrb[0].mxu0 %v4780
  %v4898 = vpop.f32.mrb[0].mxu0
  %v4899 = vadd.f32 0.0, %v4898
  %v4900 = vpop.f32.mrb[0].mxu0
  %v4901 = vadd.f32 0.0, %v4900
  %v4902 = vpop.f32.mrb[0].mxu0
  %v4903 = vpop.f32.mrb[0].mxu0
  %4904 = vdwg.mxu0
  %4905 = vmatprep.subr.bf16.mxu0 %v3349
  %4906 = vmatpush1.bf16.msra.mxu0 %v3348
  %4907 = vmatprep.subr.bf16.mxu0 %v3357
  %4908 = vmatpush1.bf16.msra.mxu0 %v3356
  %4909 = vmatprep.subr.bf16.mxu0 %v3365
  %4910 = vmatpush1.bf16.msra.mxu0 %v3364
  %4911 = vmatprep.subr.bf16.mxu0 %v3373
  %4912 = vmatpush1.bf16.msra.mxu0 %v3372
  %4913 = vmatprep.subr.bf16.mxu0 %v3381
  %4914 = vmatpush1.bf16.msra.mxu0 %v3380
  %4915 = vmatprep.subr.bf16.mxu0 %v3389
  %4916 = vmatpush1.bf16.msra.mxu0 %v3388
  %4917 = vmatprep.subr.bf16.mxu0 %v3397
  %4918 = vmatpush1.bf16.msra.mxu0 %v3396
  %4919 = vmatprep.subr.bf16.mxu0 %v3405
  %4920 = vmatpush1.bf16.msra.mxu0 %v3404
  %4921 = vmatprep.subr.bf16.mxu0 %v3413
  %4922 = vmatpush1.bf16.msra.mxu0 %v3412
  %4923 = vmatprep.subr.bf16.mxu0 %v3421
  %4924 = vmatpush1.bf16.msra.mxu0 %v3420
  %4925 = vmatprep.subr.bf16.mxu0 %v3429
  %4926 = vmatpush1.bf16.msra.mxu0 %v3428
  %4927 = vmatprep.subr.bf16.mxu0 %v3437
  %4928 = vmatpush1.bf16.msra.mxu0 %v3436
  %4929 = vmatprep.subr.bf16.mxu0 %v3445
  %4930 = vmatpush1.bf16.msra.mxu0 %v3444
  %4931 = vmatprep.subr.bf16.mxu0 %v3453
  %4932 = vmatpush1.bf16.msra.mxu0 %v3452
  %4933 = vmatprep.subr.bf16.mxu0 %v3461
  %4934 = vmatpush1.bf16.msra.mxu0 %v3460
  %4935 = vmatprep.subr.bf16.mxu0 %v3469
  %4936 = vmatpush1.bf16.msra.mxu0 %v3468
  %4937 = vmatprep.mubr.bf16.mxu0 %v4781
  %4938 = vmatmul.mubr.bf16.gmra.mrb[0].mxu0 %v4780
  %v4939 = vpop.f32.mrb[0].mxu0
  %v4940 = vadd.f32 0.0, %v4939
  %v4941 = vpop.f32.mrb[0].mxu0
  %v4942 = vadd.f32 0.0, %v4941
  %v4943 = vpop.f32.mrb[0].mxu0
  %v4944 = vpop.f32.mrb[0].mxu0
  %4945 = vdwg.mxu0
  %v4946 = vadd.f32 %v4651, %v4817
  %v4947 = vadd.f32 %v4653, %v4819
  %v4948 = vadd.f32 %v4692, %v4858
  %v4949 = vadd.f32 %v4694, %v4860
  %v4950 = vadd.f32 %v4733, %v4899
  %v4951 = vadd.f32 %v4735, %v4901
  %v4952 = vadd.f32 %v4774, %v4940
  %v4953 = vadd.f32 %v4776, %v4942
  %v4954 = vmul.f32 %v4946, 0.5
  %v4955 = vmul.f32 %v4947, 0.5
  %v4956 = vtanh.pop %v4954
  %v4957 = vtanh.pop %v4955
  %v4958 = vmul.f32 %v4956, 0.5
  %v4959 = vmul.f32 %v4957, 0.5
  %v4960 = vadd.f32 %v4958, 0.5
  %v4961 = vadd.f32 %v4959, 0.5
  %v4962 = vmul.f32 %v4948, 0.5
  %v4963 = vmul.f32 %v4949, 0.5
  %v4964 = vtanh.pop %v4962
  %v4965 = vtanh.pop %v4963
  %v4966 = vmul.f32 %v4964, 0.5
  %v4967 = vmul.f32 %v4965, 0.5
  %v4968 = vadd.f32 %v4966, 0.5
  %v4969 = vadd.f32 %v4967, 0.5
  %v4970 = vtanh.pop %v4950
  %v4971 = vtanh.pop %v4951
  %v4972 = vmul.f32 %v4952, 0.5
  %v4973 = vmul.f32 %v4953, 0.5
  %v4974 = vtanh.pop %v4972
  %v4975 = vtanh.pop %v4973
  %v4976 = vmul.f32 %v4974, 0.5
  %v4977 = vmul.f32 %v4975, 0.5
  %v4978 = vadd.f32 %v4976, 0.5
  %v4979 = vadd.f32 %v4977, 0.5
  %v4980 = vmul.f32 %v4968, %v4392
  %v4981 = vmul.f32 %v4969, %v4393
  %v4982 = vmul.f32 %v4960, %v4970
  %v4983 = vmul.f32 %v4961, %v4971
  %v4984 = vadd.f32 %v4980, %v4982
  %v4985 = vadd.f32 %v4981, %v4983
  %v4986 = vtanh.pop %v4984
  %v4987 = vtanh.pop %v4985
  %v4988 = vmul.f32 %v4978, %v4986
  %v4989 = vmul.f32 %v4979, %v4987
  %v4990 = vld [vmem:[#allocation2 + $0xc0] sm:$0xff]
  %v4991 = vld [vmem:[#allocation2 + $0xc8] sm:$0xff]
  %v4992 = vld [vmem:[#allocation2 + $0xd0] sm:$0xff]
  %v4993 = vld [vmem:[#allocation2 + $0xd8] sm:$0xff]
  %v4994 = vld [vmem:[#allocation2 + $0xe0] sm:$0xff]
  %v4995 = vld [vmem:[#allocation2 + $0xe8] sm:$0xff]
  %v4996 = vld [vmem:[#allocation2 + $0xf0] sm:$0xff]
  %v4997 = vld [vmem:[#allocation2 + $0xf8] sm:$0xff]
  %4998 = vmatprep.subr.bf16.mxu0 %v1646
  %4999 = vmatpush1.bf16.msra.mxu0 %v1645
  %5000 = vmatprep.subr.bf16.mxu0 %v1654
  %5001 = vmatpush1.bf16.msra.mxu0 %v1653
  %5002 = vmatprep.subr.bf16.mxu0 %v1662
  %5003 = vmatpush1.bf16.msra.mxu0 %v1661
  %5004 = vmatprep.subr.bf16.mxu0 %v1670
  %5005 = vmatpush1.bf16.msra.mxu0 %v1669
  %5006 = vmatprep.subr.bf16.mxu0 %v1678
  %5007 = vmatpush1.bf16.msra.mxu0 %v1677
  %5008 = vmatprep.subr.bf16.mxu0 %v1686
  %5009 = vmatpush1.bf16.msra.mxu0 %v1685
  %5010 = vmatprep.subr.bf16.mxu0 %v1694
  %5011 = vmatpush1.bf16.msra.mxu0 %v1693
  %5012 = vmatprep.subr.bf16.mxu0 %v1702
  %5013 = vmatpush1.bf16.msra.mxu0 %v1701
  %5014 = vmatprep.subr.bf16.mxu0 %v1710
  %5015 = vmatpush1.bf16.msra.mxu0 %v1709
  %5016 = vmatprep.subr.bf16.mxu0 %v1718
  %5017 = vmatpush1.bf16.msra.mxu0 %v1717
  %5018 = vmatprep.subr.bf16.mxu0 %v1726
  %5019 = vmatpush1.bf16.msra.mxu0 %v1725
  %5020 = vmatprep.subr.bf16.mxu0 %v1734
  %5021 = vmatpush1.bf16.msra.mxu0 %v1733
  %5022 = vmatprep.subr.bf16.mxu0 %v1742
  %5023 = vmatpush1.bf16.msra.mxu0 %v1741
  %5024 = vmatprep.subr.bf16.mxu0 %v1750
  %5025 = vmatpush1.bf16.msra.mxu0 %v1749
  %5026 = vmatprep.subr.bf16.mxu0 %v1758
  %5027 = vmatpush1.bf16.msra.mxu0 %v1757
  %5028 = vmatprep.subr.bf16.mxu0 %v1766
  %5029 = vmatpush1.bf16.msra.mxu0 %v1765
  %5030 = vmatprep.mubr.bf16.mxu0 %v4615
  %5031 = vmatmul.mubr.bf16.gmra.mrb[0].mxu0 %v4614
  %v5032 = vpop.f32.mrb[0].mxu0
  %v5033 = vadd.f32 0.0, %v5032
  %v5034 = vpop.f32.mrb[0].mxu0
  %v5035 = vadd.f32 0.0, %v5034
  %v5036 = vpop.f32.mrb[0].mxu0
  %v5037 = vpop.f32.mrb[0].mxu0
  %5038 = vdwg.mxu0
  %5039 = vmatprep.subr.bf16.mxu0 %v1648
  %5040 = vmatpush1.bf16.msra.mxu0 %v1647
  %5041 = vmatprep.subr.bf16.mxu0 %v1656
  %5042 = vmatpush1.bf16.msra.mxu0 %v1655
  %5043 = vmatprep.subr.bf16.mxu0 %v1664
  %5044 = vmatpush1.bf16.msra.mxu0 %v1663
  %5045 = vmatprep.subr.bf16.mxu0 %v1672
  %5046 = vmatpush1.bf16.msra.mxu0 %v1671
  %5047 = vmatprep.subr.bf16.mxu0 %v1680
  %5048 = vmatpush1.bf16.msra.mxu0 %v1679
  %5049 = vmatprep.subr.bf16.mxu0 %v1688
  %5050 = vmatpush1.bf16.msra.mxu0 %v1687
  %5051 = vmatprep.subr.bf16.mxu0 %v1696
  %5052 = vmatpush1.bf16.msra.mxu0 %v1695
  %5053 = vmatprep.subr.bf16.mxu0 %v1704
  %5054 = vmatpush1.bf16.msra.mxu0 %v1703
  %5055 = vmatprep.subr.bf16.mxu0 %v1712
  %5056 = vmatpush1.bf16.msra.mxu0 %v1711
  %5057 = vmatprep.subr.bf16.mxu0 %v1720
  %5058 = vmatpush1.bf16.msra.mxu0 %v1719
  %5059 = vmatprep.subr.bf16.mxu0 %v1728
  %5060 = vmatpush1.bf16.msra.mxu0 %v1727
  %5061 = vmatprep.subr.bf16.mxu0 %v1736
  %5062 = vmatpush1.bf16.msra.mxu0 %v1735
  %5063 = vmatprep.subr.bf16.mxu0 %v1744
  %5064 = vmatpush1.bf16.msra.mxu0 %v1743
  %5065 = vmatprep.subr.bf16.mxu0 %v1752
  %5066 = vmatpush1.bf16.msra.mxu0 %v1751
  %5067 = vmatprep.subr.bf16.mxu0 %v1760
  %5068 = vmatpush1.bf16.msra.mxu0 %v1759
  %5069 = vmatprep.subr.bf16.mxu0 %v1768
  %5070 = vmatpush1.bf16.msra.mxu0 %v1767
  %5071 = vmatprep.mubr.bf16.mxu0 %v4615
  %5072 = vmatmul.mubr.bf16.gmra.mrb[0].mxu0 %v4614
  %v5073 = vpop.f32.mrb[0].mxu0
  %v5074 = vadd.f32 0.0, %v5073
  %v5075 = vpop.f32.mrb[0].mxu0
  %v5076 = vadd.f32 0.0, %v5075
  %v5077 = vpop.f32.mrb[0].mxu0
  %v5078 = vpop.f32.mrb[0].mxu0
  %5079 = vdwg.mxu0
  %5080 = vmatprep.subr.bf16.mxu0 %v1650
  %5081 = vmatpush1.bf16.msra.mxu0 %v1649
  %5082 = vmatprep.subr.bf16.mxu0 %v1658
  %5083 = vmatpush1.bf16.msra.mxu0 %v1657
  %5084 = vmatprep.subr.bf16.mxu0 %v1666
  %5085 = vmatpush1.bf16.msra.mxu0 %v1665
  %5086 = vmatprep.subr.bf16.mxu0 %v1674
  %5087 = vmatpush1.bf16.msra.mxu0 %v1673
  %5088 = vmatprep.subr.bf16.mxu0 %v1682
  %5089 = vmatpush1.bf16.msra.mxu0 %v1681
  %5090 = vmatprep.subr.bf16.mxu0 %v1690
  %5091 = vmatpush1.bf16.msra.mxu0 %v1689
  %5092 = vmatprep.subr.bf16.mxu0 %v1698
  %5093 = vmatpush1.bf16.msra.mxu0 %v1697
  %5094 = vmatprep.subr.bf16.mxu0 %v1706
  %5095 = vmatpush1.bf16.msra.mxu0 %v1705
  %5096 = vmatprep.subr.bf16.mxu0 %v1714
  %5097 = vmatpush1.bf16.msra.mxu0 %v1713
  %5098 = vmatprep.subr.bf16.mxu0 %v1722
  %5099 = vmatpush1.bf16.msra.mxu0 %v1721
  %5100 = vmatprep.subr.bf16.mxu0 %v1730
  %5101 = vmatpush1.bf16.msra.mxu0 %v1729
  %5102 = vmatprep.subr.bf16.mxu0 %v1738
  %5103 = vmatpush1.bf16.msra.mxu0 %v1737
  %5104 = vmatprep.subr.bf16.mxu0 %v1746
  %5105 = vmatpush1.bf16.msra.mxu0 %v1745
  %5106 = vmatprep.subr.bf16.mxu0 %v1754
  %5107 = vmatpush1.bf16.msra.mxu0 %v1753
  %5108 = vmatprep.subr.bf16.mxu0 %v1762
  %5109 = vmatpush1.bf16.msra.mxu0 %v1761
  %5110 = vmatprep.subr.bf16.mxu0 %v1770
  %5111 = vmatpush1.bf16.msra.mxu0 %v1769
  %5112 = vmatprep.mubr.bf16.mxu0 %v4615
  %5113 = vmatmul.mubr.bf16.gmra.mrb[0].mxu0 %v4614
  %v5114 = vpop.f32.mrb[0].mxu0
  %v5115 = vadd.f32 0.0, %v5114
  %v5116 = vpop.f32.mrb[0].mxu0
  %v5117 = vadd.f32 0.0, %v5116
  %v5118 = vpop.f32.mrb[0].mxu0
  %v5119 = vpop.f32.mrb[0].mxu0
  %5120 = vdwg.mxu0
  %5121 = vmatprep.subr.bf16.mxu0 %v1652
  %5122 = vmatpush1.bf16.msra.mxu0 %v1651
  %5123 = vmatprep.subr.bf16.mxu0 %v1660
  %5124 = vmatpush1.bf16.msra.mxu0 %v1659
  %5125 = vmatprep.subr.bf16.mxu0 %v1668
  %5126 = vmatpush1.bf16.msra.mxu0 %v1667
  %5127 = vmatprep.subr.bf16.mxu0 %v1676
  %5128 = vmatpush1.bf16.msra.mxu0 %v1675
  %5129 = vmatprep.subr.bf16.mxu0 %v1684
  %5130 = vmatpush1.bf16.msra.mxu0 %v1683
  %5131 = vmatprep.subr.bf16.mxu0 %v1692
  %5132 = vmatpush1.bf16.msra.mxu0 %v1691
  %5133 = vmatprep.subr.bf16.mxu0 %v1700
  %5134 = vmatpush1.bf16.msra.mxu0 %v1699
  %5135 = vmatprep.subr.bf16.mxu0 %v1708
  %5136 = vmatpush1.bf16.msra.mxu0 %v1707
  %5137 = vmatprep.subr.bf16.mxu0 %v1716
  %5138 = vmatpush1.bf16.msra.mxu0 %v1715
  %5139 = vmatprep.subr.bf16.mxu0 %v1724
  %5140 = vmatpush1.bf16.msra.mxu0 %v1723
  %5141 = vmatprep.subr.bf16.mxu0 %v1732
  %5142 = vmatpush1.bf16.msra.mxu0 %v1731
  %5143 = vmatprep.subr.bf16.mxu0 %v1740
  %5144 = vmatpush1.bf16.msra.mxu0 %v1739
  %5145 = vmatprep.subr.bf16.mxu0 %v1748
  %5146 = vmatpush1.bf16.msra.mxu0 %v1747
  %5147 = vmatprep.subr.bf16.mxu0 %v1756
  %5148 = vmatpush1.bf16.msra.mxu0 %v1755
  %5149 = vmatprep.subr.bf16.mxu0 %v1764
  %5150 = vmatpush1.bf16.msra.mxu0 %v1763
  %5151 = vmatprep.subr.bf16.mxu0 %v1772
  %5152 = vmatpush1.bf16.msra.mxu0 %v1771
  %5153 = vmatprep.mubr.bf16.mxu0 %v4615
  %5154 = vmatmul.mubr.bf16.gmra.mrb[0].mxu0 %v4614
  %v5155 = vpop.f32.mrb[0].mxu0
  %v5156 = vadd.f32 0.0, %v5155
  %v5157 = vpop.f32.mrb[0].mxu0
  %v5158 = vadd.f32 0.0, %v5157
  %v5159 = vpop.f32.mrb[0].mxu0
  %v5160 = vpop.f32.mrb[0].mxu0
  %5161 = vdwg.mxu0
  %v5162 = vadd.f32 %v4990, %v5033
  %v5163 = vadd.f32 %v4991, %v5035
  %v5164 = vadd.f32 %v4992, %v5074
  %v5165 = vadd.f32 %v4993, %v5076
  %v5166 = vadd.f32 %v4994, %v5115
  %v5167 = vadd.f32 %v4995, %v5117
  %v5168 = vadd.f32 %v4996, %v5156
  %v5169 = vadd.f32 %v4997, %v5158
  %v5170 = vmul.f32 %v5162, 0.5
  %v5171 = vmul.f32 %v5163, 0.5
  %v5172 = vtanh.pop %v5170
  %v5173 = vtanh.pop %v5171
  %v5174 = vmul.f32 %v5172, 0.5
  %v5175 = vmul.f32 %v5173, 0.5
  %v5176 = vadd.f32 %v5174, 0.5
  %v5177 = vadd.f32 %v5175, 0.5
  %v5178 = vmul.f32 %v5164, 0.5
  %v5179 = vmul.f32 %v5165, 0.5
  %v5180 = vtanh.pop %v5178
  %v5181 = vtanh.pop %v5179
  %v5182 = vmul.f32 %v5180, 0.5
  %v5183 = vmul.f32 %v5181, 0.5
  %v5184 = vadd.f32 %v5182, 0.5
  %v5185 = vadd.f32 %v5183, 0.5
  %v5186 = vtanh.pop %v5166
  %v5187 = vtanh.pop %v5167
  %v5188 = vmul.f32 %v5168, 0.5
  %v5189 = vmul.f32 %v5169, 0.5
  %v5190 = vtanh.pop %v5188
  %v5191 = vtanh.pop %v5189
  %v5192 = vmul.f32 %v5190, 0.5
  %v5193 = vmul.f32 %v5191, 0.5
  %v5194 = vadd.f32 %v5192, 0.5
  %v5195 = vadd.f32 %v5193, 0.5
  %v5196 = vmul.f32 %v5184, %v4608
  %v5197 = vmul.f32 %v5185, %v4609
  %v5198 = vmul.f32 %v5176, %v5186
  %v5199 = vmul.f32 %v5177, %v5187
  %v5200 = vadd.f32 %v5196, %v5198
  %v5201 = vadd.f32 %v5197, %v5199
  %v5202 = vtanh.pop %v5200
  %v5203 = vtanh.pop %v5201
  %v5204 = vmul.f32 %v5194, %v5202
  %v5205 = vmul.f32 %v5195, %v5203
  %v5206 = vpack.c.bf16 %v5204, %v5204
  %v5207 = vpack.c.bf16 %v5205, %v5205
  %5208 = vmatprep.subr.bf16.mxu0 %v2537
  %5209 = vmatpush1.bf16.msra.mxu0 %v2536
  %5210 = vmatprep.subr.bf16.mxu0 %v2545
  %5211 = vmatpush1.bf16.msra.mxu0 %v2544
  %5212 = vmatprep.subr.bf16.mxu0 %v2553
  %5213 = vmatpush1.bf16.msra.mxu0 %v2552
  %5214 = vmatprep.subr.bf16.mxu0 %v2561
  %5215 = vmatpush1.bf16.msra.mxu0 %v2560
  %5216 = vmatprep.subr.bf16.mxu0 %v2569
  %5217 = vmatpush1.bf16.msra.mxu0 %v2568
  %5218 = vmatprep.subr.bf16.mxu0 %v2577
  %5219 = vmatpush1.bf16.msra.mxu0 %v2576
  %5220 = vmatprep.subr.bf16.mxu0 %v2585
  %5221 = vmatpush1.bf16.msra.mxu0 %v2584
  %5222 = vmatprep.subr.bf16.mxu0 %v2593
  %5223 = vmatpush1.bf16.msra.mxu0 %v2592
  %5224 = vmatprep.subr.bf16.mxu0 %v2601
  %5225 = vmatpush1.bf16.msra.mxu0 %v2600
  %5226 = vmatprep.subr.bf16.mxu0 %v2609
  %5227 = vmatpush1.bf16.msra.mxu0 %v2608
  %5228 = vmatprep.subr.bf16.mxu0 %v2617
  %5229 = vmatpush1.bf16.msra.mxu0 %v2616
  %5230 = vmatprep.subr.bf16.mxu0 %v2625
  %5231 = vmatpush1.bf16.msra.mxu0 %v2624
  %5232 = vmatprep.subr.bf16.mxu0 %v2633
  %5233 = vmatpush1.bf16.msra.mxu0 %v2632
  %5234 = vmatprep.subr.bf16.mxu0 %v2641
  %5235 = vmatpush1.bf16.msra.mxu0 %v2640
  %5236 = vmatprep.subr.bf16.mxu0 %v2649
  %5237 = vmatpush1.bf16.msra.mxu0 %v2648
  %5238 = vmatprep.subr.bf16.mxu0 %v2657
  %5239 = vmatpush1.bf16.msra.mxu0 %v2656
  %5240 = vmatprep.mubr.bf16.mxu0 %v5207
  %5241 = vmatmul.mubr.bf16.gmra.mrb[0].mxu0 %v5206
  %v5242 = vpop.f32.mrb[0].mxu0
  %v5243 = vadd.f32 %v2115, %v5242
  %v5244 = vpop.f32.mrb[0].mxu0
  %v5245 = vadd.f32 %v2119, %v5244
  %v5246 = vpop.f32.mrb[0].mxu0
  %v5247 = vpop.f32.mrb[0].mxu0
  %5248 = vdwg.mxu0
  %5249 = vmatprep.subr.bf16.mxu0 %v2539
  %5250 = vmatpush1.bf16.msra.mxu0 %v2538
  %5251 = vmatprep.subr.bf16.mxu0 %v2547
  %5252 = vmatpush1.bf16.msra.mxu0 %v2546
  %5253 = vmatprep.subr.bf16.mxu0 %v2555
  %5254 = vmatpush1.bf16.msra.mxu0 %v2554
  %5255 = vmatprep.subr.bf16.mxu0 %v2563
  %5256 = vmatpush1.bf16.msra.mxu0 %v2562
  %5257 = vmatprep.subr.bf16.mxu0 %v2571
  %5258 = vmatpush1.bf16.msra.mxu0 %v2570
  %5259 = vmatprep.subr.bf16.mxu0 %v2579
  %5260 = vmatpush1.bf16.msra.mxu0 %v2578
  %5261 = vmatprep.subr.bf16.mxu0 %v2587
  %5262 = vmatpush1.bf16.msra.mxu0 %v2586
  %5263 = vmatprep.subr.bf16.mxu0 %v2595
  %5264 = vmatpush1.bf16.msra.mxu0 %v2594
  %5265 = vmatprep.subr.bf16.mxu0 %v2603
  %5266 = vmatpush1.bf16.msra.mxu0 %v2602
  %5267 = vmatprep.subr.bf16.mxu0 %v2611
  %5268 = vmatpush1.bf16.msra.mxu0 %v2610
  %5269 = vmatprep.subr.bf16.mxu0 %v2619
  %5270 = vmatpush1.bf16.msra.mxu0 %v2618
  %5271 = vmatprep.subr.bf16.mxu0 %v2627
  %5272 = vmatpush1.bf16.msra.mxu0 %v2626
  %5273 = vmatprep.subr.bf16.mxu0 %v2635
  %5274 = vmatpush1.bf16.msra.mxu0 %v2634
  %5275 = vmatprep.subr.bf16.mxu0 %v2643
  %5276 = vmatpush1.bf16.msra.mxu0 %v2642
  %5277 = vmatprep.subr.bf16.mxu0 %v2651
  %5278 = vmatpush1.bf16.msra.mxu0 %v2650
  %5279 = vmatprep.subr.bf16.mxu0 %v2659
  %5280 = vmatpush1.bf16.msra.mxu0 %v2658
  %5281 = vmatprep.mubr.bf16.mxu0 %v5207
  %5282 = vmatmul.mubr.bf16.gmra.mrb[0].mxu0 %v5206
  %v5283 = vpop.f32.mrb[0].mxu0
  %v5284 = vadd.f32 %v2123, %v5283
  %v5285 = vpop.f32.mrb[0].mxu0
  %v5286 = vadd.f32 %v2127, %v5285
  %v5287 = vpop.f32.mrb[0].mxu0
  %v5288 = vpop.f32.mrb[0].mxu0
  %5289 = vdwg.mxu0
  %5290 = vmatprep.subr.bf16.mxu0 %v2541
  %5291 = vmatpush1.bf16.msra.mxu0 %v2540
  %5292 = vmatprep.subr.bf16.mxu0 %v2549
  %5293 = vmatpush1.bf16.msra.mxu0 %v2548
  %5294 = vmatprep.subr.bf16.mxu0 %v2557
  %5295 = vmatpush1.bf16.msra.mxu0 %v2556
  %5296 = vmatprep.subr.bf16.mxu0 %v2565
  %5297 = vmatpush1.bf16.msra.mxu0 %v2564
  %5298 = vmatprep.subr.bf16.mxu0 %v2573
  %5299 = vmatpush1.bf16.msra.mxu0 %v2572
  %5300 = vmatprep.subr.bf16.mxu0 %v2581
  %5301 = vmatpush1.bf16.msra.mxu0 %v2580
  %5302 = vmatprep.subr.bf16.mxu0 %v2589
  %5303 = vmatpush1.bf16.msra.mxu0 %v2588
  %5304 = vmatprep.subr.bf16.mxu0 %v2597
  %5305 = vmatpush1.bf16.msra.mxu0 %v2596
  %5306 = vmatprep.subr.bf16.mxu0 %v2605
  %5307 = vmatpush1.bf16.msra.mxu0 %v2604
  %5308 = vmatprep.subr.bf16.mxu0 %v2613
  %5309 = vmatpush1.bf16.msra.mxu0 %v2612
  %5310 = vmatprep.subr.bf16.mxu0 %v2621
  %5311 = vmatpush1.bf16.msra.mxu0 %v2620
  %5312 = vmatprep.subr.bf16.mxu0 %v2629
  %5313 = vmatpush1.bf16.msra.mxu0 %v2628
  %5314 = vmatprep.subr.bf16.mxu0 %v2637
  %5315 = vmatpush1.bf16.msra.mxu0 %v2636
  %5316 = vmatprep.subr.bf16.mxu0 %v2645
  %5317 = vmatpush1.bf16.msra.mxu0 %v2644
  %5318 = vmatprep.subr.bf16.mxu0 %v2653
  %5319 = vmatpush1.bf16.msra.mxu0 %v2652
  %5320 = vmatprep.subr.bf16.mxu0 %v2661
  %5321 = vmatpush1.bf16.msra.mxu0 %v2660
  %5322 = vmatprep.mubr.bf16.mxu0 %v5207
  %5323 = vmatmul.mubr.bf16.gmra.mrb[0].mxu0 %v5206
  %v5324 = vpop.f32.mrb[0].mxu0
  %v5325 = vadd.f32 %v2131, %v5324
  %v5326 = vpop.f32.mrb[0].mxu0
  %v5327 = vadd.f32 %v2135, %v5326
  %v5328 = vpop.f32.mrb[0].mxu0
  %v5329 = vpop.f32.mrb[0].mxu0
  %5330 = vdwg.mxu0
  %5331 = vmatprep.subr.bf16.mxu0 %v2543
  %5332 = vmatpush1.bf16.msra.mxu0 %v2542
  %5333 = vmatprep.subr.bf16.mxu0 %v2551
  %5334 = vmatpush1.bf16.msra.mxu0 %v2550
  %5335 = vmatprep.subr.bf16.mxu0 %v2559
  %5336 = vmatpush1.bf16.msra.mxu0 %v2558
  %5337 = vmatprep.subr.bf16.mxu0 %v2567
  %5338 = vmatpush1.bf16.msra.mxu0 %v2566
  %5339 = vmatprep.subr.bf16.mxu0 %v2575
  %5340 = vmatpush1.bf16.msra.mxu0 %v2574
  %5341 = vmatprep.subr.bf16.mxu0 %v2583
  %5342 = vmatpush1.bf16.msra.mxu0 %v2582
  %5343 = vmatprep.subr.bf16.mxu0 %v2591
  %5344 = vmatpush1.bf16.msra.mxu0 %v2590
  %5345 = vmatprep.subr.bf16.mxu0 %v2599
  %5346 = vmatpush1.bf16.msra.mxu0 %v2598
  %5347 = vmatprep.subr.bf16.mxu0 %v2607
  %5348 = vmatpush1.bf16.msra.mxu0 %v2606
  %5349 = vmatprep.subr.bf16.mxu0 %v2615
  %5350 = vmatpush1.bf16.msra.mxu0 %v2614
  %5351 = vmatprep.subr.bf16.mxu0 %v2623
  %5352 = vmatpush1.bf16.msra.mxu0 %v2622
  %5353 = vmatprep.subr.bf16.mxu0 %v2631
  %5354 = vmatpush1.bf16.msra.mxu0 %v2630
  %5355 = vmatprep.subr.bf16.mxu0 %v2639
  %5356 = vmatpush1.bf16.msra.mxu0 %v2638
  %5357 = vmatprep.subr.bf16.mxu0 %v2647
  %5358 = vmatpush1.bf16.msra.mxu0 %v2646
  %5359 = vmatprep.subr.bf16.mxu0 %v2655
  %5360 = vmatpush1.bf16.msra.mxu0 %v2654
  %5361 = vmatprep.subr.bf16.mxu0 %v2663
  %5362 = vmatpush1.bf16.msra.mxu0 %v2662
  %5363 = vmatprep.mubr.bf16.mxu0 %v5207
  %5364 = vmatmul.mubr.bf16.gmra.mrb[0].mxu0 %v5206
  %v5365 = vpop.f32.mrb[0].mxu0
  %v5366 = vadd.f32 %v2139, %v5365
  %v5367 = vpop.f32.mrb[0].mxu0
  %v5368 = vadd.f32 %v2143, %v5367
  %v5369 = vpop.f32.mrb[0].mxu0
  %v5370 = vpop.f32.mrb[0].mxu0
  %5371 = vdwg.mxu0
  %v5372 = vpack.c.bf16 %v4988, %v4988
  %v5373 = vpack.c.bf16 %v4989, %v4989
  %5374 = vmatprep.subr.bf16.mxu0 %v3343
  %5375 = vmatpush1.bf16.msra.mxu0 %v3342
  %5376 = vmatprep.subr.bf16.mxu0 %v3351
  %5377 = vmatpush1.bf16.msra.mxu0 %v3350
  %5378 = vmatprep.subr.bf16.mxu0 %v3359
  %5379 = vmatpush1.bf16.msra.mxu0 %v3358
  %5380 = vmatprep.subr.bf16.mxu0 %v3367
  %5381 = vmatpush1.bf16.msra.mxu0 %v3366
  %5382 = vmatprep.subr.bf16.mxu0 %v3375
  %5383 = vmatpush1.bf16.msra.mxu0 %v3374
  %5384 = vmatprep.subr.bf16.mxu0 %v3383
  %5385 = vmatpush1.bf16.msra.mxu0 %v3382
  %5386 = vmatprep.subr.bf16.mxu0 %v3391
  %5387 = vmatpush1.bf16.msra.mxu0 %v3390
  %5388 = vmatprep.subr.bf16.mxu0 %v3399
  %5389 = vmatpush1.bf16.msra.mxu0 %v3398
  %5390 = vmatprep.subr.bf16.mxu0 %v3407
  %5391 = vmatpush1.bf16.msra.mxu0 %v3406
  %5392 = vmatprep.subr.bf16.mxu0 %v3415
  %5393 = vmatpush1.bf16.msra.mxu0 %v3414
  %5394 = vmatprep.subr.bf16.mxu0 %v3423
  %5395 = vmatpush1.bf16.msra.mxu0 %v3422
  %5396 = vmatprep.subr.bf16.mxu0 %v3431
  %5397 = vmatpush1.bf16.msra.mxu0 %v3430
  %5398 = vmatprep.subr.bf16.mxu0 %v3439
  %5399 = vmatpush1.bf16.msra.mxu0 %v3438
  %5400 = vmatprep.subr.bf16.mxu0 %v3447
  %5401 = vmatpush1.bf16.msra.mxu0 %v3446
  %5402 = vmatprep.subr.bf16.mxu0 %v3455
  %5403 = vmatpush1.bf16.msra.mxu0 %v3454
  %5404 = vmatprep.subr.bf16.mxu0 %v3463
  %5405 = vmatpush1.bf16.msra.mxu0 %v3462
  %5406 = vmatprep.mubr.bf16.mxu0 %v5373
  %5407 = vmatmul.mubr.bf16.gmra.mrb[0].mxu0 %v5372
  %v5408 = vpop.f32.mrb[0].mxu0
  %v5409 = vadd.f32 0.0, %v5408
  %v5410 = vpop.f32.mrb[0].mxu0
  %v5411 = vadd.f32 0.0, %v5410
  %v5412 = vpop.f32.mrb[0].mxu0
  %v5413 = vpop.f32.mrb[0].mxu0
  %5414 = vdwg.mxu0
  %5415 = vmatprep.subr.bf16.mxu0 %v3345
  %5416 = vmatpush1.bf16.msra.mxu0 %v3344
  %5417 = vmatprep.subr.bf16.mxu0 %v3353
  %5418 = vmatpush1.bf16.msra.mxu0 %v3352
  %5419 = vmatprep.subr.bf16.mxu0 %v3361
  %5420 = vmatpush1.bf16.msra.mxu0 %v3360
  %5421 = vmatprep.subr.bf16.mxu0 %v3369
  %5422 = vmatpush1.bf16.msra.mxu0 %v3368
  %5423 = vmatprep.subr.bf16.mxu0 %v3377
  %5424 = vmatpush1.bf16.msra.mxu0 %v3376
  %5425 = vmatprep.subr.bf16.mxu0 %v3385
  %5426 = vmatpush1.bf16.msra.mxu0 %v3384
  %5427 = vmatprep.subr.bf16.mxu0 %v3393
  %5428 = vmatpush1.bf16.msra.mxu0 %v3392
  %5429 = vmatprep.subr.bf16.mxu0 %v3401
  %5430 = vmatpush1.bf16.msra.mxu0 %v3400
  %5431 = vmatprep.subr.bf16.mxu0 %v3409
  %5432 = vmatpush1.bf16.msra.mxu0 %v3408
  %5433 = vmatprep.subr.bf16.mxu0 %v3417
  %5434 = vmatpush1.bf16.msra.mxu0 %v3416
  %5435 = vmatprep.subr.bf16.mxu0 %v3425
  %5436 = vmatpush1.bf16.msra.mxu0 %v3424
  %5437 = vmatprep.subr.bf16.mxu0 %v3433
  %5438 = vmatpush1.bf16.msra.mxu0 %v3432
  %5439 = vmatprep.subr.bf16.mxu0 %v3441
  %5440 = vmatpush1.bf16.msra.mxu0 %v3440
  %5441 = vmatprep.subr.bf16.mxu0 %v3449
  %5442 = vmatpush1.bf16.msra.mxu0 %v3448
  %5443 = vmatprep.subr.bf16.mxu0 %v3457
  %5444 = vmatpush1.bf16.msra.mxu0 %v3456
  %5445 = vmatprep.subr.bf16.mxu0 %v3465
  %5446 = vmatpush1.bf16.msra.mxu0 %v3464
  %5447 = vmatprep.mubr.bf16.mxu0 %v5373
  %5448 = vmatmul.mubr.bf16.gmra.mrb[0].mxu0 %v5372
  %v5449 = vpop.f32.mrb[0].mxu0
  %v5450 = vadd.f32 0.0, %v5449
  %v5451 = vpop.f32.mrb[0].mxu0
  %v5452 = vadd.f32 0.0, %v5451
  %v5453 = vpop.f32.mrb[0].mxu0
  %v5454 = vpop.f32.mrb[0].mxu0
  %5455 = vdwg.mxu0
  %5456 = vmatprep.subr.bf16.mxu0 %v3347
  %5457 = vmatpush1.bf16.msra.mxu0 %v3346
  %5458 = vmatprep.subr.bf16.mxu0 %v3355
  %5459 = vmatpush1.bf16.msra.mxu0 %v3354
  %5460 = vmatprep.subr.bf16.mxu0 %v3363
  %5461 = vmatpush1.bf16.msra.mxu0 %v3362
  %5462 = vmatprep.subr.bf16.mxu0 %v3371
  %5463 = vmatpush1.bf16.msra.mxu0 %v3370
  %5464 = vmatprep.subr.bf16.mxu0 %v3379
  %5465 = vmatpush1.bf16.msra.mxu0 %v3378
  %5466 = vmatprep.subr.bf16.mxu0 %v3387
  %5467 = vmatpush1.bf16.msra.mxu0 %v3386
  %5468 = vmatprep.subr.bf16.mxu0 %v3395
  %5469 = vmatpush1.bf16.msra.mxu0 %v3394
  %5470 = vmatprep.subr.bf16.mxu0 %v3403
  %5471 = vmatpush1.bf16.msra.mxu0 %v3402
  %5472 = vmatprep.subr.bf16.mxu0 %v3411
  %5473 = vmatpush1.bf16.msra.mxu0 %v3410
  %5474 = vmatprep.subr.bf16.mxu0 %v3419
  %5475 = vmatpush1.bf16.msra.mxu0 %v3418
  %5476 = vmatprep.subr.bf16.mxu0 %v3427
  %5477 = vmatpush1.bf16.msra.mxu0 %v3426
  %5478 = vmatprep.subr.bf16.mxu0 %v3435
  %5479 = vmatpush1.bf16.msra.mxu0 %v3434
  %5480 = vmatprep.subr.bf16.mxu0 %v3443
  %5481 = vmatpush1.bf16.msra.mxu0 %v3442
  %5482 = vmatprep.subr.bf16.mxu0 %v3451
  %5483 = vmatpush1.bf16.msra.mxu0 %v3450
  %5484 = vmatprep.subr.bf16.mxu0 %v3459
  %5485 = vmatpush1.bf16.msra.mxu0 %v3458
  %5486 = vmatprep.subr.bf16.mxu0 %v3467
  %5487 = vmatpush1.bf16.msra.mxu0 %v3466
  %5488 = vmatprep.mubr.bf16.mxu0 %v5373
  %5489 = vmatmul.mubr.bf16.gmra.mrb[0].mxu0 %v5372
  %v5490 = vpop.f32.mrb[0].mxu0
  %v5491 = vadd.f32 0.0, %v5490
  %v5492 = vpop.f32.mrb[0].mxu0
  %v5493 = vadd.f32 0.0, %v5492
  %v5494 = vpop.f32.mrb[0].mxu0
  %v5495 = vpop.f32.mrb[0].mxu0
  %5496 = vdwg.mxu0
  %5497 = vmatprep.subr.bf16.mxu0 %v3349
  %5498 = vmatpush1.bf16.msra.mxu0 %v3348
  %5499 = vmatprep.subr.bf16.mxu0 %v3357
  %5500 = vmatpush1.bf16.msra.mxu0 %v3356
  %5501 = vmatprep.subr.bf16.mxu0 %v3365
  %5502 = vmatpush1.bf16.msra.mxu0 %v3364
  %5503 = vmatprep.subr.bf16.mxu0 %v3373
  %5504 = vmatpush1.bf16.msra.mxu0 %v3372
  %5505 = vmatprep.subr.bf16.mxu0 %v3381
  %5506 = vmatpush1.bf16.msra.mxu0 %v3380
  %5507 = vmatprep.subr.bf16.mxu0 %v3389
  %5508 = vmatpush1.bf16.msra.mxu0 %v3388
  %5509 = vmatprep.subr.bf16.mxu0 %v3397
  %5510 = vmatpush1.bf16.msra.mxu0 %v3396
  %5511 = vmatprep.subr.bf16.mxu0 %v3405
  %5512 = vmatpush1.bf16.msra.mxu0 %v3404
  %5513 = vmatprep.subr.bf16.mxu0 %v3413
  %5514 = vmatpush1.bf16.msra.mxu0 %v3412
  %5515 = vmatprep.subr.bf16.mxu0 %v3421
  %5516 = vmatpush1.bf16.msra.mxu0 %v3420
  %5517 = vmatprep.subr.bf16.mxu0 %v3429
  %5518 = vmatpush1.bf16.msra.mxu0 %v3428
  %5519 = vmatprep.subr.bf16.mxu0 %v3437
  %5520 = vmatpush1.bf16.msra.mxu0 %v3436
  %5521 = vmatprep.subr.bf16.mxu0 %v3445
  %5522 = vmatpush1.bf16.msra.mxu0 %v3444
  %5523 = vmatprep.subr.bf16.mxu0 %v3453
  %5524 = vmatpush1.bf16.msra.mxu0 %v3452
  %5525 = vmatprep.subr.bf16.mxu0 %v3461
  %5526 = vmatpush1.bf16.msra.mxu0 %v3460
  %5527 = vmatprep.subr.bf16.mxu0 %v3469
  %5528 = vmatpush1.bf16.msra.mxu0 %v3468
  %5529 = vmatprep.mubr.bf16.mxu0 %v5373
  %5530 = vmatmul.mubr.bf16.gmra.mrb[0].mxu0 %v5372
  %v5531 = vpop.f32.mrb[0].mxu0
  %v5532 = vadd.f32 0.0, %v5531
  %v5533 = vpop.f32.mrb[0].mxu0
  %v5534 = vadd.f32 0.0, %v5533
  %v5535 = vpop.f32.mrb[0].mxu0
  %v5536 = vpop.f32.mrb[0].mxu0
  %5537 = vdwg.mxu0
  %v5538 = vadd.f32 %v5243, %v5409
  %v5539 = vadd.f32 %v5245, %v5411
  %v5540 = vadd.f32 %v5284, %v5450
  %v5541 = vadd.f32 %v5286, %v5452
  %v5542 = vadd.f32 %v5325, %v5491
  %v5543 = vadd.f32 %v5327, %v5493
  %v5544 = vadd.f32 %v5366, %v5532
  %v5545 = vadd.f32 %v5368, %v5534
  %v5546 = vmul.f32 %v5538, 0.5
  %v5547 = vmul.f32 %v5539, 0.5
  %v5548 = vtanh.pop %v5546
  %v5549 = vtanh.pop %v5547
  %v5550 = vmul.f32 %v5548, 0.5
  %v5551 = vmul.f32 %v5549, 0.5
  %v5552 = vadd.f32 %v5550, 0.5
  %v5553 = vadd.f32 %v5551, 0.5
  %v5554 = vmul.f32 %v5540, 0.5
  %v5555 = vmul.f32 %v5541, 0.5
  %v5556 = vtanh.pop %v5554
  %v5557 = vtanh.pop %v5555
  %v5558 = vmul.f32 %v5556, 0.5
  %v5559 = vmul.f32 %v5557, 0.5
  %v5560 = vadd.f32 %v5558, 0.5
  %v5561 = vadd.f32 %v5559, 0.5
  %v5562 = vtanh.pop %v5542
  %v5563 = vtanh.pop %v5543
  %v5564 = vmul.f32 %v5544, 0.5
  %v5565 = vmul.f32 %v5545, 0.5
  %v5566 = vtanh.pop %v5564
  %v5567 = vtanh.pop %v5565
  %v5568 = vmul.f32 %v5566, 0.5
  %v5569 = vmul.f32 %v5567, 0.5
  %v5570 = vadd.f32 %v5568, 0.5
  %v5571 = vadd.f32 %v5569, 0.5
  %v5572 = vmul.f32 %v5560, %v4984
  %v5573 = vmul.f32 %v5561, %v4985
  %v5574 = vmul.f32 %v5552, %v5562
  %v5575 = vmul.f32 %v5553, %v5563
  %v5576 = vadd.f32 %v5572, %v5574
  %v5577 = vadd.f32 %v5573, %v5575
  %v5578 = vtanh.pop %v5576
  %v5579 = vtanh.pop %v5577
  %v5580 = vmul.f32 %v5570, %v5578
  %v5581 = vmul.f32 %v5571, %v5579
  %v5582 = vld [vmem:[#allocation2 + $0x100] sm:$0xff]
  %v5583 = vld [vmem:[#allocation2 + $0x108] sm:$0xff]
  %v5584 = vld [vmem:[#allocation2 + $0x110] sm:$0xff]
  %v5585 = vld [vmem:[#allocation2 + $0x118] sm:$0xff]
  %v5586 = vld [vmem:[#allocation2 + $0x120] sm:$0xff]
  %v5587 = vld [vmem:[#allocation2 + $0x128] sm:$0xff]
  %v5588 = vld [vmem:[#allocation2 + $0x130] sm:$0xff]
  %v5589 = vld [vmem:[#allocation2 + $0x138] sm:$0xff]
  %5590 = vmatprep.subr.bf16.mxu0 %v1646
  %5591 = vmatpush1.bf16.msra.mxu0 %v1645
  %5592 = vmatprep.subr.bf16.mxu0 %v1654
  %5593 = vmatpush1.bf16.msra.mxu0 %v1653
  %5594 = vmatprep.subr.bf16.mxu0 %v1662
  %5595 = vmatpush1.bf16.msra.mxu0 %v1661
  %5596 = vmatprep.subr.bf16.mxu0 %v1670
  %5597 = vmatpush1.bf16.msra.mxu0 %v1669
  %5598 = vmatprep.subr.bf16.mxu0 %v1678
  %5599 = vmatpush1.bf16.msra.mxu0 %v1677
  %5600 = vmatprep.subr.bf16.mxu0 %v1686
  %5601 = vmatpush1.bf16.msra.mxu0 %v1685
  %5602 = vmatprep.subr.bf16.mxu0 %v1694
  %5603 = vmatpush1.bf16.msra.mxu0 %v1693
  %5604 = vmatprep.subr.bf16.mxu0 %v1702
  %5605 = vmatpush1.bf16.msra.mxu0 %v1701
  %5606 = vmatprep.subr.bf16.mxu0 %v1710
  %5607 = vmatpush1.bf16.msra.mxu0 %v1709
  %5608 = vmatprep.subr.bf16.mxu0 %v1718
  %5609 = vmatpush1.bf16.msra.mxu0 %v1717
  %5610 = vmatprep.subr.bf16.mxu0 %v1726
  %5611 = vmatpush1.bf16.msra.mxu0 %v1725
  %5612 = vmatprep.subr.bf16.mxu0 %v1734
  %5613 = vmatpush1.bf16.msra.mxu0 %v1733
  %5614 = vmatprep.subr.bf16.mxu0 %v1742
  %5615 = vmatpush1.bf16.msra.mxu0 %v1741
  %5616 = vmatprep.subr.bf16.mxu0 %v1750
  %5617 = vmatpush1.bf16.msra.mxu0 %v1749
  %5618 = vmatprep.subr.bf16.mxu0 %v1758
  %5619 = vmatpush1.bf16.msra.mxu0 %v1757
  %5620 = vmatprep.subr.bf16.mxu0 %v1766
  %5621 = vmatpush1.bf16.msra.mxu0 %v1765
  %5622 = vmatprep.mubr.bf16.mxu0 %v5207
  %5623 = vmatmul.mubr.bf16.gmra.mrb[0].mxu0 %v5206
  %v5624 = vpop.f32.mrb[0].mxu0
  %v5625 = vadd.f32 0.0, %v5624
  %v5626 = vpop.f32.mrb[0].mxu0
  %v5627 = vadd.f32 0.0, %v5626
  %v5628 = vpop.f32.mrb[0].mxu0
  %v5629 = vpop.f32.mrb[0].mxu0
  %5630 = vdwg.mxu0
  %5631 = vmatprep.subr.bf16.mxu0 %v1648
  %5632 = vmatpush1.bf16.msra.mxu0 %v1647
  %5633 = vmatprep.subr.bf16.mxu0 %v1656
  %5634 = vmatpush1.bf16.msra.mxu0 %v1655
  %5635 = vmatprep.subr.bf16.mxu0 %v1664
  %5636 = vmatpush1.bf16.msra.mxu0 %v1663
  %5637 = vmatprep.subr.bf16.mxu0 %v1672
  %5638 = vmatpush1.bf16.msra.mxu0 %v1671
  %5639 = vmatprep.subr.bf16.mxu0 %v1680
  %5640 = vmatpush1.bf16.msra.mxu0 %v1679
  %5641 = vmatprep.subr.bf16.mxu0 %v1688
  %5642 = vmatpush1.bf16.msra.mxu0 %v1687
  %5643 = vmatprep.subr.bf16.mxu0 %v1696
  %5644 = vmatpush1.bf16.msra.mxu0 %v1695
  %5645 = vmatprep.subr.bf16.mxu0 %v1704
  %5646 = vmatpush1.bf16.msra.mxu0 %v1703
  %5647 = vmatprep.subr.bf16.mxu0 %v1712
  %5648 = vmatpush1.bf16.msra.mxu0 %v1711
  %5649 = vmatprep.subr.bf16.mxu0 %v1720
  %5650 = vmatpush1.bf16.msra.mxu0 %v1719
  %5651 = vmatprep.subr.bf16.mxu0 %v1728
  %5652 = vmatpush1.bf16.msra.mxu0 %v1727
  %5653 = vmatprep.subr.bf16.mxu0 %v1736
  %5654 = vmatpush1.bf16.msra.mxu0 %v1735
  %5655 = vmatprep.subr.bf16.mxu0 %v1744
  %5656 = vmatpush1.bf16.msra.mxu0 %v1743
  %5657 = vmatprep.subr.bf16.mxu0 %v1752
  %5658 = vmatpush1.bf16.msra.mxu0 %v1751
  %5659 = vmatprep.subr.bf16.mxu0 %v1760
  %5660 = vmatpush1.bf16.msra.mxu0 %v1759
  %5661 = vmatprep.subr.bf16.mxu0 %v1768
  %5662 = vmatpush1.bf16.msra.mxu0 %v1767
  %5663 = vmatprep.mubr.bf16.mxu0 %v5207
  %5664 = vmatmul.mubr.bf16.gmra.mrb[0].mxu0 %v5206
  %v5665 = vpop.f32.mrb[0].mxu0
  %v5666 = vadd.f32 0.0, %v5665
  %v5667 = vpop.f32.mrb[0].mxu0
  %v5668 = vadd.f32 0.0, %v5667
  %v5669 = vpop.f32.mrb[0].mxu0
  %v5670 = vpop.f32.mrb[0].mxu0
  %5671 = vdwg.mxu0
  %5672 = vmatprep.subr.bf16.mxu0 %v1650
  %5673 = vmatpush1.bf16.msra.mxu0 %v1649
  %5674 = vmatprep.subr.bf16.mxu0 %v1658
  %5675 = vmatpush1.bf16.msra.mxu0 %v1657
  %5676 = vmatprep.subr.bf16.mxu0 %v1666
  %5677 = vmatpush1.bf16.msra.mxu0 %v1665
  %5678 = vmatprep.subr.bf16.mxu0 %v1674
  %5679 = vmatpush1.bf16.msra.mxu0 %v1673
  %5680 = vmatprep.subr.bf16.mxu0 %v1682
  %5681 = vmatpush1.bf16.msra.mxu0 %v1681
  %5682 = vmatprep.subr.bf16.mxu0 %v1690
  %5683 = vmatpush1.bf16.msra.mxu0 %v1689
  %5684 = vmatprep.subr.bf16.mxu0 %v1698
  %5685 = vmatpush1.bf16.msra.mxu0 %v1697
  %5686 = vmatprep.subr.bf16.mxu0 %v1706
  %5687 = vmatpush1.bf16.msra.mxu0 %v1705
  %5688 = vmatprep.subr.bf16.mxu0 %v1714
  %5689 = vmatpush1.bf16.msra.mxu0 %v1713
  %5690 = vmatprep.subr.bf16.mxu0 %v1722
  %5691 = vmatpush1.bf16.msra.mxu0 %v1721
  %5692 = vmatprep.subr.bf16.mxu0 %v1730
  %5693 = vmatpush1.bf16.msra.mxu0 %v1729
  %5694 = vmatprep.subr.bf16.mxu0 %v1738
  %5695 = vmatpush1.bf16.msra.mxu0 %v1737
  %5696 = vmatprep.subr.bf16.mxu0 %v1746
  %5697 = vmatpush1.bf16.msra.mxu0 %v1745
  %5698 = vmatprep.subr.bf16.mxu0 %v1754
  %5699 = vmatpush1.bf16.msra.mxu0 %v1753
  %5700 = vmatprep.subr.bf16.mxu0 %v1762
  %5701 = vmatpush1.bf16.msra.mxu0 %v1761
  %5702 = vmatprep.subr.bf16.mxu0 %v1770
  %5703 = vmatpush1.bf16.msra.mxu0 %v1769
  %5704 = vmatprep.mubr.bf16.mxu0 %v5207
  %5705 = vmatmul.mubr.bf16.gmra.mrb[0].mxu0 %v5206
  %v5706 = vpop.f32.mrb[0].mxu0
  %v5707 = vadd.f32 0.0, %v5706
  %v5708 = vpop.f32.mrb[0].mxu0
  %v5709 = vadd.f32 0.0, %v5708
  %v5710 = vpop.f32.mrb[0].mxu0
  %v5711 = vpop.f32.mrb[0].mxu0
  %5712 = vdwg.mxu0
  %5713 = vmatprep.subr.bf16.mxu0 %v1652
  %5714 = vmatpush1.bf16.msra.mxu0 %v1651
  %5715 = vmatprep.subr.bf16.mxu0 %v1660
  %5716 = vmatpush1.bf16.msra.mxu0 %v1659
  %5717 = vmatprep.subr.bf16.mxu0 %v1668
  %5718 = vmatpush1.bf16.msra.mxu0 %v1667
  %5719 = vmatprep.subr.bf16.mxu0 %v1676
  %5720 = vmatpush1.bf16.msra.mxu0 %v1675
  %5721 = vmatprep.subr.bf16.mxu0 %v1684
  %5722 = vmatpush1.bf16.msra.mxu0 %v1683
  %5723 = vmatprep.subr.bf16.mxu0 %v1692
  %5724 = vmatpush1.bf16.msra.mxu0 %v1691
  %5725 = vmatprep.subr.bf16.mxu0 %v1700
  %5726 = vmatpush1.bf16.msra.mxu0 %v1699
  %5727 = vmatprep.subr.bf16.mxu0 %v1708
  %5728 = vmatpush1.bf16.msra.mxu0 %v1707
  %5729 = vmatprep.subr.bf16.mxu0 %v1716
  %5730 = vmatpush1.bf16.msra.mxu0 %v1715
  %5731 = vmatprep.subr.bf16.mxu0 %v1724
  %5732 = vmatpush1.bf16.msra.mxu0 %v1723
  %5733 = vmatprep.subr.bf16.mxu0 %v1732
  %5734 = vmatpush1.bf16.msra.mxu0 %v1731
  %5735 = vmatprep.subr.bf16.mxu0 %v1740
  %5736 = vmatpush1.bf16.msra.mxu0 %v1739
  %5737 = vmatprep.subr.bf16.mxu0 %v1748
  %5738 = vmatpush1.bf16.msra.mxu0 %v1747
  %5739 = vmatprep.subr.bf16.mxu0 %v1756
  %5740 = vmatpush1.bf16.msra.mxu0 %v1755
  %5741 = vmatprep.subr.bf16.mxu0 %v1764
  %5742 = vmatpush1.bf16.msra.mxu0 %v1763
  %5743 = vmatprep.subr.bf16.mxu0 %v1772
  %5744 = vmatpush1.bf16.msra.mxu0 %v1771
  %5745 = vmatprep.mubr.bf16.mxu0 %v5207
  %5746 = vmatmul.mubr.bf16.gmra.mrb[0].mxu0 %v5206
  %v5747 = vpop.f32.mrb[0].mxu0
  %v5748 = vadd.f32 0.0, %v5747
  %v5749 = vpop.f32.mrb[0].mxu0
  %v5750 = vadd.f32 0.0, %v5749
  %v5751 = vpop.f32.mrb[0].mxu0
  %v5752 = vpop.f32.mrb[0].mxu0
  %5753 = vdwg.mxu0
  %v5754 = vadd.f32 %v5582, %v5625
  %v5755 = vadd.f32 %v5583, %v5627
  %v5756 = vadd.f32 %v5584, %v5666
  %v5757 = vadd.f32 %v5585, %v5668
  %v5758 = vadd.f32 %v5586, %v5707
  %v5759 = vadd.f32 %v5587, %v5709
  %v5760 = vadd.f32 %v5588, %v5748
  %v5761 = vadd.f32 %v5589, %v5750
  %v5762 = vmul.f32 %v5754, 0.5
  %v5763 = vmul.f32 %v5755, 0.5
  %v5764 = vtanh.pop %v5762
  %v5765 = vtanh.pop %v5763
  %v5766 = vmul.f32 %v5764, 0.5
  %v5767 = vmul.f32 %v5765, 0.5
  %v5768 = vadd.f32 %v5766, 0.5
  %v5769 = vadd.f32 %v5767, 0.5
  %v5770 = vmul.f32 %v5756, 0.5
  %v5771 = vmul.f32 %v5757, 0.5
  %v5772 = vtanh.pop %v5770
  %v5773 = vtanh.pop %v5771
  %v5774 = vmul.f32 %v5772, 0.5
  %v5775 = vmul.f32 %v5773, 0.5
  %v5776 = vadd.f32 %v5774, 0.5
  %v5777 = vadd.f32 %v5775, 0.5
  %v5778 = vtanh.pop %v5758
  %v5779 = vtanh.pop %v5759
  %v5780 = vmul.f32 %v5760, 0.5
  %v5781 = vmul.f32 %v5761, 0.5
  %v5782 = vtanh.pop %v5780
  %v5783 = vtanh.pop %v5781
  %v5784 = vmul.f32 %v5782, 0.5
  %v5785 = vmul.f32 %v5783, 0.5
  %v5786 = vadd.f32 %v5784, 0.5
  %v5787 = vadd.f32 %v5785, 0.5
  %v5788 = vmul.f32 %v5776, %v5200
  %v5789 = vmul.f32 %v5777, %v5201
  %v5790 = vmul.f32 %v5768, %v5778
  %v5791 = vmul.f32 %v5769, %v5779
  %v5792 = vadd.f32 %v5788, %v5790
  %v5793 = vadd.f32 %v5789, %v5791
  %v5794 = vtanh.pop %v5792
  %v5795 = vtanh.pop %v5793
  %v5796 = vmul.f32 %v5786, %v5794
  %v5797 = vmul.f32 %v5787, %v5795
  %v5798 = vpack.c.bf16 %v5796, %v5796
  %v5799 = vpack.c.bf16 %v5797, %v5797
  %5800 = vmatprep.subr.bf16.mxu0 %v2537
  %5801 = vmatpush1.bf16.msra.mxu0 %v2536
  %5802 = vmatprep.subr.bf16.mxu0 %v2545
  %5803 = vmatpush1.bf16.msra.mxu0 %v2544
  %5804 = vmatprep.subr.bf16.mxu0 %v2553
  %5805 = vmatpush1.bf16.msra.mxu0 %v2552
  %5806 = vmatprep.subr.bf16.mxu0 %v2561
  %5807 = vmatpush1.bf16.msra.mxu0 %v2560
  %5808 = vmatprep.subr.bf16.mxu0 %v2569
  %5809 = vmatpush1.bf16.msra.mxu0 %v2568
  %5810 = vmatprep.subr.bf16.mxu0 %v2577
  %5811 = vmatpush1.bf16.msra.mxu0 %v2576
  %5812 = vmatprep.subr.bf16.mxu0 %v2585
  %5813 = vmatpush1.bf16.msra.mxu0 %v2584
  %5814 = vmatprep.subr.bf16.mxu0 %v2593
  %5815 = vmatpush1.bf16.msra.mxu0 %v2592
  %5816 = vmatprep.subr.bf16.mxu0 %v2601
  %5817 = vmatpush1.bf16.msra.mxu0 %v2600
  %5818 = vmatprep.subr.bf16.mxu0 %v2609
  %5819 = vmatpush1.bf16.msra.mxu0 %v2608
  %5820 = vmatprep.subr.bf16.mxu0 %v2617
  %5821 = vmatpush1.bf16.msra.mxu0 %v2616
  %5822 = vmatprep.subr.bf16.mxu0 %v2625
  %5823 = vmatpush1.bf16.msra.mxu0 %v2624
  %5824 = vmatprep.subr.bf16.mxu0 %v2633
  %5825 = vmatpush1.bf16.msra.mxu0 %v2632
  %5826 = vmatprep.subr.bf16.mxu0 %v2641
  %5827 = vmatpush1.bf16.msra.mxu0 %v2640
  %5828 = vmatprep.subr.bf16.mxu0 %v2649
  %5829 = vmatpush1.bf16.msra.mxu0 %v2648
  %5830 = vmatprep.subr.bf16.mxu0 %v2657
  %5831 = vmatpush1.bf16.msra.mxu0 %v2656
  %5832 = vmatprep.mubr.bf16.mxu0 %v5799
  %5833 = vmatmul.mubr.bf16.gmra.mrb[0].mxu0 %v5798
  %v5834 = vpop.f32.mrb[0].mxu0
  %v5835 = vadd.f32 %v2115, %v5834
  %v5836 = vpop.f32.mrb[0].mxu0
  %v5837 = vadd.f32 %v2119, %v5836
  %v5838 = vpop.f32.mrb[0].mxu0
  %v5839 = vpop.f32.mrb[0].mxu0
  %5840 = vdwg.mxu0
  %5841 = vmatprep.subr.bf16.mxu0 %v2539
  %5842 = vmatpush1.bf16.msra.mxu0 %v2538
  %5843 = vmatprep.subr.bf16.mxu0 %v2547
  %5844 = vmatpush1.bf16.msra.mxu0 %v2546
  %5845 = vmatprep.subr.bf16.mxu0 %v2555
  %5846 = vmatpush1.bf16.msra.mxu0 %v2554
  %5847 = vmatprep.subr.bf16.mxu0 %v2563
  %5848 = vmatpush1.bf16.msra.mxu0 %v2562
  %5849 = vmatprep.subr.bf16.mxu0 %v2571
  %5850 = vmatpush1.bf16.msra.mxu0 %v2570
  %5851 = vmatprep.subr.bf16.mxu0 %v2579
  %5852 = vmatpush1.bf16.msra.mxu0 %v2578
  %5853 = vmatprep.subr.bf16.mxu0 %v2587
  %5854 = vmatpush1.bf16.msra.mxu0 %v2586
  %5855 = vmatprep.subr.bf16.mxu0 %v2595
  %5856 = vmatpush1.bf16.msra.mxu0 %v2594
  %5857 = vmatprep.subr.bf16.mxu0 %v2603
  %5858 = vmatpush1.bf16.msra.mxu0 %v2602
  %5859 = vmatprep.subr.bf16.mxu0 %v2611
  %5860 = vmatpush1.bf16.msra.mxu0 %v2610
  %5861 = vmatprep.subr.bf16.mxu0 %v2619
  %5862 = vmatpush1.bf16.msra.mxu0 %v2618
  %5863 = vmatprep.subr.bf16.mxu0 %v2627
  %5864 = vmatpush1.bf16.msra.mxu0 %v2626
  %5865 = vmatprep.subr.bf16.mxu0 %v2635
  %5866 = vmatpush1.bf16.msra.mxu0 %v2634
  %5867 = vmatprep.subr.bf16.mxu0 %v2643
  %5868 = vmatpush1.bf16.msra.mxu0 %v2642
  %5869 = vmatprep.subr.bf16.mxu0 %v2651
  %5870 = vmatpush1.bf16.msra.mxu0 %v2650
  %5871 = vmatprep.subr.bf16.mxu0 %v2659
  %5872 = vmatpush1.bf16.msra.mxu0 %v2658
  %5873 = vmatprep.mubr.bf16.mxu0 %v5799
  %5874 = vmatmul.mubr.bf16.gmra.mrb[0].mxu0 %v5798
  %v5875 = vpop.f32.mrb[0].mxu0
  %v5876 = vadd.f32 %v2123, %v5875
  %v5877 = vpop.f32.mrb[0].mxu0
  %v5878 = vadd.f32 %v2127, %v5877
  %v5879 = vpop.f32.mrb[0].mxu0
  %v5880 = vpop.f32.mrb[0].mxu0
  %5881 = vdwg.mxu0
  %5882 = vmatprep.subr.bf16.mxu0 %v2541
  %5883 = vmatpush1.bf16.msra.mxu0 %v2540
  %5884 = vmatprep.subr.bf16.mxu0 %v2549
  %5885 = vmatpush1.bf16.msra.mxu0 %v2548
  %5886 = vmatprep.subr.bf16.mxu0 %v2557
  %5887 = vmatpush1.bf16.msra.mxu0 %v2556
  %5888 = vmatprep.subr.bf16.mxu0 %v2565
  %5889 = vmatpush1.bf16.msra.mxu0 %v2564
  %5890 = vmatprep.subr.bf16.mxu0 %v2573
  %5891 = vmatpush1.bf16.msra.mxu0 %v2572
  %5892 = vmatprep.subr.bf16.mxu0 %v2581
  %5893 = vmatpush1.bf16.msra.mxu0 %v2580
  %5894 = vmatprep.subr.bf16.mxu0 %v2589
  %5895 = vmatpush1.bf16.msra.mxu0 %v2588
  %5896 = vmatprep.subr.bf16.mxu0 %v2597
  %5897 = vmatpush1.bf16.msra.mxu0 %v2596
  %5898 = vmatprep.subr.bf16.mxu0 %v2605
  %5899 = vmatpush1.bf16.msra.mxu0 %v2604
  %5900 = vmatprep.subr.bf16.mxu0 %v2613
  %5901 = vmatpush1.bf16.msra.mxu0 %v2612
  %5902 = vmatprep.subr.bf16.mxu0 %v2621
  %5903 = vmatpush1.bf16.msra.mxu0 %v2620
  %5904 = vmatprep.subr.bf16.mxu0 %v2629
  %5905 = vmatpush1.bf16.msra.mxu0 %v2628
  %5906 = vmatprep.subr.bf16.mxu0 %v2637
  %5907 = vmatpush1.bf16.msra.mxu0 %v2636
  %5908 = vmatprep.subr.bf16.mxu0 %v2645
  %5909 = vmatpush1.bf16.msra.mxu0 %v2644
  %5910 = vmatprep.subr.bf16.mxu0 %v2653
  %5911 = vmatpush1.bf16.msra.mxu0 %v2652
  %5912 = vmatprep.subr.bf16.mxu0 %v2661
  %5913 = vmatpush1.bf16.msra.mxu0 %v2660
  %5914 = vmatprep.mubr.bf16.mxu0 %v5799
  %5915 = vmatmul.mubr.bf16.gmra.mrb[0].mxu0 %v5798
  %v5916 = vpop.f32.mrb[0].mxu0
  %v5917 = vadd.f32 %v2131, %v5916
  %v5918 = vpop.f32.mrb[0].mxu0
  %v5919 = vadd.f32 %v2135, %v5918
  %v5920 = vpop.f32.mrb[0].mxu0
  %v5921 = vpop.f32.mrb[0].mxu0
  %5922 = vdwg.mxu0
  %5923 = vmatprep.subr.bf16.mxu0 %v2543
  %5924 = vmatpush1.bf16.msra.mxu0 %v2542
  %5925 = vmatprep.subr.bf16.mxu0 %v2551
  %5926 = vmatpush1.bf16.msra.mxu0 %v2550
  %5927 = vmatprep.subr.bf16.mxu0 %v2559
  %5928 = vmatpush1.bf16.msra.mxu0 %v2558
  %5929 = vmatprep.subr.bf16.mxu0 %v2567
  %5930 = vmatpush1.bf16.msra.mxu0 %v2566
  %5931 = vmatprep.subr.bf16.mxu0 %v2575
  %5932 = vmatpush1.bf16.msra.mxu0 %v2574
  %5933 = vmatprep.subr.bf16.mxu0 %v2583
  %5934 = vmatpush1.bf16.msra.mxu0 %v2582
  %5935 = vmatprep.subr.bf16.mxu0 %v2591
  %5936 = vmatpush1.bf16.msra.mxu0 %v2590
  %5937 = vmatprep.subr.bf16.mxu0 %v2599
  %5938 = vmatpush1.bf16.msra.mxu0 %v2598
  %5939 = vmatprep.subr.bf16.mxu0 %v2607
  %5940 = vmatpush1.bf16.msra.mxu0 %v2606
  %5941 = vmatprep.subr.bf16.mxu0 %v2615
  %5942 = vmatpush1.bf16.msra.mxu0 %v2614
  %5943 = vmatprep.subr.bf16.mxu0 %v2623
  %5944 = vmatpush1.bf16.msra.mxu0 %v2622
  %5945 = vmatprep.subr.bf16.mxu0 %v2631
  %5946 = vmatpush1.bf16.msra.mxu0 %v2630
  %5947 = vmatprep.subr.bf16.mxu0 %v2639
  %5948 = vmatpush1.bf16.msra.mxu0 %v2638
  %5949 = vmatprep.subr.bf16.mxu0 %v2647
  %5950 = vmatpush1.bf16.msra.mxu0 %v2646
  %5951 = vmatprep.subr.bf16.mxu0 %v2655
  %5952 = vmatpush1.bf16.msra.mxu0 %v2654
  %5953 = vmatprep.subr.bf16.mxu0 %v2663
  %5954 = vmatpush1.bf16.msra.mxu0 %v2662
  %5955 = vmatprep.mubr.bf16.mxu0 %v5799
  %5956 = vmatmul.mubr.bf16.gmra.mrb[0].mxu0 %v5798
  %v5957 = vpop.f32.mrb[0].mxu0
  %v5958 = vadd.f32 %v2139, %v5957
  %v5959 = vpop.f32.mrb[0].mxu0
  %v5960 = vadd.f32 %v2143, %v5959
  %v5961 = vpop.f32.mrb[0].mxu0
  %v5962 = vpop.f32.mrb[0].mxu0
  %5963 = vdwg.mxu0
  %v5964 = vpack.c.bf16 %v5580, %v5580
  %v5965 = vpack.c.bf16 %v5581, %v5581
  %5966 = vmatprep.subr.bf16.mxu0 %v3343
  %5967 = vmatpush1.bf16.msra.mxu0 %v3342
  %5968 = vmatprep.subr.bf16.mxu0 %v3351
  %5969 = vmatpush1.bf16.msra.mxu0 %v3350
  %5970 = vmatprep.subr.bf16.mxu0 %v3359
  %5971 = vmatpush1.bf16.msra.mxu0 %v3358
  %5972 = vmatprep.subr.bf16.mxu0 %v3367
  %5973 = vmatpush1.bf16.msra.mxu0 %v3366
  %5974 = vmatprep.subr.bf16.mxu0 %v3375
  %5975 = vmatpush1.bf16.msra.mxu0 %v3374
  %5976 = vmatprep.subr.bf16.mxu0 %v3383
  %5977 = vmatpush1.bf16.msra.mxu0 %v3382
  %5978 = vmatprep.subr.bf16.mxu0 %v3391
  %5979 = vmatpush1.bf16.msra.mxu0 %v3390
  %5980 = vmatprep.subr.bf16.mxu0 %v3399
  %5981 = vmatpush1.bf16.msra.mxu0 %v3398
  %5982 = vmatprep.subr.bf16.mxu0 %v3407
  %5983 = vmatpush1.bf16.msra.mxu0 %v3406
  %5984 = vmatprep.subr.bf16.mxu0 %v3415
  %5985 = vmatpush1.bf16.msra.mxu0 %v3414
  %5986 = vmatprep.subr.bf16.mxu0 %v3423
  %5987 = vmatpush1.bf16.msra.mxu0 %v3422
  %5988 = vmatprep.subr.bf16.mxu0 %v3431
  %5989 = vmatpush1.bf16.msra.mxu0 %v3430
  %5990 = vmatprep.subr.bf16.mxu0 %v3439
  %5991 = vmatpush1.bf16.msra.mxu0 %v3438
  %5992 = vmatprep.subr.bf16.mxu0 %v3447
  %5993 = vmatpush1.bf16.msra.mxu0 %v3446
  %5994 = vmatprep.subr.bf16.mxu0 %v3455
  %5995 = vmatpush1.bf16.msra.mxu0 %v3454
  %5996 = vmatprep.subr.bf16.mxu0 %v3463
  %5997 = vmatpush1.bf16.msra.mxu0 %v3462
  %5998 = vmatprep.mubr.bf16.mxu0 %v5965
  %5999 = vmatmul.mubr.bf16.gmra.mrb[0].mxu0 %v5964
  %v6000 = vpop.f32.mrb[0].mxu0
  %v6001 = vadd.f32 0.0, %v6000
  %v6002 = vpop.f32.mrb[0].mxu0
  %v6003 = vadd.f32 0.0, %v6002
  %v6004 = vpop.f32.mrb[0].mxu0
  %v6005 = vpop.f32.mrb[0].mxu0
  %6006 = vdwg.mxu0
  %6007 = vmatprep.subr.bf16.mxu0 %v3345
  %6008 = vmatpush1.bf16.msra.mxu0 %v3344
  %6009 = vmatprep.subr.bf16.mxu0 %v3353
  %6010 = vmatpush1.bf16.msra.mxu0 %v3352
  %6011 = vmatprep.subr.bf16.mxu0 %v3361
  %6012 = vmatpush1.bf16.msra.mxu0 %v3360
  %6013 = vmatprep.subr.bf16.mxu0 %v3369
  %6014 = vmatpush1.bf16.msra.mxu0 %v3368
  %6015 = vmatprep.subr.bf16.mxu0 %v3377
  %6016 = vmatpush1.bf16.msra.mxu0 %v3376
  %6017 = vmatprep.subr.bf16.mxu0 %v3385
  %6018 = vmatpush1.bf16.msra.mxu0 %v3384
  %6019 = vmatprep.subr.bf16.mxu0 %v3393
  %6020 = vmatpush1.bf16.msra.mxu0 %v3392
  %6021 = vmatprep.subr.bf16.mxu0 %v3401
  %6022 = vmatpush1.bf16.msra.mxu0 %v3400
  %6023 = vmatprep.subr.bf16.mxu0 %v3409
  %6024 = vmatpush1.bf16.msra.mxu0 %v3408
  %6025 = vmatprep.subr.bf16.mxu0 %v3417
  %6026 = vmatpush1.bf16.msra.mxu0 %v3416
  %6027 = vmatprep.subr.bf16.mxu0 %v3425
  %6028 = vmatpush1.bf16.msra.mxu0 %v3424
  %6029 = vmatprep.subr.bf16.mxu0 %v3433
  %6030 = vmatpush1.bf16.msra.mxu0 %v3432
  %6031 = vmatprep.subr.bf16.mxu0 %v3441
  %6032 = vmatpush1.bf16.msra.mxu0 %v3440
  %6033 = vmatprep.subr.bf16.mxu0 %v3449
  %6034 = vmatpush1.bf16.msra.mxu0 %v3448
  %6035 = vmatprep.subr.bf16.mxu0 %v3457
  %6036 = vmatpush1.bf16.msra.mxu0 %v3456
  %6037 = vmatprep.subr.bf16.mxu0 %v3465
  %6038 = vmatpush1.bf16.msra.mxu0 %v3464
  %6039 = vmatprep.mubr.bf16.mxu0 %v5965
  %6040 = vmatmul.mubr.bf16.gmra.mrb[0].mxu0 %v5964
  %v6041 = vpop.f32.mrb[0].mxu0
  %v6042 = vadd.f32 0.0, %v6041
  %v6043 = vpop.f32.mrb[0].mxu0
  %v6044 = vadd.f32 0.0, %v6043
  %v6045 = vpop.f32.mrb[0].mxu0
  %v6046 = vpop.f32.mrb[0].mxu0
  %6047 = vdwg.mxu0
  %6048 = vmatprep.subr.bf16.mxu0 %v3347
  %6049 = vmatpush1.bf16.msra.mxu0 %v3346
  %6050 = vmatprep.subr.bf16.mxu0 %v3355
  %6051 = vmatpush1.bf16.msra.mxu0 %v3354
  %6052 = vmatprep.subr.bf16.mxu0 %v3363
  %6053 = vmatpush1.bf16.msra.mxu0 %v3362
  %6054 = vmatprep.subr.bf16.mxu0 %v3371
  %6055 = vmatpush1.bf16.msra.mxu0 %v3370
  %6056 = vmatprep.subr.bf16.mxu0 %v3379
  %6057 = vmatpush1.bf16.msra.mxu0 %v3378
  %6058 = vmatprep.subr.bf16.mxu0 %v3387
  %6059 = vmatpush1.bf16.msra.mxu0 %v3386
  %6060 = vmatprep.subr.bf16.mxu0 %v3395
  %6061 = vmatpush1.bf16.msra.mxu0 %v3394
  %6062 = vmatprep.subr.bf16.mxu0 %v3403
  %6063 = vmatpush1.bf16.msra.mxu0 %v3402
  %6064 = vmatprep.subr.bf16.mxu0 %v3411
  %6065 = vmatpush1.bf16.msra.mxu0 %v3410
  %6066 = vmatprep.subr.bf16.mxu0 %v3419
  %6067 = vmatpush1.bf16.msra.mxu0 %v3418
  %6068 = vmatprep.subr.bf16.mxu0 %v3427
  %6069 = vmatpush1.bf16.msra.mxu0 %v3426
  %6070 = vmatprep.subr.bf16.mxu0 %v3435
  %6071 = vmatpush1.bf16.msra.mxu0 %v3434
  %6072 = vmatprep.subr.bf16.mxu0 %v3443
  %6073 = vmatpush1.bf16.msra.mxu0 %v3442
  %6074 = vmatprep.subr.bf16.mxu0 %v3451
  %6075 = vmatpush1.bf16.msra.mxu0 %v3450
  %6076 = vmatprep.subr.bf16.mxu0 %v3459
  %6077 = vmatpush1.bf16.msra.mxu0 %v3458
  %6078 = vmatprep.subr.bf16.mxu0 %v3467
  %6079 = vmatpush1.bf16.msra.mxu0 %v3466
  %6080 = vmatprep.mubr.bf16.mxu0 %v5965
  %6081 = vmatmul.mubr.bf16.gmra.mrb[0].mxu0 %v5964
  %v6082 = vpop.f32.mrb[0].mxu0
  %v6083 = vadd.f32 0.0, %v6082
  %v6084 = vpop.f32.mrb[0].mxu0
  %v6085 = vadd.f32 0.0, %v6084
  %v6086 = vpop.f32.mrb[0].mxu0
  %v6087 = vpop.f32.mrb[0].mxu0
  %6088 = vdwg.mxu0
  %6089 = vmatprep.subr.bf16.mxu0 %v3349
  %6090 = vmatpush1.bf16.msra.mxu0 %v3348
  %6091 = vmatprep.subr.bf16.mxu0 %v3357
  %6092 = vmatpush1.bf16.msra.mxu0 %v3356
  %6093 = vmatprep.subr.bf16.mxu0 %v3365
  %6094 = vmatpush1.bf16.msra.mxu0 %v3364
  %6095 = vmatprep.subr.bf16.mxu0 %v3373
  %6096 = vmatpush1.bf16.msra.mxu0 %v3372
  %6097 = vmatprep.subr.bf16.mxu0 %v3381
  %6098 = vmatpush1.bf16.msra.mxu0 %v3380
  %6099 = vmatprep.subr.bf16.mxu0 %v3389
  %6100 = vmatpush1.bf16.msra.mxu0 %v3388
  %6101 = vmatprep.subr.bf16.mxu0 %v3397
  %6102 = vmatpush1.bf16.msra.mxu0 %v3396
  %6103 = vmatprep.subr.bf16.mxu0 %v3405
  %6104 = vmatpush1.bf16.msra.mxu0 %v3404
  %6105 = vmatprep.subr.bf16.mxu0 %v3413
  %6106 = vmatpush1.bf16.msra.mxu0 %v3412
  %6107 = vmatprep.subr.bf16.mxu0 %v3421
  %6108 = vmatpush1.bf16.msra.mxu0 %v3420
  %6109 = vmatprep.subr.bf16.mxu0 %v3429
  %6110 = vmatpush1.bf16.msra.mxu0 %v3428
  %6111 = vmatprep.subr.bf16.mxu0 %v3437
  %6112 = vmatpush1.bf16.msra.mxu0 %v3436
  %6113 = vmatprep.subr.bf16.mxu0 %v3445
  %6114 = vmatpush1.bf16.msra.mxu0 %v3444
  %6115 = vmatprep.subr.bf16.mxu0 %v3453
  %6116 = vmatpush1.bf16.msra.mxu0 %v3452
  %6117 = vmatprep.subr.bf16.mxu0 %v3461
  %6118 = vmatpush1.bf16.msra.mxu0 %v3460
  %6119 = vmatprep.subr.bf16.mxu0 %v3469
  %6120 = vmatpush1.bf16.msra.mxu0 %v3468
  %6121 = vmatprep.mubr.bf16.mxu0 %v5965
  %6122 = vmatmul.mubr.bf16.gmra.mrb[0].mxu0 %v5964
  %v6123 = vpop.f32.mrb[0].mxu0
  %v6124 = vadd.f32 0.0, %v6123
  %v6125 = vpop.f32.mrb[0].mxu0
  %v6126 = vadd.f32 0.0, %v6125
  %v6127 = vpop.f32.mrb[0].mxu0
  %v6128 = vpop.f32.mrb[0].mxu0
  %6129 = vdwg.mxu0
  %v6130 = vadd.f32 %v5835, %v6001
  %v6131 = vadd.f32 %v5837, %v6003
  %v6132 = vadd.f32 %v5876, %v6042
  %v6133 = vadd.f32 %v5878, %v6044
  %v6134 = vadd.f32 %v5917, %v6083
  %v6135 = vadd.f32 %v5919, %v6085
  %v6136 = vadd.f32 %v5958, %v6124
  %v6137 = vadd.f32 %v5960, %v6126
  %v6138 = vmul.f32 %v6130, 0.5
  %v6139 = vmul.f32 %v6131, 0.5
  %v6140 = vtanh.pop %v6138
  %v6141 = vtanh.pop %v6139
  %v6142 = vmul.f32 %v6140, 0.5
  %v6143 = vmul.f32 %v6141, 0.5
  %v6144 = vadd.f32 %v6142, 0.5
  %v6145 = vadd.f32 %v6143, 0.5
  %v6146 = vmul.f32 %v6132, 0.5
  %v6147 = vmul.f32 %v6133, 0.5
  %v6148 = vtanh.pop %v6146
  %v6149 = vtanh.pop %v6147
  %v6150 = vmul.f32 %v6148, 0.5
  %v6151 = vmul.f32 %v6149, 0.5
  %v6152 = vadd.f32 %v6150, 0.5
  %v6153 = vadd.f32 %v6151, 0.5
  %v6154 = vtanh.pop %v6134
  %v6155 = vtanh.pop %v6135
  %v6156 = vmul.f32 %v6136, 0.5
  %v6157 = vmul.f32 %v6137, 0.5
  %v6158 = vtanh.pop %v6156
  %v6159 = vtanh.pop %v6157
  %v6160 = vmul.f32 %v6158, 0.5
  %v6161 = vmul.f32 %v6159, 0.5
  %v6162 = vadd.f32 %v6160, 0.5
  %v6163 = vadd.f32 %v6161, 0.5
  %v6164 = vmul.f32 %v6152, %v5576
  %v6165 = vmul.f32 %v6153, %v5577
  %v6166 = vmul.f32 %v6144, %v6154
  %v6167 = vmul.f32 %v6145, %v6155
  %v6168 = vadd.f32 %v6164, %v6166
  %v6169 = vadd.f32 %v6165, %v6167
  %v6170 = vtanh.pop %v6168
  %v6171 = vtanh.pop %v6169
  %v6172 = vmul.f32 %v6162, %v6170
  %v6173 = vmul.f32 %v6163, %v6171
  %v6174 = vld [vmem:[#allocation2 + $0x140] sm:$0xff]
  %v6175 = vld [vmem:[#allocation2 + $0x148] sm:$0xff]
  %v6176 = vld [vmem:[#allocation2 + $0x150] sm:$0xff]
  %v6177 = vld [vmem:[#allocation2 + $0x158] sm:$0xff]
  %v6178 = vld [vmem:[#allocation2 + $0x160] sm:$0xff]
  %v6179 = vld [vmem:[#allocation2 + $0x168] sm:$0xff]
  %v6180 = vld [vmem:[#allocation2 + $0x170] sm:$0xff]
  %v6181 = vld [vmem:[#allocation2 + $0x178] sm:$0xff]
  %6182 = vmatprep.subr.bf16.mxu0 %v1646
  %6183 = vmatpush1.bf16.msra.mxu0 %v1645
  %6184 = vmatprep.subr.bf16.mxu0 %v1654
  %6185 = vmatpush1.bf16.msra.mxu0 %v1653
  %6186 = vmatprep.subr.bf16.mxu0 %v1662
  %6187 = vmatpush1.bf16.msra.mxu0 %v1661
  %6188 = vmatprep.subr.bf16.mxu0 %v1670
  %6189 = vmatpush1.bf16.msra.mxu0 %v1669
  %6190 = vmatprep.subr.bf16.mxu0 %v1678
  %6191 = vmatpush1.bf16.msra.mxu0 %v1677
  %6192 = vmatprep.subr.bf16.mxu0 %v1686
  %6193 = vmatpush1.bf16.msra.mxu0 %v1685
  %6194 = vmatprep.subr.bf16.mxu0 %v1694
  %6195 = vmatpush1.bf16.msra.mxu0 %v1693
  %6196 = vmatprep.subr.bf16.mxu0 %v1702
  %6197 = vmatpush1.bf16.msra.mxu0 %v1701
  %6198 = vmatprep.subr.bf16.mxu0 %v1710
  %6199 = vmatpush1.bf16.msra.mxu0 %v1709
  %6200 = vmatprep.subr.bf16.mxu0 %v1718
  %6201 = vmatpush1.bf16.msra.mxu0 %v1717
  %6202 = vmatprep.subr.bf16.mxu0 %v1726
  %6203 = vmatpush1.bf16.msra.mxu0 %v1725
  %6204 = vmatprep.subr.bf16.mxu0 %v1734
  %6205 = vmatpush1.bf16.msra.mxu0 %v1733
  %6206 = vmatprep.subr.bf16.mxu0 %v1742
  %6207 = vmatpush1.bf16.msra.mxu0 %v1741
  %6208 = vmatprep.subr.bf16.mxu0 %v1750
  %6209 = vmatpush1.bf16.msra.mxu0 %v1749
  %6210 = vmatprep.subr.bf16.mxu0 %v1758
  %6211 = vmatpush1.bf16.msra.mxu0 %v1757
  %6212 = vmatprep.subr.bf16.mxu0 %v1766
  %6213 = vmatpush1.bf16.msra.mxu0 %v1765
  %6214 = vmatprep.mubr.bf16.mxu0 %v5799
  %6215 = vmatmul.mubr.bf16.gmra.mrb[0].mxu0 %v5798
  %v6216 = vpop.f32.mrb[0].mxu0
  %v6217 = vadd.f32 0.0, %v6216
  %v6218 = vpop.f32.mrb[0].mxu0
  %v6219 = vadd.f32 0.0, %v6218
  %v6220 = vpop.f32.mrb[0].mxu0
  %v6221 = vpop.f32.mrb[0].mxu0
  %6222 = vdwg.mxu0
  %6223 = vmatprep.subr.bf16.mxu0 %v1648
  %6224 = vmatpush1.bf16.msra.mxu0 %v1647
  %6225 = vmatprep.subr.bf16.mxu0 %v1656
  %6226 = vmatpush1.bf16.msra.mxu0 %v1655
  %6227 = vmatprep.subr.bf16.mxu0 %v1664
  %6228 = vmatpush1.bf16.msra.mxu0 %v1663
  %6229 = vmatprep.subr.bf16.mxu0 %v1672
  %6230 = vmatpush1.bf16.msra.mxu0 %v1671
  %6231 = vmatprep.subr.bf16.mxu0 %v1680
  %6232 = vmatpush1.bf16.msra.mxu0 %v1679
  %6233 = vmatprep.subr.bf16.mxu0 %v1688
  %6234 = vmatpush1.bf16.msra.mxu0 %v1687
  %6235 = vmatprep.subr.bf16.mxu0 %v1696
  %6236 = vmatpush1.bf16.msra.mxu0 %v1695
  %6237 = vmatprep.subr.bf16.mxu0 %v1704
  %6238 = vmatpush1.bf16.msra.mxu0 %v1703
  %6239 = vmatprep.subr.bf16.mxu0 %v1712
  %6240 = vmatpush1.bf16.msra.mxu0 %v1711
  %6241 = vmatprep.subr.bf16.mxu0 %v1720
  %6242 = vmatpush1.bf16.msra.mxu0 %v1719
  %6243 = vmatprep.subr.bf16.mxu0 %v1728
  %6244 = vmatpush1.bf16.msra.mxu0 %v1727
  %6245 = vmatprep.subr.bf16.mxu0 %v1736
  %6246 = vmatpush1.bf16.msra.mxu0 %v1735
  %6247 = vmatprep.subr.bf16.mxu0 %v1744
  %6248 = vmatpush1.bf16.msra.mxu0 %v1743
  %6249 = vmatprep.subr.bf16.mxu0 %v1752
  %6250 = vmatpush1.bf16.msra.mxu0 %v1751
  %6251 = vmatprep.subr.bf16.mxu0 %v1760
  %6252 = vmatpush1.bf16.msra.mxu0 %v1759
  %6253 = vmatprep.subr.bf16.mxu0 %v1768
  %6254 = vmatpush1.bf16.msra.mxu0 %v1767
  %6255 = vmatprep.mubr.bf16.mxu0 %v5799
  %6256 = vmatmul.mubr.bf16.gmra.mrb[0].mxu0 %v5798
  %v6257 = vpop.f32.mrb[0].mxu0
  %v6258 = vadd.f32 0.0, %v6257
  %v6259 = vpop.f32.mrb[0].mxu0
  %v6260 = vadd.f32 0.0, %v6259
  %v6261 = vpop.f32.mrb[0].mxu0
  %v6262 = vpop.f32.mrb[0].mxu0
  %6263 = vdwg.mxu0
  %6264 = vmatprep.subr.bf16.mxu0 %v1650
  %6265 = vmatpush1.bf16.msra.mxu0 %v1649
  %6266 = vmatprep.subr.bf16.mxu0 %v1658
  %6267 = vmatpush1.bf16.msra.mxu0 %v1657
  %6268 = vmatprep.subr.bf16.mxu0 %v1666
  %6269 = vmatpush1.bf16.msra.mxu0 %v1665
  %6270 = vmatprep.subr.bf16.mxu0 %v1674
  %6271 = vmatpush1.bf16.msra.mxu0 %v1673
  %6272 = vmatprep.subr.bf16.mxu0 %v1682
  %6273 = vmatpush1.bf16.msra.mxu0 %v1681
  %6274 = vmatprep.subr.bf16.mxu0 %v1690
  %6275 = vmatpush1.bf16.msra.mxu0 %v1689
  %6276 = vmatprep.subr.bf16.mxu0 %v1698
  %6277 = vmatpush1.bf16.msra.mxu0 %v1697
  %6278 = vmatprep.subr.bf16.mxu0 %v1706
  %6279 = vmatpush1.bf16.msra.mxu0 %v1705
  %6280 = vmatprep.subr.bf16.mxu0 %v1714
  %6281 = vmatpush1.bf16.msra.mxu0 %v1713
  %6282 = vmatprep.subr.bf16.mxu0 %v1722
  %6283 = vmatpush1.bf16.msra.mxu0 %v1721
  %6284 = vmatprep.subr.bf16.mxu0 %v1730
  %6285 = vmatpush1.bf16.msra.mxu0 %v1729
  %6286 = vmatprep.subr.bf16.mxu0 %v1738
  %6287 = vmatpush1.bf16.msra.mxu0 %v1737
  %6288 = vmatprep.subr.bf16.mxu0 %v1746
  %6289 = vmatpush1.bf16.msra.mxu0 %v1745
  %6290 = vmatprep.subr.bf16.mxu0 %v1754
  %6291 = vmatpush1.bf16.msra.mxu0 %v1753
  %6292 = vmatprep.subr.bf16.mxu0 %v1762
  %6293 = vmatpush1.bf16.msra.mxu0 %v1761
  %6294 = vmatprep.subr.bf16.mxu0 %v1770
  %6295 = vmatpush1.bf16.msra.mxu0 %v1769
  %6296 = vmatprep.mubr.bf16.mxu0 %v5799
  %6297 = vmatmul.mubr.bf16.gmra.mrb[0].mxu0 %v5798
  %v6298 = vpop.f32.mrb[0].mxu0
  %v6299 = vadd.f32 0.0, %v6298
  %v6300 = vpop.f32.mrb[0].mxu0
  %v6301 = vadd.f32 0.0, %v6300
  %v6302 = vpop.f32.mrb[0].mxu0
  %v6303 = vpop.f32.mrb[0].mxu0
  %6304 = vdwg.mxu0
  %6305 = vmatprep.subr.bf16.mxu0 %v1652
  %6306 = vmatpush1.bf16.msra.mxu0 %v1651
  %6307 = vmatprep.subr.bf16.mxu0 %v1660
  %6308 = vmatpush1.bf16.msra.mxu0 %v1659
  %6309 = vmatprep.subr.bf16.mxu0 %v1668
  %6310 = vmatpush1.bf16.msra.mxu0 %v1667
  %6311 = vmatprep.subr.bf16.mxu0 %v1676
  %6312 = vmatpush1.bf16.msra.mxu0 %v1675
  %6313 = vmatprep.subr.bf16.mxu0 %v1684
  %6314 = vmatpush1.bf16.msra.mxu0 %v1683
  %6315 = vmatprep.subr.bf16.mxu0 %v1692
  %6316 = vmatpush1.bf16.msra.mxu0 %v1691
  %6317 = vmatprep.subr.bf16.mxu0 %v1700
  %6318 = vmatpush1.bf16.msra.mxu0 %v1699
  %6319 = vmatprep.subr.bf16.mxu0 %v1708
  %6320 = vmatpush1.bf16.msra.mxu0 %v1707
  %6321 = vmatprep.subr.bf16.mxu0 %v1716
  %6322 = vmatpush1.bf16.msra.mxu0 %v1715
  %6323 = vmatprep.subr.bf16.mxu0 %v1724
  %6324 = vmatpush1.bf16.msra.mxu0 %v1723
  %6325 = vmatprep.subr.bf16.mxu0 %v1732
  %6326 = vmatpush1.bf16.msra.mxu0 %v1731
  %6327 = vmatprep.subr.bf16.mxu0 %v1740
  %6328 = vmatpush1.bf16.msra.mxu0 %v1739
  %6329 = vmatprep.subr.bf16.mxu0 %v1748
  %6330 = vmatpush1.bf16.msra.mxu0 %v1747
  %6331 = vmatprep.subr.bf16.mxu0 %v1756
  %6332 = vmatpush1.bf16.msra.mxu0 %v1755
  %6333 = vmatprep.subr.bf16.mxu0 %v1764
  %6334 = vmatpush1.bf16.msra.mxu0 %v1763
  %6335 = vmatprep.subr.bf16.mxu0 %v1772
  %6336 = vmatpush1.bf16.msra.mxu0 %v1771
  %6337 = vmatprep.mubr.bf16.mxu0 %v5799
  %6338 = vmatmul.mubr.bf16.gmra.mrb[0].mxu0 %v5798
  %v6339 = vpop.f32.mrb[0].mxu0
  %v6340 = vadd.f32 0.0, %v6339
  %v6341 = vpop.f32.mrb[0].mxu0
  %v6342 = vadd.f32 0.0, %v6341
  %v6343 = vpop.f32.mrb[0].mxu0
  %v6344 = vpop.f32.mrb[0].mxu0
  %6345 = vdwg.mxu0
  %v6346 = vadd.f32 %v6174, %v6217
  %v6347 = vadd.f32 %v6175, %v6219
  %v6348 = vadd.f32 %v6176, %v6258
  %v6349 = vadd.f32 %v6177, %v6260
  %v6350 = vadd.f32 %v6178, %v6299
  %v6351 = vadd.f32 %v6179, %v6301
  %v6352 = vadd.f32 %v6180, %v6340
  %v6353 = vadd.f32 %v6181, %v6342
  %v6354 = vmul.f32 %v6346, 0.5
  %v6355 = vmul.f32 %v6347, 0.5
  %v6356 = vtanh.pop %v6354
  %v6357 = vtanh.pop %v6355
  %v6358 = vmul.f32 %v6356, 0.5
  %v6359 = vmul.f32 %v6357, 0.5
  %v6360 = vadd.f32 %v6358, 0.5
  %v6361 = vadd.f32 %v6359, 0.5
  %v6362 = vmul.f32 %v6348, 0.5
  %v6363 = vmul.f32 %v6349, 0.5
  %v6364 = vtanh.pop %v6362
  %v6365 = vtanh.pop %v6363
  %v6366 = vmul.f32 %v6364, 0.5
  %v6367 = vmul.f32 %v6365, 0.5
  %v6368 = vadd.f32 %v6366, 0.5
  %v6369 = vadd.f32 %v6367, 0.5
  %v6370 = vtanh.pop %v6350
  %v6371 = vtanh.pop %v6351
  %v6372 = vmul.f32 %v6352, 0.5
  %v6373 = vmul.f32 %v6353, 0.5
  %v6374 = vtanh.pop %v6372
  %v6375 = vtanh.pop %v6373
  %v6376 = vmul.f32 %v6374, 0.5
  %v6377 = vmul.f32 %v6375, 0.5
  %v6378 = vadd.f32 %v6376, 0.5
  %v6379 = vadd.f32 %v6377, 0.5
  %v6380 = vmul.f32 %v6368, %v5792
  %v6381 = vmul.f32 %v6369, %v5793
  %v6382 = vmul.f32 %v6360, %v6370
  %v6383 = vmul.f32 %v6361, %v6371
  %v6384 = vadd.f32 %v6380, %v6382
  %v6385 = vadd.f32 %v6381, %v6383
  %v6386 = vtanh.pop %v6384
  %v6387 = vtanh.pop %v6385
  %v6388 = vmul.f32 %v6378, %v6386
  %v6389 = vmul.f32 %v6379, %v6387
  %v6390 = vpack.c.bf16 %v6388, %v6388
  %v6391 = vpack.c.bf16 %v6389, %v6389
  %6392 = vmatprep.subr.bf16.mxu0 %v2537
  %6393 = vmatpush1.bf16.msra.mxu0 %v2536
  %6394 = vmatprep.subr.bf16.mxu0 %v2545
  %6395 = vmatpush1.bf16.msra.mxu0 %v2544
  %6396 = vmatprep.subr.bf16.mxu0 %v2553
  %6397 = vmatpush1.bf16.msra.mxu0 %v2552
  %6398 = vmatprep.subr.bf16.mxu0 %v2561
  %6399 = vmatpush1.bf16.msra.mxu0 %v2560
  %6400 = vmatprep.subr.bf16.mxu0 %v2569
  %6401 = vmatpush1.bf16.msra.mxu0 %v2568
  %6402 = vmatprep.subr.bf16.mxu0 %v2577
  %6403 = vmatpush1.bf16.msra.mxu0 %v2576
  %6404 = vmatprep.subr.bf16.mxu0 %v2585
  %6405 = vmatpush1.bf16.msra.mxu0 %v2584
  %6406 = vmatprep.subr.bf16.mxu0 %v2593
  %6407 = vmatpush1.bf16.msra.mxu0 %v2592
  %6408 = vmatprep.subr.bf16.mxu0 %v2601
  %6409 = vmatpush1.bf16.msra.mxu0 %v2600
  %6410 = vmatprep.subr.bf16.mxu0 %v2609
  %6411 = vmatpush1.bf16.msra.mxu0 %v2608
  %6412 = vmatprep.subr.bf16.mxu0 %v2617
  %6413 = vmatpush1.bf16.msra.mxu0 %v2616
  %6414 = vmatprep.subr.bf16.mxu0 %v2625
  %6415 = vmatpush1.bf16.msra.mxu0 %v2624
  %6416 = vmatprep.subr.bf16.mxu0 %v2633
  %6417 = vmatpush1.bf16.msra.mxu0 %v2632
  %6418 = vmatprep.subr.bf16.mxu0 %v2641
  %6419 = vmatpush1.bf16.msra.mxu0 %v2640
  %6420 = vmatprep.subr.bf16.mxu0 %v2649
  %6421 = vmatpush1.bf16.msra.mxu0 %v2648
  %6422 = vmatprep.subr.bf16.mxu0 %v2657
  %6423 = vmatpush1.bf16.msra.mxu0 %v2656
  %6424 = vmatprep.mubr.bf16.mxu0 %v6391
  %6425 = vmatmul.mubr.bf16.gmra.mrb[0].mxu0 %v6390
  %v6426 = vpop.f32.mrb[0].mxu0
  %v6427 = vadd.f32 %v2115, %v6426
  %v6428 = vpop.f32.mrb[0].mxu0
  %v6429 = vadd.f32 %v2119, %v6428
  %v6430 = vpop.f32.mrb[0].mxu0
  %v6431 = vpop.f32.mrb[0].mxu0
  %6432 = vdwg.mxu0
  %6433 = vmatprep.subr.bf16.mxu0 %v2539
  %6434 = vmatpush1.bf16.msra.mxu0 %v2538
  %6435 = vmatprep.subr.bf16.mxu0 %v2547
  %6436 = vmatpush1.bf16.msra.mxu0 %v2546
  %6437 = vmatprep.subr.bf16.mxu0 %v2555
  %6438 = vmatpush1.bf16.msra.mxu0 %v2554
  %6439 = vmatprep.subr.bf16.mxu0 %v2563
  %6440 = vmatpush1.bf16.msra.mxu0 %v2562
  %6441 = vmatprep.subr.bf16.mxu0 %v2571
  %6442 = vmatpush1.bf16.msra.mxu0 %v2570
  %6443 = vmatprep.subr.bf16.mxu0 %v2579
  %6444 = vmatpush1.bf16.msra.mxu0 %v2578
  %6445 = vmatprep.subr.bf16.mxu0 %v2587
  %6446 = vmatpush1.bf16.msra.mxu0 %v2586
  %6447 = vmatprep.subr.bf16.mxu0 %v2595
  %6448 = vmatpush1.bf16.msra.mxu0 %v2594
  %6449 = vmatprep.subr.bf16.mxu0 %v2603
  %6450 = vmatpush1.bf16.msra.mxu0 %v2602
  %6451 = vmatprep.subr.bf16.mxu0 %v2611
  %6452 = vmatpush1.bf16.msra.mxu0 %v2610
  %6453 = vmatprep.subr.bf16.mxu0 %v2619
  %6454 = vmatpush1.bf16.msra.mxu0 %v2618
  %6455 = vmatprep.subr.bf16.mxu0 %v2627
  %6456 = vmatpush1.bf16.msra.mxu0 %v2626
  %6457 = vmatprep.subr.bf16.mxu0 %v2635
  %6458 = vmatpush1.bf16.msra.mxu0 %v2634
  %6459 = vmatprep.subr.bf16.mxu0 %v2643
  %6460 = vmatpush1.bf16.msra.mxu0 %v2642
  %6461 = vmatprep.subr.bf16.mxu0 %v2651
  %6462 = vmatpush1.bf16.msra.mxu0 %v2650
  %6463 = vmatprep.subr.bf16.mxu0 %v2659
  %6464 = vmatpush1.bf16.msra.mxu0 %v2658
  %6465 = vmatprep.mubr.bf16.mxu0 %v6391
  %6466 = vmatmul.mubr.bf16.gmra.mrb[0].mxu0 %v6390
  %v6467 = vpop.f32.mrb[0].mxu0
  %v6468 = vadd.f32 %v2123, %v6467
  %v6469 = vpop.f32.mrb[0].mxu0
  %v6470 = vadd.f32 %v2127, %v6469
  %v6471 = vpop.f32.mrb[0].mxu0
  %v6472 = vpop.f32.mrb[0].mxu0
  %6473 = vdwg.mxu0
  %6474 = vmatprep.subr.bf16.mxu0 %v2541
  %6475 = vmatpush1.bf16.msra.mxu0 %v2540
  %6476 = vmatprep.subr.bf16.mxu0 %v2549
  %6477 = vmatpush1.bf16.msra.mxu0 %v2548
  %6478 = vmatprep.subr.bf16.mxu0 %v2557
  %6479 = vmatpush1.bf16.msra.mxu0 %v2556
  %6480 = vmatprep.subr.bf16.mxu0 %v2565
  %6481 = vmatpush1.bf16.msra.mxu0 %v2564
  %6482 = vmatprep.subr.bf16.mxu0 %v2573
  %6483 = vmatpush1.bf16.msra.mxu0 %v2572
  %6484 = vmatprep.subr.bf16.mxu0 %v2581
  %6485 = vmatpush1.bf16.msra.mxu0 %v2580
  %6486 = vmatprep.subr.bf16.mxu0 %v2589
  %6487 = vmatpush1.bf16.msra.mxu0 %v2588
  %6488 = vmatprep.subr.bf16.mxu0 %v2597
  %6489 = vmatpush1.bf16.msra.mxu0 %v2596
  %6490 = vmatprep.subr.bf16.mxu0 %v2605
  %6491 = vmatpush1.bf16.msra.mxu0 %v2604
  %6492 = vmatprep.subr.bf16.mxu0 %v2613
  %6493 = vmatpush1.bf16.msra.mxu0 %v2612
  %6494 = vmatprep.subr.bf16.mxu0 %v2621
  %6495 = vmatpush1.bf16.msra.mxu0 %v2620
  %6496 = vmatprep.subr.bf16.mxu0 %v2629
  %6497 = vmatpush1.bf16.msra.mxu0 %v2628
  %6498 = vmatprep.subr.bf16.mxu0 %v2637
  %6499 = vmatpush1.bf16.msra.mxu0 %v2636
  %6500 = vmatprep.subr.bf16.mxu0 %v2645
  %6501 = vmatpush1.bf16.msra.mxu0 %v2644
  %6502 = vmatprep.subr.bf16.mxu0 %v2653
  %6503 = vmatpush1.bf16.msra.mxu0 %v2652
  %6504 = vmatprep.subr.bf16.mxu0 %v2661
  %6505 = vmatpush1.bf16.msra.mxu0 %v2660
  %6506 = vmatprep.mubr.bf16.mxu0 %v6391
  %6507 = vmatmul.mubr.bf16.gmra.mrb[0].mxu0 %v6390
  %v6508 = vpop.f32.mrb[0].mxu0
  %v6509 = vadd.f32 %v2131, %v6508
  %v6510 = vpop.f32.mrb[0].mxu0
  %v6511 = vadd.f32 %v2135, %v6510
  %v6512 = vpop.f32.mrb[0].mxu0
  %v6513 = vpop.f32.mrb[0].mxu0
  %6514 = vdwg.mxu0
  %6515 = vmatprep.subr.bf16.mxu0 %v2543
  %6516 = vmatpush1.bf16.msra.mxu0 %v2542
  %6517 = vmatprep.subr.bf16.mxu0 %v2551
  %6518 = vmatpush1.bf16.msra.mxu0 %v2550
  %6519 = vmatprep.subr.bf16.mxu0 %v2559
  %6520 = vmatpush1.bf16.msra.mxu0 %v2558
  %6521 = vmatprep.subr.bf16.mxu0 %v2567
  %6522 = vmatpush1.bf16.msra.mxu0 %v2566
  %6523 = vmatprep.subr.bf16.mxu0 %v2575
  %6524 = vmatpush1.bf16.msra.mxu0 %v2574
  %6525 = vmatprep.subr.bf16.mxu0 %v2583
  %6526 = vmatpush1.bf16.msra.mxu0 %v2582
  %6527 = vmatprep.subr.bf16.mxu0 %v2591
  %6528 = vmatpush1.bf16.msra.mxu0 %v2590
  %6529 = vmatprep.subr.bf16.mxu0 %v2599
  %6530 = vmatpush1.bf16.msra.mxu0 %v2598
  %6531 = vmatprep.subr.bf16.mxu0 %v2607
  %6532 = vmatpush1.bf16.msra.mxu0 %v2606
  %6533 = vmatprep.subr.bf16.mxu0 %v2615
  %6534 = vmatpush1.bf16.msra.mxu0 %v2614
  %6535 = vmatprep.subr.bf16.mxu0 %v2623
  %6536 = vmatpush1.bf16.msra.mxu0 %v2622
  %6537 = vmatprep.subr.bf16.mxu0 %v2631
  %6538 = vmatpush1.bf16.msra.mxu0 %v2630
  %6539 = vmatprep.subr.bf16.mxu0 %v2639
  %6540 = vmatpush1.bf16.msra.mxu0 %v2638
  %6541 = vmatprep.subr.bf16.mxu0 %v2647
  %6542 = vmatpush1.bf16.msra.mxu0 %v2646
  %6543 = vmatprep.subr.bf16.mxu0 %v2655
  %6544 = vmatpush1.bf16.msra.mxu0 %v2654
  %6545 = vmatprep.subr.bf16.mxu0 %v2663
  %6546 = vmatpush1.bf16.msra.mxu0 %v2662
  %6547 = vmatprep.mubr.bf16.mxu0 %v6391
  %6548 = vmatmul.mubr.bf16.gmra.mrb[0].mxu0 %v6390
  %v6549 = vpop.f32.mrb[0].mxu0
  %v6550 = vadd.f32 %v2139, %v6549
  %v6551 = vpop.f32.mrb[0].mxu0
  %v6552 = vadd.f32 %v2143, %v6551
  %v6553 = vpop.f32.mrb[0].mxu0
  %v6554 = vpop.f32.mrb[0].mxu0
  %6555 = vdwg.mxu0
  %v6556 = vpack.c.bf16 %v6172, %v6172
  %v6557 = vpack.c.bf16 %v6173, %v6173
  %6558 = vmatprep.subr.bf16.mxu0 %v3343
  %6559 = vmatpush1.bf16.msra.mxu0 %v3342
  %6560 = vmatprep.subr.bf16.mxu0 %v3351
  %6561 = vmatpush1.bf16.msra.mxu0 %v3350
  %6562 = vmatprep.subr.bf16.mxu0 %v3359
  %6563 = vmatpush1.bf16.msra.mxu0 %v3358
  %6564 = vmatprep.subr.bf16.mxu0 %v3367
  %6565 = vmatpush1.bf16.msra.mxu0 %v3366
  %6566 = vmatprep.subr.bf16.mxu0 %v3375
  %6567 = vmatpush1.bf16.msra.mxu0 %v3374
  %6568 = vmatprep.subr.bf16.mxu0 %v3383
  %6569 = vmatpush1.bf16.msra.mxu0 %v3382
  %6570 = vmatprep.subr.bf16.mxu0 %v3391
  %6571 = vmatpush1.bf16.msra.mxu0 %v3390
  %6572 = vmatprep.subr.bf16.mxu0 %v3399
  %6573 = vmatpush1.bf16.msra.mxu0 %v3398
  %6574 = vmatprep.subr.bf16.mxu0 %v3407
  %6575 = vmatpush1.bf16.msra.mxu0 %v3406
  %6576 = vmatprep.subr.bf16.mxu0 %v3415
  %6577 = vmatpush1.bf16.msra.mxu0 %v3414
  %6578 = vmatprep.subr.bf16.mxu0 %v3423
  %6579 = vmatpush1.bf16.msra.mxu0 %v3422
  %6580 = vmatprep.subr.bf16.mxu0 %v3431
  %6581 = vmatpush1.bf16.msra.mxu0 %v3430
  %6582 = vmatprep.subr.bf16.mxu0 %v3439
  %6583 = vmatpush1.bf16.msra.mxu0 %v3438
  %6584 = vmatprep.subr.bf16.mxu0 %v3447
  %6585 = vmatpush1.bf16.msra.mxu0 %v3446
  %6586 = vmatprep.subr.bf16.mxu0 %v3455
  %6587 = vmatpush1.bf16.msra.mxu0 %v3454
  %6588 = vmatprep.subr.bf16.mxu0 %v3463
  %6589 = vmatpush1.bf16.msra.mxu0 %v3462
  %6590 = vmatprep.mubr.bf16.mxu0 %v6557
  %6591 = vmatmul.mubr.bf16.gmra.mrb[0].mxu0 %v6556
  %v6592 = vpop.f32.mrb[0].mxu0
  %v6593 = vadd.f32 0.0, %v6592
  %v6594 = vpop.f32.mrb[0].mxu0
  %v6595 = vadd.f32 0.0, %v6594
  %v6596 = vpop.f32.mrb[0].mxu0
  %v6597 = vpop.f32.mrb[0].mxu0
  %6598 = vdwg.mxu0
  %6599 = vmatprep.subr.bf16.mxu0 %v3345
  %6600 = vmatpush1.bf16.msra.mxu0 %v3344
  %6601 = vmatprep.subr.bf16.mxu0 %v3353
  %6602 = vmatpush1.bf16.msra.mxu0 %v3352
  %6603 = vmatprep.subr.bf16.mxu0 %v3361
  %6604 = vmatpush1.bf16.msra.mxu0 %v3360
  %6605 = vmatprep.subr.bf16.mxu0 %v3369
  %6606 = vmatpush1.bf16.msra.mxu0 %v3368
  %6607 = vmatprep.subr.bf16.mxu0 %v3377
  %6608 = vmatpush1.bf16.msra.mxu0 %v3376
  %6609 = vmatprep.subr.bf16.mxu0 %v3385
  %6610 = vmatpush1.bf16.msra.mxu0 %v3384
  %6611 = vmatprep.subr.bf16.mxu0 %v3393
  %6612 = vmatpush1.bf16.msra.mxu0 %v3392
  %6613 = vmatprep.subr.bf16.mxu0 %v3401
  %6614 = vmatpush1.bf16.msra.mxu0 %v3400
  %6615 = vmatprep.subr.bf16.mxu0 %v3409
  %6616 = vmatpush1.bf16.msra.mxu0 %v3408
  %6617 = vmatprep.subr.bf16.mxu0 %v3417
  %6618 = vmatpush1.bf16.msra.mxu0 %v3416
  %6619 = vmatprep.subr.bf16.mxu0 %v3425
  %6620 = vmatpush1.bf16.msra.mxu0 %v3424
  %6621 = vmatprep.subr.bf16.mxu0 %v3433
  %6622 = vmatpush1.bf16.msra.mxu0 %v3432
  %6623 = vmatprep.subr.bf16.mxu0 %v3441
  %6624 = vmatpush1.bf16.msra.mxu0 %v3440
  %6625 = vmatprep.subr.bf16.mxu0 %v3449
  %6626 = vmatpush1.bf16.msra.mxu0 %v3448
  %6627 = vmatprep.subr.bf16.mxu0 %v3457
  %6628 = vmatpush1.bf16.msra.mxu0 %v3456
  %6629 = vmatprep.subr.bf16.mxu0 %v3465
  %6630 = vmatpush1.bf16.msra.mxu0 %v3464
  %6631 = vmatprep.mubr.bf16.mxu0 %v6557
  %6632 = vmatmul.mubr.bf16.gmra.mrb[0].mxu0 %v6556
  %v6633 = vpop.f32.mrb[0].mxu0
  %v6634 = vadd.f32 0.0, %v6633
  %v6635 = vpop.f32.mrb[0].mxu0
  %v6636 = vadd.f32 0.0, %v6635
  %v6637 = vpop.f32.mrb[0].mxu0
  %v6638 = vpop.f32.mrb[0].mxu0
  %6639 = vdwg.mxu0
  %6640 = vmatprep.subr.bf16.mxu0 %v3347
  %6641 = vmatpush1.bf16.msra.mxu0 %v3346
  %6642 = vmatprep.subr.bf16.mxu0 %v3355
  %6643 = vmatpush1.bf16.msra.mxu0 %v3354
  %6644 = vmatprep.subr.bf16.mxu0 %v3363
  %6645 = vmatpush1.bf16.msra.mxu0 %v3362
  %6646 = vmatprep.subr.bf16.mxu0 %v3371
  %6647 = vmatpush1.bf16.msra.mxu0 %v3370
  %6648 = vmatprep.subr.bf16.mxu0 %v3379
  %6649 = vmatpush1.bf16.msra.mxu0 %v3378
  %6650 = vmatprep.subr.bf16.mxu0 %v3387
  %6651 = vmatpush1.bf16.msra.mxu0 %v3386
  %6652 = vmatprep.subr.bf16.mxu0 %v3395
  %6653 = vmatpush1.bf16.msra.mxu0 %v3394
  %6654 = vmatprep.subr.bf16.mxu0 %v3403
  %6655 = vmatpush1.bf16.msra.mxu0 %v3402
  %6656 = vmatprep.subr.bf16.mxu0 %v3411
  %6657 = vmatpush1.bf16.msra.mxu0 %v3410
  %6658 = vmatprep.subr.bf16.mxu0 %v3419
  %6659 = vmatpush1.bf16.msra.mxu0 %v3418
  %6660 = vmatprep.subr.bf16.mxu0 %v3427
  %6661 = vmatpush1.bf16.msra.mxu0 %v3426
  %6662 = vmatprep.subr.bf16.mxu0 %v3435
  %6663 = vmatpush1.bf16.msra.mxu0 %v3434
  %6664 = vmatprep.subr.bf16.mxu0 %v3443
  %6665 = vmatpush1.bf16.msra.mxu0 %v3442
  %6666 = vmatprep.subr.bf16.mxu0 %v3451
  %6667 = vmatpush1.bf16.msra.mxu0 %v3450
  %6668 = vmatprep.subr.bf16.mxu0 %v3459
  %6669 = vmatpush1.bf16.msra.mxu0 %v3458
  %6670 = vmatprep.subr.bf16.mxu0 %v3467
  %6671 = vmatpush1.bf16.msra.mxu0 %v3466
  %6672 = vmatprep.mubr.bf16.mxu0 %v6557
  %6673 = vmatmul.mubr.bf16.gmra.mrb[0].mxu0 %v6556
  %v6674 = vpop.f32.mrb[0].mxu0
  %v6675 = vadd.f32 0.0, %v6674
  %v6676 = vpop.f32.mrb[0].mxu0
  %v6677 = vadd.f32 0.0, %v6676
  %v6678 = vpop.f32.mrb[0].mxu0
  %v6679 = vpop.f32.mrb[0].mxu0
  %6680 = vdwg.mxu0
  %6681 = vmatprep.subr.bf16.mxu0 %v3349
  %6682 = vmatpush1.bf16.msra.mxu0 %v3348
  %6683 = vmatprep.subr.bf16.mxu0 %v3357
  %6684 = vmatpush1.bf16.msra.mxu0 %v3356
  %6685 = vmatprep.subr.bf16.mxu0 %v3365
  %6686 = vmatpush1.bf16.msra.mxu0 %v3364
  %6687 = vmatprep.subr.bf16.mxu0 %v3373
  %6688 = vmatpush1.bf16.msra.mxu0 %v3372
  %6689 = vmatprep.subr.bf16.mxu0 %v3381
  %6690 = vmatpush1.bf16.msra.mxu0 %v3380
  %6691 = vmatprep.subr.bf16.mxu0 %v3389
  %6692 = vmatpush1.bf16.msra.mxu0 %v3388
  %6693 = vmatprep.subr.bf16.mxu0 %v3397
  %6694 = vmatpush1.bf16.msra.mxu0 %v3396
  %6695 = vmatprep.subr.bf16.mxu0 %v3405
  %6696 = vmatpush1.bf16.msra.mxu0 %v3404
  %6697 = vmatprep.subr.bf16.mxu0 %v3413
  %6698 = vmatpush1.bf16.msra.mxu0 %v3412
  %6699 = vmatprep.subr.bf16.mxu0 %v3421
  %6700 = vmatpush1.bf16.msra.mxu0 %v3420
  %6701 = vmatprep.subr.bf16.mxu0 %v3429
  %6702 = vmatpush1.bf16.msra.mxu0 %v3428
  %6703 = vmatprep.subr.bf16.mxu0 %v3437
  %6704 = vmatpush1.bf16.msra.mxu0 %v3436
  %6705 = vmatprep.subr.bf16.mxu0 %v3445
  %6706 = vmatpush1.bf16.msra.mxu0 %v3444
  %6707 = vmatprep.subr.bf16.mxu0 %v3453
  %6708 = vmatpush1.bf16.msra.mxu0 %v3452
  %6709 = vmatprep.subr.bf16.mxu0 %v3461
  %6710 = vmatpush1.bf16.msra.mxu0 %v3460
  %6711 = vmatprep.subr.bf16.mxu0 %v3469
  %6712 = vmatpush1.bf16.msra.mxu0 %v3468
  %6713 = vmatprep.mubr.bf16.mxu0 %v6557
  %6714 = vmatmul.mubr.bf16.gmra.mrb[0].mxu0 %v6556
  %v6715 = vpop.f32.mrb[0].mxu0
  %v6716 = vadd.f32 0.0, %v6715
  %v6717 = vpop.f32.mrb[0].mxu0
  %v6718 = vadd.f32 0.0, %v6717
  %v6719 = vpop.f32.mrb[0].mxu0
  %v6720 = vpop.f32.mrb[0].mxu0
  %6721 = vdwg.mxu0
  %v6722 = vadd.f32 %v6427, %v6593
  %v6723 = vadd.f32 %v6429, %v6595
  %v6724 = vadd.f32 %v6468, %v6634
  %v6725 = vadd.f32 %v6470, %v6636
  %v6726 = vadd.f32 %v6509, %v6675
  %v6727 = vadd.f32 %v6511, %v6677
  %v6728 = vadd.f32 %v6550, %v6716
  %v6729 = vadd.f32 %v6552, %v6718
  %v6730 = vmul.f32 %v6722, 0.5
  %v6731 = vmul.f32 %v6723, 0.5
  %v6732 = vtanh.pop %v6730
  %v6733 = vtanh.pop %v6731
  %v6734 = vmul.f32 %v6732, 0.5
  %v6735 = vmul.f32 %v6733, 0.5
  %v6736 = vadd.f32 %v6734, 0.5
  %v6737 = vadd.f32 %v6735, 0.5
  %v6738 = vmul.f32 %v6724, 0.5
  %v6739 = vmul.f32 %v6725, 0.5
  %v6740 = vtanh.pop %v6738
  %v6741 = vtanh.pop %v6739
  %v6742 = vmul.f32 %v6740, 0.5
  %v6743 = vmul.f32 %v6741, 0.5
  %v6744 = vadd.f32 %v6742, 0.5
  %v6745 = vadd.f32 %v6743, 0.5
  %v6746 = vtanh.pop %v6726
  %v6747 = vtanh.pop %v6727
  %v6748 = vmul.f32 %v6728, 0.5
  %v6749 = vmul.f32 %v6729, 0.5
  %v6750 = vtanh.pop %v6748
  %v6751 = vtanh.pop %v6749
  %v6752 = vmul.f32 %v6750, 0.5
  %v6753 = vmul.f32 %v6751, 0.5
  %v6754 = vadd.f32 %v6752, 0.5
  %v6755 = vadd.f32 %v6753, 0.5
  %v6756 = vmul.f32 %v6744, %v6168
  %v6757 = vmul.f32 %v6745, %v6169
  %v6758 = vmul.f32 %v6736, %v6746
  %v6759 = vmul.f32 %v6737, %v6747
  %v6760 = vadd.f32 %v6756, %v6758
  %v6761 = vadd.f32 %v6757, %v6759
  %v6762 = vtanh.pop %v6760
  %v6763 = vtanh.pop %v6761
  %v6764 = vmul.f32 %v6754, %v6762
  %v6765 = vmul.f32 %v6755, %v6763
  %v6766 = vld [vmem:[#allocation2 + $0x180] sm:$0xff]
  %v6767 = vld [vmem:[#allocation2 + $0x188] sm:$0xff]
  %v6768 = vld [vmem:[#allocation2 + $0x190] sm:$0xff]
  %v6769 = vld [vmem:[#allocation2 + $0x198] sm:$0xff]
  %v6770 = vld [vmem:[#allocation2 + $0x1a0] sm:$0xff]
  %v6771 = vld [vmem:[#allocation2 + $0x1a8] sm:$0xff]
  %v6772 = vld [vmem:[#allocation2 + $0x1b0] sm:$0xff]
  %v6773 = vld [vmem:[#allocation2 + $0x1b8] sm:$0xff]
  %6774 = vmatprep.subr.bf16.mxu0 %v1646
  %6775 = vmatpush1.bf16.msra.mxu0 %v1645
  %6776 = vmatprep.subr.bf16.mxu0 %v1654
  %6777 = vmatpush1.bf16.msra.mxu0 %v1653
  %6778 = vmatprep.subr.bf16.mxu0 %v1662
  %6779 = vmatpush1.bf16.msra.mxu0 %v1661
  %6780 = vmatprep.subr.bf16.mxu0 %v1670
  %6781 = vmatpush1.bf16.msra.mxu0 %v1669
  %6782 = vmatprep.subr.bf16.mxu0 %v1678
  %6783 = vmatpush1.bf16.msra.mxu0 %v1677
  %6784 = vmatprep.subr.bf16.mxu0 %v1686
  %6785 = vmatpush1.bf16.msra.mxu0 %v1685
  %6786 = vmatprep.subr.bf16.mxu0 %v1694
  %6787 = vmatpush1.bf16.msra.mxu0 %v1693
  %6788 = vmatprep.subr.bf16.mxu0 %v1702
  %6789 = vmatpush1.bf16.msra.mxu0 %v1701
  %6790 = vmatprep.subr.bf16.mxu0 %v1710
  %6791 = vmatpush1.bf16.msra.mxu0 %v1709
  %6792 = vmatprep.subr.bf16.mxu0 %v1718
  %6793 = vmatpush1.bf16.msra.mxu0 %v1717
  %6794 = vmatprep.subr.bf16.mxu0 %v1726
  %6795 = vmatpush1.bf16.msra.mxu0 %v1725
  %6796 = vmatprep.subr.bf16.mxu0 %v1734
  %6797 = vmatpush1.bf16.msra.mxu0 %v1733
  %6798 = vmatprep.subr.bf16.mxu0 %v1742
  %6799 = vmatpush1.bf16.msra.mxu0 %v1741
  %6800 = vmatprep.subr.bf16.mxu0 %v1750
  %6801 = vmatpush1.bf16.msra.mxu0 %v1749
  %6802 = vmatprep.subr.bf16.mxu0 %v1758
  %6803 = vmatpush1.bf16.msra.mxu0 %v1757
  %6804 = vmatprep.subr.bf16.mxu0 %v1766
  %6805 = vmatpush1.bf16.msra.mxu0 %v1765
  %6806 = vmatprep.mubr.bf16.mxu0 %v6391
  %6807 = vmatmul.mubr.bf16.gmra.mrb[0].mxu0 %v6390
  %v6808 = vpop.f32.mrb[0].mxu0
  %v6809 = vadd.f32 0.0, %v6808
  %v6810 = vpop.f32.mrb[0].mxu0
  %v6811 = vadd.f32 0.0, %v6810
  %v6812 = vpop.f32.mrb[0].mxu0
  %v6813 = vpop.f32.mrb[0].mxu0
  %6814 = vdwg.mxu0
  %6815 = vmatprep.subr.bf16.mxu0 %v1648
  %6816 = vmatpush1.bf16.msra.mxu0 %v1647
  %6817 = vmatprep.subr.bf16.mxu0 %v1656
  %6818 = vmatpush1.bf16.msra.mxu0 %v1655
  %6819 = vmatprep.subr.bf16.mxu0 %v1664
  %6820 = vmatpush1.bf16.msra.mxu0 %v1663
  %6821 = vmatprep.subr.bf16.mxu0 %v1672
  %6822 = vmatpush1.bf16.msra.mxu0 %v1671
  %6823 = vmatprep.subr.bf16.mxu0 %v1680
  %6824 = vmatpush1.bf16.msra.mxu0 %v1679
  %6825 = vmatprep.subr.bf16.mxu0 %v1688
  %6826 = vmatpush1.bf16.msra.mxu0 %v1687
  %6827 = vmatprep.subr.bf16.mxu0 %v1696
  %6828 = vmatpush1.bf16.msra.mxu0 %v1695
  %6829 = vmatprep.subr.bf16.mxu0 %v1704
  %6830 = vmatpush1.bf16.msra.mxu0 %v1703
  %6831 = vmatprep.subr.bf16.mxu0 %v1712
  %6832 = vmatpush1.bf16.msra.mxu0 %v1711
  %6833 = vmatprep.subr.bf16.mxu0 %v1720
  %6834 = vmatpush1.bf16.msra.mxu0 %v1719
  %6835 = vmatprep.subr.bf16.mxu0 %v1728
  %6836 = vmatpush1.bf16.msra.mxu0 %v1727
  %6837 = vmatprep.subr.bf16.mxu0 %v1736
  %6838 = vmatpush1.bf16.msra.mxu0 %v1735
  %6839 = vmatprep.subr.bf16.mxu0 %v1744
  %6840 = vmatpush1.bf16.msra.mxu0 %v1743
  %6841 = vmatprep.subr.bf16.mxu0 %v1752
  %6842 = vmatpush1.bf16.msra.mxu0 %v1751
  %6843 = vmatprep.subr.bf16.mxu0 %v1760
  %6844 = vmatpush1.bf16.msra.mxu0 %v1759
  %6845 = vmatprep.subr.bf16.mxu0 %v1768
  %6846 = vmatpush1.bf16.msra.mxu0 %v1767
  %6847 = vmatprep.mubr.bf16.mxu0 %v6391
  %6848 = vmatmul.mubr.bf16.gmra.mrb[0].mxu0 %v6390
  %v6849 = vpop.f32.mrb[0].mxu0
  %v6850 = vadd.f32 0.0, %v6849
  %v6851 = vpop.f32.mrb[0].mxu0
  %v6852 = vadd.f32 0.0, %v6851
  %v6853 = vpop.f32.mrb[0].mxu0
  %v6854 = vpop.f32.mrb[0].mxu0
  %6855 = vdwg.mxu0
  %6856 = vmatprep.subr.bf16.mxu0 %v1650
  %6857 = vmatpush1.bf16.msra.mxu0 %v1649
  %6858 = vmatprep.subr.bf16.mxu0 %v1658
  %6859 = vmatpush1.bf16.msra.mxu0 %v1657
  %6860 = vmatprep.subr.bf16.mxu0 %v1666
  %6861 = vmatpush1.bf16.msra.mxu0 %v1665
  %6862 = vmatprep.subr.bf16.mxu0 %v1674
  %6863 = vmatpush1.bf16.msra.mxu0 %v1673
  %6864 = vmatprep.subr.bf16.mxu0 %v1682
  %6865 = vmatpush1.bf16.msra.mxu0 %v1681
  %6866 = vmatprep.subr.bf16.mxu0 %v1690
  %6867 = vmatpush1.bf16.msra.mxu0 %v1689
  %6868 = vmatprep.subr.bf16.mxu0 %v1698
  %6869 = vmatpush1.bf16.msra.mxu0 %v1697
  %6870 = vmatprep.subr.bf16.mxu0 %v1706
  %6871 = vmatpush1.bf16.msra.mxu0 %v1705
  %6872 = vmatprep.subr.bf16.mxu0 %v1714
  %6873 = vmatpush1.bf16.msra.mxu0 %v1713
  %6874 = vmatprep.subr.bf16.mxu0 %v1722
  %6875 = vmatpush1.bf16.msra.mxu0 %v1721
  %6876 = vmatprep.subr.bf16.mxu0 %v1730
  %6877 = vmatpush1.bf16.msra.mxu0 %v1729
  %6878 = vmatprep.subr.bf16.mxu0 %v1738
  %6879 = vmatpush1.bf16.msra.mxu0 %v1737
  %6880 = vmatprep.subr.bf16.mxu0 %v1746
  %6881 = vmatpush1.bf16.msra.mxu0 %v1745
  %6882 = vmatprep.subr.bf16.mxu0 %v1754
  %6883 = vmatpush1.bf16.msra.mxu0 %v1753
  %6884 = vmatprep.subr.bf16.mxu0 %v1762
  %6885 = vmatpush1.bf16.msra.mxu0 %v1761
  %6886 = vmatprep.subr.bf16.mxu0 %v1770
  %6887 = vmatpush1.bf16.msra.mxu0 %v1769
  %6888 = vmatprep.mubr.bf16.mxu0 %v6391
  %6889 = vmatmul.mubr.bf16.gmra.mrb[0].mxu0 %v6390
  %v6890 = vpop.f32.mrb[0].mxu0
  %v6891 = vadd.f32 0.0, %v6890
  %v6892 = vpop.f32.mrb[0].mxu0
  %v6893 = vadd.f32 0.0, %v6892
  %v6894 = vpop.f32.mrb[0].mxu0
  %v6895 = vpop.f32.mrb[0].mxu0
  %6896 = vdwg.mxu0
  %6897 = vmatprep.subr.bf16.mxu0 %v1652
  %6898 = vmatpush1.bf16.msra.mxu0 %v1651
  %6899 = vmatprep.subr.bf16.mxu0 %v1660
  %6900 = vmatpush1.bf16.msra.mxu0 %v1659
  %6901 = vmatprep.subr.bf16.mxu0 %v1668
  %6902 = vmatpush1.bf16.msra.mxu0 %v1667
  %6903 = vmatprep.subr.bf16.mxu0 %v1676
  %6904 = vmatpush1.bf16.msra.mxu0 %v1675
  %6905 = vmatprep.subr.bf16.mxu0 %v1684
  %6906 = vmatpush1.bf16.msra.mxu0 %v1683
  %6907 = vmatprep.subr.bf16.mxu0 %v1692
  %6908 = vmatpush1.bf16.msra.mxu0 %v1691
  %6909 = vmatprep.subr.bf16.mxu0 %v1700
  %6910 = vmatpush1.bf16.msra.mxu0 %v1699
  %6911 = vmatprep.subr.bf16.mxu0 %v1708
  %6912 = vmatpush1.bf16.msra.mxu0 %v1707
  %6913 = vmatprep.subr.bf16.mxu0 %v1716
  %6914 = vmatpush1.bf16.msra.mxu0 %v1715
  %6915 = vmatprep.subr.bf16.mxu0 %v1724
  %6916 = vmatpush1.bf16.msra.mxu0 %v1723
  %6917 = vmatprep.subr.bf16.mxu0 %v1732
  %6918 = vmatpush1.bf16.msra.mxu0 %v1731
  %6919 = vmatprep.subr.bf16.mxu0 %v1740
  %6920 = vmatpush1.bf16.msra.mxu0 %v1739
  %6921 = vmatprep.subr.bf16.mxu0 %v1748
  %6922 = vmatpush1.bf16.msra.mxu0 %v1747
  %6923 = vmatprep.subr.bf16.mxu0 %v1756
  %6924 = vmatpush1.bf16.msra.mxu0 %v1755
  %6925 = vmatprep.subr.bf16.mxu0 %v1764
  %6926 = vmatpush1.bf16.msra.mxu0 %v1763
  %6927 = vmatprep.subr.bf16.mxu0 %v1772
  %6928 = vmatpush1.bf16.msra.mxu0 %v1771
  %6929 = vmatprep.mubr.bf16.mxu0 %v6391
  %6930 = vmatmul.mubr.bf16.gmra.mrb[0].mxu0 %v6390
  %v6931 = vpop.f32.mrb[0].mxu0
  %v6932 = vadd.f32 0.0, %v6931
  %v6933 = vpop.f32.mrb[0].mxu0
  %v6934 = vadd.f32 0.0, %v6933
  %v6935 = vpop.f32.mrb[0].mxu0
  %v6936 = vpop.f32.mrb[0].mxu0
  %6937 = vdwg.mxu0
  %v6938 = vadd.f32 %v6766, %v6809
  %v6939 = vadd.f32 %v6767, %v6811
  %v6940 = vadd.f32 %v6768, %v6850
  %v6941 = vadd.f32 %v6769, %v6852
  %v6942 = vadd.f32 %v6770, %v6891
  %v6943 = vadd.f32 %v6771, %v6893
  %v6944 = vadd.f32 %v6772, %v6932
  %v6945 = vadd.f32 %v6773, %v6934
  %v6946 = vmul.f32 %v6938, 0.5
  %v6947 = vmul.f32 %v6939, 0.5
  %v6948 = vtanh.pop %v6946
  %v6949 = vtanh.pop %v6947
  %v6950 = vmul.f32 %v6948, 0.5
  %v6951 = vmul.f32 %v6949, 0.5
  %v6952 = vadd.f32 %v6950, 0.5
  %v6953 = vadd.f32 %v6951, 0.5
  %v6954 = vmul.f32 %v6940, 0.5
  %v6955 = vmul.f32 %v6941, 0.5
  %v6956 = vtanh.pop %v6954
  %v6957 = vtanh.pop %v6955
  %v6958 = vmul.f32 %v6956, 0.5
  %v6959 = vmul.f32 %v6957, 0.5
  %v6960 = vadd.f32 %v6958, 0.5
  %v6961 = vadd.f32 %v6959, 0.5
  %v6962 = vtanh.pop %v6942
  %v6963 = vtanh.pop %v6943
  %v6964 = vmul.f32 %v6944, 0.5
  %v6965 = vmul.f32 %v6945, 0.5
  %v6966 = vtanh.pop %v6964
  %v6967 = vtanh.pop %v6965
  %v6968 = vmul.f32 %v6966, 0.5
  %v6969 = vmul.f32 %v6967, 0.5
  %v6970 = vadd.f32 %v6968, 0.5
  %v6971 = vadd.f32 %v6969, 0.5
  %v6972 = vmul.f32 %v6960, %v6384
  %v6973 = vmul.f32 %v6961, %v6385
  %v6974 = vmul.f32 %v6952, %v6962
  %v6975 = vmul.f32 %v6953, %v6963
  %v6976 = vadd.f32 %v6972, %v6974
  %v6977 = vadd.f32 %v6973, %v6975
  %v6978 = vtanh.pop %v6976
  %v6979 = vtanh.pop %v6977
  %v6980 = vmul.f32 %v6970, %v6978
  %v6981 = vmul.f32 %v6971, %v6979
  %v6982 = vpack.c.bf16 %v6980, %v6980
  %v6983 = vpack.c.bf16 %v6981, %v6981
  %6984 = vmatprep.subr.bf16.mxu0 %v2537
  %6985 = vmatpush1.bf16.msra.mxu0 %v2536
  %6986 = vmatprep.subr.bf16.mxu0 %v2545
  %6987 = vmatpush1.bf16.msra.mxu0 %v2544
  %6988 = vmatprep.subr.bf16.mxu0 %v2553
  %6989 = vmatpush1.bf16.msra.mxu0 %v2552
  %6990 = vmatprep.subr.bf16.mxu0 %v2561
  %6991 = vmatpush1.bf16.msra.mxu0 %v2560
  %6992 = vmatprep.subr.bf16.mxu0 %v2569
  %6993 = vmatpush1.bf16.msra.mxu0 %v2568
  %6994 = vmatprep.subr.bf16.mxu0 %v2577
  %6995 = vmatpush1.bf16.msra.mxu0 %v2576
  %6996 = vmatprep.subr.bf16.mxu0 %v2585
  %6997 = vmatpush1.bf16.msra.mxu0 %v2584
  %6998 = vmatprep.subr.bf16.mxu0 %v2593
  %6999 = vmatpush1.bf16.msra.mxu0 %v2592
  %7000 = vmatprep.subr.bf16.mxu0 %v2601
  %7001 = vmatpush1.bf16.msra.mxu0 %v2600
  %7002 = vmatprep.subr.bf16.mxu0 %v2609
  %7003 = vmatpush1.bf16.msra.mxu0 %v2608
  %7004 = vmatprep.subr.bf16.mxu0 %v2617
  %7005 = vmatpush1.bf16.msra.mxu0 %v2616
  %7006 = vmatprep.subr.bf16.mxu0 %v2625
  %7007 = vmatpush1.bf16.msra.mxu0 %v2624
  %7008 = vmatprep.subr.bf16.mxu0 %v2633
  %7009 = vmatpush1.bf16.msra.mxu0 %v2632
  %7010 = vmatprep.subr.bf16.mxu0 %v2641
  %7011 = vmatpush1.bf16.msra.mxu0 %v2640
  %7012 = vmatprep.subr.bf16.mxu0 %v2649
  %7013 = vmatpush1.bf16.msra.mxu0 %v2648
  %7014 = vmatprep.subr.bf16.mxu0 %v2657
  %7015 = vmatpush1.bf16.msra.mxu0 %v2656
  %7016 = vmatprep.mubr.bf16.mxu0 %v6983
  %7017 = vmatmul.mubr.bf16.gmra.mrb[0].mxu0 %v6982
  %v7018 = vpop.f32.mrb[0].mxu0
  %v7019 = vadd.f32 %v2115, %v7018
  %v7020 = vpop.f32.mrb[0].mxu0
  %v7021 = vadd.f32 %v2119, %v7020
  %v7022 = vpop.f32.mrb[0].mxu0
  %v7023 = vpop.f32.mrb[0].mxu0
  %7024 = vdwg.mxu0
  %7025 = vmatprep.subr.bf16.mxu0 %v2539
  %7026 = vmatpush1.bf16.msra.mxu0 %v2538
  %7027 = vmatprep.subr.bf16.mxu0 %v2547
  %7028 = vmatpush1.bf16.msra.mxu0 %v2546
  %7029 = vmatprep.subr.bf16.mxu0 %v2555
  %7030 = vmatpush1.bf16.msra.mxu0 %v2554
  %7031 = vmatprep.subr.bf16.mxu0 %v2563
  %7032 = vmatpush1.bf16.msra.mxu0 %v2562
  %7033 = vmatprep.subr.bf16.mxu0 %v2571
  %7034 = vmatpush1.bf16.msra.mxu0 %v2570
  %7035 = vmatprep.subr.bf16.mxu0 %v2579
  %7036 = vmatpush1.bf16.msra.mxu0 %v2578
  %7037 = vmatprep.subr.bf16.mxu0 %v2587
  %7038 = vmatpush1.bf16.msra.mxu0 %v2586
  %7039 = vmatprep.subr.bf16.mxu0 %v2595
  %7040 = vmatpush1.bf16.msra.mxu0 %v2594
  %7041 = vmatprep.subr.bf16.mxu0 %v2603
  %7042 = vmatpush1.bf16.msra.mxu0 %v2602
  %7043 = vmatprep.subr.bf16.mxu0 %v2611
  %7044 = vmatpush1.bf16.msra.mxu0 %v2610
  %7045 = vmatprep.subr.bf16.mxu0 %v2619
  %7046 = vmatpush1.bf16.msra.mxu0 %v2618
  %7047 = vmatprep.subr.bf16.mxu0 %v2627
  %7048 = vmatpush1.bf16.msra.mxu0 %v2626
  %7049 = vmatprep.subr.bf16.mxu0 %v2635
  %7050 = vmatpush1.bf16.msra.mxu0 %v2634
  %7051 = vmatprep.subr.bf16.mxu0 %v2643
  %7052 = vmatpush1.bf16.msra.mxu0 %v2642
  %7053 = vmatprep.subr.bf16.mxu0 %v2651
  %7054 = vmatpush1.bf16.msra.mxu0 %v2650
  %7055 = vmatprep.subr.bf16.mxu0 %v2659
  %7056 = vmatpush1.bf16.msra.mxu0 %v2658
  %7057 = vmatprep.mubr.bf16.mxu0 %v6983
  %7058 = vmatmul.mubr.bf16.gmra.mrb[0].mxu0 %v6982
  %v7059 = vpop.f32.mrb[0].mxu0
  %v7060 = vadd.f32 %v2123, %v7059
  %v7061 = vpop.f32.mrb[0].mxu0
  %v7062 = vadd.f32 %v2127, %v7061
  %v7063 = vpop.f32.mrb[0].mxu0
  %v7064 = vpop.f32.mrb[0].mxu0
  %7065 = vdwg.mxu0
  %7066 = vmatprep.subr.bf16.mxu0 %v2541
  %7067 = vmatpush1.bf16.msra.mxu0 %v2540
  %7068 = vmatprep.subr.bf16.mxu0 %v2549
  %7069 = vmatpush1.bf16.msra.mxu0 %v2548
  %7070 = vmatprep.subr.bf16.mxu0 %v2557
  %7071 = vmatpush1.bf16.msra.mxu0 %v2556
  %7072 = vmatprep.subr.bf16.mxu0 %v2565
  %7073 = vmatpush1.bf16.msra.mxu0 %v2564
  %7074 = vmatprep.subr.bf16.mxu0 %v2573
  %7075 = vmatpush1.bf16.msra.mxu0 %v2572
  %7076 = vmatprep.subr.bf16.mxu0 %v2581
  %7077 = vmatpush1.bf16.msra.mxu0 %v2580
  %7078 = vmatprep.subr.bf16.mxu0 %v2589
  %7079 = vmatpush1.bf16.msra.mxu0 %v2588
  %7080 = vmatprep.subr.bf16.mxu0 %v2597
  %7081 = vmatpush1.bf16.msra.mxu0 %v2596
  %7082 = vmatprep.subr.bf16.mxu0 %v2605
  %7083 = vmatpush1.bf16.msra.mxu0 %v2604
  %7084 = vmatprep.subr.bf16.mxu0 %v2613
  %7085 = vmatpush1.bf16.msra.mxu0 %v2612
  %7086 = vmatprep.subr.bf16.mxu0 %v2621
  %7087 = vmatpush1.bf16.msra.mxu0 %v2620
  %7088 = vmatprep.subr.bf16.mxu0 %v2629
  %7089 = vmatpush1.bf16.msra.mxu0 %v2628
  %7090 = vmatprep.subr.bf16.mxu0 %v2637
  %7091 = vmatpush1.bf16.msra.mxu0 %v2636
  %7092 = vmatprep.subr.bf16.mxu0 %v2645
  %7093 = vmatpush1.bf16.msra.mxu0 %v2644
  %7094 = vmatprep.subr.bf16.mxu0 %v2653
  %7095 = vmatpush1.bf16.msra.mxu0 %v2652
  %7096 = vmatprep.subr.bf16.mxu0 %v2661
  %7097 = vmatpush1.bf16.msra.mxu0 %v2660
  %7098 = vmatprep.mubr.bf16.mxu0 %v6983
  %7099 = vmatmul.mubr.bf16.gmra.mrb[0].mxu0 %v6982
  %v7100 = vpop.f32.mrb[0].mxu0
  %v7101 = vadd.f32 %v2131, %v7100
  %v7102 = vpop.f32.mrb[0].mxu0
  %v7103 = vadd.f32 %v2135, %v7102
  %v7104 = vpop.f32.mrb[0].mxu0
  %v7105 = vpop.f32.mrb[0].mxu0
  %7106 = vdwg.mxu0
  %7107 = vmatprep.subr.bf16.mxu0 %v2543
  %7108 = vmatpush1.bf16.msra.mxu0 %v2542
  %7109 = vmatprep.subr.bf16.mxu0 %v2551
  %7110 = vmatpush1.bf16.msra.mxu0 %v2550
  %7111 = vmatprep.subr.bf16.mxu0 %v2559
  %7112 = vmatpush1.bf16.msra.mxu0 %v2558
  %7113 = vmatprep.subr.bf16.mxu0 %v2567
  %7114 = vmatpush1.bf16.msra.mxu0 %v2566
  %7115 = vmatprep.subr.bf16.mxu0 %v2575
  %7116 = vmatpush1.bf16.msra.mxu0 %v2574
  %7117 = vmatprep.subr.bf16.mxu0 %v2583
  %7118 = vmatpush1.bf16.msra.mxu0 %v2582
  %7119 = vmatprep.subr.bf16.mxu0 %v2591
  %7120 = vmatpush1.bf16.msra.mxu0 %v2590
  %7121 = vmatprep.subr.bf16.mxu0 %v2599
  %7122 = vmatpush1.bf16.msra.mxu0 %v2598
  %7123 = vmatprep.subr.bf16.mxu0 %v2607
  %7124 = vmatpush1.bf16.msra.mxu0 %v2606
  %7125 = vmatprep.subr.bf16.mxu0 %v2615
  %7126 = vmatpush1.bf16.msra.mxu0 %v2614
  %7127 = vmatprep.subr.bf16.mxu0 %v2623
  %7128 = vmatpush1.bf16.msra.mxu0 %v2622
  %7129 = vmatprep.subr.bf16.mxu0 %v2631
  %7130 = vmatpush1.bf16.msra.mxu0 %v2630
  %7131 = vmatprep.subr.bf16.mxu0 %v2639
  %7132 = vmatpush1.bf16.msra.mxu0 %v2638
  %7133 = vmatprep.subr.bf16.mxu0 %v2647
  %7134 = vmatpush1.bf16.msra.mxu0 %v2646
  %7135 = vmatprep.subr.bf16.mxu0 %v2655
  %7136 = vmatpush1.bf16.msra.mxu0 %v2654
  %7137 = vmatprep.subr.bf16.mxu0 %v2663
  %7138 = vmatpush1.bf16.msra.mxu0 %v2662
  %7139 = vmatprep.mubr.bf16.mxu0 %v6983
  %7140 = vmatmul.mubr.bf16.gmra.mrb[0].mxu0 %v6982
  %v7141 = vpop.f32.mrb[0].mxu0
  %v7142 = vadd.f32 %v2139, %v7141
  %v7143 = vpop.f32.mrb[0].mxu0
  %v7144 = vadd.f32 %v2143, %v7143
  %v7145 = vpop.f32.mrb[0].mxu0
  %v7146 = vpop.f32.mrb[0].mxu0
  %7147 = vdwg.mxu0
  %v7148 = vpack.c.bf16 %v6764, %v6764
  %v7149 = vpack.c.bf16 %v6765, %v6765
  %7150 = vmatprep.subr.bf16.mxu0 %v3343
  %7151 = vmatpush1.bf16.msra.mxu0 %v3342
  %7152 = vmatprep.subr.bf16.mxu0 %v3351
  %7153 = vmatpush1.bf16.msra.mxu0 %v3350
  %7154 = vmatprep.subr.bf16.mxu0 %v3359
  %7155 = vmatpush1.bf16.msra.mxu0 %v3358
  %7156 = vmatprep.subr.bf16.mxu0 %v3367
  %7157 = vmatpush1.bf16.msra.mxu0 %v3366
  %7158 = vmatprep.subr.bf16.mxu0 %v3375
  %7159 = vmatpush1.bf16.msra.mxu0 %v3374
  %7160 = vmatprep.subr.bf16.mxu0 %v3383
  %7161 = vmatpush1.bf16.msra.mxu0 %v3382
  %7162 = vmatprep.subr.bf16.mxu0 %v3391
  %7163 = vmatpush1.bf16.msra.mxu0 %v3390
  %7164 = vmatprep.subr.bf16.mxu0 %v3399
  %7165 = vmatpush1.bf16.msra.mxu0 %v3398
  %7166 = vmatprep.subr.bf16.mxu0 %v3407
  %7167 = vmatpush1.bf16.msra.mxu0 %v3406
  %7168 = vmatprep.subr.bf16.mxu0 %v3415
  %7169 = vmatpush1.bf16.msra.mxu0 %v3414
  %7170 = vmatprep.subr.bf16.mxu0 %v3423
  %7171 = vmatpush1.bf16.msra.mxu0 %v3422
  %7172 = vmatprep.subr.bf16.mxu0 %v3431
  %7173 = vmatpush1.bf16.msra.mxu0 %v3430
  %7174 = vmatprep.subr.bf16.mxu0 %v3439
  %7175 = vmatpush1.bf16.msra.mxu0 %v3438
  %7176 = vmatprep.subr.bf16.mxu0 %v3447
  %7177 = vmatpush1.bf16.msra.mxu0 %v3446
  %7178 = vmatprep.subr.bf16.mxu0 %v3455
  %7179 = vmatpush1.bf16.msra.mxu0 %v3454
  %7180 = vmatprep.subr.bf16.mxu0 %v3463
  %7181 = vmatpush1.bf16.msra.mxu0 %v3462
  %7182 = vmatprep.mubr.bf16.mxu0 %v7149
  %7183 = vmatmul.mubr.bf16.gmra.mrb[0].mxu0 %v7148
  %v7184 = vpop.f32.mrb[0].mxu0
  %v7185 = vadd.f32 0.0, %v7184
  %v7186 = vpop.f32.mrb[0].mxu0
  %v7187 = vadd.f32 0.0, %v7186
  %v7188 = vpop.f32.mrb[0].mxu0
  %v7189 = vpop.f32.mrb[0].mxu0
  %7190 = vdwg.mxu0
  %7191 = vmatprep.subr.bf16.mxu0 %v3345
  %7192 = vmatpush1.bf16.msra.mxu0 %v3344
  %7193 = vmatprep.subr.bf16.mxu0 %v3353
  %7194 = vmatpush1.bf16.msra.mxu0 %v3352
  %7195 = vmatprep.subr.bf16.mxu0 %v3361
  %7196 = vmatpush1.bf16.msra.mxu0 %v3360
  %7197 = vmatprep.subr.bf16.mxu0 %v3369
  %7198 = vmatpush1.bf16.msra.mxu0 %v3368
  %7199 = vmatprep.subr.bf16.mxu0 %v3377
  %7200 = vmatpush1.bf16.msra.mxu0 %v3376
  %7201 = vmatprep.subr.bf16.mxu0 %v3385
  %7202 = vmatpush1.bf16.msra.mxu0 %v3384
  %7203 = vmatprep.subr.bf16.mxu0 %v3393
  %7204 = vmatpush1.bf16.msra.mxu0 %v3392
  %7205 = vmatprep.subr.bf16.mxu0 %v3401
  %7206 = vmatpush1.bf16.msra.mxu0 %v3400
  %7207 = vmatprep.subr.bf16.mxu0 %v3409
  %7208 = vmatpush1.bf16.msra.mxu0 %v3408
  %7209 = vmatprep.subr.bf16.mxu0 %v3417
  %7210 = vmatpush1.bf16.msra.mxu0 %v3416
  %7211 = vmatprep.subr.bf16.mxu0 %v3425
  %7212 = vmatpush1.bf16.msra.mxu0 %v3424
  %7213 = vmatprep.subr.bf16.mxu0 %v3433
  %7214 = vmatpush1.bf16.msra.mxu0 %v3432
  %7215 = vmatprep.subr.bf16.mxu0 %v3441
  %7216 = vmatpush1.bf16.msra.mxu0 %v3440
  %7217 = vmatprep.subr.bf16.mxu0 %v3449
  %7218 = vmatpush1.bf16.msra.mxu0 %v3448
  %7219 = vmatprep.subr.bf16.mxu0 %v3457
  %7220 = vmatpush1.bf16.msra.mxu0 %v3456
  %7221 = vmatprep.subr.bf16.mxu0 %v3465
  %7222 = vmatpush1.bf16.msra.mxu0 %v3464
  %7223 = vmatprep.mubr.bf16.mxu0 %v7149
  %7224 = vmatmul.mubr.bf16.gmra.mrb[0].mxu0 %v7148
  %v7225 = vpop.f32.mrb[0].mxu0
  %v7226 = vadd.f32 0.0, %v7225
  %v7227 = vpop.f32.mrb[0].mxu0
  %v7228 = vadd.f32 0.0, %v7227
  %v7229 = vpop.f32.mrb[0].mxu0
  %v7230 = vpop.f32.mrb[0].mxu0
  %7231 = vdwg.mxu0
  %7232 = vmatprep.subr.bf16.mxu0 %v3347
  %7233 = vmatpush1.bf16.msra.mxu0 %v3346
  %7234 = vmatprep.subr.bf16.mxu0 %v3355
  %7235 = vmatpush1.bf16.msra.mxu0 %v3354
  %7236 = vmatprep.subr.bf16.mxu0 %v3363
  %7237 = vmatpush1.bf16.msra.mxu0 %v3362
  %7238 = vmatprep.subr.bf16.mxu0 %v3371
  %7239 = vmatpush1.bf16.msra.mxu0 %v3370
  %7240 = vmatprep.subr.bf16.mxu0 %v3379
  %7241 = vmatpush1.bf16.msra.mxu0 %v3378
  %7242 = vmatprep.subr.bf16.mxu0 %v3387
  %7243 = vmatpush1.bf16.msra.mxu0 %v3386
  %7244 = vmatprep.subr.bf16.mxu0 %v3395
  %7245 = vmatpush1.bf16.msra.mxu0 %v3394
  %7246 = vmatprep.subr.bf16.mxu0 %v3403
  %7247 = vmatpush1.bf16.msra.mxu0 %v3402
  %7248 = vmatprep.subr.bf16.mxu0 %v3411
  %7249 = vmatpush1.bf16.msra.mxu0 %v3410
  %7250 = vmatprep.subr.bf16.mxu0 %v3419
  %7251 = vmatpush1.bf16.msra.mxu0 %v3418
  %7252 = vmatprep.subr.bf16.mxu0 %v3427
  %7253 = vmatpush1.bf16.msra.mxu0 %v3426
  %7254 = vmatprep.subr.bf16.mxu0 %v3435
  %7255 = vmatpush1.bf16.msra.mxu0 %v3434
  %7256 = vmatprep.subr.bf16.mxu0 %v3443
  %7257 = vmatpush1.bf16.msra.mxu0 %v3442
  %7258 = vmatprep.subr.bf16.mxu0 %v3451
  %7259 = vmatpush1.bf16.msra.mxu0 %v3450
  %7260 = vmatprep.subr.bf16.mxu0 %v3459
  %7261 = vmatpush1.bf16.msra.mxu0 %v3458
  %7262 = vmatprep.subr.bf16.mxu0 %v3467
  %7263 = vmatpush1.bf16.msra.mxu0 %v3466
  %7264 = vmatprep.mubr.bf16.mxu0 %v7149
  %7265 = vmatmul.mubr.bf16.gmra.mrb[0].mxu0 %v7148
  %v7266 = vpop.f32.mrb[0].mxu0
  %v7267 = vadd.f32 0.0, %v7266
  %v7268 = vpop.f32.mrb[0].mxu0
  %v7269 = vadd.f32 0.0, %v7268
  %v7270 = vpop.f32.mrb[0].mxu0
  %v7271 = vpop.f32.mrb[0].mxu0
  %7272 = vdwg.mxu0
  %7273 = vmatprep.subr.bf16.mxu0 %v3349
  %7274 = vmatpush1.bf16.msra.mxu0 %v3348
  %7275 = vmatprep.subr.bf16.mxu0 %v3357
  %7276 = vmatpush1.bf16.msra.mxu0 %v3356
  %7277 = vmatprep.subr.bf16.mxu0 %v3365
  %7278 = vmatpush1.bf16.msra.mxu0 %v3364
  %7279 = vmatprep.subr.bf16.mxu0 %v3373
  %7280 = vmatpush1.bf16.msra.mxu0 %v3372
  %7281 = vmatprep.subr.bf16.mxu0 %v3381
  %7282 = vmatpush1.bf16.msra.mxu0 %v3380
  %7283 = vmatprep.subr.bf16.mxu0 %v3389
  %7284 = vmatpush1.bf16.msra.mxu0 %v3388
  %7285 = vmatprep.subr.bf16.mxu0 %v3397
  %7286 = vmatpush1.bf16.msra.mxu0 %v3396
  %7287 = vmatprep.subr.bf16.mxu0 %v3405
  %7288 = vmatpush1.bf16.msra.mxu0 %v3404
  %7289 = vmatprep.subr.bf16.mxu0 %v3413
  %7290 = vmatpush1.bf16.msra.mxu0 %v3412
  %7291 = vmatprep.subr.bf16.mxu0 %v3421
  %7292 = vmatpush1.bf16.msra.mxu0 %v3420
  %7293 = vmatprep.subr.bf16.mxu0 %v3429
  %7294 = vmatpush1.bf16.msra.mxu0 %v3428
  %7295 = vmatprep.subr.bf16.mxu0 %v3437
  %7296 = vmatpush1.bf16.msra.mxu0 %v3436
  %7297 = vmatprep.subr.bf16.mxu0 %v3445
  %7298 = vmatpush1.bf16.msra.mxu0 %v3444
  %7299 = vmatprep.subr.bf16.mxu0 %v3453
  %7300 = vmatpush1.bf16.msra.mxu0 %v3452
  %7301 = vmatprep.subr.bf16.mxu0 %v3461
  %7302 = vmatpush1.bf16.msra.mxu0 %v3460
  %7303 = vmatprep.subr.bf16.mxu0 %v3469
  %7304 = vmatpush1.bf16.msra.mxu0 %v3468
  %7305 = vmatprep.mubr.bf16.mxu0 %v7149
  %7306 = vmatmul.mubr.bf16.gmra.mrb[0].mxu0 %v7148
  %v7307 = vpop.f32.mrb[0].mxu0
  %v7308 = vadd.f32 0.0, %v7307
  %v7309 = vpop.f32.mrb[0].mxu0
  %v7310 = vadd.f32 0.0, %v7309
  %v7311 = vpop.f32.mrb[0].mxu0
  %v7312 = vpop.f32.mrb[0].mxu0
  %7313 = vdwg.mxu0
  %v7314 = vadd.f32 %v7019, %v7185
  %v7315 = vadd.f32 %v7021, %v7187
  %v7316 = vadd.f32 %v7060, %v7226
  %v7317 = vadd.f32 %v7062, %v7228
  %v7318 = vadd.f32 %v7101, %v7267
  %v7319 = vadd.f32 %v7103, %v7269
  %v7320 = vadd.f32 %v7142, %v7308
  %v7321 = vadd.f32 %v7144, %v7310
  %v7322 = vmul.f32 %v7314, 0.5
  %v7323 = vmul.f32 %v7315, 0.5
  %v7324 = vtanh.pop %v7322
  %v7325 = vtanh.pop %v7323
  %v7326 = vmul.f32 %v7324, 0.5
  %v7327 = vmul.f32 %v7325, 0.5
  %v7328 = vadd.f32 %v7326, 0.5
  %v7329 = vadd.f32 %v7327, 0.5
  %v7330 = vmul.f32 %v7316, 0.5
  %v7331 = vmul.f32 %v7317, 0.5
  %v7332 = vtanh.pop %v7330
  %v7333 = vtanh.pop %v7331
  %v7334 = vmul.f32 %v7332, 0.5
  %v7335 = vmul.f32 %v7333, 0.5
  %v7336 = vadd.f32 %v7334, 0.5
  %v7337 = vadd.f32 %v7335, 0.5
  %v7338 = vtanh.pop %v7318
  %v7339 = vtanh.pop %v7319
  %v7340 = vmul.f32 %v7320, 0.5
  %v7341 = vmul.f32 %v7321, 0.5
  %v7342 = vtanh.pop %v7340
  %v7343 = vtanh.pop %v7341
  %v7344 = vmul.f32 %v7342, 0.5
  %v7345 = vmul.f32 %v7343, 0.5
  %v7346 = vadd.f32 %v7344, 0.5
  %v7347 = vadd.f32 %v7345, 0.5
  %v7348 = vmul.f32 %v7336, %v6760
  %v7349 = vmul.f32 %v7337, %v6761
  %v7350 = vmul.f32 %v7328, %v7338
  %v7351 = vmul.f32 %v7329, %v7339
  %v7352 = vadd.f32 %v7348, %v7350
  %v7353 = vadd.f32 %v7349, %v7351
  %v7354 = vtanh.pop %v7352
  %v7355 = vtanh.pop %v7353
  %v7356 = vmul.f32 %v7346, %v7354
  %v7357 = vmul.f32 %v7347, %v7355
  %v7358 = vld [vmem:[#allocation2 + $0x1c0] sm:$0xff]
  %v7359 = vld [vmem:[#allocation2 + $0x1c8] sm:$0xff]
  %v7360 = vld [vmem:[#allocation2 + $0x1d0] sm:$0xff]
  %v7361 = vld [vmem:[#allocation2 + $0x1d8] sm:$0xff]
  %v7362 = vld [vmem:[#allocation2 + $0x1e0] sm:$0xff]
  %v7363 = vld [vmem:[#allocation2 + $0x1e8] sm:$0xff]
  %v7364 = vld [vmem:[#allocation2 + $0x1f0] sm:$0xff]
  %v7365 = vld [vmem:[#allocation2 + $0x1f8] sm:$0xff]
  %7366 = vmatprep.subr.bf16.mxu0 %v1646
  %7367 = vmatpush1.bf16.msra.mxu0 %v1645
  %7368 = vmatprep.subr.bf16.mxu0 %v1654
  %7369 = vmatpush1.bf16.msra.mxu0 %v1653
  %7370 = vmatprep.subr.bf16.mxu0 %v1662
  %7371 = vmatpush1.bf16.msra.mxu0 %v1661
  %7372 = vmatprep.subr.bf16.mxu0 %v1670
  %7373 = vmatpush1.bf16.msra.mxu0 %v1669
  %7374 = vmatprep.subr.bf16.mxu0 %v1678
  %7375 = vmatpush1.bf16.msra.mxu0 %v1677
  %7376 = vmatprep.subr.bf16.mxu0 %v1686
  %7377 = vmatpush1.bf16.msra.mxu0 %v1685
  %7378 = vmatprep.subr.bf16.mxu0 %v1694
  %7379 = vmatpush1.bf16.msra.mxu0 %v1693
  %7380 = vmatprep.subr.bf16.mxu0 %v1702
  %7381 = vmatpush1.bf16.msra.mxu0 %v1701
  %7382 = vmatprep.subr.bf16.mxu0 %v1710
  %7383 = vmatpush1.bf16.msra.mxu0 %v1709
  %7384 = vmatprep.subr.bf16.mxu0 %v1718
  %7385 = vmatpush1.bf16.msra.mxu0 %v1717
  %7386 = vmatprep.subr.bf16.mxu0 %v1726
  %7387 = vmatpush1.bf16.msra.mxu0 %v1725
  %7388 = vmatprep.subr.bf16.mxu0 %v1734
  %7389 = vmatpush1.bf16.msra.mxu0 %v1733
  %7390 = vmatprep.subr.bf16.mxu0 %v1742
  %7391 = vmatpush1.bf16.msra.mxu0 %v1741
  %7392 = vmatprep.subr.bf16.mxu0 %v1750
  %7393 = vmatpush1.bf16.msra.mxu0 %v1749
  %7394 = vmatprep.subr.bf16.mxu0 %v1758
  %7395 = vmatpush1.bf16.msra.mxu0 %v1757
  %7396 = vmatprep.subr.bf16.mxu0 %v1766
  %7397 = vmatpush1.bf16.msra.mxu0 %v1765
  %7398 = vmatprep.mubr.bf16.mxu0 %v6983
  %7399 = vmatmul.mubr.bf16.gmra.mrb[0].mxu0 %v6982
  %v7400 = vpop.f32.mrb[0].mxu0
  %v7401 = vadd.f32 0.0, %v7400
  %v7402 = vpop.f32.mrb[0].mxu0
  %v7403 = vadd.f32 0.0, %v7402
  %v7404 = vpop.f32.mrb[0].mxu0
  %v7405 = vpop.f32.mrb[0].mxu0
  %7406 = vdwg.mxu0
  %7407 = vmatprep.subr.bf16.mxu0 %v1648
  %7408 = vmatpush1.bf16.msra.mxu0 %v1647
  %7409 = vmatprep.subr.bf16.mxu0 %v1656
  %7410 = vmatpush1.bf16.msra.mxu0 %v1655
  %7411 = vmatprep.subr.bf16.mxu0 %v1664
  %7412 = vmatpush1.bf16.msra.mxu0 %v1663
  %7413 = vmatprep.subr.bf16.mxu0 %v1672
  %7414 = vmatpush1.bf16.msra.mxu0 %v1671
  %7415 = vmatprep.subr.bf16.mxu0 %v1680
  %7416 = vmatpush1.bf16.msra.mxu0 %v1679
  %7417 = vmatprep.subr.bf16.mxu0 %v1688
  %7418 = vmatpush1.bf16.msra.mxu0 %v1687
  %7419 = vmatprep.subr.bf16.mxu0 %v1696
  %7420 = vmatpush1.bf16.msra.mxu0 %v1695
  %7421 = vmatprep.subr.bf16.mxu0 %v1704
  %7422 = vmatpush1.bf16.msra.mxu0 %v1703
  %7423 = vmatprep.subr.bf16.mxu0 %v1712
  %7424 = vmatpush1.bf16.msra.mxu0 %v1711
  %7425 = vmatprep.subr.bf16.mxu0 %v1720
  %7426 = vmatpush1.bf16.msra.mxu0 %v1719
  %7427 = vmatprep.subr.bf16.mxu0 %v1728
  %7428 = vmatpush1.bf16.msra.mxu0 %v1727
  %7429 = vmatprep.subr.bf16.mxu0 %v1736
  %7430 = vmatpush1.bf16.msra.mxu0 %v1735
  %7431 = vmatprep.subr.bf16.mxu0 %v1744
  %7432 = vmatpush1.bf16.msra.mxu0 %v1743
  %7433 = vmatprep.subr.bf16.mxu0 %v1752
  %7434 = vmatpush1.bf16.msra.mxu0 %v1751
  %7435 = vmatprep.subr.bf16.mxu0 %v1760
  %7436 = vmatpush1.bf16.msra.mxu0 %v1759
  %7437 = vmatprep.subr.bf16.mxu0 %v1768
  %7438 = vmatpush1.bf16.msra.mxu0 %v1767
  %7439 = vmatprep.mubr.bf16.mxu0 %v6983
  %7440 = vmatmul.mubr.bf16.gmra.mrb[0].mxu0 %v6982
  %v7441 = vpop.f32.mrb[0].mxu0
  %v7442 = vadd.f32 0.0, %v7441
  %v7443 = vpop.f32.mrb[0].mxu0
  %v7444 = vadd.f32 0.0, %v7443
  %v7445 = vpop.f32.mrb[0].mxu0
  %v7446 = vpop.f32.mrb[0].mxu0
  %7447 = vdwg.mxu0
  %7448 = vmatprep.subr.bf16.mxu0 %v1650
  %7449 = vmatpush1.bf16.msra.mxu0 %v1649
  %7450 = vmatprep.subr.bf16.mxu0 %v1658
  %7451 = vmatpush1.bf16.msra.mxu0 %v1657
  %7452 = vmatprep.subr.bf16.mxu0 %v1666
  %7453 = vmatpush1.bf16.msra.mxu0 %v1665
  %7454 = vmatprep.subr.bf16.mxu0 %v1674
  %7455 = vmatpush1.bf16.msra.mxu0 %v1673
  %7456 = vmatprep.subr.bf16.mxu0 %v1682
  %7457 = vmatpush1.bf16.msra.mxu0 %v1681
  %7458 = vmatprep.subr.bf16.mxu0 %v1690
  %7459 = vmatpush1.bf16.msra.mxu0 %v1689
  %7460 = vmatprep.subr.bf16.mxu0 %v1698
  %7461 = vmatpush1.bf16.msra.mxu0 %v1697
  %7462 = vmatprep.subr.bf16.mxu0 %v1706
  %7463 = vmatpush1.bf16.msra.mxu0 %v1705
  %7464 = vmatprep.subr.bf16.mxu0 %v1714
  %7465 = vmatpush1.bf16.msra.mxu0 %v1713
  %7466 = vmatprep.subr.bf16.mxu0 %v1722
  %7467 = vmatpush1.bf16.msra.mxu0 %v1721
  %7468 = vmatprep.subr.bf16.mxu0 %v1730
  %7469 = vmatpush1.bf16.msra.mxu0 %v1729
  %7470 = vmatprep.subr.bf16.mxu0 %v1738
  %7471 = vmatpush1.bf16.msra.mxu0 %v1737
  %7472 = vmatprep.subr.bf16.mxu0 %v1746
  %7473 = vmatpush1.bf16.msra.mxu0 %v1745
  %7474 = vmatprep.subr.bf16.mxu0 %v1754
  %7475 = vmatpush1.bf16.msra.mxu0 %v1753
  %7476 = vmatprep.subr.bf16.mxu0 %v1762
  %7477 = vmatpush1.bf16.msra.mxu0 %v1761
  %7478 = vmatprep.subr.bf16.mxu0 %v1770
  %7479 = vmatpush1.bf16.msra.mxu0 %v1769
  %7480 = vmatprep.mubr.bf16.mxu0 %v6983
  %7481 = vmatmul.mubr.bf16.gmra.mrb[0].mxu0 %v6982
  %v7482 = vpop.f32.mrb[0].mxu0
  %v7483 = vadd.f32 0.0, %v7482
  %v7484 = vpop.f32.mrb[0].mxu0
  %v7485 = vadd.f32 0.0, %v7484
  %v7486 = vpop.f32.mrb[0].mxu0
  %v7487 = vpop.f32.mrb[0].mxu0
  %7488 = vdwg.mxu0
  %7489 = vmatprep.subr.bf16.mxu0 %v1652
  %7490 = vmatpush1.bf16.msra.mxu0 %v1651
  %7491 = vmatprep.subr.bf16.mxu0 %v1660
  %7492 = vmatpush1.bf16.msra.mxu0 %v1659
  %7493 = vmatprep.subr.bf16.mxu0 %v1668
  %7494 = vmatpush1.bf16.msra.mxu0 %v1667
  %7495 = vmatprep.subr.bf16.mxu0 %v1676
  %7496 = vmatpush1.bf16.msra.mxu0 %v1675
  %7497 = vmatprep.subr.bf16.mxu0 %v1684
  %7498 = vmatpush1.bf16.msra.mxu0 %v1683
  %7499 = vmatprep.subr.bf16.mxu0 %v1692
  %7500 = vmatpush1.bf16.msra.mxu0 %v1691
  %7501 = vmatprep.subr.bf16.mxu0 %v1700
  %7502 = vmatpush1.bf16.msra.mxu0 %v1699
  %7503 = vmatprep.subr.bf16.mxu0 %v1708
  %7504 = vmatpush1.bf16.msra.mxu0 %v1707
  %7505 = vmatprep.subr.bf16.mxu0 %v1716
  %7506 = vmatpush1.bf16.msra.mxu0 %v1715
  %7507 = vmatprep.subr.bf16.mxu0 %v1724
  %7508 = vmatpush1.bf16.msra.mxu0 %v1723
  %7509 = vmatprep.subr.bf16.mxu0 %v1732
  %7510 = vmatpush1.bf16.msra.mxu0 %v1731
  %7511 = vmatprep.subr.bf16.mxu0 %v1740
  %7512 = vmatpush1.bf16.msra.mxu0 %v1739
  %7513 = vmatprep.subr.bf16.mxu0 %v1748
  %7514 = vmatpush1.bf16.msra.mxu0 %v1747
  %7515 = vmatprep.subr.bf16.mxu0 %v1756
  %7516 = vmatpush1.bf16.msra.mxu0 %v1755
  %7517 = vmatprep.subr.bf16.mxu0 %v1764
  %7518 = vmatpush1.bf16.msra.mxu0 %v1763
  %7519 = vmatprep.subr.bf16.mxu0 %v1772
  %7520 = vmatpush1.bf16.msra.mxu0 %v1771
  %7521 = vmatprep.mubr.bf16.mxu0 %v6983
  %7522 = vmatmul.mubr.bf16.gmra.mrb[0].mxu0 %v6982
  %v7523 = vpop.f32.mrb[0].mxu0
  %v7524 = vadd.f32 0.0, %v7523
  %v7525 = vpop.f32.mrb[0].mxu0
  %v7526 = vadd.f32 0.0, %v7525
  %v7527 = vpop.f32.mrb[0].mxu0
  %v7528 = vpop.f32.mrb[0].mxu0
  %7529 = vdwg.mxu0
  %v7530 = vadd.f32 %v7358, %v7401
  %v7531 = vadd.f32 %v7359, %v7403
  %v7532 = vadd.f32 %v7360, %v7442
  %v7533 = vadd.f32 %v7361, %v7444
  %v7534 = vadd.f32 %v7362, %v7483
  %v7535 = vadd.f32 %v7363, %v7485
  %v7536 = vadd.f32 %v7364, %v7524
  %v7537 = vadd.f32 %v7365, %v7526
  %v7538 = vmul.f32 %v7530, 0.5
  %v7539 = vmul.f32 %v7531, 0.5
  %v7540 = vtanh.pop %v7538
  %v7541 = vtanh.pop %v7539
  %v7542 = vmul.f32 %v7540, 0.5
  %v7543 = vmul.f32 %v7541, 0.5
  %v7544 = vadd.f32 %v7542, 0.5
  %v7545 = vadd.f32 %v7543, 0.5
  %v7546 = vmul.f32 %v7532, 0.5
  %v7547 = vmul.f32 %v7533, 0.5
  %v7548 = vtanh.pop %v7546
  %v7549 = vtanh.pop %v7547
  %v7550 = vmul.f32 %v7548, 0.5
  %v7551 = vmul.f32 %v7549, 0.5
  %v7552 = vadd.f32 %v7550, 0.5
  %v7553 = vadd.f32 %v7551, 0.5
  %v7554 = vtanh.pop %v7534
  %v7555 = vtanh.pop %v7535
  %v7556 = vmul.f32 %v7536, 0.5
  %v7557 = vmul.f32 %v7537, 0.5
  %v7558 = vtanh.pop %v7556
  %v7559 = vtanh.pop %v7557
  %v7560 = vmul.f32 %v7558, 0.5
  %v7561 = vmul.f32 %v7559, 0.5
  %v7562 = vadd.f32 %v7560, 0.5
  %v7563 = vadd.f32 %v7561, 0.5
  %v7564 = vmul.f32 %v7552, %v6976
  %v7565 = vmul.f32 %v7553, %v6977
  %v7566 = vmul.f32 %v7544, %v7554
  %v7567 = vmul.f32 %v7545, %v7555
  %v7568 = vadd.f32 %v7564, %v7566
  %v7569 = vadd.f32 %v7565, %v7567
  %v7570 = vtanh.pop %v7568
  %v7571 = vtanh.pop %v7569
  %v7572 = vmul.f32 %v7562, %v7570
  %v7573 = vmul.f32 %v7563, %v7571
  %v7574 = vpack.c.bf16 %v7572, %v7572
  %v7575 = vpack.c.bf16 %v7573, %v7573
  %7576 = vmatprep.subr.bf16.mxu0 %v2537
  %7577 = vmatpush1.bf16.msra.mxu0 %v2536
  %7578 = vmatprep.subr.bf16.mxu0 %v2545
  %7579 = vmatpush1.bf16.msra.mxu0 %v2544
  %7580 = vmatprep.subr.bf16.mxu0 %v2553
  %7581 = vmatpush1.bf16.msra.mxu0 %v2552
  %7582 = vmatprep.subr.bf16.mxu0 %v2561
  %7583 = vmatpush1.bf16.msra.mxu0 %v2560
  %7584 = vmatprep.subr.bf16.mxu0 %v2569
  %7585 = vmatpush1.bf16.msra.mxu0 %v2568
  %7586 = vmatprep.subr.bf16.mxu0 %v2577
  %7587 = vmatpush1.bf16.msra.mxu0 %v2576
  %7588 = vmatprep.subr.bf16.mxu0 %v2585
  %7589 = vmatpush1.bf16.msra.mxu0 %v2584
  %7590 = vmatprep.subr.bf16.mxu0 %v2593
  %7591 = vmatpush1.bf16.msra.mxu0 %v2592
  %7592 = vmatprep.subr.bf16.mxu0 %v2601
  %7593 = vmatpush1.bf16.msra.mxu0 %v2600
  %7594 = vmatprep.subr.bf16.mxu0 %v2609
  %7595 = vmatpush1.bf16.msra.mxu0 %v2608
  %7596 = vmatprep.subr.bf16.mxu0 %v2617
  %7597 = vmatpush1.bf16.msra.mxu0 %v2616
  %7598 = vmatprep.subr.bf16.mxu0 %v2625
  %7599 = vmatpush1.bf16.msra.mxu0 %v2624
  %7600 = vmatprep.subr.bf16.mxu0 %v2633
  %7601 = vmatpush1.bf16.msra.mxu0 %v2632
  %7602 = vmatprep.subr.bf16.mxu0 %v2641
  %7603 = vmatpush1.bf16.msra.mxu0 %v2640
  %7604 = vmatprep.subr.bf16.mxu0 %v2649
  %7605 = vmatpush1.bf16.msra.mxu0 %v2648
  %7606 = vmatprep.subr.bf16.mxu0 %v2657
  %7607 = vmatpush1.bf16.msra.mxu0 %v2656
  %7608 = vmatprep.mubr.bf16.mxu0 %v7575
  %7609 = vmatmul.mubr.bf16.gmra.mrb[0].mxu0 %v7574
  %v7610 = vpop.f32.mrb[0].mxu0
  %v7611 = vadd.f32 %v2115, %v7610
  %v7612 = vpop.f32.mrb[0].mxu0
  %v7613 = vadd.f32 %v2119, %v7612
  %v7614 = vpop.f32.mrb[0].mxu0
  %v7615 = vpop.f32.mrb[0].mxu0
  %7616 = vdwg.mxu0
  %7617 = vmatprep.subr.bf16.mxu0 %v2539
  %7618 = vmatpush1.bf16.msra.mxu0 %v2538
  %7619 = vmatprep.subr.bf16.mxu0 %v2547
  %7620 = vmatpush1.bf16.msra.mxu0 %v2546
  %7621 = vmatprep.subr.bf16.mxu0 %v2555
  %7622 = vmatpush1.bf16.msra.mxu0 %v2554
  %7623 = vmatprep.subr.bf16.mxu0 %v2563
  %7624 = vmatpush1.bf16.msra.mxu0 %v2562
  %7625 = vmatprep.subr.bf16.mxu0 %v2571
  %7626 = vmatpush1.bf16.msra.mxu0 %v2570
  %7627 = vmatprep.subr.bf16.mxu0 %v2579
  %7628 = vmatpush1.bf16.msra.mxu0 %v2578
  %7629 = vmatprep.subr.bf16.mxu0 %v2587
  %7630 = vmatpush1.bf16.msra.mxu0 %v2586
  %7631 = vmatprep.subr.bf16.mxu0 %v2595
  %7632 = vmatpush1.bf16.msra.mxu0 %v2594
  %7633 = vmatprep.subr.bf16.mxu0 %v2603
  %7634 = vmatpush1.bf16.msra.mxu0 %v2602
  %7635 = vmatprep.subr.bf16.mxu0 %v2611
  %7636 = vmatpush1.bf16.msra.mxu0 %v2610
  %7637 = vmatprep.subr.bf16.mxu0 %v2619
  %7638 = vmatpush1.bf16.msra.mxu0 %v2618
  %7639 = vmatprep.subr.bf16.mxu0 %v2627
  %7640 = vmatpush1.bf16.msra.mxu0 %v2626
  %7641 = vmatprep.subr.bf16.mxu0 %v2635
  %7642 = vmatpush1.bf16.msra.mxu0 %v2634
  %7643 = vmatprep.subr.bf16.mxu0 %v2643
  %7644 = vmatpush1.bf16.msra.mxu0 %v2642
  %7645 = vmatprep.subr.bf16.mxu0 %v2651
  %7646 = vmatpush1.bf16.msra.mxu0 %v2650
  %7647 = vmatprep.subr.bf16.mxu0 %v2659
  %7648 = vmatpush1.bf16.msra.mxu0 %v2658
  %7649 = vmatprep.mubr.bf16.mxu0 %v7575
  %7650 = vmatmul.mubr.bf16.gmra.mrb[0].mxu0 %v7574
  %v7651 = vpop.f32.mrb[0].mxu0
  %v7652 = vadd.f32 %v2123, %v7651
  %v7653 = vpop.f32.mrb[0].mxu0
  %v7654 = vadd.f32 %v2127, %v7653
  %v7655 = vpop.f32.mrb[0].mxu0
  %v7656 = vpop.f32.mrb[0].mxu0
  %7657 = vdwg.mxu0
  %7658 = vmatprep.subr.bf16.mxu0 %v2541
  %7659 = vmatpush1.bf16.msra.mxu0 %v2540
  %7660 = vmatprep.subr.bf16.mxu0 %v2549
  %7661 = vmatpush1.bf16.msra.mxu0 %v2548
  %7662 = vmatprep.subr.bf16.mxu0 %v2557
  %7663 = vmatpush1.bf16.msra.mxu0 %v2556
  %7664 = vmatprep.subr.bf16.mxu0 %v2565
  %7665 = vmatpush1.bf16.msra.mxu0 %v2564
  %7666 = vmatprep.subr.bf16.mxu0 %v2573
  %7667 = vmatpush1.bf16.msra.mxu0 %v2572
  %7668 = vmatprep.subr.bf16.mxu0 %v2581
  %7669 = vmatpush1.bf16.msra.mxu0 %v2580
  %7670 = vmatprep.subr.bf16.mxu0 %v2589
  %7671 = vmatpush1.bf16.msra.mxu0 %v2588
  %7672 = vmatprep.subr.bf16.mxu0 %v2597
  %7673 = vmatpush1.bf16.msra.mxu0 %v2596
  %7674 = vmatprep.subr.bf16.mxu0 %v2605
  %7675 = vmatpush1.bf16.msra.mxu0 %v2604
  %7676 = vmatprep.subr.bf16.mxu0 %v2613
  %7677 = vmatpush1.bf16.msra.mxu0 %v2612
  %7678 = vmatprep.subr.bf16.mxu0 %v2621
  %7679 = vmatpush1.bf16.msra.mxu0 %v2620
  %7680 = vmatprep.subr.bf16.mxu0 %v2629
  %7681 = vmatpush1.bf16.msra.mxu0 %v2628
  %7682 = vmatprep.subr.bf16.mxu0 %v2637
  %7683 = vmatpush1.bf16.msra.mxu0 %v2636
  %7684 = vmatprep.subr.bf16.mxu0 %v2645
  %7685 = vmatpush1.bf16.msra.mxu0 %v2644
  %7686 = vmatprep.subr.bf16.mxu0 %v2653
  %7687 = vmatpush1.bf16.msra.mxu0 %v2652
  %7688 = vmatprep.subr.bf16.mxu0 %v2661
  %7689 = vmatpush1.bf16.msra.mxu0 %v2660
  %7690 = vmatprep.mubr.bf16.mxu0 %v7575
  %7691 = vmatmul.mubr.bf16.gmra.mrb[0].mxu0 %v7574
  %v7692 = vpop.f32.mrb[0].mxu0
  %v7693 = vadd.f32 %v2131, %v7692
  %v7694 = vpop.f32.mrb[0].mxu0
  %v7695 = vadd.f32 %v2135, %v7694
  %v7696 = vpop.f32.mrb[0].mxu0
  %v7697 = vpop.f32.mrb[0].mxu0
  %7698 = vdwg.mxu0
  %7699 = vmatprep.subr.bf16.mxu0 %v2543
  %7700 = vmatpush1.bf16.msra.mxu0 %v2542
  %7701 = vmatprep.subr.bf16.mxu0 %v2551
  %7702 = vmatpush1.bf16.msra.mxu0 %v2550
  %7703 = vmatprep.subr.bf16.mxu0 %v2559
  %7704 = vmatpush1.bf16.msra.mxu0 %v2558
  %7705 = vmatprep.subr.bf16.mxu0 %v2567
  %7706 = vmatpush1.bf16.msra.mxu0 %v2566
  %7707 = vmatprep.subr.bf16.mxu0 %v2575
  %7708 = vmatpush1.bf16.msra.mxu0 %v2574
  %7709 = vmatprep.subr.bf16.mxu0 %v2583
  %7710 = vmatpush1.bf16.msra.mxu0 %v2582
  %7711 = vmatprep.subr.bf16.mxu0 %v2591
  %7712 = vmatpush1.bf16.msra.mxu0 %v2590
  %7713 = vmatprep.subr.bf16.mxu0 %v2599
  %7714 = vmatpush1.bf16.msra.mxu0 %v2598
  %7715 = vmatprep.subr.bf16.mxu0 %v2607
  %7716 = vmatpush1.bf16.msra.mxu0 %v2606
  %7717 = vmatprep.subr.bf16.mxu0 %v2615
  %7718 = vmatpush1.bf16.msra.mxu0 %v2614
  %7719 = vmatprep.subr.bf16.mxu0 %v2623
  %7720 = vmatpush1.bf16.msra.mxu0 %v2622
  %7721 = vmatprep.subr.bf16.mxu0 %v2631
  %7722 = vmatpush1.bf16.msra.mxu0 %v2630
  %7723 = vmatprep.subr.bf16.mxu0 %v2639
  %7724 = vmatpush1.bf16.msra.mxu0 %v2638
  %7725 = vmatprep.subr.bf16.mxu0 %v2647
  %7726 = vmatpush1.bf16.msra.mxu0 %v2646
  %7727 = vmatprep.subr.bf16.mxu0 %v2655
  %7728 = vmatpush1.bf16.msra.mxu0 %v2654
  %7729 = vmatprep.subr.bf16.mxu0 %v2663
  %7730 = vmatpush1.bf16.msra.mxu0 %v2662
  %7731 = vmatprep.mubr.bf16.mxu0 %v7575
  %7732 = vmatmul.mubr.bf16.gmra.mrb[0].mxu0 %v7574
  %v7733 = vpop.f32.mrb[0].mxu0
  %v7734 = vadd.f32 %v2139, %v7733
  %v7735 = vpop.f32.mrb[0].mxu0
  %v7736 = vadd.f32 %v2143, %v7735
  %v7737 = vpop.f32.mrb[0].mxu0
  %v7738 = vpop.f32.mrb[0].mxu0
  %7739 = vdwg.mxu0
  %v7740 = vpack.c.bf16 %v7356, %v7356
  %v7741 = vpack.c.bf16 %v7357, %v7357
  %7742 = vmatprep.subr.bf16.mxu0 %v3343
  %7743 = vmatpush1.bf16.msra.mxu0 %v3342
  %7744 = vmatprep.subr.bf16.mxu0 %v3351
  %7745 = vmatpush1.bf16.msra.mxu0 %v3350
  %7746 = vmatprep.subr.bf16.mxu0 %v3359
  %7747 = vmatpush1.bf16.msra.mxu0 %v3358
  %7748 = vmatprep.subr.bf16.mxu0 %v3367
  %7749 = vmatpush1.bf16.msra.mxu0 %v3366
  %7750 = vmatprep.subr.bf16.mxu0 %v3375
  %7751 = vmatpush1.bf16.msra.mxu0 %v3374
  %7752 = vmatprep.subr.bf16.mxu0 %v3383
  %7753 = vmatpush1.bf16.msra.mxu0 %v3382
  %7754 = vmatprep.subr.bf16.mxu0 %v3391
  %7755 = vmatpush1.bf16.msra.mxu0 %v3390
  %7756 = vmatprep.subr.bf16.mxu0 %v3399
  %7757 = vmatpush1.bf16.msra.mxu0 %v3398
  %7758 = vmatprep.subr.bf16.mxu0 %v3407
  %7759 = vmatpush1.bf16.msra.mxu0 %v3406
  %7760 = vmatprep.subr.bf16.mxu0 %v3415
  %7761 = vmatpush1.bf16.msra.mxu0 %v3414
  %7762 = vmatprep.subr.bf16.mxu0 %v3423
  %7763 = vmatpush1.bf16.msra.mxu0 %v3422
  %7764 = vmatprep.subr.bf16.mxu0 %v3431
  %7765 = vmatpush1.bf16.msra.mxu0 %v3430
  %7766 = vmatprep.subr.bf16.mxu0 %v3439
  %7767 = vmatpush1.bf16.msra.mxu0 %v3438
  %7768 = vmatprep.subr.bf16.mxu0 %v3447
  %7769 = vmatpush1.bf16.msra.mxu0 %v3446
  %7770 = vmatprep.subr.bf16.mxu0 %v3455
  %7771 = vmatpush1.bf16.msra.mxu0 %v3454
  %7772 = vmatprep.subr.bf16.mxu0 %v3463
  %7773 = vmatpush1.bf16.msra.mxu0 %v3462
  %7774 = vmatprep.mubr.bf16.mxu0 %v7741
  %7775 = vmatmul.mubr.bf16.gmra.mrb[0].mxu0 %v7740
  %v7776 = vpop.f32.mrb[0].mxu0
  %v7777 = vadd.f32 0.0, %v7776
  %v7778 = vpop.f32.mrb[0].mxu0
  %v7779 = vadd.f32 0.0, %v7778
  %v7780 = vpop.f32.mrb[0].mxu0
  %v7781 = vpop.f32.mrb[0].mxu0
  %7782 = vdwg.mxu0
  %7783 = vmatprep.subr.bf16.mxu0 %v3345
  %7784 = vmatpush1.bf16.msra.mxu0 %v3344
  %7785 = vmatprep.subr.bf16.mxu0 %v3353
  %7786 = vmatpush1.bf16.msra.mxu0 %v3352
  %7787 = vmatprep.subr.bf16.mxu0 %v3361
  %7788 = vmatpush1.bf16.msra.mxu0 %v3360
  %7789 = vmatprep.subr.bf16.mxu0 %v3369
  %7790 = vmatpush1.bf16.msra.mxu0 %v3368
  %7791 = vmatprep.subr.bf16.mxu0 %v3377
  %7792 = vmatpush1.bf16.msra.mxu0 %v3376
  %7793 = vmatprep.subr.bf16.mxu0 %v3385
  %7794 = vmatpush1.bf16.msra.mxu0 %v3384
  %7795 = vmatprep.subr.bf16.mxu0 %v3393
  %7796 = vmatpush1.bf16.msra.mxu0 %v3392
  %7797 = vmatprep.subr.bf16.mxu0 %v3401
  %7798 = vmatpush1.bf16.msra.mxu0 %v3400
  %7799 = vmatprep.subr.bf16.mxu0 %v3409
  %7800 = vmatpush1.bf16.msra.mxu0 %v3408
  %7801 = vmatprep.subr.bf16.mxu0 %v3417
  %7802 = vmatpush1.bf16.msra.mxu0 %v3416
  %7803 = vmatprep.subr.bf16.mxu0 %v3425
  %7804 = vmatpush1.bf16.msra.mxu0 %v3424
  %7805 = vmatprep.subr.bf16.mxu0 %v3433
  %7806 = vmatpush1.bf16.msra.mxu0 %v3432
  %7807 = vmatprep.subr.bf16.mxu0 %v3441
  %7808 = vmatpush1.bf16.msra.mxu0 %v3440
  %7809 = vmatprep.subr.bf16.mxu0 %v3449
  %7810 = vmatpush1.bf16.msra.mxu0 %v3448
  %7811 = vmatprep.subr.bf16.mxu0 %v3457
  %7812 = vmatpush1.bf16.msra.mxu0 %v3456
  %7813 = vmatprep.subr.bf16.mxu0 %v3465
  %7814 = vmatpush1.bf16.msra.mxu0 %v3464
  %7815 = vmatprep.mubr.bf16.mxu0 %v7741
  %7816 = vmatmul.mubr.bf16.gmra.mrb[0].mxu0 %v7740
  %v7817 = vpop.f32.mrb[0].mxu0
  %v7818 = vadd.f32 0.0, %v7817
  %v7819 = vpop.f32.mrb[0].mxu0
  %v7820 = vadd.f32 0.0, %v7819
  %v7821 = vpop.f32.mrb[0].mxu0
  %v7822 = vpop.f32.mrb[0].mxu0
  %7823 = vdwg.mxu0
  %7824 = vmatprep.subr.bf16.mxu0 %v3347
  %7825 = vmatpush1.bf16.msra.mxu0 %v3346
  %7826 = vmatprep.subr.bf16.mxu0 %v3355
  %7827 = vmatpush1.bf16.msra.mxu0 %v3354
  %7828 = vmatprep.subr.bf16.mxu0 %v3363
  %7829 = vmatpush1.bf16.msra.mxu0 %v3362
  %7830 = vmatprep.subr.bf16.mxu0 %v3371
  %7831 = vmatpush1.bf16.msra.mxu0 %v3370
  %7832 = vmatprep.subr.bf16.mxu0 %v3379
  %7833 = vmatpush1.bf16.msra.mxu0 %v3378
  %7834 = vmatprep.subr.bf16.mxu0 %v3387
  %7835 = vmatpush1.bf16.msra.mxu0 %v3386
  %7836 = vmatprep.subr.bf16.mxu0 %v3395
  %7837 = vmatpush1.bf16.msra.mxu0 %v3394
  %7838 = vmatprep.subr.bf16.mxu0 %v3403
  %7839 = vmatpush1.bf16.msra.mxu0 %v3402
  %7840 = vmatprep.subr.bf16.mxu0 %v3411
  %7841 = vmatpush1.bf16.msra.mxu0 %v3410
  %7842 = vmatprep.subr.bf16.mxu0 %v3419
  %7843 = vmatpush1.bf16.msra.mxu0 %v3418
  %7844 = vmatprep.subr.bf16.mxu0 %v3427
  %7845 = vmatpush1.bf16.msra.mxu0 %v3426
  %7846 = vmatprep.subr.bf16.mxu0 %v3435
  %7847 = vmatpush1.bf16.msra.mxu0 %v3434
  %7848 = vmatprep.subr.bf16.mxu0 %v3443
  %7849 = vmatpush1.bf16.msra.mxu0 %v3442
  %7850 = vmatprep.subr.bf16.mxu0 %v3451
  %7851 = vmatpush1.bf16.msra.mxu0 %v3450
  %7852 = vmatprep.subr.bf16.mxu0 %v3459
  %7853 = vmatpush1.bf16.msra.mxu0 %v3458
  %7854 = vmatprep.subr.bf16.mxu0 %v3467
  %7855 = vmatpush1.bf16.msra.mxu0 %v3466
  %7856 = vmatprep.mubr.bf16.mxu0 %v7741
  %7857 = vmatmul.mubr.bf16.gmra.mrb[0].mxu0 %v7740
  %v7858 = vpop.f32.mrb[0].mxu0
  %v7859 = vadd.f32 0.0, %v7858
  %v7860 = vpop.f32.mrb[0].mxu0
  %v7861 = vadd.f32 0.0, %v7860
  %v7862 = vpop.f32.mrb[0].mxu0
  %v7863 = vpop.f32.mrb[0].mxu0
  %7864 = vdwg.mxu0
  %7865 = vmatprep.subr.bf16.mxu0 %v3349
  %7866 = vmatpush1.bf16.msra.mxu0 %v3348
  %7867 = vmatprep.subr.bf16.mxu0 %v3357
  %7868 = vmatpush1.bf16.msra.mxu0 %v3356
  %7869 = vmatprep.subr.bf16.mxu0 %v3365
  %7870 = vmatpush1.bf16.msra.mxu0 %v3364
  %7871 = vmatprep.subr.bf16.mxu0 %v3373
  %7872 = vmatpush1.bf16.msra.mxu0 %v3372
  %7873 = vmatprep.subr.bf16.mxu0 %v3381
  %7874 = vmatpush1.bf16.msra.mxu0 %v3380
  %7875 = vmatprep.subr.bf16.mxu0 %v3389
  %7876 = vmatpush1.bf16.msra.mxu0 %v3388
  %7877 = vmatprep.subr.bf16.mxu0 %v3397
  %7878 = vmatpush1.bf16.msra.mxu0 %v3396
  %7879 = vmatprep.subr.bf16.mxu0 %v3405
  %7880 = vmatpush1.bf16.msra.mxu0 %v3404
  %7881 = vmatprep.subr.bf16.mxu0 %v3413
  %7882 = vmatpush1.bf16.msra.mxu0 %v3412
  %7883 = vmatprep.subr.bf16.mxu0 %v3421
  %7884 = vmatpush1.bf16.msra.mxu0 %v3420
  %7885 = vmatprep.subr.bf16.mxu0 %v3429
  %7886 = vmatpush1.bf16.msra.mxu0 %v3428
  %7887 = vmatprep.subr.bf16.mxu0 %v3437
  %7888 = vmatpush1.bf16.msra.mxu0 %v3436
  %7889 = vmatprep.subr.bf16.mxu0 %v3445
  %7890 = vmatpush1.bf16.msra.mxu0 %v3444
  %7891 = vmatprep.subr.bf16.mxu0 %v3453
  %7892 = vmatpush1.bf16.msra.mxu0 %v3452
  %7893 = vmatprep.subr.bf16.mxu0 %v3461
  %7894 = vmatpush1.bf16.msra.mxu0 %v3460
  %7895 = vmatprep.subr.bf16.mxu0 %v3469
  %7896 = vmatpush1.bf16.msra.mxu0 %v3468
  %7897 = vmatprep.mubr.bf16.mxu0 %v7741
  %7898 = vmatmul.mubr.bf16.gmra.mrb[0].mxu0 %v7740
  %v7899 = vpop.f32.mrb[0].mxu0
  %v7900 = vadd.f32 0.0, %v7899
  %v7901 = vpop.f32.mrb[0].mxu0
  %v7902 = vadd.f32 0.0, %v7901
  %v7903 = vpop.f32.mrb[0].mxu0
  %v7904 = vpop.f32.mrb[0].mxu0
  %7905 = vdwg.mxu0
  %v7906 = vadd.f32 %v7611, %v7777
  %v7907 = vadd.f32 %v7613, %v7779
  %v7908 = vadd.f32 %v7652, %v7818
  %v7909 = vadd.f32 %v7654, %v7820
  %v7910 = vadd.f32 %v7693, %v7859
  %v7911 = vadd.f32 %v7695, %v7861
  %v7912 = vadd.f32 %v7734, %v7900
  %v7913 = vadd.f32 %v7736, %v7902
  %v7914 = vmul.f32 %v7906, 0.5
  %v7915 = vmul.f32 %v7907, 0.5
  %v7916 = vtanh.pop %v7914
  %v7917 = vtanh.pop %v7915
  %v7918 = vmul.f32 %v7916, 0.5
  %v7919 = vmul.f32 %v7917, 0.5
  %v7920 = vadd.f32 %v7918, 0.5
  %v7921 = vadd.f32 %v7919, 0.5
  %v7922 = vmul.f32 %v7908, 0.5
  %v7923 = vmul.f32 %v7909, 0.5
  %v7924 = vtanh.pop %v7922
  %v7925 = vtanh.pop %v7923
  %v7926 = vmul.f32 %v7924, 0.5
  %v7927 = vmul.f32 %v7925, 0.5
  %v7928 = vadd.f32 %v7926, 0.5
  %v7929 = vadd.f32 %v7927, 0.5
  %v7930 = vtanh.pop %v7910
  %v7931 = vtanh.pop %v7911
  %v7932 = vmul.f32 %v7912, 0.5
  %v7933 = vmul.f32 %v7913, 0.5
  %v7934 = vtanh.pop %v7932
  %v7935 = vtanh.pop %v7933
  %v7936 = vmul.f32 %v7934, 0.5
  %v7937 = vmul.f32 %v7935, 0.5
  %v7938 = vadd.f32 %v7936, 0.5
  %v7939 = vadd.f32 %v7937, 0.5
  %v7940 = vmul.f32 %v7928, %v7352
  %v7941 = vmul.f32 %v7929, %v7353
  %v7942 = vmul.f32 %v7920, %v7930
  %v7943 = vmul.f32 %v7921, %v7931
  %v7944 = vadd.f32 %v7940, %v7942
  %v7945 = vadd.f32 %v7941, %v7943
  %v7946 = vtanh.pop %v7944
  %v7947 = vtanh.pop %v7945
  %v7948 = vmul.f32 %v7938, %v7946
  %v7949 = vmul.f32 %v7939, %v7947
  %7950 = vst [vmem:[%s12] sm:$0xff] %v7572
  %7951 = vst [vmem:[%s12 + $0x8] sm:$0xff] %v7573
  %7952 = vst [vmem:[%s13] sm:$0xff] %v7568
  %7953 = vst [vmem:[%s13 + $0x8] sm:$0xff] %v7569
  %s7954 = scalar_lea.vmem %s12, 16
  %7955 = vst [vmem:[%s7954] sm:$0xff] %v7948
  %7956 = vst [vmem:[%s7954 + $0x8] sm:$0xff] %v7949
  %s7957 = scalar_lea.vmem %s13, 16
  %7958 = vst [vmem:[%s7957] sm:$0xff] %v7944
  %7959 = vst [vmem:[%s7957 + $0x8] sm:$0xff] %v7945
  %v7960 = vpack.c.bf16 %v7948, %v7948
  %v7961 = vpack.c.bf16 %v7949, %v7949
  %v7962 = vld [vmem:[%s7] sm:$0xff]
  %v7963 = vld [vmem:[%s7 + $0x8] sm:$0xf]
  %v7964 = vld [vmem:[%s7 + $0xc] sm:$0xff]
  %v7965 = vld [vmem:[%s7 + $0x14] sm:$0xf]
  %v7966 = vld [vmem:[%s7 + $0x18] sm:$0xff]
  %v7967 = vld [vmem:[%s7 + $0x20] sm:$0xf]
  %v7968 = vld [vmem:[%s7 + $0x24] sm:$0xff]
  %v7969 = vld [vmem:[%s7 + $0x2c] sm:$0xf]
  %v7970 = vld [vmem:[%s7 + $0x30] sm:$0xff]
  %v7971 = vld [vmem:[%s7 + $0x38] sm:$0xf]
  %v7972 = vld [vmem:[%s7 + $0x3c] sm:$0xff]
  %v7973 = vld [vmem:[%s7 + $0x44] sm:$0xf]
  %v7974 = vld [vmem:[%s7 + $0x48] sm:$0xff]
  %v7975 = vld [vmem:[%s7 + $0x50] sm:$0xf]
  %v7976 = vld [vmem:[%s7 + $0x54] sm:$0xff]
  %v7977 = vld [vmem:[%s7 + $0x5c] sm:$0xf]
  %v7978 = vld [vmem:[%s7 + $0x60] sm:$0xff]
  %v7979 = vld [vmem:[%s7 + $0x68] sm:$0xf]
  %v7980 = vld [vmem:[%s7 + $0x6c] sm:$0xff]
  %v7981 = vld [vmem:[%s7 + $0x74] sm:$0xf]
  %v7982 = vld [vmem:[%s7 + $0x78] sm:$0xff]
  %v7983 = vld [vmem:[%s7 + $0x80] sm:$0xf]
  %v7984 = vld [vmem:[%s7 + $0x84] sm:$0xff]
  %v7985 = vld [vmem:[%s7 + $0x8c] sm:$0xf]
  %v7986 = vld [vmem:[%s7 + $0x90] sm:$0xff]
  %v7987 = vld [vmem:[%s7 + $0x98] sm:$0xf]
  %v7988 = vld [vmem:[%s7 + $0x9c] sm:$0xff]
  %v7989 = vld [vmem:[%s7 + $0xa4] sm:$0xf]
  %v7990 = vld [vmem:[%s7 + $0xa8] sm:$0xff]
  %v7991 = vld [vmem:[%s7 + $0xb0] sm:$0xf]
  %v7992 = vld [vmem:[%s7 + $0xb4] sm:$0xff]
  %v7993 = vld [vmem:[%s7 + $0xbc] sm:$0xf]
  %v7994 = vld [vmem:[%s7 + $0xc0] sm:$0xff]
  %v7995 = vld [vmem:[%s7 + $0xc8] sm:$0xf]
  %v7996 = vld [vmem:[%s7 + $0xcc] sm:$0xff]
  %v7997 = vld [vmem:[%s7 + $0xd4] sm:$0xf]
  %v7998 = vld [vmem:[%s7 + $0xd8] sm:$0xff]
  %v7999 = vld [vmem:[%s7 + $0xe0] sm:$0xf]
  %v8000 = vld [vmem:[%s7 + $0xe4] sm:$0xff]
  %v8001 = vld [vmem:[%s7 + $0xec] sm:$0xf]
  %v8002 = vld [vmem:[%s7 + $0xf0] sm:$0xff]
  %v8003 = vld [vmem:[%s7 + $0xf8] sm:$0xf]
  %v8004 = vld [vmem:[%s7 + $0xfc] sm:$0xff]
  %v8005 = vld [vmem:[%s7 + $0x104] sm:$0xf]
  %v8006 = vld [vmem:[%s7 + $0x108] sm:$0xff]
  %v8007 = vld [vmem:[%s7 + $0x110] sm:$0xf]
  %v8008 = vld [vmem:[%s7 + $0x114] sm:$0xff]
  %v8009 = vld [vmem:[%s7 + $0x11c] sm:$0xf]
  %v8010 = vld [vmem:[%s7 + $0x120] sm:$0xff]
  %v8011 = vld [vmem:[%s7 + $0x128] sm:$0xf]
  %v8012 = vld [vmem:[%s7 + $0x12c] sm:$0xff]
  %v8013 = vld [vmem:[%s7 + $0x134] sm:$0xf]
  %v8014 = vld [vmem:[%s7 + $0x138] sm:$0xff]
  %v8015 = vld [vmem:[%s7 + $0x140] sm:$0xf]
  %v8016 = vld [vmem:[%s7 + $0x144] sm:$0xff]
  %v8017 = vld [vmem:[%s7 + $0x14c] sm:$0xf]
  %v8018 = vld [vmem:[%s7 + $0x150] sm:$0xff]
  %v8019 = vld [vmem:[%s7 + $0x158] sm:$0xf]
  %v8020 = vld [vmem:[%s7 + $0x15c] sm:$0xff]
  %v8021 = vld [vmem:[%s7 + $0x164] sm:$0xf]
  %v8022 = vld [vmem:[%s7 + $0x168] sm:$0xff]
  %v8023 = vld [vmem:[%s7 + $0x170] sm:$0xf]
  %v8024 = vld [vmem:[%s7 + $0x174] sm:$0xff]
  %v8025 = vld [vmem:[%s7 + $0x17c] sm:$0xf]
  %v8026 = vld [vmem:[%s8] sm:$0x7]
  %v8028 = vlaneseq
  %v8029 = vshrl.u32 %v8028, 7
  %v8030 = vsub.s32 0, %v8029
  %v8031 = vrot.slane %v8026, %v8030
  %v8032 = vlaneseq
  %v8033 = vshrl.u32 %v8032, 7
  %v8034 = vsub.s32 1, %v8033
  %v8035 = vrot.slane %v8026, %v8034
  %v8036 = vlaneseq
  %v8037 = vshrl.u32 %v8036, 7
  %v8038 = vsub.s32 2, %v8037
  %v8039 = vrot.slane %v8026, %v8038
  %v8107 = vunpack.c.l.b16 %v7962
  %v8108 = vunpack.c.h.b16 %v7962
  %v8109 = vunpack.c.l.b16 %v7963
  %v8110 = vunpack.c.l.b16 %v7964
  %v8111 = vunpack.c.h.b16 %v7964
  %v8112 = vunpack.c.l.b16 %v7965
  %v8113 = vunpack.c.l.b16 %v7966
  %v8114 = vunpack.c.h.b16 %v7966
  %v8115 = vunpack.c.l.b16 %v7967
  %v8116 = vunpack.c.l.b16 %v7968
  %v8117 = vunpack.c.h.b16 %v7968
  %v8118 = vunpack.c.l.b16 %v7969
  %v8119 = vunpack.c.l.b16 %v7970
  %v8120 = vunpack.c.h.b16 %v7970
  %v8121 = vunpack.c.l.b16 %v7971
  %v8122 = vunpack.c.l.b16 %v7972
  %v8123 = vunpack.c.h.b16 %v7972
  %v8124 = vunpack.c.l.b16 %v7973
  %v8125 = vunpack.c.l.b16 %v7974
  %v8126 = vunpack.c.h.b16 %v7974
  %v8127 = vunpack.c.l.b16 %v7975
  %v8128 = vunpack.c.l.b16 %v7976
  %v8129 = vunpack.c.h.b16 %v7976
  %v8130 = vunpack.c.l.b16 %v7977
  %v8131 = vunpack.c.l.b16 %v7978
  %v8132 = vunpack.c.h.b16 %v7978
  %v8133 = vunpack.c.l.b16 %v7979
  %v8134 = vunpack.c.l.b16 %v7980
  %v8135 = vunpack.c.h.b16 %v7980
  %v8136 = vunpack.c.l.b16 %v7981
  %v8137 = vunpack.c.l.b16 %v7982
  %v8138 = vunpack.c.h.b16 %v7982
  %v8139 = vunpack.c.l.b16 %v7983
  %v8140 = vunpack.c.l.b16 %v7984
  %v8141 = vunpack.c.h.b16 %v7984
  %v8142 = vunpack.c.l.b16 %v7985
  %v8143 = vunpack.c.l.b16 %v7986
  %v8144 = vunpack.c.h.b16 %v7986
  %v8145 = vunpack.c.l.b16 %v7987
  %v8146 = vunpack.c.l.b16 %v7988
  %v8147 = vunpack.c.h.b16 %v7988
  %v8148 = vunpack.c.l.b16 %v7989
  %v8149 = vunpack.c.l.b16 %v7990
  %v8150 = vunpack.c.h.b16 %v7990
  %v8151 = vunpack.c.l.b16 %v7991
  %v8152 = vunpack.c.l.b16 %v7992
  %v8153 = vunpack.c.h.b16 %v7992
  %v8154 = vunpack.c.l.b16 %v7993
  %v8155 = vunpack.c.l.b16 %v7994
  %v8156 = vunpack.c.h.b16 %v7994
  %v8157 = vunpack.c.l.b16 %v7995
  %v8158 = vunpack.c.l.b16 %v7996
  %v8159 = vunpack.c.h.b16 %v7996
  %v8160 = vunpack.c.l.b16 %v7997
  %v8161 = vunpack.c.l.b16 %v7998
  %v8162 = vunpack.c.h.b16 %v7998
  %v8163 = vunpack.c.l.b16 %v7999
  %v8164 = vunpack.c.l.b16 %v8000
  %v8165 = vunpack.c.h.b16 %v8000
  %v8166 = vunpack.c.l.b16 %v8001
  %v8167 = vunpack.c.l.b16 %v8002
  %v8168 = vunpack.c.h.b16 %v8002
  %v8169 = vunpack.c.l.b16 %v8003
  %v8170 = vunpack.c.l.b16 %v8004
  %v8171 = vunpack.c.h.b16 %v8004
  %v8172 = vunpack.c.l.b16 %v8005
  %v8173 = vunpack.c.l.b16 %v8006
  %v8174 = vunpack.c.h.b16 %v8006
  %v8175 = vunpack.c.l.b16 %v8007
  %v8176 = vunpack.c.l.b16 %v8008
  %v8177 = vunpack.c.h.b16 %v8008
  %v8178 = vunpack.c.l.b16 %v8009
  %v8179 = vunpack.c.l.b16 %v8010
  %v8180 = vunpack.c.h.b16 %v8010
  %v8181 = vunpack.c.l.b16 %v8011
  %v8182 = vunpack.c.l.b16 %v8012
  %v8183 = vunpack.c.h.b16 %v8012
  %v8184 = vunpack.c.l.b16 %v8013
  %v8185 = vunpack.c.l.b16 %v8014
  %v8186 = vunpack.c.h.b16 %v8014
  %v8187 = vunpack.c.l.b16 %v8015
  %v8188 = vunpack.c.l.b16 %v8016
  %v8189 = vunpack.c.h.b16 %v8016
  %v8190 = vunpack.c.l.b16 %v8017
  %v8191 = vunpack.c.l.b16 %v8018
  %v8192 = vunpack.c.h.b16 %v8018
  %v8193 = vunpack.c.l.b16 %v8019
  %v8194 = vunpack.c.l.b16 %v8020
  %v8195 = vunpack.c.h.b16 %v8020
  %v8196 = vunpack.c.l.b16 %v8021
  %v8197 = vunpack.c.l.b16 %v8022
  %v8198 = vunpack.c.h.b16 %v8022
  %v8199 = vunpack.c.l.b16 %v8023
  %v8200 = vunpack.c.l.b16 %v8024
  %v8201 = vunpack.c.h.b16 %v8024
  %v8202 = vunpack.c.l.b16 %v8025
  %v8203 = vpack.c.b16 %v8110, %v8107
  %v8204 = vpack.c.b16 %v8111, %v8108
  %v8205 = vpack.c.b16 %v8112, %v8109
  %v8206 = vpack.c.b16 %v8116, %v8113
  %v8207 = vpack.c.b16 %v8117, %v8114
  %v8208 = vpack.c.b16 %v8118, %v8115
  %v8209 = vpack.c.b16 %v8122, %v8119
  %v8210 = vpack.c.b16 %v8123, %v8120
  %v8211 = vpack.c.b16 %v8124, %v8121
  %v8212 = vpack.c.b16 %v8128, %v8125
  %v8213 = vpack.c.b16 %v8129, %v8126
  %v8214 = vpack.c.b16 %v8130, %v8127
  %v8215 = vpack.c.b16 %v8134, %v8131
  %v8216 = vpack.c.b16 %v8135, %v8132
  %v8217 = vpack.c.b16 %v8136, %v8133
  %v8218 = vpack.c.b16 %v8140, %v8137
  %v8219 = vpack.c.b16 %v8141, %v8138
  %v8220 = vpack.c.b16 %v8142, %v8139
  %v8221 = vpack.c.b16 %v8146, %v8143
  %v8222 = vpack.c.b16 %v8147, %v8144
  %v8223 = vpack.c.b16 %v8148, %v8145
  %v8224 = vpack.c.b16 %v8152, %v8149
  %v8225 = vpack.c.b16 %v8153, %v8150
  %v8226 = vpack.c.b16 %v8154, %v8151
  %v8227 = vpack.c.b16 %v8158, %v8155
  %v8228 = vpack.c.b16 %v8159, %v8156
  %v8229 = vpack.c.b16 %v8160, %v8157
  %v8230 = vpack.c.b16 %v8164, %v8161
  %v8231 = vpack.c.b16 %v8165, %v8162
  %v8232 = vpack.c.b16 %v8166, %v8163
  %v8233 = vpack.c.b16 %v8170, %v8167
  %v8234 = vpack.c.b16 %v8171, %v8168
  %v8235 = vpack.c.b16 %v8172, %v8169
  %v8236 = vpack.c.b16 %v8176, %v8173
  %v8237 = vpack.c.b16 %v8177, %v8174
  %v8238 = vpack.c.b16 %v8178, %v8175
  %v8239 = vpack.c.b16 %v8182, %v8179
  %v8240 = vpack.c.b16 %v8183, %v8180
  %v8241 = vpack.c.b16 %v8184, %v8181
  %v8242 = vpack.c.b16 %v8188, %v8185
  %v8243 = vpack.c.b16 %v8189, %v8186
  %v8244 = vpack.c.b16 %v8190, %v8187
  %v8245 = vpack.c.b16 %v8194, %v8191
  %v8246 = vpack.c.b16 %v8195, %v8192
  %v8247 = vpack.c.b16 %v8196, %v8193
  %v8248 = vpack.c.b16 %v8200, %v8197
  %v8249 = vpack.c.b16 %v8201, %v8198
  %v8250 = vpack.c.b16 %v8202, %v8199
  %8299 = vmatprep.subr.bf16.mxu0 %v8204
  %8300 = vmatpush1.bf16.msra.mxu0 %v8203
  %8301 = vmatprep.subr.bf16.mxu0 %v8207
  %8302 = vmatpush1.bf16.msra.mxu0 %v8206
  %8303 = vmatprep.subr.bf16.mxu0 %v8210
  %8304 = vmatpush1.bf16.msra.mxu0 %v8209
  %8305 = vmatprep.subr.bf16.mxu0 %v8213
  %8306 = vmatpush1.bf16.msra.mxu0 %v8212
  %8307 = vmatprep.subr.bf16.mxu0 %v8216
  %8308 = vmatpush1.bf16.msra.mxu0 %v8215
  %8309 = vmatprep.subr.bf16.mxu0 %v8219
  %8310 = vmatpush1.bf16.msra.mxu0 %v8218
  %8311 = vmatprep.subr.bf16.mxu0 %v8222
  %8312 = vmatpush1.bf16.msra.mxu0 %v8221
  %8313 = vmatprep.subr.bf16.mxu0 %v8225
  %8314 = vmatpush1.bf16.msra.mxu0 %v8224
  %8315 = vmatprep.subr.bf16.mxu0 %v8228
  %8316 = vmatpush1.bf16.msra.mxu0 %v8227
  %8317 = vmatprep.subr.bf16.mxu0 %v8231
  %8318 = vmatpush1.bf16.msra.mxu0 %v8230
  %8319 = vmatprep.subr.bf16.mxu0 %v8234
  %8320 = vmatpush1.bf16.msra.mxu0 %v8233
  %8321 = vmatprep.subr.bf16.mxu0 %v8237
  %8322 = vmatpush1.bf16.msra.mxu0 %v8236
  %8323 = vmatprep.subr.bf16.mxu0 %v8240
  %8324 = vmatpush1.bf16.msra.mxu0 %v8239
  %8325 = vmatprep.subr.bf16.mxu0 %v8243
  %8326 = vmatpush1.bf16.msra.mxu0 %v8242
  %8327 = vmatprep.subr.bf16.mxu0 %v8246
  %8328 = vmatpush1.bf16.msra.mxu0 %v8245
  %8329 = vmatprep.subr.bf16.mxu0 %v8249
  %8330 = vmatpush1.bf16.msra.mxu0 %v8248
  %8331 = vmatprep.mubr.bf16.mxu0 %v7961
  %8332 = vmatmul.mubr.bf16.gmra.mrb[0].mxu0 %v7960
  %v8333 = vpop.f32.mrb[0].mxu0
  %v8334 = vadd.f32 %v8031, %v8333
  %v8335 = vpop.f32.mrb[0].mxu0
  %v8336 = vadd.f32 %v8035, %v8335
  %v8337 = vpop.f32.mrb[0].mxu0
  %v8338 = vpop.f32.mrb[0].mxu0
  %8339 = vdwg.mxu0
  %8340 = vmatprep.subr.bf16.mxu0 0
  %8341 = vmatpush1.bf16.msra.mxu0 %v8205
  %8342 = vmatprep.subr.bf16.mxu0 0
  %8343 = vmatpush1.bf16.msra.mxu0 %v8208
  %8344 = vmatprep.subr.bf16.mxu0 0
  %8345 = vmatpush1.bf16.msra.mxu0 %v8211
  %8346 = vmatprep.subr.bf16.mxu0 0
  %8347 = vmatpush1.bf16.msra.mxu0 %v8214
  %8348 = vmatprep.subr.bf16.mxu0 0
  %8349 = vmatpush1.bf16.msra.mxu0 %v8217
  %8350 = vmatprep.subr.bf16.mxu0 0
  %8351 = vmatpush1.bf16.msra.mxu0 %v8220
  %8352 = vmatprep.subr.bf16.mxu0 0
  %8353 = vmatpush1.bf16.msra.mxu0 %v8223
  %8354 = vmatprep.subr.bf16.mxu0 0
  %8355 = vmatpush1.bf16.msra.mxu0 %v8226
  %8356 = vmatprep.subr.bf16.mxu0 0
  %8357 = vmatpush1.bf16.msra.mxu0 %v8229
  %8358 = vmatprep.subr.bf16.mxu0 0
  %8359 = vmatpush1.bf16.msra.mxu0 %v8232
  %8360 = vmatprep.subr.bf16.mxu0 0
  %8361 = vmatpush1.bf16.msra.mxu0 %v8235
  %8362 = vmatprep.subr.bf16.mxu0 0
  %8363 = vmatpush1.bf16.msra.mxu0 %v8238
  %8364 = vmatprep.subr.bf16.mxu0 0
  %8365 = vmatpush1.bf16.msra.mxu0 %v8241
  %8366 = vmatprep.subr.bf16.mxu0 0
  %8367 = vmatpush1.bf16.msra.mxu0 %v8244
  %8368 = vmatprep.subr.bf16.mxu0 0
  %8369 = vmatpush1.bf16.msra.mxu0 %v8247
  %8370 = vmatprep.subr.bf16.mxu0 0
  %8371 = vmatpush1.bf16.msra.mxu0 %v8250
  %8372 = vmatprep.mubr.bf16.mxu0 %v7961
  %8373 = vmatmul.mubr.bf16.gmra.mrb[0].mxu0 %v7960
  %v8374 = vpop.f32.mrb[0].mxu0
  %v8375 = vadd.f32 %v8039, %v8374
  %v8376 = vpop.f32.mrb[0].mxu0
  %v8377 = vpop.f32.mrb[0].mxu0
  %v8378 = vpop.f32.mrb[0].mxu0
  %8379 = vdwg.mxu0
  %8380 = vst [vmem:[%s11] sm:$0xff] %v8334
  %8381 = vst [vmem:[%s11 + $0x8] sm:$0xff] %v8336
  %8382 = vst [vmem:[%s11 + $0x10] sm:$0xff] %v8375
  // Predicated region
  $region46: #{_forward_impl.1} parent=0 // pred_check
    _
  $region47: #{_forward_impl.1} parent=0 // pred_check_branch
    %8384 = sbr.rel (0) target = $region49
  $region48: #{_forward_impl.1} parent=0 // pred_region
    _
  $region49: #{_forward_impl.1} parent=0 // pred_fallthru
    _
  // Predicated region
  $region50: #{_forward_impl.1} parent=0 // pred_check
    _
  $region51: #{_forward_impl.1} parent=0 // pred_check_branch
    %8386 = sbr.rel (0) target = $region53
  $region52: #{_forward_impl.1} parent=0 // pred_region
    _
  $region53: #{_forward_impl.1} parent=0 // pred_fallthru
    _
  // Predicated region
  $region54: #{_forward_impl.1} parent=0 // pred_check
    _
  $region55: #{_forward_impl.1} parent=0 // pred_check_branch
    %8388 = sbr.rel (0) target = $region57
  $region56: #{_forward_impl.1} parent=0 // pred_region
    _
  $region57: #{_forward_impl.1} parent=0 // pred_fallthru
    _
  // Predicated region
  $region58: #{_forward_impl.1} parent=0 // pred_check
    _
  $region59: #{_forward_impl.1} parent=0 // pred_check_branch
    %8390 = sbr.rel (0) target = $region61
  $region60: #{_forward_impl.1} parent=0 // pred_region
    _
  $region61: #{_forward_impl.1} parent=0 // pred_fallthru
    _
  // Predicated region
  $region62: #{_forward_impl.1} parent=0 // pred_check
    _
  $region63: #{_forward_impl.1} parent=0 // pred_check_branch
    %8392 = sbr.rel (0) target = $region65
  $region64: #{_forward_impl.1} parent=0 // pred_region
    _
  $region65: #{_forward_impl.1} parent=0 // pred_fallthru
    _
  // Predicated region
  $region66: #{_forward_impl.1} parent=0 // pred_check
    _
  $region67: #{_forward_impl.1} parent=0 // pred_check_branch
    %8394 = sbr.rel (0) target = $region69
  $region68: #{_forward_impl.1} parent=0 // pred_region
    _
  $region69: #{_forward_impl.1} parent=0 // pred_fallthru
    _

</llo_original>
